<compile_context>
chip_gen: v6e
topology: v6e:2x2x1
jax: 0.10.0
libtpu: 0.0.40
codegen_flags: <defaults>
</compile_context>

<pallas_src>
import functools

import jax
import jax.numpy as jnp
from jax.experimental import pallas as pl
from jax.experimental.pallas import tpu as pltpu

FEAT_C = 3712          # regnety_32gf feature channels (Linear in_features)
NUM_CLASSES = 10       # classification_head out_features
N_PAD = 128            # lane-dense padded output width


# ----------------------------------------------------------------------------
# Fused kernel: stem (1x1 conv + bias + ReLU)  ->  global average pool
#               ->  Linear(3712, 10) (padded to 128 lanes)
# Grid: (B, num_hw_tiles).  The hw axis is a reduction into a VMEM accumulator.
# ----------------------------------------------------------------------------
def _fused_kernel(x_ref, sw_ref, sb_ref, hw_w_ref, hb_ref, o_ref, acc_ref,
                  *, hw, tile_hw, cin, inv_hw):
    h = pl.program_id(1)

    @pl.when(h == 0)
    def _():
        acc_ref[...] = jnp.zeros_like(acc_ref)

    x = x_ref[0]                      # (tile_hw, Cin)   channels-last
    w = sw_ref[...]                   # (Cin, FEAT_C)
    # Stem as VPU broadcast-FMAs (K=Cin is tiny; avoid the lane-sparse MXU op).
    y = jnp.broadcast_to(sb_ref[...], (tile_hw, FEAT_C))
    for c in range(cin):              # static unrolled loop (Cin is small)
        y = y + x[:, c:c + 1] * w[c:c + 1, :]
    y = jnp.maximum(y, 0.0)           # ReLU

    # Mask out padded pixels of the last tile (only emitted when needed).
    if hw % tile_hw != 0:
        row = jax.lax.broadcasted_iota(jnp.int32, (tile_hw, 1), 0) + h * tile_hw
        y = jnp.where(row < hw, y, 0.0)

    # Partial spatial sum for this pixel tile -> accumulate.
    acc_ref[...] += jnp.sum(y, axis=0, keepdims=True)        # (1, FEAT_C)

    @pl.when(h == pl.num_programs(1) - 1)
    def _():
        pooled = acc_ref[...] * inv_hw                        # (1, FEAT_C)
        logits = jnp.dot(pooled, hw_w_ref[...],
                         preferred_element_type=jnp.float32) + hb_ref[...]
        # (1, N_PAD) -> lane-dense store into this batch's (8, N_PAD) block.
        o_ref[0] = jnp.broadcast_to(logits, (8, N_PAD))


def regnet_forward(x_nchw, params, *, tile_hw=128):
    """x_nchw: (B, Cin, H, W)  ->  (B, NUM_CLASSES)."""
    B, Cin, H, W = x_nchw.shape
    HW = H * W

    # NCHW -> (B, HW, Cin): channels last (lane dim), pixels on sublanes.
    x_pix = jnp.transpose(x_nchw, (0, 2, 3, 1)).reshape(B, HW, Cin)

    n_hw = pl.cdiv(HW, tile_hw)
    hw_pad = n_hw * tile_hw
    if hw_pad != HW:
        x_pix = jnp.pad(x_pix, ((0, 0), (0, hw_pad - HW), (0, 0)))

    # Pad head weights/bias to a lane-dense N=128 (zeros -> zero extra logits).
    head_w_pad = jnp.zeros((FEAT_C, N_PAD), jnp.float32)
    head_w_pad = head_w_pad.at[:, :NUM_CLASSES].set(params["head_w"])
    head_b_pad = jnp.zeros((1, N_PAD), jnp.float32)
    head_b_pad = head_b_pad.at[:, :NUM_CLASSES].set(params["head_b"])

    kern = functools.partial(_fused_kernel, hw=HW, tile_hw=tile_hw,
                             cin=Cin, inv_hw=float(1.0 / HW))

    out = pl.pallas_call(
        kern,
        out_shape=jax.ShapeDtypeStruct((B, 8, N_PAD), jnp.float32),
        grid_spec=pltpu.PrefetchScalarGridSpec(
            num_scalar_prefetch=0,
            grid=(B, n_hw),
            in_specs=[
                pl.BlockSpec((1, tile_hw, Cin), lambda b, h: (b, h, 0)),
                pl.BlockSpec((Cin, FEAT_C), lambda b, h: (0, 0)),
                pl.BlockSpec((1, FEAT_C), lambda b, h: (0, 0)),
                pl.BlockSpec((FEAT_C, N_PAD), lambda b, h: (0, 0)),
                pl.BlockSpec((1, N_PAD), lambda b, h: (0, 0)),
            ],
            out_specs=pl.BlockSpec((1, 8, N_PAD), lambda b, h: (b, 0, 0)),
            scratch_shapes=[pltpu.VMEM((1, FEAT_C), jnp.float32)],
        ),
        compiler_params=pltpu.CompilerParams(
            dimension_semantics=("parallel", "arbitrary")),
    )(x_pix, params["stem_w"], params["stem_b"], head_w_pad, head_b_pad)

    return out[:, 0, :NUM_CLASSES]


def init_params(key, cin):
    k1, k2, k3, k4 = jax.random.split(key, 4)
    # Deterministic, PyTorch-Linear-style uniform init: U(-1/sqrt(fan_in), +).
    s_stem = 1.0 / float(jnp.sqrt(jnp.float32(cin)))
    s_head = 1.0 / float(jnp.sqrt(jnp.float32(FEAT_C)))
    return {
        "stem_w": jax.random.uniform(k1, (cin, FEAT_C), jnp.float32,
                                     -s_stem, s_stem),
        "stem_b": jax.random.uniform(k2, (1, FEAT_C), jnp.float32,
                                     -s_stem, s_stem),
        "head_w": jax.random.uniform(k3, (FEAT_C, NUM_CLASSES), jnp.float32,
                                     -s_head, s_head),
        "head_b": jax.random.uniform(k4, (1, NUM_CLASSES), jnp.float32,
                                     -s_head, s_head),
    }


def _reference_forward(x_nchw, params):
    B, Cin, H, W = x_nchw.shape
    x_pix = jnp.transpose(x_nchw, (0, 2, 3, 1)).reshape(B, H * W, Cin)
    feat = jnp.maximum(
        jnp.einsum("bpc,cf->bpf", x_pix, params["stem_w"]) + params["stem_b"],
        0.0)
    pooled = jnp.mean(feat, axis=1)          # AdaptiveAvgPool2d((1,1)) + flatten
    return pooled @ params["head_w"] + params["head_b"]


if __name__ == "__main__":
    key = jax.random.PRNGKey(0)
    k_x, k_p = jax.random.split(key)

    B, Cin, H, W = 2, 3, 16, 16              # small NCHW image input
    x = jax.random.normal(k_x, (B, Cin, H, W), jnp.float32)
    params = init_params(k_p, Cin)

    out = jax.jit(regnet_forward)(x, params)
    out = jax.block_until_ready(out)
    assert out.shape == (B, NUM_CLASSES), out.shape

    ref = _reference_forward(x, params)
    max_err = float(jnp.max(jnp.abs(out - ref)))
    assert jnp.allclose(out, ref, atol=1e-3, rtol=1e-3), max_err

    print("KERNEL_OK")
</pallas_src>

<mosaic_0001>
module attributes {stable_mosaic.version = 11 : i64} {
  func.func @_fused_kernel(%arg0: i32, %arg1: i32, %arg2: memref<1x128x3xf32, #tpu.memory_space<vmem>>, %arg3: memref<3x3712xf32, #tpu.memory_space<vmem>>, %arg4: memref<1x3712xf32, #tpu.memory_space<vmem>>, %arg5: memref<3712x128xf32, #tpu.memory_space<vmem>>, %arg6: memref<1x128xf32, #tpu.memory_space<vmem>>, %arg7: memref<1x8x128xf32, #tpu.memory_space<vmem>>, %arg8: memref<1x3712xf32, #tpu.memory_space<vmem>>) attributes {dimension_semantics = [#tpu.dimension_semantics<parallel>, #tpu.dimension_semantics<arbitrary>], iteration_bounds = array<i64: 2, 2>, scalar_prefetch = 0 : i64, scratch_operands = 1 : i64, tpu.core_type = #tpu.core_type<tc>, window_params = [{transform_indices = @transform_0, window_bounds = array<i64: 1, 128, 3>}, {pipeline_mode = #tpu.pipeline_mode<synchronous>, transform_indices = @transform_1, window_bounds = array<i64: 3, 3712>}, {pipeline_mode = #tpu.pipeline_mode<synchronous>, transform_indices = @transform_2, window_bounds = array<i64: 1, 3712>}, {pipeline_mode = #tpu.pipeline_mode<synchronous>, transform_indices = @transform_3, window_bounds = array<i64: 3712, 128>}, {pipeline_mode = #tpu.pipeline_mode<synchronous>, transform_indices = @transform_4, window_bounds = array<i64: 1, 128>}, {transform_indices = @transform_5, window_bounds = array<i64: 1, 8, 128>}]} {
    %c0_i32 = arith.constant 0 : i32
    %0 = arith.cmpi eq, %arg1, %c0_i32 : i32
    %1 = arith.extui %0 : i1 to i32
    %c0_i32_0 = arith.constant 0 : i32
    %2 = arith.cmpi ne, %1, %c0_i32_0 : i32
    scf.if %2 {
      %cst_13 = arith.constant 0.000000e+00 : f32
      %37 = vector.broadcast %cst_13 : f32 to vector<1x3712xf32>
      %c0_14 = arith.constant 0 : index
      %c0_15 = arith.constant 0 : index
      %38 = vector.load %arg8[%c0_14, %c0_15] : memref<1x3712xf32, #tpu.memory_space<vmem>>, vector<1x3712xf32>
      tpu.vector_store %arg8[%c0_14, %c0_15], %37 {strides = array<i32>} : memref<1x3712xf32, #tpu.memory_space<vmem>>, vector<1x3712xf32>,
    } else {
    }
    %c0 = arith.constant 0 : index
    %c0_1 = arith.constant 0 : index
    %c0_2 = arith.constant 0 : index
    %3 = vector.load %arg2[%c0, %c0_1, %c0_2] : memref<1x128x3xf32, #tpu.memory_space<vmem>>, vector<1x128x3xf32>
    %4 = vector.shape_cast %3 : vector<1x128x3xf32> to vector<128x3xf32>
    %c0_3 = arith.constant 0 : index
    %c0_4 = arith.constant 0 : index
    %5 = vector.load %arg3[%c0_3, %c0_4] : memref<3x3712xf32, #tpu.memory_space<vmem>>, vector<3x3712xf32>
    %c0_5 = arith.constant 0 : index
    %c0_6 = arith.constant 0 : index
    %6 = vector.load %arg4[%c0_5, %c0_6] : memref<1x3712xf32, #tpu.memory_space<vmem>>, vector<1x3712xf32>
    %7 = vector.shape_cast %6 : vector<1x3712xf32> to vector<1x3712xf32>
    %8 = vector.broadcast %7 : vector<1x3712xf32> to vector<128x3712xf32>
    %9 = vector.extract_strided_slice %4 {offsets = [0, 0], sizes = [128, 1], strides = [1, 1]} : vector<128x3xf32> to vector<128x1xf32>
    %10 = vector.extract_strided_slice %5 {offsets = [0, 0], sizes = [1, 3712], strides = [1, 1]} : vector<3x3712xf32> to vector<1x3712xf32>
    %11 = vector.broadcast %9 : vector<128x1xf32> to vector<128x3712xf32>
    %12 = vector.broadcast %10 : vector<1x3712xf32> to vector<128x3712xf32>
    %13 = arith.mulf %11, %12 : vector<128x3712xf32>
    %14 = arith.addf %8, %13 : vector<128x3712xf32>
    %15 = vector.extract_strided_slice %4 {offsets = [0, 1], sizes = [128, 1], strides = [1, 1]} : vector<128x3xf32> to vector<128x1xf32>
    %16 = vector.extract_strided_slice %5 {offsets = [1, 0], sizes = [1, 3712], strides = [1, 1]} : vector<3x3712xf32> to vector<1x3712xf32>
    %17 = vector.broadcast %15 : vector<128x1xf32> to vector<128x3712xf32>
    %18 = vector.broadcast %16 : vector<1x3712xf32> to vector<128x3712xf32>
    %19 = arith.mulf %17, %18 : vector<128x3712xf32>
    %20 = arith.addf %14, %19 : vector<128x3712xf32>
    %21 = vector.extract_strided_slice %4 {offsets = [0, 2], sizes = [128, 1], strides = [1, 1]} : vector<128x3xf32> to vector<128x1xf32>
    %22 = vector.extract_strided_slice %5 {offsets = [2, 0], sizes = [1, 3712], strides = [1, 1]} : vector<3x3712xf32> to vector<1x3712xf32>
    %23 = vector.broadcast %21 : vector<128x1xf32> to vector<128x3712xf32>
    %24 = vector.broadcast %22 : vector<1x3712xf32> to vector<128x3712xf32>
    %25 = arith.mulf %23, %24 : vector<128x3712xf32>
    %26 = arith.addf %20, %25 : vector<128x3712xf32>
    %cst = arith.constant 0.000000e+00 : f32
    %27 = vector.broadcast %cst : f32 to vector<128x3712xf32>
    %28 = arith.maximumf %26, %27 : vector<128x3712xf32>
    %c0_7 = arith.constant 0 : index
    %c0_8 = arith.constant 0 : index
    %29 = vector.load %arg8[%c0_7, %c0_8] : memref<1x3712xf32, #tpu.memory_space<vmem>>, vector<1x3712xf32>
    %cst_9 = arith.constant dense<0.000000e+00> : vector<3712xf32>
    %30 = vector.multi_reduction <add>, %28, %cst_9 [0] : vector<128x3712xf32> to vector<3712xf32>
    %31 = vector.shape_cast %30 : vector<3712xf32> to vector<1x3712xf32>
    %32 = arith.addf %29, %31 : vector<1x3712xf32>
    %c0_10 = arith.constant 0 : index
    %c0_11 = arith.constant 0 : index
    %33 = vector.load %arg8[%c0_10, %c0_11] : memref<1x3712xf32, #tpu.memory_space<vmem>>, vector<1x3712xf32>
    tpu.vector_store %arg8[%c0_10, %c0_11], %32 {strides = array<i32>} : memref<1x3712xf32, #tpu.memory_space<vmem>>, vector<1x3712xf32>,
    %c1_i32 = arith.constant 1 : i32
    %34 = arith.cmpi eq, %arg1, %c1_i32 : i32
    %35 = arith.extui %34 : i1 to i32
    %c0_i32_12 = arith.constant 0 : i32
    %36 = arith.cmpi ne, %35, %c0_i32_12 : i32
    scf.if %36 {
      %c0_13 = arith.constant 0 : index
      %c0_14 = arith.constant 0 : index
      %37 = vector.load %arg8[%c0_13, %c0_14] : memref<1x3712xf32, #tpu.memory_space<vmem>>, vector<1x3712xf32>
      %cst_15 = arith.constant 3.906250e-03 : f32
      %38 = vector.broadcast %cst_15 : f32 to vector<1x3712xf32>
      %39 = arith.mulf %37, %38 : vector<1x3712xf32>
      %c0_16 = arith.constant 0 : index
      %c0_17 = arith.constant 0 : index
      %40 = vector.load %arg5[%c0_16, %c0_17] : memref<3712x128xf32, #tpu.memory_space<vmem>>, vector<3712x128xf32>
      %cst_18 = arith.constant dense<0.000000e+00> : vector<1x128xf32>
      %41 = tpu.matmul %39, %40, %cst_18 {dimension_numbers = #tpu.dot_dimension_numbers<[1], [0], [0], [1], [0, 0, 1, 1], [], []>} : vector<1x3712xf32>, vector<3712x128xf32>, vector<1x128xf32> -> vector<1x128xf32>
      %c0_19 = arith.constant 0 : index
      %c0_20 = arith.constant 0 : index
      %42 = vector.load %arg6[%c0_19, %c0_20] : memref<1x128xf32, #tpu.memory_space<vmem>>, vector<1x128xf32>
      %43 = arith.addf %41, %42 : vector<1x128xf32>
      %44 = vector.shape_cast %43 : vector<1x128xf32> to vector<1x128xf32>
      %45 = vector.broadcast %44 : vector<1x128xf32> to vector<8x128xf32>
      %c0_21 = arith.constant 0 : index
      %c0_22 = arith.constant 0 : index
      %c0_23 = arith.constant 0 : index
      %46 = vector.load %arg7[%c0_21, %c0_22, %c0_23] : memref<1x8x128xf32, #tpu.memory_space<vmem>>, vector<1x8x128xf32>
      %47 = vector.shape_cast %46 : vector<1x8x128xf32> to vector<8x128xf32>
      %48 = vector.shape_cast %45 : vector<8x128xf32> to vector<1x8x128xf32>
      tpu.vector_store %arg7[%c0_21, %c0_22, %c0_23], %48 {strides = array<i32>} : memref<1x8x128xf32, #tpu.memory_space<vmem>>, vector<1x8x128xf32>,
    } else {
    }
    return
  }
  func.func @transform_0(%arg0: i32, %arg1: i32) -> (i32, i32, i32) {
    %c0_i32 = arith.constant 0 : i32
    %c0_i32_0 = arith.constant 0 : i32
    return %arg0, %arg1, %c0_i32 : i32, i32, i32
  }
  func.func @transform_1(%arg0: i32, %arg1: i32) -> (i32, i32) {
    %c0_i32 = arith.constant 0 : i32
    %c0_i32_0 = arith.constant 0 : i32
    %c0_i32_1 = arith.constant 0 : i32
    return %c0_i32, %c0_i32_0 : i32, i32
  }
  func.func @transform_2(%arg0: i32, %arg1: i32) -> (i32, i32) {
    %c0_i32 = arith.constant 0 : i32
    %c0_i32_0 = arith.constant 0 : i32
    %c0_i32_1 = arith.constant 0 : i32
    return %c0_i32, %c0_i32_0 : i32, i32
  }
  func.func @transform_3(%arg0: i32, %arg1: i32) -> (i32, i32) {
    %c0_i32 = arith.constant 0 : i32
    %c0_i32_0 = arith.constant 0 : i32
    %c0_i32_1 = arith.constant 0 : i32
    return %c0_i32, %c0_i32_0 : i32, i32
  }
  func.func @transform_4(%arg0: i32, %arg1: i32) -> (i32, i32) {
    %c0_i32 = arith.constant 0 : i32
    %c0_i32_0 = arith.constant 0 : i32
    %c0_i32_1 = arith.constant 0 : i32
    return %c0_i32, %c0_i32_0 : i32, i32
  }
  func.func @transform_5(%arg0: i32, %arg1: i32) -> (i32, i32, i32) {
    %c0_i32 = arith.constant 0 : i32
    %c0_i32_0 = arith.constant 0 : i32
    %c0_i32_1 = arith.constant 0 : i32
    return %arg0, %c0_i32, %c0_i32_0 : i32, i32, i32
  }
}

</mosaic_0001>

<llo_original>
// kernel: regnet_forward.1
$region0: #{regnet_forward.1}
  #allocation0 [shape = 'u32[]', space=smem, size = 0x4, offset = 0x4, fixed_abs, tag = 'smem constant byte address 0x4 - core index']
  #allocation1 [shape = 'u32[144,128]{1,0:T(1,128)}', space=vmem, size = 0x12000, scoped, tag = 'internal scratch']
  #allocation2 [shape = 'f32[1,3712]{1,0:T(1,128)}', space=vmem, size = 0x3a00, scoped, tag = 'scratch operand']
  %s0 = inlined_call_operand.vmem [shape: f32[2,256,3], index: 0, kind: input, shape index: {}]
  %s1 = inlined_call_operand.vmem [shape: f32[3,3712], index: 1, kind: input, shape index: {}]
  %s2 = inlined_call_operand.vmem [shape: f32[1,3712], index: 2, kind: input, shape index: {}]
  %s3 = inlined_call_operand.vmem [shape: f32[3712,128], index: 3, kind: input, shape index: {}]
  %s4 = inlined_call_operand.vmem [shape: f32[1,128], index: 4, kind: input, shape index: {}]
  %s5 = inlined_call_operand.vmem [shape: f32[2,8,128], index: 5, kind: output, shape index: {}]
  %s6 = sld [smem:[#allocation0]]
  $region61: #{regnet_forward.1} parent=0
    _
  %s8 = ssub.s32 1, %s6
  %s9 = scalar_select 0, %s8, %s6
  loop: start=0, step=1, limit=6
  $region2: #{regnet_forward.1} parent=0 // loop_pre_header
    _
  $region3: #{regnet_forward.1} parent=0 // loop_header
    %s11 = sphi 0, %s15
    %p12 = scmp.ge.s32.totalorder %s11, 6
    %s18 = sphi 0, %s30
    %s19 = sphi 0, %s26
    %s20 = sphi 0, %s18
    %s21 = sphi 0, %s19
    %s22 = sphi 0, %s20
    %s23 = sphi 0, %s21
    %s35 = sphi 0, %s37
    %s38 = sphi 0, %s35
    %s39 = sphi 0, %s38
    %s55 = sphi 0, %s39
    %s59 = sphi 0, %s59
    %s61 = sphi 0, %s59
    %s62 = sphi 0, %s61
    %s76 = sphi 0, %s62
    %s80 = sphi 0, %s80
    %s82 = sphi 0, %s80
    %s83 = sphi 0, %s82
    %s97 = sphi 0, %s83
    %s101 = sphi 0, %s101
    %s103 = sphi 0, %s101
    %s104 = sphi 0, %s103
    %s118 = sphi 0, %s104
    %s122 = sphi 0, %s122
    %s124 = sphi 0, %s122
    %s125 = sphi 0, %s124
    %s139 = sphi 0, %s125
    %s145 = sphi 0, %s147
    %s148 = sphi 0, %s145
    %s149 = sphi 0, %s148
    %s165 = sphi 0, %s149
  $region4: #{regnet_forward.1} parent=0 // loop_header_branch
    %14 = sbr.rel (%p12) target = $region8
  $region5: #{regnet_forward.1} parent=0 // loop_body
    %s16 = ssub.s32 %s11, 1
    %s17 = ssub.s32 %s11, 2
    %s24 = sadd.s32 1, %s19
    %p25 = scmp.ge.s32.totalorder %s24, 2
    %s26 = scalar_select %p25, 0, %s24
    %s27 = sadd.s32 1, %s18
    %s28 = scalar_select %p25, %s27, %s18
    %p29 = scmp.ge.s32.totalorder %s28, 2
    %s30 = scalar_select %p29, 0, %s28
    %s31 = ssub.s32 %s18, %s30
    %s32 = ssub.s32 %s19, %s26
    %s33 = sor.u32 %s31, %s32
    %p34 = scmp.eq.s32.totalorder %s33, 0
    %s36 = sadd.s32 %s35, 1
    %s37 = scalar_select %p34, %s35, %s36
    %p40 = pneg %p34
    %p41 = scmp.eq.s32.totalorder %s11, 3
    %p42 = por %p40, %p41
    %p43 = scmp.ne.s32.totalorder %s35, %s38
    %p44 = scmp.eq.s32.totalorder %s11, 0
    %p45 = por %p43, %p44
    %p46 = scmp.ne.s32.totalorder %s35, %s38
    %p47 = scmp.eq.s32.totalorder %s16, 3
    %p48 = por %p46, %p47
    %p49 = scmp.ne.s32.totalorder %s38, %s39
    %p50 = scmp.eq.s32.totalorder %s16, 0
    %p51 = por %p49, %p50
    %p52 = scmp.ne.s32.totalorder %s38, %s39
    %p53 = scmp.eq.s32.totalorder %s17, 3
    %p54 = por %p52, %p53
    %p56 = scmp.ne.s32.totalorder %s39, %s55
    %p57 = scmp.eq.s32.totalorder %s17, 0
    %p58 = por %p56, %p57
    %s60 = sadd.s32 %s59, 1
    %p63 = scmp.eq.s32.totalorder %s11, 3
    %p64 = scmp.ne.s32.totalorder %s59, %s61
    %p65 = scmp.eq.s32.totalorder %s11, 0
    %p66 = por %p64, %p65
    %p67 = scmp.ne.s32.totalorder %s59, %s61
    %p68 = scmp.eq.s32.totalorder %s16, 3
    %p69 = por %p67, %p68
    %p70 = scmp.ne.s32.totalorder %s61, %s62
    %p71 = scmp.eq.s32.totalorder %s16, 0
    %p72 = por %p70, %p71
    %p73 = scmp.ne.s32.totalorder %s61, %s62
    %p74 = scmp.eq.s32.totalorder %s17, 3
    %p75 = por %p73, %p74
    %p77 = scmp.ne.s32.totalorder %s62, %s76
    %p78 = scmp.eq.s32.totalorder %s17, 0
    %p79 = por %p77, %p78
    %s81 = sadd.s32 %s80, 1
    %p84 = scmp.eq.s32.totalorder %s11, 3
    %p85 = scmp.ne.s32.totalorder %s80, %s82
    %p86 = scmp.eq.s32.totalorder %s11, 0
    %p87 = por %p85, %p86
    %p88 = scmp.ne.s32.totalorder %s80, %s82
    %p89 = scmp.eq.s32.totalorder %s16, 3
    %p90 = por %p88, %p89
    %p91 = scmp.ne.s32.totalorder %s82, %s83
    %p92 = scmp.eq.s32.totalorder %s16, 0
    %p93 = por %p91, %p92
    %p94 = scmp.ne.s32.totalorder %s82, %s83
    %p95 = scmp.eq.s32.totalorder %s17, 3
    %p96 = por %p94, %p95
    %p98 = scmp.ne.s32.totalorder %s83, %s97
    %p99 = scmp.eq.s32.totalorder %s17, 0
    %p100 = por %p98, %p99
    %s102 = sadd.s32 %s101, 1
    %p105 = scmp.eq.s32.totalorder %s11, 3
    %p106 = scmp.ne.s32.totalorder %s101, %s103
    %p107 = scmp.eq.s32.totalorder %s11, 0
    %p108 = por %p106, %p107
    %p109 = scmp.ne.s32.totalorder %s101, %s103
    %p110 = scmp.eq.s32.totalorder %s16, 3
    %p111 = por %p109, %p110
    %p112 = scmp.ne.s32.totalorder %s103, %s104
    %p113 = scmp.eq.s32.totalorder %s16, 0
    %p114 = por %p112, %p113
    %p115 = scmp.ne.s32.totalorder %s103, %s104
    %p116 = scmp.eq.s32.totalorder %s17, 3
    %p117 = por %p115, %p116
    %p119 = scmp.ne.s32.totalorder %s104, %s118
    %p120 = scmp.eq.s32.totalorder %s17, 0
    %p121 = por %p119, %p120
    %s123 = sadd.s32 %s122, 1
    %p126 = scmp.eq.s32.totalorder %s11, 3
    %p127 = scmp.ne.s32.totalorder %s122, %s124
    %p128 = scmp.eq.s32.totalorder %s11, 0
    %p129 = por %p127, %p128
    %p130 = scmp.ne.s32.totalorder %s122, %s124
    %p131 = scmp.eq.s32.totalorder %s16, 3
    %p132 = por %p130, %p131
    %p133 = scmp.ne.s32.totalorder %s124, %s125
    %p134 = scmp.eq.s32.totalorder %s16, 0
    %p135 = por %p133, %p134
    %p136 = scmp.ne.s32.totalorder %s124, %s125
    %p137 = scmp.eq.s32.totalorder %s17, 3
    %p138 = por %p136, %p137
    %p140 = scmp.ne.s32.totalorder %s125, %s139
    %p141 = scmp.eq.s32.totalorder %s17, 0
    %p142 = por %p140, %p141
    %s143 = ssub.s32 %s18, %s30
    %p144 = scmp.eq.s32.totalorder %s143, 0
    %s146 = sadd.s32 %s145, 1
    %s147 = scalar_select %p144, %s145, %s146
    %p150 = pneg %p144
    %p151 = scmp.eq.s32.totalorder %s11, 3
    %p152 = por %p150, %p151
    %p153 = scmp.ne.s32.totalorder %s145, %s148
    %p154 = scmp.eq.s32.totalorder %s11, 0
    %p155 = por %p153, %p154
    %p156 = scmp.ne.s32.totalorder %s145, %s148
    %p157 = scmp.eq.s32.totalorder %s16, 3
    %p158 = por %p156, %p157
    %p159 = scmp.ne.s32.totalorder %s148, %s149
    %p160 = scmp.eq.s32.totalorder %s16, 0
    %p161 = por %p159, %p160
    %p162 = scmp.ne.s32.totalorder %s148, %s149
    %p163 = scmp.eq.s32.totalorder %s17, 3
    %p164 = por %p162, %p163
    %p166 = scmp.ne.s32.totalorder %s149, %s165
    %p167 = scmp.eq.s32.totalorder %s17, 0
    %p168 = por %p166, %p167
    %p169 = scmp.le.s32.totalorder 1, %s11
    %p170 = scmp.lt.s32.totalorder %s11, 5
    %p171 = pnand %p169, %p170
    %p172 = pneg %p171
    // Predicated region
    $region9: #{regnet_forward.1} parent=5 // pred_check
      _
    $region10: #{regnet_forward.1} parent=5 // pred_check_branch
      %174 = sbr.rel (%p171) target = $region12
    $region11: #{regnet_forward.1} parent=5 // pred_region
      %s175 = ssub.s32 %s11, 1
      // Predicated region
      $region13: #{regnet_forward.1} parent=11 // pred_check
        %p176 = pneg %p72
      $region14: #{regnet_forward.1} parent=11 // pred_check_branch
        %178 = sbr.rel (%p176) target = $region16
      $region15: #{regnet_forward.1} parent=11 // pred_region
        _
      $region16: #{regnet_forward.1} parent=11 // pred_fallthru
        _
      // Predicated region
      $region17: #{regnet_forward.1} parent=11 // pred_check
        %p179 = pneg %p93
      $region18: #{regnet_forward.1} parent=11 // pred_check_branch
        %181 = sbr.rel (%p179) target = $region20
      $region19: #{regnet_forward.1} parent=11 // pred_region
        _
      $region20: #{regnet_forward.1} parent=11 // pred_fallthru
        _
      // Predicated region
      $region21: #{regnet_forward.1} parent=11 // pred_check
        %p182 = pneg %p114
      $region22: #{regnet_forward.1} parent=11 // pred_check_branch
        %184 = sbr.rel (%p182) target = $region24
      $region23: #{regnet_forward.1} parent=11 // pred_region
        _
      $region24: #{regnet_forward.1} parent=11 // pred_fallthru
        _
      // Predicated region
      $region25: #{regnet_forward.1} parent=11 // pred_check
        %p185 = pneg %p135
      $region26: #{regnet_forward.1} parent=11 // pred_check_branch
        %187 = sbr.rel (%p185) target = $region28
      $region27: #{regnet_forward.1} parent=11 // pred_region
        _
      $region28: #{regnet_forward.1} parent=11 // pred_fallthru
        _
    $region12: #{regnet_forward.1} parent=5 // pred_fallthru
      _
    %p188 = scmp.lt.s32.totalorder %s11, 4
    // Predicated region
    $region29: #{regnet_forward.1} parent=5 // pred_check
      %p189 = pneg %p188
    $region30: #{regnet_forward.1} parent=5 // pred_check_branch
      %191 = sbr.rel (%p189) target = $region32
    $region31: #{regnet_forward.1} parent=5 // pred_region
      // Predicated region
      $region33: #{regnet_forward.1} parent=31 // pred_check
        %p192 = pneg %p45
      $region34: #{regnet_forward.1} parent=31 // pred_check_branch
        %194 = sbr.rel (%p192) target = $region36
      $region35: #{regnet_forward.1} parent=31 // pred_region
        %s195 = smul.u32 16, %s19
        %p196 = scmp.lt.s32.totalorder %s18, 1
        %s197 = scalar_select %p196, %s18, 1
        %p198 = scmp.lt.s32.totalorder %s195, 31
        %s199 = scalar_select %p198, %s195, 31
        %s200 = smul.addr %s197, 32
        %s201 = sadd.s32 %s199, %s200
        %s202 = smul.addr %s201, 8
        %s203 = scalar_lea.vmem %s0, %s202
        %s204 = smul.u32 16, %s19
      $region36: #{regnet_forward.1} parent=31 // pred_fallthru
        _
    $region32: #{regnet_forward.1} parent=5 // pred_fallthru
      _
    %p205 = scmp.le.s32.totalorder 1, %s11
    %p206 = scmp.lt.s32.totalorder %s11, 5
    %p207 = pnand %p205, %p206
    %p208 = pneg %p207
    // Predicated region
    $region37: #{regnet_forward.1} parent=5 // pred_check
      _
    $region38: #{regnet_forward.1} parent=5 // pred_check_branch
      %210 = sbr.rel (%p207) target = $region40
    $region39: #{regnet_forward.1} parent=5 // pred_region
      %s211 = ssub.s32 %s11, 1
      %s212 = smul.u32 16, %s21
      %p213 = scmp.lt.s32.totalorder %s20, 1
      %s214 = scalar_select %p213, %s20, 1
      %p215 = scmp.lt.s32.totalorder %s212, 31
      %s216 = scalar_select %p215, %s212, 31
      %s217 = smul.addr %s214, 32
      %s218 = sadd.s32 %s216, %s217
      %s219 = smul.addr %s218, 8
      %s220 = scalar_lea.vmem %s0, %s219
      %p221 = pneg %p51
      %p222 = pneg %p48
      %p223 = pneg %p72
      %p224 = pneg %p69
      %p225 = pneg %p93
      %p226 = pneg %p90
      %p227 = pneg %p114
      %p228 = pneg %p111
      %p229 = pneg %p135
      %p230 = pneg %p132
      %p231 = pneg %p161
      %p232 = pneg %p158
      %p233 = scmp.lt.s32.totalorder %s20, 1
      %s234 = scalar_select %p233, %s20, 1
      %s235 = smul.addr %s234, 8
      %s236 = scalar_lea.vmem %s5, %s235
      %s237 = smul.u32 16, %s21
      %p238 = scmp.lt.s32.totalorder %s20, 1
      %s239 = scalar_select %p238, %s20, 1
      %p240 = scmp.lt.s32.totalorder %s237, 31
      %s241 = scalar_select %p240, %s237, 31
      %s242 = smul.addr %s239, 32
      %s243 = sadd.s32 %s241, %s242
      %s244 = smul.addr %s243, 8
      %s245 = scalar_lea.vmem %s0, %s244
      %s246 = smul.u32 16, %s21
      %p247 = scmp.lt.s32.totalorder %s20, 1
      %s248 = scalar_select %p247, %s20, 1
      %s249 = smul.addr %s248, 8
      %s250 = scalar_lea.vmem %s5, %s249
      %p251 = scmp.eq.s32.totalorder %s21, 0
      // Predicated region
      $region41: #{regnet_forward.1} parent=39 // pred_check
        %p252 = pneg %p251
      $region42: #{regnet_forward.1} parent=39 // pred_check_branch
        %254 = sbr.rel (%p252) target = $region44
      $region43: #{regnet_forward.1} parent=39 // pred_region
        %255 = vst [vmem:[#allocation2] sm:$0xff] 0.0
        %256 = vst [vmem:[#allocation2 + $0x8] sm:$0xff] 0.0
        %257 = vst [vmem:[#allocation2 + $0x10] sm:$0xff] 0.0
        %v258 = vlaneseq
        %vm259 = vcmp.ge.s32.totalorder %v258, 0
        %vm260 = vcmp.lt.s32.totalorder %v258, 640
        %vm261 = vmand %vm259, %vm260
        %262 = vst.msk [vmem:[#allocation2 + $0x18] sm:$0x1f] %vm261, 0.0
      $region44: #{regnet_forward.1} parent=39 // pred_fallthru
        _
      %v263 = vld [vmem:[%s245] sm:$0xff]
      %v264 = vld [vmem:[%s245 + $0x8] sm:$0xff]
      %v265 = vld [vmem:[%s245 + $0x10] sm:$0xff]
      %v266 = vld [vmem:[%s245 + $0x18] sm:$0xff]
      %v267 = vld [vmem:[%s245 + $0x20] sm:$0xff]
      %v268 = vld [vmem:[%s245 + $0x28] sm:$0xff]
      %v269 = vld [vmem:[%s245 + $0x30] sm:$0xff]
      %v270 = vld [vmem:[%s245 + $0x38] sm:$0xff]
      %v271 = vld [vmem:[%s245 + $0x40] sm:$0xff]
      %v272 = vld [vmem:[%s245 + $0x48] sm:$0xff]
      %v273 = vld [vmem:[%s245 + $0x50] sm:$0xff]
      %v274 = vld [vmem:[%s245 + $0x58] sm:$0xff]
      %v275 = vld [vmem:[%s245 + $0x60] sm:$0xff]
      %v276 = vld [vmem:[%s245 + $0x68] sm:$0xff]
      %v277 = vld [vmem:[%s245 + $0x70] sm:$0xff]
      %v278 = vld [vmem:[%s245 + $0x78] sm:$0xff]
      %v279 = vld [vmem:[%s1] sm:$0x77]
      %v280 = vld [vmem:[%s1 + $0x8] sm:$0x77]
      %v281 = vld [vmem:[%s1 + $0x10] sm:$0x77]
      %v282 = vld [vmem:[%s1 + $0x18] sm:$0x77]
      %v283 = vld [vmem:[%s1 + $0x20] sm:$0x77]
      %v284 = vld [vmem:[%s1 + $0x28] sm:$0x77]
      %v285 = vld [vmem:[%s1 + $0x30] sm:$0x77]
      %v286 = vld [vmem:[%s1 + $0x38] sm:$0x77]
      %v287 = vld [vmem:[%s1 + $0x40] sm:$0x77]
      %v288 = vld [vmem:[%s1 + $0x48] sm:$0x77]
      %v289 = vld [vmem:[%s1 + $0x50] sm:$0x77]
      %v290 = vld [vmem:[%s1 + $0x58] sm:$0x77]
      %v291 = vld [vmem:[%s1 + $0x60] sm:$0x77]
      %v292 = vld [vmem:[%s1 + $0x68] sm:$0x77]
      %v293 = vld [vmem:[%s1 + $0x70] sm:$0x7]
      %v294 = vld [vmem:[%s2] sm:$0xff]
      %v295 = vld [vmem:[%s2 + $0x8] sm:$0xff]
      %v296 = vld [vmem:[%s2 + $0x10] sm:$0xff]
      %v297 = vld [vmem:[%s2 + $0x18] sm:$0x1f]
      %v302 = vlaneseq
      %v303 = vshrl.u32 %v302, 7
      %v304 = vsub.s32 0, %v303
      %v305 = vrot.slane %v294, %v304
      %v306 = vlaneseq
      %v307 = vshrl.u32 %v306, 7
      %v308 = vsub.s32 1, %v307
      %v309 = vrot.slane %v294, %v308
      %v310 = vlaneseq
      %v311 = vshrl.u32 %v310, 7
      %v312 = vsub.s32 2, %v311
      %v313 = vrot.slane %v294, %v312
      %v314 = vlaneseq
      %v315 = vshrl.u32 %v314, 7
      %v316 = vsub.s32 3, %v315
      %v317 = vrot.slane %v294, %v316
      %v318 = vlaneseq
      %v319 = vshrl.u32 %v318, 7
      %v320 = vsub.s32 4, %v319
      %v321 = vrot.slane %v294, %v320
      %v322 = vlaneseq
      %v323 = vshrl.u32 %v322, 7
      %v324 = vsub.s32 5, %v323
      %v325 = vrot.slane %v294, %v324
      %v326 = vlaneseq
      %v327 = vshrl.u32 %v326, 7
      %v328 = vsub.s32 6, %v327
      %v329 = vrot.slane %v294, %v328
      %v330 = vlaneseq
      %v331 = vshrl.u32 %v330, 7
      %v332 = vsub.s32 7, %v331
      %v333 = vrot.slane %v294, %v332
      %v334 = vlaneseq
      %v335 = vshrl.u32 %v334, 7
      %v336 = vsub.s32 0, %v335
      %v337 = vrot.slane %v295, %v336
      %v338 = vlaneseq
      %v339 = vshrl.u32 %v338, 7
      %v340 = vsub.s32 1, %v339
      %v341 = vrot.slane %v295, %v340
      %v342 = vlaneseq
      %v343 = vshrl.u32 %v342, 7
      %v344 = vsub.s32 2, %v343
      %v345 = vrot.slane %v295, %v344
      %v346 = vlaneseq
      %v347 = vshrl.u32 %v346, 7
      %v348 = vsub.s32 3, %v347
      %v349 = vrot.slane %v295, %v348
      %v350 = vlaneseq
      %v351 = vshrl.u32 %v350, 7
      %v352 = vsub.s32 4, %v351
      %v353 = vrot.slane %v295, %v352
      %v354 = vlaneseq
      %v355 = vshrl.u32 %v354, 7
      %v356 = vsub.s32 5, %v355
      %v357 = vrot.slane %v295, %v356
      %v358 = vlaneseq
      %v359 = vshrl.u32 %v358, 7
      %v360 = vsub.s32 6, %v359
      %v361 = vrot.slane %v295, %v360
      %v362 = vlaneseq
      %v363 = vshrl.u32 %v362, 7
      %v364 = vsub.s32 7, %v363
      %v365 = vrot.slane %v295, %v364
      %v366 = vlaneseq
      %v367 = vshrl.u32 %v366, 7
      %v368 = vsub.s32 0, %v367
      %v369 = vrot.slane %v296, %v368
      %v370 = vlaneseq
      %v371 = vshrl.u32 %v370, 7
      %v372 = vsub.s32 1, %v371
      %v373 = vrot.slane %v296, %v372
      %v374 = vlaneseq
      %v375 = vshrl.u32 %v374, 7
      %v376 = vsub.s32 2, %v375
      %v377 = vrot.slane %v296, %v376
      %v378 = vlaneseq
      %v379 = vshrl.u32 %v378, 7
      %v380 = vsub.s32 3, %v379
      %v381 = vrot.slane %v296, %v380
      %v382 = vlaneseq
      %v383 = vshrl.u32 %v382, 7
      %v384 = vsub.s32 4, %v383
      %v385 = vrot.slane %v296, %v384
      %v386 = vlaneseq
      %v387 = vshrl.u32 %v386, 7
      %v388 = vsub.s32 5, %v387
      %v389 = vrot.slane %v296, %v388
      %v390 = vlaneseq
      %v391 = vshrl.u32 %v390, 7
      %v392 = vsub.s32 6, %v391
      %v393 = vrot.slane %v296, %v392
      %v394 = vlaneseq
      %v395 = vshrl.u32 %v394, 7
      %v396 = vsub.s32 7, %v395
      %v397 = vrot.slane %v296, %v396
      %v398 = vlaneseq
      %v399 = vshrl.u32 %v398, 7
      %v400 = vsub.s32 0, %v399
      %v401 = vrot.slane %v297, %v400
      %v402 = vlaneseq
      %v403 = vshrl.u32 %v402, 7
      %v404 = vsub.s32 1, %v403
      %v405 = vrot.slane %v297, %v404
      %v406 = vlaneseq
      %v407 = vshrl.u32 %v406, 7
      %v408 = vsub.s32 2, %v407
      %v409 = vrot.slane %v297, %v408
      %v410 = vlaneseq
      %v411 = vshrl.u32 %v410, 7
      %v412 = vsub.s32 3, %v411
      %v413 = vrot.slane %v297, %v412
      %v414 = vlaneseq
      %v415 = vshrl.u32 %v414, 7
      %v416 = vsub.s32 4, %v415
      %v417 = vrot.slane %v297, %v416
      %448 = vset.pattern.permute.xlu0 0
      %449 = vperm.xlu0 %448, %v263
      %v450 = vpop.permute.xlu0 %449
      %453 = vset.pattern.permute.xlu0 0
      %454 = vperm.xlu0 %453, %v264
      %v455 = vpop.permute.xlu0 %454
      %458 = vset.pattern.permute.xlu0 0
      %459 = vperm.xlu0 %458, %v265
      %v460 = vpop.permute.xlu0 %459
      %463 = vset.pattern.permute.xlu0 0
      %464 = vperm.xlu0 %463, %v266
      %v465 = vpop.permute.xlu0 %464
      %468 = vset.pattern.permute.xlu0 0
      %469 = vperm.xlu0 %468, %v267
      %v470 = vpop.permute.xlu0 %469
      %473 = vset.pattern.permute.xlu0 0
      %474 = vperm.xlu0 %473, %v268
      %v475 = vpop.permute.xlu0 %474
      %478 = vset.pattern.permute.xlu0 0
      %479 = vperm.xlu0 %478, %v269
      %v480 = vpop.permute.xlu0 %479
      %483 = vset.pattern.permute.xlu0 0
      %484 = vperm.xlu0 %483, %v270
      %v485 = vpop.permute.xlu0 %484
      %488 = vset.pattern.permute.xlu0 0
      %489 = vperm.xlu0 %488, %v271
      %v490 = vpop.permute.xlu0 %489
      %493 = vset.pattern.permute.xlu0 0
      %494 = vperm.xlu0 %493, %v272
      %v495 = vpop.permute.xlu0 %494
      %498 = vset.pattern.permute.xlu0 0
      %499 = vperm.xlu0 %498, %v273
      %v500 = vpop.permute.xlu0 %499
      %503 = vset.pattern.permute.xlu0 0
      %504 = vperm.xlu0 %503, %v274
      %v505 = vpop.permute.xlu0 %504
      %508 = vset.pattern.permute.xlu0 0
      %509 = vperm.xlu0 %508, %v275
      %v510 = vpop.permute.xlu0 %509
      %513 = vset.pattern.permute.xlu0 0
      %514 = vperm.xlu0 %513, %v276
      %v515 = vpop.permute.xlu0 %514
      %518 = vset.pattern.permute.xlu0 0
      %519 = vperm.xlu0 %518, %v277
      %v520 = vpop.permute.xlu0 %519
      %523 = vset.pattern.permute.xlu0 0
      %524 = vperm.xlu0 %523, %v278
      %v525 = vpop.permute.xlu0 %524
      %v542 = vlaneseq
      %v543 = vshrl.u32 %v542, 7
      %v544 = vsub.s32 0, %v543
      %v545 = vrot.slane %v279, %v544
      %v546 = vlaneseq
      %v547 = vshrl.u32 %v546, 7
      %v548 = vsub.s32 4, %v547
      %v549 = vrot.slane %v279, %v548
      %v550 = vlaneseq
      %v551 = vshrl.u32 %v550, 7
      %v552 = vsub.s32 0, %v551
      %v553 = vrot.slane %v280, %v552
      %v554 = vlaneseq
      %v555 = vshrl.u32 %v554, 7
      %v556 = vsub.s32 4, %v555
      %v557 = vrot.slane %v280, %v556
      %v558 = vlaneseq
      %v559 = vshrl.u32 %v558, 7
      %v560 = vsub.s32 0, %v559
      %v561 = vrot.slane %v281, %v560
      %v562 = vlaneseq
      %v563 = vshrl.u32 %v562, 7
      %v564 = vsub.s32 4, %v563
      %v565 = vrot.slane %v281, %v564
      %v566 = vlaneseq
      %v567 = vshrl.u32 %v566, 7
      %v568 = vsub.s32 0, %v567
      %v569 = vrot.slane %v282, %v568
      %v570 = vlaneseq
      %v571 = vshrl.u32 %v570, 7
      %v572 = vsub.s32 4, %v571
      %v573 = vrot.slane %v282, %v572
      %v574 = vlaneseq
      %v575 = vshrl.u32 %v574, 7
      %v576 = vsub.s32 0, %v575
      %v577 = vrot.slane %v283, %v576
      %v578 = vlaneseq
      %v579 = vshrl.u32 %v578, 7
      %v580 = vsub.s32 4, %v579
      %v581 = vrot.slane %v283, %v580
      %v582 = vlaneseq
      %v583 = vshrl.u32 %v582, 7
      %v584 = vsub.s32 0, %v583
      %v585 = vrot.slane %v284, %v584
      %v586 = vlaneseq
      %v587 = vshrl.u32 %v586, 7
      %v588 = vsub.s32 4, %v587
      %v589 = vrot.slane %v284, %v588
      %v590 = vlaneseq
      %v591 = vshrl.u32 %v590, 7
      %v592 = vsub.s32 0, %v591
      %v593 = vrot.slane %v285, %v592
      %v594 = vlaneseq
      %v595 = vshrl.u32 %v594, 7
      %v596 = vsub.s32 4, %v595
      %v597 = vrot.slane %v285, %v596
      %v598 = vlaneseq
      %v599 = vshrl.u32 %v598, 7
      %v600 = vsub.s32 0, %v599
      %v601 = vrot.slane %v286, %v600
      %v602 = vlaneseq
      %v603 = vshrl.u32 %v602, 7
      %v604 = vsub.s32 4, %v603
      %v605 = vrot.slane %v286, %v604
      %v606 = vlaneseq
      %v607 = vshrl.u32 %v606, 7
      %v608 = vsub.s32 0, %v607
      %v609 = vrot.slane %v287, %v608
      %v610 = vlaneseq
      %v611 = vshrl.u32 %v610, 7
      %v612 = vsub.s32 4, %v611
      %v613 = vrot.slane %v287, %v612
      %v614 = vlaneseq
      %v615 = vshrl.u32 %v614, 7
      %v616 = vsub.s32 0, %v615
      %v617 = vrot.slane %v288, %v616
      %v618 = vlaneseq
      %v619 = vshrl.u32 %v618, 7
      %v620 = vsub.s32 4, %v619
      %v621 = vrot.slane %v288, %v620
      %v622 = vlaneseq
      %v623 = vshrl.u32 %v622, 7
      %v624 = vsub.s32 0, %v623
      %v625 = vrot.slane %v289, %v624
      %v626 = vlaneseq
      %v627 = vshrl.u32 %v626, 7
      %v628 = vsub.s32 4, %v627
      %v629 = vrot.slane %v289, %v628
      %v630 = vlaneseq
      %v631 = vshrl.u32 %v630, 7
      %v632 = vsub.s32 0, %v631
      %v633 = vrot.slane %v290, %v632
      %v634 = vlaneseq
      %v635 = vshrl.u32 %v634, 7
      %v636 = vsub.s32 4, %v635
      %v637 = vrot.slane %v290, %v636
      %v638 = vlaneseq
      %v639 = vshrl.u32 %v638, 7
      %v640 = vsub.s32 0, %v639
      %v641 = vrot.slane %v291, %v640
      %v642 = vlaneseq
      %v643 = vshrl.u32 %v642, 7
      %v644 = vsub.s32 4, %v643
      %v645 = vrot.slane %v291, %v644
      %v646 = vlaneseq
      %v647 = vshrl.u32 %v646, 7
      %v648 = vsub.s32 0, %v647
      %v649 = vrot.slane %v292, %v648
      %v650 = vlaneseq
      %v651 = vshrl.u32 %v650, 7
      %v652 = vsub.s32 4, %v651
      %v653 = vrot.slane %v292, %v652
      %v654 = vlaneseq
      %v655 = vshrl.u32 %v654, 7
      %v656 = vsub.s32 0, %v655
      %v657 = vrot.slane %v293, %v656
      %v687 = vlaneseq
      %v688 = vshrl.u32 %v687, 7
      %v689 = vsub.s32 0, %v688
      %v690 = vrot.slane %v545, %v689
      %v691 = vlaneseq
      %v692 = vshrl.u32 %v691, 7
      %v693 = vsub.s32 0, %v692
      %v694 = vrot.slane %v549, %v693
      %v695 = vlaneseq
      %v696 = vshrl.u32 %v695, 7
      %v697 = vsub.s32 0, %v696
      %v698 = vrot.slane %v553, %v697
      %v699 = vlaneseq
      %v700 = vshrl.u32 %v699, 7
      %v701 = vsub.s32 0, %v700
      %v702 = vrot.slane %v557, %v701
      %v703 = vlaneseq
      %v704 = vshrl.u32 %v703, 7
      %v705 = vsub.s32 0, %v704
      %v706 = vrot.slane %v561, %v705
      %v707 = vlaneseq
      %v708 = vshrl.u32 %v707, 7
      %v709 = vsub.s32 0, %v708
      %v710 = vrot.slane %v565, %v709
      %v711 = vlaneseq
      %v712 = vshrl.u32 %v711, 7
      %v713 = vsub.s32 0, %v712
      %v714 = vrot.slane %v569, %v713
      %v715 = vlaneseq
      %v716 = vshrl.u32 %v715, 7
      %v717 = vsub.s32 0, %v716
      %v718 = vrot.slane %v573, %v717
      %v719 = vlaneseq
      %v720 = vshrl.u32 %v719, 7
      %v721 = vsub.s32 0, %v720
      %v722 = vrot.slane %v577, %v721
      %v723 = vlaneseq
      %v724 = vshrl.u32 %v723, 7
      %v725 = vsub.s32 0, %v724
      %v726 = vrot.slane %v581, %v725
      %v727 = vlaneseq
      %v728 = vshrl.u32 %v727, 7
      %v729 = vsub.s32 0, %v728
      %v730 = vrot.slane %v585, %v729
      %v731 = vlaneseq
      %v732 = vshrl.u32 %v731, 7
      %v733 = vsub.s32 0, %v732
      %v734 = vrot.slane %v589, %v733
      %v735 = vlaneseq
      %v736 = vshrl.u32 %v735, 7
      %v737 = vsub.s32 0, %v736
      %v738 = vrot.slane %v593, %v737
      %v739 = vlaneseq
      %v740 = vshrl.u32 %v739, 7
      %v741 = vsub.s32 0, %v740
      %v742 = vrot.slane %v597, %v741
      %v743 = vlaneseq
      %v744 = vshrl.u32 %v743, 7
      %v745 = vsub.s32 0, %v744
      %v746 = vrot.slane %v601, %v745
      %v747 = vlaneseq
      %v748 = vshrl.u32 %v747, 7
      %v749 = vsub.s32 0, %v748
      %v750 = vrot.slane %v605, %v749
      %v751 = vlaneseq
      %v752 = vshrl.u32 %v751, 7
      %v753 = vsub.s32 0, %v752
      %v754 = vrot.slane %v609, %v753
      %v755 = vlaneseq
      %v756 = vshrl.u32 %v755, 7
      %v757 = vsub.s32 0, %v756
      %v758 = vrot.slane %v613, %v757
      %v759 = vlaneseq
      %v760 = vshrl.u32 %v759, 7
      %v761 = vsub.s32 0, %v760
      %v762 = vrot.slane %v617, %v761
      %v763 = vlaneseq
      %v764 = vshrl.u32 %v763, 7
      %v765 = vsub.s32 0, %v764
      %v766 = vrot.slane %v621, %v765
      %v767 = vlaneseq
      %v768 = vshrl.u32 %v767, 7
      %v769 = vsub.s32 0, %v768
      %v770 = vrot.slane %v625, %v769
      %v771 = vlaneseq
      %v772 = vshrl.u32 %v771, 7
      %v773 = vsub.s32 0, %v772
      %v774 = vrot.slane %v629, %v773
      %v775 = vlaneseq
      %v776 = vshrl.u32 %v775, 7
      %v777 = vsub.s32 0, %v776
      %v778 = vrot.slane %v633, %v777
      %v779 = vlaneseq
      %v780 = vshrl.u32 %v779, 7
      %v781 = vsub.s32 0, %v780
      %v782 = vrot.slane %v637, %v781
      %v783 = vlaneseq
      %v784 = vshrl.u32 %v783, 7
      %v785 = vsub.s32 0, %v784
      %v786 = vrot.slane %v641, %v785
      %v787 = vlaneseq
      %v788 = vshrl.u32 %v787, 7
      %v789 = vsub.s32 0, %v788
      %v790 = vrot.slane %v645, %v789
      %v791 = vlaneseq
      %v792 = vshrl.u32 %v791, 7
      %v793 = vsub.s32 0, %v792
      %v794 = vrot.slane %v649, %v793
      %v795 = vlaneseq
      %v796 = vshrl.u32 %v795, 7
      %v797 = vsub.s32 0, %v796
      %v798 = vrot.slane %v653, %v797
      %v799 = vlaneseq
      %v800 = vshrl.u32 %v799, 7
      %v801 = vsub.s32 0, %v800
      %v802 = vrot.slane %v657, %v801
      %v803 = vmul.f32 %v450, %v690
      %v804 = vmul.f32 %v450, %v694
      %v805 = vmul.f32 %v450, %v698
      %v806 = vmul.f32 %v450, %v702
      %v807 = vmul.f32 %v450, %v706
      %v808 = vmul.f32 %v450, %v710
      %v809 = vmul.f32 %v450, %v714
      %v810 = vmul.f32 %v450, %v718
      %v811 = vmul.f32 %v450, %v722
      %v812 = vmul.f32 %v450, %v726
      %v813 = vmul.f32 %v450, %v730
      %v814 = vmul.f32 %v450, %v734
      %v815 = vmul.f32 %v450, %v738
      %v816 = vmul.f32 %v450, %v742
      %v817 = vmul.f32 %v450, %v746
      %v818 = vmul.f32 %v450, %v750
      %v819 = vmul.f32 %v450, %v754
      %v820 = vmul.f32 %v450, %v758
      %v821 = vmul.f32 %v450, %v762
      %v822 = vmul.f32 %v450, %v766
      %v823 = vmul.f32 %v450, %v770
      %v824 = vmul.f32 %v450, %v774
      %v825 = vmul.f32 %v450, %v778
      %v826 = vmul.f32 %v450, %v782
      %v827 = vmul.f32 %v450, %v786
      %v828 = vmul.f32 %v450, %v790
      %v829 = vmul.f32 %v450, %v794
      %v830 = vmul.f32 %v450, %v798
      %v831 = vmul.f32 %v450, %v802
      %v832 = vmul.f32 %v455, %v690
      %v833 = vmul.f32 %v455, %v694
      %v834 = vmul.f32 %v455, %v698
      %v835 = vmul.f32 %v455, %v702
      %v836 = vmul.f32 %v455, %v706
      %v837 = vmul.f32 %v455, %v710
      %v838 = vmul.f32 %v455, %v714
      %v839 = vmul.f32 %v455, %v718
      %v840 = vmul.f32 %v455, %v722
      %v841 = vmul.f32 %v455, %v726
      %v842 = vmul.f32 %v455, %v730
      %v843 = vmul.f32 %v455, %v734
      %v844 = vmul.f32 %v455, %v738
      %v845 = vmul.f32 %v455, %v742
      %v846 = vmul.f32 %v455, %v746
      %v847 = vmul.f32 %v455, %v750
      %v848 = vmul.f32 %v455, %v754
      %v849 = vmul.f32 %v455, %v758
      %v850 = vmul.f32 %v455, %v762
      %v851 = vmul.f32 %v455, %v766
      %v852 = vmul.f32 %v455, %v770
      %v853 = vmul.f32 %v455, %v774
      %v854 = vmul.f32 %v455, %v778
      %v855 = vmul.f32 %v455, %v782
      %v856 = vmul.f32 %v455, %v786
      %v857 = vmul.f32 %v455, %v790
      %v858 = vmul.f32 %v455, %v794
      %v859 = vmul.f32 %v455, %v798
      %v860 = vmul.f32 %v455, %v802
      %v861 = vmul.f32 %v460, %v690
      %v862 = vmul.f32 %v460, %v694
      %v863 = vmul.f32 %v460, %v698
      %v864 = vmul.f32 %v460, %v702
      %v865 = vmul.f32 %v460, %v706
      %v866 = vmul.f32 %v460, %v710
      %v867 = vmul.f32 %v460, %v714
      %v868 = vmul.f32 %v460, %v718
      %v869 = vmul.f32 %v460, %v722
      %v870 = vmul.f32 %v460, %v726
      %v871 = vmul.f32 %v460, %v730
      %v872 = vmul.f32 %v460, %v734
      %v873 = vmul.f32 %v460, %v738
      %v874 = vmul.f32 %v460, %v742
      %v875 = vmul.f32 %v460, %v746
      %v876 = vmul.f32 %v460, %v750
      %v877 = vmul.f32 %v460, %v754
      %v878 = vmul.f32 %v460, %v758
      %v879 = vmul.f32 %v460, %v762
      %v880 = vmul.f32 %v460, %v766
      %v881 = vmul.f32 %v460, %v770
      %v882 = vmul.f32 %v460, %v774
      %v883 = vmul.f32 %v460, %v778
      %v884 = vmul.f32 %v460, %v782
      %v885 = vmul.f32 %v460, %v786
      %v886 = vmul.f32 %v460, %v790
      %v887 = vmul.f32 %v460, %v794
      %v888 = vmul.f32 %v460, %v798
      %v889 = vmul.f32 %v460, %v802
      %v890 = vmul.f32 %v465, %v690
      %v891 = vmul.f32 %v465, %v694
      %v892 = vmul.f32 %v465, %v698
      %v893 = vmul.f32 %v465, %v702
      %v894 = vmul.f32 %v465, %v706
      %v895 = vmul.f32 %v465, %v710
      %v896 = vmul.f32 %v465, %v714
      %v897 = vmul.f32 %v465, %v718
      %v898 = vmul.f32 %v465, %v722
      %v899 = vmul.f32 %v465, %v726
      %v900 = vmul.f32 %v465, %v730
      %v901 = vmul.f32 %v465, %v734
      %v902 = vmul.f32 %v465, %v738
      %v903 = vmul.f32 %v465, %v742
      %v904 = vmul.f32 %v465, %v746
      %v905 = vmul.f32 %v465, %v750
      %v906 = vmul.f32 %v465, %v754
      %v907 = vmul.f32 %v465, %v758
      %v908 = vmul.f32 %v465, %v762
      %v909 = vmul.f32 %v465, %v766
      %v910 = vmul.f32 %v465, %v770
      %v911 = vmul.f32 %v465, %v774
      %v912 = vmul.f32 %v465, %v778
      %v913 = vmul.f32 %v465, %v782
      %v914 = vmul.f32 %v465, %v786
      %v915 = vmul.f32 %v465, %v790
      %v916 = vmul.f32 %v465, %v794
      %v917 = vmul.f32 %v465, %v798
      %v918 = vmul.f32 %v465, %v802
      %v919 = vmul.f32 %v470, %v690
      %v920 = vmul.f32 %v470, %v694
      %v921 = vmul.f32 %v470, %v698
      %v922 = vmul.f32 %v470, %v702
      %v923 = vmul.f32 %v470, %v706
      %v924 = vmul.f32 %v470, %v710
      %v925 = vmul.f32 %v470, %v714
      %v926 = vmul.f32 %v470, %v718
      %v927 = vmul.f32 %v470, %v722
      %v928 = vmul.f32 %v470, %v726
      %v929 = vmul.f32 %v470, %v730
      %v930 = vmul.f32 %v470, %v734
      %v931 = vmul.f32 %v470, %v738
      %v932 = vmul.f32 %v470, %v742
      %v933 = vmul.f32 %v470, %v746
      %v934 = vmul.f32 %v470, %v750
      %v935 = vmul.f32 %v470, %v754
      %v936 = vmul.f32 %v470, %v758
      %v937 = vmul.f32 %v470, %v762
      %v938 = vmul.f32 %v470, %v766
      %v939 = vmul.f32 %v470, %v770
      %v940 = vmul.f32 %v470, %v774
      %v941 = vmul.f32 %v470, %v778
      %v942 = vmul.f32 %v470, %v782
      %v943 = vmul.f32 %v470, %v786
      %v944 = vmul.f32 %v470, %v790
      %v945 = vmul.f32 %v470, %v794
      %v946 = vmul.f32 %v470, %v798
      %v947 = vmul.f32 %v470, %v802
      %v948 = vmul.f32 %v475, %v690
      %v949 = vmul.f32 %v475, %v694
      %v950 = vmul.f32 %v475, %v698
      %v951 = vmul.f32 %v475, %v702
      %v952 = vmul.f32 %v475, %v706
      %v953 = vmul.f32 %v475, %v710
      %v954 = vmul.f32 %v475, %v714
      %v955 = vmul.f32 %v475, %v718
      %v956 = vmul.f32 %v475, %v722
      %v957 = vmul.f32 %v475, %v726
      %v958 = vmul.f32 %v475, %v730
      %v959 = vmul.f32 %v475, %v734
      %v960 = vmul.f32 %v475, %v738
      %v961 = vmul.f32 %v475, %v742
      %v962 = vmul.f32 %v475, %v746
      %v963 = vmul.f32 %v475, %v750
      %v964 = vmul.f32 %v475, %v754
      %v965 = vmul.f32 %v475, %v758
      %v966 = vmul.f32 %v475, %v762
      %v967 = vmul.f32 %v475, %v766
      %v968 = vmul.f32 %v475, %v770
      %v969 = vmul.f32 %v475, %v774
      %v970 = vmul.f32 %v475, %v778
      %v971 = vmul.f32 %v475, %v782
      %v972 = vmul.f32 %v475, %v786
      %v973 = vmul.f32 %v475, %v790
      %v974 = vmul.f32 %v475, %v794
      %v975 = vmul.f32 %v475, %v798
      %v976 = vmul.f32 %v475, %v802
      %v977 = vmul.f32 %v480, %v690
      %v978 = vmul.f32 %v480, %v694
      %v979 = vmul.f32 %v480, %v698
      %v980 = vmul.f32 %v480, %v702
      %v981 = vmul.f32 %v480, %v706
      %v982 = vmul.f32 %v480, %v710
      %v983 = vmul.f32 %v480, %v714
      %v984 = vmul.f32 %v480, %v718
      %v985 = vmul.f32 %v480, %v722
      %v986 = vmul.f32 %v480, %v726
      %v987 = vmul.f32 %v480, %v730
      %v988 = vmul.f32 %v480, %v734
      %v989 = vmul.f32 %v480, %v738
      %v990 = vmul.f32 %v480, %v742
      %v991 = vmul.f32 %v480, %v746
      %v992 = vmul.f32 %v480, %v750
      %v993 = vmul.f32 %v480, %v754
      %v994 = vmul.f32 %v480, %v758
      %v995 = vmul.f32 %v480, %v762
      %v996 = vmul.f32 %v480, %v766
      %v997 = vmul.f32 %v480, %v770
      %v998 = vmul.f32 %v480, %v774
      %v999 = vmul.f32 %v480, %v778
      %v1000 = vmul.f32 %v480, %v782
      %v1001 = vmul.f32 %v480, %v786
      %v1002 = vmul.f32 %v480, %v790
      %v1003 = vmul.f32 %v480, %v794
      %v1004 = vmul.f32 %v480, %v798
      %v1005 = vmul.f32 %v480, %v802
      %v1006 = vmul.f32 %v485, %v690
      %v1007 = vmul.f32 %v485, %v694
      %v1008 = vmul.f32 %v485, %v698
      %v1009 = vmul.f32 %v485, %v702
      %v1010 = vmul.f32 %v485, %v706
      %v1011 = vmul.f32 %v485, %v710
      %v1012 = vmul.f32 %v485, %v714
      %v1013 = vmul.f32 %v485, %v718
      %v1014 = vmul.f32 %v485, %v722
      %v1015 = vmul.f32 %v485, %v726
      %v1016 = vmul.f32 %v485, %v730
      %v1017 = vmul.f32 %v485, %v734
      %v1018 = vmul.f32 %v485, %v738
      %v1019 = vmul.f32 %v485, %v742
      %v1020 = vmul.f32 %v485, %v746
      %v1021 = vmul.f32 %v485, %v750
      %v1022 = vmul.f32 %v485, %v754
      %v1023 = vmul.f32 %v485, %v758
      %v1024 = vmul.f32 %v485, %v762
      %v1025 = vmul.f32 %v485, %v766
      %v1026 = vmul.f32 %v485, %v770
      %v1027 = vmul.f32 %v485, %v774
      %v1028 = vmul.f32 %v485, %v778
      %v1029 = vmul.f32 %v485, %v782
      %v1030 = vmul.f32 %v485, %v786
      %v1031 = vmul.f32 %v485, %v790
      %v1032 = vmul.f32 %v485, %v794
      %v1033 = vmul.f32 %v485, %v798
      %v1034 = vmul.f32 %v485, %v802
      %v1035 = vmul.f32 %v490, %v690
      %v1036 = vmul.f32 %v490, %v694
      %v1037 = vmul.f32 %v490, %v698
      %v1038 = vmul.f32 %v490, %v702
      %v1039 = vmul.f32 %v490, %v706
      %v1040 = vmul.f32 %v490, %v710
      %v1041 = vmul.f32 %v490, %v714
      %v1042 = vmul.f32 %v490, %v718
      %v1043 = vmul.f32 %v490, %v722
      %v1044 = vmul.f32 %v490, %v726
      %v1045 = vmul.f32 %v490, %v730
      %v1046 = vmul.f32 %v490, %v734
      %v1047 = vmul.f32 %v490, %v738
      %v1048 = vmul.f32 %v490, %v742
      %v1049 = vmul.f32 %v490, %v746
      %v1050 = vmul.f32 %v490, %v750
      %v1051 = vmul.f32 %v490, %v754
      %v1052 = vmul.f32 %v490, %v758
      %v1053 = vmul.f32 %v490, %v762
      %v1054 = vmul.f32 %v490, %v766
      %v1055 = vmul.f32 %v490, %v770
      %v1056 = vmul.f32 %v490, %v774
      %v1057 = vmul.f32 %v490, %v778
      %v1058 = vmul.f32 %v490, %v782
      %v1059 = vmul.f32 %v490, %v786
      %v1060 = vmul.f32 %v490, %v790
      %v1061 = vmul.f32 %v490, %v794
      %v1062 = vmul.f32 %v490, %v798
      %v1063 = vmul.f32 %v490, %v802
      %v1064 = vmul.f32 %v495, %v690
      %v1065 = vmul.f32 %v495, %v694
      %v1066 = vmul.f32 %v495, %v698
      %v1067 = vmul.f32 %v495, %v702
      %v1068 = vmul.f32 %v495, %v706
      %v1069 = vmul.f32 %v495, %v710
      %v1070 = vmul.f32 %v495, %v714
      %v1071 = vmul.f32 %v495, %v718
      %v1072 = vmul.f32 %v495, %v722
      %v1073 = vmul.f32 %v495, %v726
      %v1074 = vmul.f32 %v495, %v730
      %v1075 = vmul.f32 %v495, %v734
      %v1076 = vmul.f32 %v495, %v738
      %v1077 = vmul.f32 %v495, %v742
      %v1078 = vmul.f32 %v495, %v746
      %v1079 = vmul.f32 %v495, %v750
      %v1080 = vmul.f32 %v495, %v754
      %v1081 = vmul.f32 %v495, %v758
      %v1082 = vmul.f32 %v495, %v762
      %v1083 = vmul.f32 %v495, %v766
      %v1084 = vmul.f32 %v495, %v770
      %v1085 = vmul.f32 %v495, %v774
      %v1086 = vmul.f32 %v495, %v778
      %v1087 = vmul.f32 %v495, %v782
      %v1088 = vmul.f32 %v495, %v786
      %v1089 = vmul.f32 %v495, %v790
      %v1090 = vmul.f32 %v495, %v794
      %v1091 = vmul.f32 %v495, %v798
      %v1092 = vmul.f32 %v495, %v802
      %v1093 = vmul.f32 %v500, %v690
      %v1094 = vmul.f32 %v500, %v694
      %v1095 = vmul.f32 %v500, %v698
      %v1096 = vmul.f32 %v500, %v702
      %v1097 = vmul.f32 %v500, %v706
      %v1098 = vmul.f32 %v500, %v710
      %v1099 = vmul.f32 %v500, %v714
      %v1100 = vmul.f32 %v500, %v718
      %v1101 = vmul.f32 %v500, %v722
      %v1102 = vmul.f32 %v500, %v726
      %v1103 = vmul.f32 %v500, %v730
      %v1104 = vmul.f32 %v500, %v734
      %v1105 = vmul.f32 %v500, %v738
      %v1106 = vmul.f32 %v500, %v742
      %v1107 = vmul.f32 %v500, %v746
      %v1108 = vmul.f32 %v500, %v750
      %v1109 = vmul.f32 %v500, %v754
      %v1110 = vmul.f32 %v500, %v758
      %v1111 = vmul.f32 %v500, %v762
      %v1112 = vmul.f32 %v500, %v766
      %v1113 = vmul.f32 %v500, %v770
      %v1114 = vmul.f32 %v500, %v774
      %v1115 = vmul.f32 %v500, %v778
      %v1116 = vmul.f32 %v500, %v782
      %v1117 = vmul.f32 %v500, %v786
      %v1118 = vmul.f32 %v500, %v790
      %v1119 = vmul.f32 %v500, %v794
      %v1120 = vmul.f32 %v500, %v798
      %v1121 = vmul.f32 %v500, %v802
      %v1122 = vmul.f32 %v505, %v690
      %v1123 = vmul.f32 %v505, %v694
      %v1124 = vmul.f32 %v505, %v698
      %v1125 = vmul.f32 %v505, %v702
      %v1126 = vmul.f32 %v505, %v706
      %v1127 = vmul.f32 %v505, %v710
      %v1128 = vmul.f32 %v505, %v714
      %v1129 = vmul.f32 %v505, %v718
      %v1130 = vmul.f32 %v505, %v722
      %v1131 = vmul.f32 %v505, %v726
      %v1132 = vmul.f32 %v505, %v730
      %v1133 = vmul.f32 %v505, %v734
      %v1134 = vmul.f32 %v505, %v738
      %v1135 = vmul.f32 %v505, %v742
      %v1136 = vmul.f32 %v505, %v746
      %v1137 = vmul.f32 %v505, %v750
      %v1138 = vmul.f32 %v505, %v754
      %v1139 = vmul.f32 %v505, %v758
      %v1140 = vmul.f32 %v505, %v762
      %v1141 = vmul.f32 %v505, %v766
      %v1142 = vmul.f32 %v505, %v770
      %v1143 = vmul.f32 %v505, %v774
      %v1144 = vmul.f32 %v505, %v778
      %v1145 = vmul.f32 %v505, %v782
      %v1146 = vmul.f32 %v505, %v786
      %v1147 = vmul.f32 %v505, %v790
      %v1148 = vmul.f32 %v505, %v794
      %v1149 = vmul.f32 %v505, %v798
      %v1150 = vmul.f32 %v505, %v802
      %v1151 = vmul.f32 %v510, %v690
      %v1152 = vmul.f32 %v510, %v694
      %v1153 = vmul.f32 %v510, %v698
      %v1154 = vmul.f32 %v510, %v702
      %v1155 = vmul.f32 %v510, %v706
      %v1156 = vmul.f32 %v510, %v710
      %v1157 = vmul.f32 %v510, %v714
      %v1158 = vmul.f32 %v510, %v718
      %v1159 = vmul.f32 %v510, %v722
      %v1160 = vmul.f32 %v510, %v726
      %v1161 = vmul.f32 %v510, %v730
      %v1162 = vmul.f32 %v510, %v734
      %v1163 = vmul.f32 %v510, %v738
      %v1164 = vmul.f32 %v510, %v742
      %v1165 = vmul.f32 %v510, %v746
      %v1166 = vmul.f32 %v510, %v750
      %v1167 = vmul.f32 %v510, %v754
      %v1168 = vmul.f32 %v510, %v758
      %v1169 = vmul.f32 %v510, %v762
      %v1170 = vmul.f32 %v510, %v766
      %v1171 = vmul.f32 %v510, %v770
      %v1172 = vmul.f32 %v510, %v774
      %v1173 = vmul.f32 %v510, %v778
      %v1174 = vmul.f32 %v510, %v782
      %v1175 = vmul.f32 %v510, %v786
      %v1176 = vmul.f32 %v510, %v790
      %v1177 = vmul.f32 %v510, %v794
      %v1178 = vmul.f32 %v510, %v798
      %v1179 = vmul.f32 %v510, %v802
      %v1180 = vmul.f32 %v515, %v690
      %v1181 = vmul.f32 %v515, %v694
      %v1182 = vmul.f32 %v515, %v698
      %v1183 = vmul.f32 %v515, %v702
      %v1184 = vmul.f32 %v515, %v706
      %v1185 = vmul.f32 %v515, %v710
      %v1186 = vmul.f32 %v515, %v714
      %v1187 = vmul.f32 %v515, %v718
      %v1188 = vmul.f32 %v515, %v722
      %v1189 = vmul.f32 %v515, %v726
      %v1190 = vmul.f32 %v515, %v730
      %v1191 = vmul.f32 %v515, %v734
      %v1192 = vmul.f32 %v515, %v738
      %v1193 = vmul.f32 %v515, %v742
      %v1194 = vmul.f32 %v515, %v746
      %v1195 = vmul.f32 %v515, %v750
      %v1196 = vmul.f32 %v515, %v754
      %v1197 = vmul.f32 %v515, %v758
      %v1198 = vmul.f32 %v515, %v762
      %v1199 = vmul.f32 %v515, %v766
      %v1200 = vmul.f32 %v515, %v770
      %v1201 = vmul.f32 %v515, %v774
      %v1202 = vmul.f32 %v515, %v778
      %v1203 = vmul.f32 %v515, %v782
      %v1204 = vmul.f32 %v515, %v786
      %v1205 = vmul.f32 %v515, %v790
      %v1206 = vmul.f32 %v515, %v794
      %v1207 = vmul.f32 %v515, %v798
      %v1208 = vmul.f32 %v515, %v802
      %v1209 = vmul.f32 %v520, %v690
      %v1210 = vmul.f32 %v520, %v694
      %v1211 = vmul.f32 %v520, %v698
      %v1212 = vmul.f32 %v520, %v702
      %v1213 = vmul.f32 %v520, %v706
      %v1214 = vmul.f32 %v520, %v710
      %v1215 = vmul.f32 %v520, %v714
      %v1216 = vmul.f32 %v520, %v718
      %v1217 = vmul.f32 %v520, %v722
      %v1218 = vmul.f32 %v520, %v726
      %v1219 = vmul.f32 %v520, %v730
      %v1220 = vmul.f32 %v520, %v734
      %v1221 = vmul.f32 %v520, %v738
      %v1222 = vmul.f32 %v520, %v742
      %v1223 = vmul.f32 %v520, %v746
      %v1224 = vmul.f32 %v520, %v750
      %v1225 = vmul.f32 %v520, %v754
      %v1226 = vmul.f32 %v520, %v758
      %v1227 = vmul.f32 %v520, %v762
      %v1228 = vmul.f32 %v520, %v766
      %v1229 = vmul.f32 %v520, %v770
      %v1230 = vmul.f32 %v520, %v774
      %v1231 = vmul.f32 %v520, %v778
      %v1232 = vmul.f32 %v520, %v782
      %v1233 = vmul.f32 %v520, %v786
      %v1234 = vmul.f32 %v520, %v790
      %v1235 = vmul.f32 %v520, %v794
      %v1236 = vmul.f32 %v520, %v798
      %v1237 = vmul.f32 %v520, %v802
      %v1238 = vmul.f32 %v525, %v690
      %v1239 = vmul.f32 %v525, %v694
      %v1240 = vmul.f32 %v525, %v698
      %v1241 = vmul.f32 %v525, %v702
      %v1242 = vmul.f32 %v525, %v706
      %v1243 = vmul.f32 %v525, %v710
      %v1244 = vmul.f32 %v525, %v714
      %v1245 = vmul.f32 %v525, %v718
      %v1246 = vmul.f32 %v525, %v722
      %v1247 = vmul.f32 %v525, %v726
      %v1248 = vmul.f32 %v525, %v730
      %v1249 = vmul.f32 %v525, %v734
      %v1250 = vmul.f32 %v525, %v738
      %v1251 = vmul.f32 %v525, %v742
      %v1252 = vmul.f32 %v525, %v746
      %v1253 = vmul.f32 %v525, %v750
      %v1254 = vmul.f32 %v525, %v754
      %v1255 = vmul.f32 %v525, %v758
      %v1256 = vmul.f32 %v525, %v762
      %v1257 = vmul.f32 %v525, %v766
      %v1258 = vmul.f32 %v525, %v770
      %v1259 = vmul.f32 %v525, %v774
      %v1260 = vmul.f32 %v525, %v778
      %v1261 = vmul.f32 %v525, %v782
      %v1262 = vmul.f32 %v525, %v786
      %v1263 = vmul.f32 %v525, %v790
      %v1264 = vmul.f32 %v525, %v794
      %v1265 = vmul.f32 %v525, %v798
      %v1266 = vmul.f32 %v525, %v802
      %v1267 = vadd.f32 %v305, %v803
      %v1268 = vadd.f32 %v309, %v804
      %v1269 = vadd.f32 %v313, %v805
      %v1270 = vadd.f32 %v317, %v806
      %v1271 = vadd.f32 %v321, %v807
      %v1272 = vadd.f32 %v325, %v808
      %v1273 = vadd.f32 %v329, %v809
      %v1274 = vadd.f32 %v333, %v810
      %v1275 = vadd.f32 %v337, %v811
      %v1276 = vadd.f32 %v341, %v812
      %v1277 = vadd.f32 %v345, %v813
      %v1278 = vadd.f32 %v349, %v814
      %v1279 = vadd.f32 %v353, %v815
      %v1280 = vadd.f32 %v357, %v816
      %v1281 = vadd.f32 %v361, %v817
      %v1282 = vadd.f32 %v365, %v818
      %v1283 = vadd.f32 %v369, %v819
      %v1284 = vadd.f32 %v373, %v820
      %v1285 = vadd.f32 %v377, %v821
      %v1286 = vadd.f32 %v381, %v822
      %v1287 = vadd.f32 %v385, %v823
      %v1288 = vadd.f32 %v389, %v824
      %v1289 = vadd.f32 %v393, %v825
      %v1290 = vadd.f32 %v397, %v826
      %v1291 = vadd.f32 %v401, %v827
      %v1292 = vadd.f32 %v405, %v828
      %v1293 = vadd.f32 %v409, %v829
      %v1294 = vadd.f32 %v413, %v830
      %v1295 = vadd.f32 %v417, %v831
      %v1296 = vadd.f32 %v305, %v832
      %v1297 = vadd.f32 %v309, %v833
      %v1298 = vadd.f32 %v313, %v834
      %v1299 = vadd.f32 %v317, %v835
      %v1300 = vadd.f32 %v321, %v836
      %v1301 = vadd.f32 %v325, %v837
      %v1302 = vadd.f32 %v329, %v838
      %v1303 = vadd.f32 %v333, %v839
      %v1304 = vadd.f32 %v337, %v840
      %v1305 = vadd.f32 %v341, %v841
      %v1306 = vadd.f32 %v345, %v842
      %v1307 = vadd.f32 %v349, %v843
      %v1308 = vadd.f32 %v353, %v844
      %v1309 = vadd.f32 %v357, %v845
      %v1310 = vadd.f32 %v361, %v846
      %v1311 = vadd.f32 %v365, %v847
      %v1312 = vadd.f32 %v369, %v848
      %v1313 = vadd.f32 %v373, %v849
      %v1314 = vadd.f32 %v377, %v850
      %v1315 = vadd.f32 %v381, %v851
      %v1316 = vadd.f32 %v385, %v852
      %v1317 = vadd.f32 %v389, %v853
      %v1318 = vadd.f32 %v393, %v854
      %v1319 = vadd.f32 %v397, %v855
      %v1320 = vadd.f32 %v401, %v856
      %v1321 = vadd.f32 %v405, %v857
      %v1322 = vadd.f32 %v409, %v858
      %v1323 = vadd.f32 %v413, %v859
      %v1324 = vadd.f32 %v417, %v860
      %v1325 = vadd.f32 %v305, %v861
      %v1326 = vadd.f32 %v309, %v862
      %v1327 = vadd.f32 %v313, %v863
      %v1328 = vadd.f32 %v317, %v864
      %v1329 = vadd.f32 %v321, %v865
      %v1330 = vadd.f32 %v325, %v866
      %v1331 = vadd.f32 %v329, %v867
      %v1332 = vadd.f32 %v333, %v868
      %v1333 = vadd.f32 %v337, %v869
      %v1334 = vadd.f32 %v341, %v870
      %v1335 = vadd.f32 %v345, %v871
      %v1336 = vadd.f32 %v349, %v872
      %v1337 = vadd.f32 %v353, %v873
      %v1338 = vadd.f32 %v357, %v874
      %v1339 = vadd.f32 %v361, %v875
      %v1340 = vadd.f32 %v365, %v876
      %v1341 = vadd.f32 %v369, %v877
      %v1342 = vadd.f32 %v373, %v878
      %v1343 = vadd.f32 %v377, %v879
      %v1344 = vadd.f32 %v381, %v880
      %v1345 = vadd.f32 %v385, %v881
      %v1346 = vadd.f32 %v389, %v882
      %v1347 = vadd.f32 %v393, %v883
      %v1348 = vadd.f32 %v397, %v884
      %v1349 = vadd.f32 %v401, %v885
      %v1350 = vadd.f32 %v405, %v886
      %v1351 = vadd.f32 %v409, %v887
      %v1352 = vadd.f32 %v413, %v888
      %v1353 = vadd.f32 %v417, %v889
      %v1354 = vadd.f32 %v305, %v890
      %v1355 = vadd.f32 %v309, %v891
      %v1356 = vadd.f32 %v313, %v892
      %v1357 = vadd.f32 %v317, %v893
      %v1358 = vadd.f32 %v321, %v894
      %v1359 = vadd.f32 %v325, %v895
      %v1360 = vadd.f32 %v329, %v896
      %v1361 = vadd.f32 %v333, %v897
      %v1362 = vadd.f32 %v337, %v898
      %v1363 = vadd.f32 %v341, %v899
      %v1364 = vadd.f32 %v345, %v900
      %v1365 = vadd.f32 %v349, %v901
      %v1366 = vadd.f32 %v353, %v902
      %v1367 = vadd.f32 %v357, %v903
      %v1368 = vadd.f32 %v361, %v904
      %v1369 = vadd.f32 %v365, %v905
      %v1370 = vadd.f32 %v369, %v906
      %v1371 = vadd.f32 %v373, %v907
      %v1372 = vadd.f32 %v377, %v908
      %v1373 = vadd.f32 %v381, %v909
      %v1374 = vadd.f32 %v385, %v910
      %v1375 = vadd.f32 %v389, %v911
      %v1376 = vadd.f32 %v393, %v912
      %v1377 = vadd.f32 %v397, %v913
      %v1378 = vadd.f32 %v401, %v914
      %v1379 = vadd.f32 %v405, %v915
      %v1380 = vadd.f32 %v409, %v916
      %v1381 = vadd.f32 %v413, %v917
      %v1382 = vadd.f32 %v417, %v918
      %v1383 = vadd.f32 %v305, %v919
      %v1384 = vadd.f32 %v309, %v920
      %v1385 = vadd.f32 %v313, %v921
      %v1386 = vadd.f32 %v317, %v922
      %v1387 = vadd.f32 %v321, %v923
      %v1388 = vadd.f32 %v325, %v924
      %v1389 = vadd.f32 %v329, %v925
      %v1390 = vadd.f32 %v333, %v926
      %v1391 = vadd.f32 %v337, %v927
      %v1392 = vadd.f32 %v341, %v928
      %v1393 = vadd.f32 %v345, %v929
      %v1394 = vadd.f32 %v349, %v930
      %v1395 = vadd.f32 %v353, %v931
      %v1396 = vadd.f32 %v357, %v932
      %v1397 = vadd.f32 %v361, %v933
      %v1398 = vadd.f32 %v365, %v934
      %v1399 = vadd.f32 %v369, %v935
      %v1400 = vadd.f32 %v373, %v936
      %v1401 = vadd.f32 %v377, %v937
      %v1402 = vadd.f32 %v381, %v938
      %v1403 = vadd.f32 %v385, %v939
      %v1404 = vadd.f32 %v389, %v940
      %v1405 = vadd.f32 %v393, %v941
      %v1406 = vadd.f32 %v397, %v942
      %v1407 = vadd.f32 %v401, %v943
      %v1408 = vadd.f32 %v405, %v944
      %v1409 = vadd.f32 %v409, %v945
      %v1410 = vadd.f32 %v413, %v946
      %v1411 = vadd.f32 %v417, %v947
      %v1412 = vadd.f32 %v305, %v948
      %v1413 = vadd.f32 %v309, %v949
      %v1414 = vadd.f32 %v313, %v950
      %v1415 = vadd.f32 %v317, %v951
      %v1416 = vadd.f32 %v321, %v952
      %v1417 = vadd.f32 %v325, %v953
      %v1418 = vadd.f32 %v329, %v954
      %v1419 = vadd.f32 %v333, %v955
      %v1420 = vadd.f32 %v337, %v956
      %v1421 = vadd.f32 %v341, %v957
      %v1422 = vadd.f32 %v345, %v958
      %v1423 = vadd.f32 %v349, %v959
      %v1424 = vadd.f32 %v353, %v960
      %v1425 = vadd.f32 %v357, %v961
      %v1426 = vadd.f32 %v361, %v962
      %v1427 = vadd.f32 %v365, %v963
      %v1428 = vadd.f32 %v369, %v964
      %v1429 = vadd.f32 %v373, %v965
      %v1430 = vadd.f32 %v377, %v966
      %v1431 = vadd.f32 %v381, %v967
      %v1432 = vadd.f32 %v385, %v968
      %v1433 = vadd.f32 %v389, %v969
      %v1434 = vadd.f32 %v393, %v970
      %v1435 = vadd.f32 %v397, %v971
      %v1436 = vadd.f32 %v401, %v972
      %v1437 = vadd.f32 %v405, %v973
      %v1438 = vadd.f32 %v409, %v974
      %v1439 = vadd.f32 %v413, %v975
      %v1440 = vadd.f32 %v417, %v976
      %v1441 = vadd.f32 %v305, %v977
      %v1442 = vadd.f32 %v309, %v978
      %v1443 = vadd.f32 %v313, %v979
      %v1444 = vadd.f32 %v317, %v980
      %v1445 = vadd.f32 %v321, %v981
      %v1446 = vadd.f32 %v325, %v982
      %v1447 = vadd.f32 %v329, %v983
      %v1448 = vadd.f32 %v333, %v984
      %v1449 = vadd.f32 %v337, %v985
      %v1450 = vadd.f32 %v341, %v986
      %v1451 = vadd.f32 %v345, %v987
      %v1452 = vadd.f32 %v349, %v988
      %v1453 = vadd.f32 %v353, %v989
      %v1454 = vadd.f32 %v357, %v990
      %v1455 = vadd.f32 %v361, %v991
      %v1456 = vadd.f32 %v365, %v992
      %v1457 = vadd.f32 %v369, %v993
      %v1458 = vadd.f32 %v373, %v994
      %v1459 = vadd.f32 %v377, %v995
      %v1460 = vadd.f32 %v381, %v996
      %v1461 = vadd.f32 %v385, %v997
      %v1462 = vadd.f32 %v389, %v998
      %v1463 = vadd.f32 %v393, %v999
      %v1464 = vadd.f32 %v397, %v1000
      %v1465 = vadd.f32 %v401, %v1001
      %v1466 = vadd.f32 %v405, %v1002
      %v1467 = vadd.f32 %v409, %v1003
      %v1468 = vadd.f32 %v413, %v1004
      %v1469 = vadd.f32 %v417, %v1005
      %v1470 = vadd.f32 %v305, %v1006
      %v1471 = vadd.f32 %v309, %v1007
      %v1472 = vadd.f32 %v313, %v1008
      %v1473 = vadd.f32 %v317, %v1009
      %v1474 = vadd.f32 %v321, %v1010
      %v1475 = vadd.f32 %v325, %v1011
      %v1476 = vadd.f32 %v329, %v1012
      %v1477 = vadd.f32 %v333, %v1013
      %v1478 = vadd.f32 %v337, %v1014
      %v1479 = vadd.f32 %v341, %v1015
      %v1480 = vadd.f32 %v345, %v1016
      %v1481 = vadd.f32 %v349, %v1017
      %v1482 = vadd.f32 %v353, %v1018
      %v1483 = vadd.f32 %v357, %v1019
      %v1484 = vadd.f32 %v361, %v1020
      %v1485 = vadd.f32 %v365, %v1021
      %v1486 = vadd.f32 %v369, %v1022
      %v1487 = vadd.f32 %v373, %v1023
      %v1488 = vadd.f32 %v377, %v1024
      %v1489 = vadd.f32 %v381, %v1025
      %v1490 = vadd.f32 %v385, %v1026
      %v1491 = vadd.f32 %v389, %v1027
      %v1492 = vadd.f32 %v393, %v1028
      %v1493 = vadd.f32 %v397, %v1029
      %v1494 = vadd.f32 %v401, %v1030
      %v1495 = vadd.f32 %v405, %v1031
      %v1496 = vadd.f32 %v409, %v1032
      %v1497 = vadd.f32 %v413, %v1033
      %v1498 = vadd.f32 %v417, %v1034
      %v1499 = vadd.f32 %v305, %v1035
      %v1500 = vadd.f32 %v309, %v1036
      %v1501 = vadd.f32 %v313, %v1037
      %v1502 = vadd.f32 %v317, %v1038
      %v1503 = vadd.f32 %v321, %v1039
      %v1504 = vadd.f32 %v325, %v1040
      %v1505 = vadd.f32 %v329, %v1041
      %v1506 = vadd.f32 %v333, %v1042
      %v1507 = vadd.f32 %v337, %v1043
      %v1508 = vadd.f32 %v341, %v1044
      %v1509 = vadd.f32 %v345, %v1045
      %v1510 = vadd.f32 %v349, %v1046
      %v1511 = vadd.f32 %v353, %v1047
      %v1512 = vadd.f32 %v357, %v1048
      %v1513 = vadd.f32 %v361, %v1049
      %v1514 = vadd.f32 %v365, %v1050
      %v1515 = vadd.f32 %v369, %v1051
      %v1516 = vadd.f32 %v373, %v1052
      %v1517 = vadd.f32 %v377, %v1053
      %v1518 = vadd.f32 %v381, %v1054
      %v1519 = vadd.f32 %v385, %v1055
      %v1520 = vadd.f32 %v389, %v1056
      %v1521 = vadd.f32 %v393, %v1057
      %v1522 = vadd.f32 %v397, %v1058
      %v1523 = vadd.f32 %v401, %v1059
      %v1524 = vadd.f32 %v405, %v1060
      %v1525 = vadd.f32 %v409, %v1061
      %v1526 = vadd.f32 %v413, %v1062
      %v1527 = vadd.f32 %v417, %v1063
      %v1528 = vadd.f32 %v305, %v1064
      %v1529 = vadd.f32 %v309, %v1065
      %v1530 = vadd.f32 %v313, %v1066
      %v1531 = vadd.f32 %v317, %v1067
      %v1532 = vadd.f32 %v321, %v1068
      %v1533 = vadd.f32 %v325, %v1069
      %v1534 = vadd.f32 %v329, %v1070
      %v1535 = vadd.f32 %v333, %v1071
      %v1536 = vadd.f32 %v337, %v1072
      %v1537 = vadd.f32 %v341, %v1073
      %v1538 = vadd.f32 %v345, %v1074
      %v1539 = vadd.f32 %v349, %v1075
      %v1540 = vadd.f32 %v353, %v1076
      %v1541 = vadd.f32 %v357, %v1077
      %v1542 = vadd.f32 %v361, %v1078
      %v1543 = vadd.f32 %v365, %v1079
      %v1544 = vadd.f32 %v369, %v1080
      %v1545 = vadd.f32 %v373, %v1081
      %v1546 = vadd.f32 %v377, %v1082
      %v1547 = vadd.f32 %v381, %v1083
      %v1548 = vadd.f32 %v385, %v1084
      %v1549 = vadd.f32 %v389, %v1085
      %v1550 = vadd.f32 %v393, %v1086
      %v1551 = vadd.f32 %v397, %v1087
      %v1552 = vadd.f32 %v401, %v1088
      %v1553 = vadd.f32 %v405, %v1089
      %v1554 = vadd.f32 %v409, %v1090
      %v1555 = vadd.f32 %v413, %v1091
      %v1556 = vadd.f32 %v417, %v1092
      %v1557 = vadd.f32 %v305, %v1093
      %v1558 = vadd.f32 %v309, %v1094
      %v1559 = vadd.f32 %v313, %v1095
      %v1560 = vadd.f32 %v317, %v1096
      %v1561 = vadd.f32 %v321, %v1097
      %v1562 = vadd.f32 %v325, %v1098
      %v1563 = vadd.f32 %v329, %v1099
      %v1564 = vadd.f32 %v333, %v1100
      %v1565 = vadd.f32 %v337, %v1101
      %v1566 = vadd.f32 %v341, %v1102
      %v1567 = vadd.f32 %v345, %v1103
      %v1568 = vadd.f32 %v349, %v1104
      %v1569 = vadd.f32 %v353, %v1105
      %v1570 = vadd.f32 %v357, %v1106
      %v1571 = vadd.f32 %v361, %v1107
      %v1572 = vadd.f32 %v365, %v1108
      %v1573 = vadd.f32 %v369, %v1109
      %v1574 = vadd.f32 %v373, %v1110
      %v1575 = vadd.f32 %v377, %v1111
      %v1576 = vadd.f32 %v381, %v1112
      %v1577 = vadd.f32 %v385, %v1113
      %v1578 = vadd.f32 %v389, %v1114
      %v1579 = vadd.f32 %v393, %v1115
      %v1580 = vadd.f32 %v397, %v1116
      %v1581 = vadd.f32 %v401, %v1117
      %v1582 = vadd.f32 %v405, %v1118
      %v1583 = vadd.f32 %v409, %v1119
      %v1584 = vadd.f32 %v413, %v1120
      %v1585 = vadd.f32 %v417, %v1121
      %v1586 = vadd.f32 %v305, %v1122
      %v1587 = vadd.f32 %v309, %v1123
      %v1588 = vadd.f32 %v313, %v1124
      %v1589 = vadd.f32 %v317, %v1125
      %v1590 = vadd.f32 %v321, %v1126
      %v1591 = vadd.f32 %v325, %v1127
      %v1592 = vadd.f32 %v329, %v1128
      %v1593 = vadd.f32 %v333, %v1129
      %v1594 = vadd.f32 %v337, %v1130
      %v1595 = vadd.f32 %v341, %v1131
      %v1596 = vadd.f32 %v345, %v1132
      %v1597 = vadd.f32 %v349, %v1133
      %v1598 = vadd.f32 %v353, %v1134
      %v1599 = vadd.f32 %v357, %v1135
      %v1600 = vadd.f32 %v361, %v1136
      %v1601 = vadd.f32 %v365, %v1137
      %v1602 = vadd.f32 %v369, %v1138
      %v1603 = vadd.f32 %v373, %v1139
      %v1604 = vadd.f32 %v377, %v1140
      %v1605 = vadd.f32 %v381, %v1141
      %v1606 = vadd.f32 %v385, %v1142
      %v1607 = vadd.f32 %v389, %v1143
      %v1608 = vadd.f32 %v393, %v1144
      %v1609 = vadd.f32 %v397, %v1145
      %v1610 = vadd.f32 %v401, %v1146
      %v1611 = vadd.f32 %v405, %v1147
      %v1612 = vadd.f32 %v409, %v1148
      %v1613 = vadd.f32 %v413, %v1149
      %v1614 = vadd.f32 %v417, %v1150
      %v1615 = vadd.f32 %v305, %v1151
      %v1616 = vadd.f32 %v309, %v1152
      %v1617 = vadd.f32 %v313, %v1153
      %v1618 = vadd.f32 %v317, %v1154
      %v1619 = vadd.f32 %v321, %v1155
      %v1620 = vadd.f32 %v325, %v1156
      %v1621 = vadd.f32 %v329, %v1157
      %v1622 = vadd.f32 %v333, %v1158
      %v1623 = vadd.f32 %v337, %v1159
      %v1624 = vadd.f32 %v341, %v1160
      %v1625 = vadd.f32 %v345, %v1161
      %v1626 = vadd.f32 %v349, %v1162
      %v1627 = vadd.f32 %v353, %v1163
      %v1628 = vadd.f32 %v357, %v1164
      %v1629 = vadd.f32 %v361, %v1165
      %v1630 = vadd.f32 %v365, %v1166
      %v1631 = vadd.f32 %v369, %v1167
      %v1632 = vadd.f32 %v373, %v1168
      %v1633 = vadd.f32 %v377, %v1169
      %v1634 = vadd.f32 %v381, %v1170
      %v1635 = vadd.f32 %v385, %v1171
      %v1636 = vadd.f32 %v389, %v1172
      %v1637 = vadd.f32 %v393, %v1173
      %v1638 = vadd.f32 %v397, %v1174
      %v1639 = vadd.f32 %v401, %v1175
      %v1640 = vadd.f32 %v405, %v1176
      %v1641 = vadd.f32 %v409, %v1177
      %v1642 = vadd.f32 %v413, %v1178
      %v1643 = vadd.f32 %v417, %v1179
      %v1644 = vadd.f32 %v305, %v1180
      %v1645 = vadd.f32 %v309, %v1181
      %v1646 = vadd.f32 %v313, %v1182
      %v1647 = vadd.f32 %v317, %v1183
      %v1648 = vadd.f32 %v321, %v1184
      %v1649 = vadd.f32 %v325, %v1185
      %v1650 = vadd.f32 %v329, %v1186
      %v1651 = vadd.f32 %v333, %v1187
      %v1652 = vadd.f32 %v337, %v1188
      %v1653 = vadd.f32 %v341, %v1189
      %v1654 = vadd.f32 %v345, %v1190
      %v1655 = vadd.f32 %v349, %v1191
      %v1656 = vadd.f32 %v353, %v1192
      %v1657 = vadd.f32 %v357, %v1193
      %v1658 = vadd.f32 %v361, %v1194
      %v1659 = vadd.f32 %v365, %v1195
      %v1660 = vadd.f32 %v369, %v1196
      %v1661 = vadd.f32 %v373, %v1197
      %v1662 = vadd.f32 %v377, %v1198
      %v1663 = vadd.f32 %v381, %v1199
      %v1664 = vadd.f32 %v385, %v1200
      %v1665 = vadd.f32 %v389, %v1201
      %v1666 = vadd.f32 %v393, %v1202
      %v1667 = vadd.f32 %v397, %v1203
      %v1668 = vadd.f32 %v401, %v1204
      %v1669 = vadd.f32 %v405, %v1205
      %v1670 = vadd.f32 %v409, %v1206
      %v1671 = vadd.f32 %v413, %v1207
      %v1672 = vadd.f32 %v417, %v1208
      %v1673 = vadd.f32 %v305, %v1209
      %v1674 = vadd.f32 %v309, %v1210
      %v1675 = vadd.f32 %v313, %v1211
      %v1676 = vadd.f32 %v317, %v1212
      %v1677 = vadd.f32 %v321, %v1213
      %v1678 = vadd.f32 %v325, %v1214
      %v1679 = vadd.f32 %v329, %v1215
      %v1680 = vadd.f32 %v333, %v1216
      %v1681 = vadd.f32 %v337, %v1217
      %v1682 = vadd.f32 %v341, %v1218
      %v1683 = vadd.f32 %v345, %v1219
      %v1684 = vadd.f32 %v349, %v1220
      %v1685 = vadd.f32 %v353, %v1221
      %v1686 = vadd.f32 %v357, %v1222
      %v1687 = vadd.f32 %v361, %v1223
      %v1688 = vadd.f32 %v365, %v1224
      %v1689 = vadd.f32 %v369, %v1225
      %v1690 = vadd.f32 %v373, %v1226
      %v1691 = vadd.f32 %v377, %v1227
      %v1692 = vadd.f32 %v381, %v1228
      %v1693 = vadd.f32 %v385, %v1229
      %v1694 = vadd.f32 %v389, %v1230
      %v1695 = vadd.f32 %v393, %v1231
      %v1696 = vadd.f32 %v397, %v1232
      %v1697 = vadd.f32 %v401, %v1233
      %v1698 = vadd.f32 %v405, %v1234
      %v1699 = vadd.f32 %v409, %v1235
      %v1700 = vadd.f32 %v413, %v1236
      %v1701 = vadd.f32 %v417, %v1237
      %v1702 = vadd.f32 %v305, %v1238
      %v1703 = vadd.f32 %v309, %v1239
      %v1704 = vadd.f32 %v313, %v1240
      %v1705 = vadd.f32 %v317, %v1241
      %v1706 = vadd.f32 %v321, %v1242
      %v1707 = vadd.f32 %v325, %v1243
      %v1708 = vadd.f32 %v329, %v1244
      %v1709 = vadd.f32 %v333, %v1245
      %v1710 = vadd.f32 %v337, %v1246
      %v1711 = vadd.f32 %v341, %v1247
      %v1712 = vadd.f32 %v345, %v1248
      %v1713 = vadd.f32 %v349, %v1249
      %v1714 = vadd.f32 %v353, %v1250
      %v1715 = vadd.f32 %v357, %v1251
      %v1716 = vadd.f32 %v361, %v1252
      %v1717 = vadd.f32 %v365, %v1253
      %v1718 = vadd.f32 %v369, %v1254
      %v1719 = vadd.f32 %v373, %v1255
      %v1720 = vadd.f32 %v377, %v1256
      %v1721 = vadd.f32 %v381, %v1257
      %v1722 = vadd.f32 %v385, %v1258
      %v1723 = vadd.f32 %v389, %v1259
      %v1724 = vadd.f32 %v393, %v1260
      %v1725 = vadd.f32 %v397, %v1261
      %v1726 = vadd.f32 %v401, %v1262
      %v1727 = vadd.f32 %v405, %v1263
      %v1728 = vadd.f32 %v409, %v1264
      %v1729 = vadd.f32 %v413, %v1265
      %v1730 = vadd.f32 %v417, %v1266
      %1731 = vset.pattern.permute.xlu0 1
      %1732 = vperm.xlu0 %1731, %v263
      %v1733 = vpop.permute.xlu0 %1732
      %1735 = vset.pattern.permute.xlu0 1
      %1736 = vperm.xlu0 %1735, %v264
      %v1737 = vpop.permute.xlu0 %1736
      %1739 = vset.pattern.permute.xlu0 1
      %1740 = vperm.xlu0 %1739, %v265
      %v1741 = vpop.permute.xlu0 %1740
      %1743 = vset.pattern.permute.xlu0 1
      %1744 = vperm.xlu0 %1743, %v266
      %v1745 = vpop.permute.xlu0 %1744
      %1747 = vset.pattern.permute.xlu0 1
      %1748 = vperm.xlu0 %1747, %v267
      %v1749 = vpop.permute.xlu0 %1748
      %1751 = vset.pattern.permute.xlu0 1
      %1752 = vperm.xlu0 %1751, %v268
      %v1753 = vpop.permute.xlu0 %1752
      %1755 = vset.pattern.permute.xlu0 1
      %1756 = vperm.xlu0 %1755, %v269
      %v1757 = vpop.permute.xlu0 %1756
      %1759 = vset.pattern.permute.xlu0 1
      %1760 = vperm.xlu0 %1759, %v270
      %v1761 = vpop.permute.xlu0 %1760
      %1763 = vset.pattern.permute.xlu0 1
      %1764 = vperm.xlu0 %1763, %v271
      %v1765 = vpop.permute.xlu0 %1764
      %1767 = vset.pattern.permute.xlu0 1
      %1768 = vperm.xlu0 %1767, %v272
      %v1769 = vpop.permute.xlu0 %1768
      %1771 = vset.pattern.permute.xlu0 1
      %1772 = vperm.xlu0 %1771, %v273
      %v1773 = vpop.permute.xlu0 %1772
      %1775 = vset.pattern.permute.xlu0 1
      %1776 = vperm.xlu0 %1775, %v274
      %v1777 = vpop.permute.xlu0 %1776
      %1779 = vset.pattern.permute.xlu0 1
      %1780 = vperm.xlu0 %1779, %v275
      %v1781 = vpop.permute.xlu0 %1780
      %1783 = vset.pattern.permute.xlu0 1
      %1784 = vperm.xlu0 %1783, %v276
      %v1785 = vpop.permute.xlu0 %1784
      %1787 = vset.pattern.permute.xlu0 1
      %1788 = vperm.xlu0 %1787, %v277
      %v1789 = vpop.permute.xlu0 %1788
      %1791 = vset.pattern.permute.xlu0 1
      %1792 = vperm.xlu0 %1791, %v278
      %v1793 = vpop.permute.xlu0 %1792
      %v1795 = vlaneseq
      %v1796 = vshrl.u32 %v1795, 7
      %v1797 = vsub.s32 1, %v1796
      %v1798 = vrot.slane %v279, %v1797
      %v1799 = vlaneseq
      %v1800 = vshrl.u32 %v1799, 7
      %v1801 = vsub.s32 5, %v1800
      %v1802 = vrot.slane %v279, %v1801
      %v1803 = vlaneseq
      %v1804 = vshrl.u32 %v1803, 7
      %v1805 = vsub.s32 1, %v1804
      %v1806 = vrot.slane %v280, %v1805
      %v1807 = vlaneseq
      %v1808 = vshrl.u32 %v1807, 7
      %v1809 = vsub.s32 5, %v1808
      %v1810 = vrot.slane %v280, %v1809
      %v1811 = vlaneseq
      %v1812 = vshrl.u32 %v1811, 7
      %v1813 = vsub.s32 1, %v1812
      %v1814 = vrot.slane %v281, %v1813
      %v1815 = vlaneseq
      %v1816 = vshrl.u32 %v1815, 7
      %v1817 = vsub.s32 5, %v1816
      %v1818 = vrot.slane %v281, %v1817
      %v1819 = vlaneseq
      %v1820 = vshrl.u32 %v1819, 7
      %v1821 = vsub.s32 1, %v1820
      %v1822 = vrot.slane %v282, %v1821
      %v1823 = vlaneseq
      %v1824 = vshrl.u32 %v1823, 7
      %v1825 = vsub.s32 5, %v1824
      %v1826 = vrot.slane %v282, %v1825
      %v1827 = vlaneseq
      %v1828 = vshrl.u32 %v1827, 7
      %v1829 = vsub.s32 1, %v1828
      %v1830 = vrot.slane %v283, %v1829
      %v1831 = vlaneseq
      %v1832 = vshrl.u32 %v1831, 7
      %v1833 = vsub.s32 5, %v1832
      %v1834 = vrot.slane %v283, %v1833
      %v1835 = vlaneseq
      %v1836 = vshrl.u32 %v1835, 7
      %v1837 = vsub.s32 1, %v1836
      %v1838 = vrot.slane %v284, %v1837
      %v1839 = vlaneseq
      %v1840 = vshrl.u32 %v1839, 7
      %v1841 = vsub.s32 5, %v1840
      %v1842 = vrot.slane %v284, %v1841
      %v1843 = vlaneseq
      %v1844 = vshrl.u32 %v1843, 7
      %v1845 = vsub.s32 1, %v1844
      %v1846 = vrot.slane %v285, %v1845
      %v1847 = vlaneseq
      %v1848 = vshrl.u32 %v1847, 7
      %v1849 = vsub.s32 5, %v1848
      %v1850 = vrot.slane %v285, %v1849
      %v1851 = vlaneseq
      %v1852 = vshrl.u32 %v1851, 7
      %v1853 = vsub.s32 1, %v1852
      %v1854 = vrot.slane %v286, %v1853
      %v1855 = vlaneseq
      %v1856 = vshrl.u32 %v1855, 7
      %v1857 = vsub.s32 5, %v1856
      %v1858 = vrot.slane %v286, %v1857
      %v1859 = vlaneseq
      %v1860 = vshrl.u32 %v1859, 7
      %v1861 = vsub.s32 1, %v1860
      %v1862 = vrot.slane %v287, %v1861
      %v1863 = vlaneseq
      %v1864 = vshrl.u32 %v1863, 7
      %v1865 = vsub.s32 5, %v1864
      %v1866 = vrot.slane %v287, %v1865
      %v1867 = vlaneseq
      %v1868 = vshrl.u32 %v1867, 7
      %v1869 = vsub.s32 1, %v1868
      %v1870 = vrot.slane %v288, %v1869
      %v1871 = vlaneseq
      %v1872 = vshrl.u32 %v1871, 7
      %v1873 = vsub.s32 5, %v1872
      %v1874 = vrot.slane %v288, %v1873
      %v1875 = vlaneseq
      %v1876 = vshrl.u32 %v1875, 7
      %v1877 = vsub.s32 1, %v1876
      %v1878 = vrot.slane %v289, %v1877
      %v1879 = vlaneseq
      %v1880 = vshrl.u32 %v1879, 7
      %v1881 = vsub.s32 5, %v1880
      %v1882 = vrot.slane %v289, %v1881
      %v1883 = vlaneseq
      %v1884 = vshrl.u32 %v1883, 7
      %v1885 = vsub.s32 1, %v1884
      %v1886 = vrot.slane %v290, %v1885
      %v1887 = vlaneseq
      %v1888 = vshrl.u32 %v1887, 7
      %v1889 = vsub.s32 5, %v1888
      %v1890 = vrot.slane %v290, %v1889
      %v1891 = vlaneseq
      %v1892 = vshrl.u32 %v1891, 7
      %v1893 = vsub.s32 1, %v1892
      %v1894 = vrot.slane %v291, %v1893
      %v1895 = vlaneseq
      %v1896 = vshrl.u32 %v1895, 7
      %v1897 = vsub.s32 5, %v1896
      %v1898 = vrot.slane %v291, %v1897
      %v1899 = vlaneseq
      %v1900 = vshrl.u32 %v1899, 7
      %v1901 = vsub.s32 1, %v1900
      %v1902 = vrot.slane %v292, %v1901
      %v1903 = vlaneseq
      %v1904 = vshrl.u32 %v1903, 7
      %v1905 = vsub.s32 5, %v1904
      %v1906 = vrot.slane %v292, %v1905
      %v1907 = vlaneseq
      %v1908 = vshrl.u32 %v1907, 7
      %v1909 = vsub.s32 1, %v1908
      %v1910 = vrot.slane %v293, %v1909
      %v1940 = vlaneseq
      %v1941 = vshrl.u32 %v1940, 7
      %v1942 = vsub.s32 1, %v1941
      %v1943 = vrot.slane %v1798, %v1942
      %v1944 = vlaneseq
      %v1945 = vshrl.u32 %v1944, 7
      %v1946 = vsub.s32 1, %v1945
      %v1947 = vrot.slane %v1802, %v1946
      %v1948 = vlaneseq
      %v1949 = vshrl.u32 %v1948, 7
      %v1950 = vsub.s32 1, %v1949
      %v1951 = vrot.slane %v1806, %v1950
      %v1952 = vlaneseq
      %v1953 = vshrl.u32 %v1952, 7
      %v1954 = vsub.s32 1, %v1953
      %v1955 = vrot.slane %v1810, %v1954
      %v1956 = vlaneseq
      %v1957 = vshrl.u32 %v1956, 7
      %v1958 = vsub.s32 1, %v1957
      %v1959 = vrot.slane %v1814, %v1958
      %v1960 = vlaneseq
      %v1961 = vshrl.u32 %v1960, 7
      %v1962 = vsub.s32 1, %v1961
      %v1963 = vrot.slane %v1818, %v1962
      %v1964 = vlaneseq
      %v1965 = vshrl.u32 %v1964, 7
      %v1966 = vsub.s32 1, %v1965
      %v1967 = vrot.slane %v1822, %v1966
      %v1968 = vlaneseq
      %v1969 = vshrl.u32 %v1968, 7
      %v1970 = vsub.s32 1, %v1969
      %v1971 = vrot.slane %v1826, %v1970
      %v1972 = vlaneseq
      %v1973 = vshrl.u32 %v1972, 7
      %v1974 = vsub.s32 1, %v1973
      %v1975 = vrot.slane %v1830, %v1974
      %v1976 = vlaneseq
      %v1977 = vshrl.u32 %v1976, 7
      %v1978 = vsub.s32 1, %v1977
      %v1979 = vrot.slane %v1834, %v1978
      %v1980 = vlaneseq
      %v1981 = vshrl.u32 %v1980, 7
      %v1982 = vsub.s32 1, %v1981
      %v1983 = vrot.slane %v1838, %v1982
      %v1984 = vlaneseq
      %v1985 = vshrl.u32 %v1984, 7
      %v1986 = vsub.s32 1, %v1985
      %v1987 = vrot.slane %v1842, %v1986
      %v1988 = vlaneseq
      %v1989 = vshrl.u32 %v1988, 7
      %v1990 = vsub.s32 1, %v1989
      %v1991 = vrot.slane %v1846, %v1990
      %v1992 = vlaneseq
      %v1993 = vshrl.u32 %v1992, 7
      %v1994 = vsub.s32 1, %v1993
      %v1995 = vrot.slane %v1850, %v1994
      %v1996 = vlaneseq
      %v1997 = vshrl.u32 %v1996, 7
      %v1998 = vsub.s32 1, %v1997
      %v1999 = vrot.slane %v1854, %v1998
      %v2000 = vlaneseq
      %v2001 = vshrl.u32 %v2000, 7
      %v2002 = vsub.s32 1, %v2001
      %v2003 = vrot.slane %v1858, %v2002
      %v2004 = vlaneseq
      %v2005 = vshrl.u32 %v2004, 7
      %v2006 = vsub.s32 1, %v2005
      %v2007 = vrot.slane %v1862, %v2006
      %v2008 = vlaneseq
      %v2009 = vshrl.u32 %v2008, 7
      %v2010 = vsub.s32 1, %v2009
      %v2011 = vrot.slane %v1866, %v2010
      %v2012 = vlaneseq
      %v2013 = vshrl.u32 %v2012, 7
      %v2014 = vsub.s32 1, %v2013
      %v2015 = vrot.slane %v1870, %v2014
      %v2016 = vlaneseq
      %v2017 = vshrl.u32 %v2016, 7
      %v2018 = vsub.s32 1, %v2017
      %v2019 = vrot.slane %v1874, %v2018
      %v2020 = vlaneseq
      %v2021 = vshrl.u32 %v2020, 7
      %v2022 = vsub.s32 1, %v2021
      %v2023 = vrot.slane %v1878, %v2022
      %v2024 = vlaneseq
      %v2025 = vshrl.u32 %v2024, 7
      %v2026 = vsub.s32 1, %v2025
      %v2027 = vrot.slane %v1882, %v2026
      %v2028 = vlaneseq
      %v2029 = vshrl.u32 %v2028, 7
      %v2030 = vsub.s32 1, %v2029
      %v2031 = vrot.slane %v1886, %v2030
      %v2032 = vlaneseq
      %v2033 = vshrl.u32 %v2032, 7
      %v2034 = vsub.s32 1, %v2033
      %v2035 = vrot.slane %v1890, %v2034
      %v2036 = vlaneseq
      %v2037 = vshrl.u32 %v2036, 7
      %v2038 = vsub.s32 1, %v2037
      %v2039 = vrot.slane %v1894, %v2038
      %v2040 = vlaneseq
      %v2041 = vshrl.u32 %v2040, 7
      %v2042 = vsub.s32 1, %v2041
      %v2043 = vrot.slane %v1898, %v2042
      %v2044 = vlaneseq
      %v2045 = vshrl.u32 %v2044, 7
      %v2046 = vsub.s32 1, %v2045
      %v2047 = vrot.slane %v1902, %v2046
      %v2048 = vlaneseq
      %v2049 = vshrl.u32 %v2048, 7
      %v2050 = vsub.s32 1, %v2049
      %v2051 = vrot.slane %v1906, %v2050
      %v2052 = vlaneseq
      %v2053 = vshrl.u32 %v2052, 7
      %v2054 = vsub.s32 1, %v2053
      %v2055 = vrot.slane %v1910, %v2054
      %v2056 = vmul.f32 %v1733, %v1943
      %v2057 = vmul.f32 %v1733, %v1947
      %v2058 = vmul.f32 %v1733, %v1951
      %v2059 = vmul.f32 %v1733, %v1955
      %v2060 = vmul.f32 %v1733, %v1959
      %v2061 = vmul.f32 %v1733, %v1963
      %v2062 = vmul.f32 %v1733, %v1967
      %v2063 = vmul.f32 %v1733, %v1971
      %v2064 = vmul.f32 %v1733, %v1975
      %v2065 = vmul.f32 %v1733, %v1979
      %v2066 = vmul.f32 %v1733, %v1983
      %v2067 = vmul.f32 %v1733, %v1987
      %v2068 = vmul.f32 %v1733, %v1991
      %v2069 = vmul.f32 %v1733, %v1995
      %v2070 = vmul.f32 %v1733, %v1999
      %v2071 = vmul.f32 %v1733, %v2003
      %v2072 = vmul.f32 %v1733, %v2007
      %v2073 = vmul.f32 %v1733, %v2011
      %v2074 = vmul.f32 %v1733, %v2015
      %v2075 = vmul.f32 %v1733, %v2019
      %v2076 = vmul.f32 %v1733, %v2023
      %v2077 = vmul.f32 %v1733, %v2027
      %v2078 = vmul.f32 %v1733, %v2031
      %v2079 = vmul.f32 %v1733, %v2035
      %v2080 = vmul.f32 %v1733, %v2039
      %v2081 = vmul.f32 %v1733, %v2043
      %v2082 = vmul.f32 %v1733, %v2047
      %v2083 = vmul.f32 %v1733, %v2051
      %v2084 = vmul.f32 %v1733, %v2055
      %v2085 = vmul.f32 %v1737, %v1943
      %v2086 = vmul.f32 %v1737, %v1947
      %v2087 = vmul.f32 %v1737, %v1951
      %v2088 = vmul.f32 %v1737, %v1955
      %v2089 = vmul.f32 %v1737, %v1959
      %v2090 = vmul.f32 %v1737, %v1963
      %v2091 = vmul.f32 %v1737, %v1967
      %v2092 = vmul.f32 %v1737, %v1971
      %v2093 = vmul.f32 %v1737, %v1975
      %v2094 = vmul.f32 %v1737, %v1979
      %v2095 = vmul.f32 %v1737, %v1983
      %v2096 = vmul.f32 %v1737, %v1987
      %v2097 = vmul.f32 %v1737, %v1991
      %v2098 = vmul.f32 %v1737, %v1995
      %v2099 = vmul.f32 %v1737, %v1999
      %v2100 = vmul.f32 %v1737, %v2003
      %v2101 = vmul.f32 %v1737, %v2007
      %v2102 = vmul.f32 %v1737, %v2011
      %v2103 = vmul.f32 %v1737, %v2015
      %v2104 = vmul.f32 %v1737, %v2019
      %v2105 = vmul.f32 %v1737, %v2023
      %v2106 = vmul.f32 %v1737, %v2027
      %v2107 = vmul.f32 %v1737, %v2031
      %v2108 = vmul.f32 %v1737, %v2035
      %v2109 = vmul.f32 %v1737, %v2039
      %v2110 = vmul.f32 %v1737, %v2043
      %v2111 = vmul.f32 %v1737, %v2047
      %v2112 = vmul.f32 %v1737, %v2051
      %v2113 = vmul.f32 %v1737, %v2055
      %v2114 = vmul.f32 %v1741, %v1943
      %v2115 = vmul.f32 %v1741, %v1947
      %v2116 = vmul.f32 %v1741, %v1951
      %v2117 = vmul.f32 %v1741, %v1955
      %v2118 = vmul.f32 %v1741, %v1959
      %v2119 = vmul.f32 %v1741, %v1963
      %v2120 = vmul.f32 %v1741, %v1967
      %v2121 = vmul.f32 %v1741, %v1971
      %v2122 = vmul.f32 %v1741, %v1975
      %v2123 = vmul.f32 %v1741, %v1979
      %v2124 = vmul.f32 %v1741, %v1983
      %v2125 = vmul.f32 %v1741, %v1987
      %v2126 = vmul.f32 %v1741, %v1991
      %v2127 = vmul.f32 %v1741, %v1995
      %v2128 = vmul.f32 %v1741, %v1999
      %v2129 = vmul.f32 %v1741, %v2003
      %v2130 = vmul.f32 %v1741, %v2007
      %v2131 = vmul.f32 %v1741, %v2011
      %v2132 = vmul.f32 %v1741, %v2015
      %v2133 = vmul.f32 %v1741, %v2019
      %v2134 = vmul.f32 %v1741, %v2023
      %v2135 = vmul.f32 %v1741, %v2027
      %v2136 = vmul.f32 %v1741, %v2031
      %v2137 = vmul.f32 %v1741, %v2035
      %v2138 = vmul.f32 %v1741, %v2039
      %v2139 = vmul.f32 %v1741, %v2043
      %v2140 = vmul.f32 %v1741, %v2047
      %v2141 = vmul.f32 %v1741, %v2051
      %v2142 = vmul.f32 %v1741, %v2055
      %v2143 = vmul.f32 %v1745, %v1943
      %v2144 = vmul.f32 %v1745, %v1947
      %v2145 = vmul.f32 %v1745, %v1951
      %v2146 = vmul.f32 %v1745, %v1955
      %v2147 = vmul.f32 %v1745, %v1959
      %v2148 = vmul.f32 %v1745, %v1963
      %v2149 = vmul.f32 %v1745, %v1967
      %v2150 = vmul.f32 %v1745, %v1971
      %v2151 = vmul.f32 %v1745, %v1975
      %v2152 = vmul.f32 %v1745, %v1979
      %v2153 = vmul.f32 %v1745, %v1983
      %v2154 = vmul.f32 %v1745, %v1987
      %v2155 = vmul.f32 %v1745, %v1991
      %v2156 = vmul.f32 %v1745, %v1995
      %v2157 = vmul.f32 %v1745, %v1999
      %v2158 = vmul.f32 %v1745, %v2003
      %v2159 = vmul.f32 %v1745, %v2007
      %v2160 = vmul.f32 %v1745, %v2011
      %v2161 = vmul.f32 %v1745, %v2015
      %v2162 = vmul.f32 %v1745, %v2019
      %v2163 = vmul.f32 %v1745, %v2023
      %v2164 = vmul.f32 %v1745, %v2027
      %v2165 = vmul.f32 %v1745, %v2031
      %v2166 = vmul.f32 %v1745, %v2035
      %v2167 = vmul.f32 %v1745, %v2039
      %v2168 = vmul.f32 %v1745, %v2043
      %v2169 = vmul.f32 %v1745, %v2047
      %v2170 = vmul.f32 %v1745, %v2051
      %v2171 = vmul.f32 %v1745, %v2055
      %v2172 = vmul.f32 %v1749, %v1943
      %v2173 = vmul.f32 %v1749, %v1947
      %v2174 = vmul.f32 %v1749, %v1951
      %v2175 = vmul.f32 %v1749, %v1955
      %v2176 = vmul.f32 %v1749, %v1959
      %v2177 = vmul.f32 %v1749, %v1963
      %v2178 = vmul.f32 %v1749, %v1967
      %v2179 = vmul.f32 %v1749, %v1971
      %v2180 = vmul.f32 %v1749, %v1975
      %v2181 = vmul.f32 %v1749, %v1979
      %v2182 = vmul.f32 %v1749, %v1983
      %v2183 = vmul.f32 %v1749, %v1987
      %v2184 = vmul.f32 %v1749, %v1991
      %v2185 = vmul.f32 %v1749, %v1995
      %v2186 = vmul.f32 %v1749, %v1999
      %v2187 = vmul.f32 %v1749, %v2003
      %v2188 = vmul.f32 %v1749, %v2007
      %v2189 = vmul.f32 %v1749, %v2011
      %v2190 = vmul.f32 %v1749, %v2015
      %v2191 = vmul.f32 %v1749, %v2019
      %v2192 = vmul.f32 %v1749, %v2023
      %v2193 = vmul.f32 %v1749, %v2027
      %v2194 = vmul.f32 %v1749, %v2031
      %v2195 = vmul.f32 %v1749, %v2035
      %v2196 = vmul.f32 %v1749, %v2039
      %v2197 = vmul.f32 %v1749, %v2043
      %v2198 = vmul.f32 %v1749, %v2047
      %v2199 = vmul.f32 %v1749, %v2051
      %v2200 = vmul.f32 %v1749, %v2055
      %v2201 = vmul.f32 %v1753, %v1943
      %v2202 = vmul.f32 %v1753, %v1947
      %v2203 = vmul.f32 %v1753, %v1951
      %v2204 = vmul.f32 %v1753, %v1955
      %v2205 = vmul.f32 %v1753, %v1959
      %v2206 = vmul.f32 %v1753, %v1963
      %v2207 = vmul.f32 %v1753, %v1967
      %v2208 = vmul.f32 %v1753, %v1971
      %v2209 = vmul.f32 %v1753, %v1975
      %v2210 = vmul.f32 %v1753, %v1979
      %v2211 = vmul.f32 %v1753, %v1983
      %v2212 = vmul.f32 %v1753, %v1987
      %v2213 = vmul.f32 %v1753, %v1991
      %v2214 = vmul.f32 %v1753, %v1995
      %v2215 = vmul.f32 %v1753, %v1999
      %v2216 = vmul.f32 %v1753, %v2003
      %v2217 = vmul.f32 %v1753, %v2007
      %v2218 = vmul.f32 %v1753, %v2011
      %v2219 = vmul.f32 %v1753, %v2015
      %v2220 = vmul.f32 %v1753, %v2019
      %v2221 = vmul.f32 %v1753, %v2023
      %v2222 = vmul.f32 %v1753, %v2027
      %v2223 = vmul.f32 %v1753, %v2031
      %v2224 = vmul.f32 %v1753, %v2035
      %v2225 = vmul.f32 %v1753, %v2039
      %v2226 = vmul.f32 %v1753, %v2043
      %v2227 = vmul.f32 %v1753, %v2047
      %v2228 = vmul.f32 %v1753, %v2051
      %v2229 = vmul.f32 %v1753, %v2055
      %v2230 = vmul.f32 %v1757, %v1943
      %v2231 = vmul.f32 %v1757, %v1947
      %v2232 = vmul.f32 %v1757, %v1951
      %v2233 = vmul.f32 %v1757, %v1955
      %v2234 = vmul.f32 %v1757, %v1959
      %v2235 = vmul.f32 %v1757, %v1963
      %v2236 = vmul.f32 %v1757, %v1967
      %v2237 = vmul.f32 %v1757, %v1971
      %v2238 = vmul.f32 %v1757, %v1975
      %v2239 = vmul.f32 %v1757, %v1979
      %v2240 = vmul.f32 %v1757, %v1983
      %v2241 = vmul.f32 %v1757, %v1987
      %v2242 = vmul.f32 %v1757, %v1991
      %v2243 = vmul.f32 %v1757, %v1995
      %v2244 = vmul.f32 %v1757, %v1999
      %v2245 = vmul.f32 %v1757, %v2003
      %v2246 = vmul.f32 %v1757, %v2007
      %v2247 = vmul.f32 %v1757, %v2011
      %v2248 = vmul.f32 %v1757, %v2015
      %v2249 = vmul.f32 %v1757, %v2019
      %v2250 = vmul.f32 %v1757, %v2023
      %v2251 = vmul.f32 %v1757, %v2027
      %v2252 = vmul.f32 %v1757, %v2031
      %v2253 = vmul.f32 %v1757, %v2035
      %v2254 = vmul.f32 %v1757, %v2039
      %v2255 = vmul.f32 %v1757, %v2043
      %v2256 = vmul.f32 %v1757, %v2047
      %v2257 = vmul.f32 %v1757, %v2051
      %v2258 = vmul.f32 %v1757, %v2055
      %v2259 = vmul.f32 %v1761, %v1943
      %v2260 = vmul.f32 %v1761, %v1947
      %v2261 = vmul.f32 %v1761, %v1951
      %v2262 = vmul.f32 %v1761, %v1955
      %v2263 = vmul.f32 %v1761, %v1959
      %v2264 = vmul.f32 %v1761, %v1963
      %v2265 = vmul.f32 %v1761, %v1967
      %v2266 = vmul.f32 %v1761, %v1971
      %v2267 = vmul.f32 %v1761, %v1975
      %v2268 = vmul.f32 %v1761, %v1979
      %v2269 = vmul.f32 %v1761, %v1983
      %v2270 = vmul.f32 %v1761, %v1987
      %v2271 = vmul.f32 %v1761, %v1991
      %v2272 = vmul.f32 %v1761, %v1995
      %v2273 = vmul.f32 %v1761, %v1999
      %v2274 = vmul.f32 %v1761, %v2003
      %v2275 = vmul.f32 %v1761, %v2007
      %v2276 = vmul.f32 %v1761, %v2011
      %v2277 = vmul.f32 %v1761, %v2015
      %v2278 = vmul.f32 %v1761, %v2019
      %v2279 = vmul.f32 %v1761, %v2023
      %v2280 = vmul.f32 %v1761, %v2027
      %v2281 = vmul.f32 %v1761, %v2031
      %v2282 = vmul.f32 %v1761, %v2035
      %v2283 = vmul.f32 %v1761, %v2039
      %v2284 = vmul.f32 %v1761, %v2043
      %v2285 = vmul.f32 %v1761, %v2047
      %v2286 = vmul.f32 %v1761, %v2051
      %v2287 = vmul.f32 %v1761, %v2055
      %v2288 = vmul.f32 %v1765, %v1943
      %v2289 = vmul.f32 %v1765, %v1947
      %v2290 = vmul.f32 %v1765, %v1951
      %v2291 = vmul.f32 %v1765, %v1955
      %v2292 = vmul.f32 %v1765, %v1959
      %v2293 = vmul.f32 %v1765, %v1963
      %v2294 = vmul.f32 %v1765, %v1967
      %v2295 = vmul.f32 %v1765, %v1971
      %v2296 = vmul.f32 %v1765, %v1975
      %v2297 = vmul.f32 %v1765, %v1979
      %v2298 = vmul.f32 %v1765, %v1983
      %v2299 = vmul.f32 %v1765, %v1987
      %v2300 = vmul.f32 %v1765, %v1991
      %v2301 = vmul.f32 %v1765, %v1995
      %v2302 = vmul.f32 %v1765, %v1999
      %v2303 = vmul.f32 %v1765, %v2003
      %v2304 = vmul.f32 %v1765, %v2007
      %v2305 = vmul.f32 %v1765, %v2011
      %v2306 = vmul.f32 %v1765, %v2015
      %v2307 = vmul.f32 %v1765, %v2019
      %v2308 = vmul.f32 %v1765, %v2023
      %v2309 = vmul.f32 %v1765, %v2027
      %v2310 = vmul.f32 %v1765, %v2031
      %v2311 = vmul.f32 %v1765, %v2035
      %v2312 = vmul.f32 %v1765, %v2039
      %v2313 = vmul.f32 %v1765, %v2043
      %v2314 = vmul.f32 %v1765, %v2047
      %v2315 = vmul.f32 %v1765, %v2051
      %v2316 = vmul.f32 %v1765, %v2055
      %v2317 = vmul.f32 %v1769, %v1943
      %v2318 = vmul.f32 %v1769, %v1947
      %v2319 = vmul.f32 %v1769, %v1951
      %v2320 = vmul.f32 %v1769, %v1955
      %v2321 = vmul.f32 %v1769, %v1959
      %v2322 = vmul.f32 %v1769, %v1963
      %v2323 = vmul.f32 %v1769, %v1967
      %v2324 = vmul.f32 %v1769, %v1971
      %v2325 = vmul.f32 %v1769, %v1975
      %v2326 = vmul.f32 %v1769, %v1979
      %v2327 = vmul.f32 %v1769, %v1983
      %v2328 = vmul.f32 %v1769, %v1987
      %v2329 = vmul.f32 %v1769, %v1991
      %v2330 = vmul.f32 %v1769, %v1995
      %v2331 = vmul.f32 %v1769, %v1999
      %v2332 = vmul.f32 %v1769, %v2003
      %v2333 = vmul.f32 %v1769, %v2007
      %v2334 = vmul.f32 %v1769, %v2011
      %v2335 = vmul.f32 %v1769, %v2015
      %v2336 = vmul.f32 %v1769, %v2019
      %v2337 = vmul.f32 %v1769, %v2023
      %v2338 = vmul.f32 %v1769, %v2027
      %v2339 = vmul.f32 %v1769, %v2031
      %v2340 = vmul.f32 %v1769, %v2035
      %v2341 = vmul.f32 %v1769, %v2039
      %v2342 = vmul.f32 %v1769, %v2043
      %v2343 = vmul.f32 %v1769, %v2047
      %v2344 = vmul.f32 %v1769, %v2051
      %v2345 = vmul.f32 %v1769, %v2055
      %v2346 = vmul.f32 %v1773, %v1943
      %v2347 = vmul.f32 %v1773, %v1947
      %v2348 = vmul.f32 %v1773, %v1951
      %v2349 = vmul.f32 %v1773, %v1955
      %v2350 = vmul.f32 %v1773, %v1959
      %v2351 = vmul.f32 %v1773, %v1963
      %v2352 = vmul.f32 %v1773, %v1967
      %v2353 = vmul.f32 %v1773, %v1971
      %v2354 = vmul.f32 %v1773, %v1975
      %v2355 = vmul.f32 %v1773, %v1979
      %v2356 = vmul.f32 %v1773, %v1983
      %v2357 = vmul.f32 %v1773, %v1987
      %v2358 = vmul.f32 %v1773, %v1991
      %v2359 = vmul.f32 %v1773, %v1995
      %v2360 = vmul.f32 %v1773, %v1999
      %v2361 = vmul.f32 %v1773, %v2003
      %v2362 = vmul.f32 %v1773, %v2007
      %v2363 = vmul.f32 %v1773, %v2011
      %v2364 = vmul.f32 %v1773, %v2015
      %v2365 = vmul.f32 %v1773, %v2019
      %v2366 = vmul.f32 %v1773, %v2023
      %v2367 = vmul.f32 %v1773, %v2027
      %v2368 = vmul.f32 %v1773, %v2031
      %v2369 = vmul.f32 %v1773, %v2035
      %v2370 = vmul.f32 %v1773, %v2039
      %v2371 = vmul.f32 %v1773, %v2043
      %v2372 = vmul.f32 %v1773, %v2047
      %v2373 = vmul.f32 %v1773, %v2051
      %v2374 = vmul.f32 %v1773, %v2055
      %v2375 = vmul.f32 %v1777, %v1943
      %v2376 = vmul.f32 %v1777, %v1947
      %v2377 = vmul.f32 %v1777, %v1951
      %v2378 = vmul.f32 %v1777, %v1955
      %v2379 = vmul.f32 %v1777, %v1959
      %v2380 = vmul.f32 %v1777, %v1963
      %v2381 = vmul.f32 %v1777, %v1967
      %v2382 = vmul.f32 %v1777, %v1971
      %v2383 = vmul.f32 %v1777, %v1975
      %v2384 = vmul.f32 %v1777, %v1979
      %v2385 = vmul.f32 %v1777, %v1983
      %v2386 = vmul.f32 %v1777, %v1987
      %v2387 = vmul.f32 %v1777, %v1991
      %v2388 = vmul.f32 %v1777, %v1995
      %v2389 = vmul.f32 %v1777, %v1999
      %v2390 = vmul.f32 %v1777, %v2003
      %v2391 = vmul.f32 %v1777, %v2007
      %v2392 = vmul.f32 %v1777, %v2011
      %v2393 = vmul.f32 %v1777, %v2015
      %v2394 = vmul.f32 %v1777, %v2019
      %v2395 = vmul.f32 %v1777, %v2023
      %v2396 = vmul.f32 %v1777, %v2027
      %v2397 = vmul.f32 %v1777, %v2031
      %v2398 = vmul.f32 %v1777, %v2035
      %v2399 = vmul.f32 %v1777, %v2039
      %v2400 = vmul.f32 %v1777, %v2043
      %v2401 = vmul.f32 %v1777, %v2047
      %v2402 = vmul.f32 %v1777, %v2051
      %v2403 = vmul.f32 %v1777, %v2055
      %v2404 = vmul.f32 %v1781, %v1943
      %v2405 = vmul.f32 %v1781, %v1947
      %v2406 = vmul.f32 %v1781, %v1951
      %v2407 = vmul.f32 %v1781, %v1955
      %v2408 = vmul.f32 %v1781, %v1959
      %v2409 = vmul.f32 %v1781, %v1963
      %v2410 = vmul.f32 %v1781, %v1967
      %v2411 = vmul.f32 %v1781, %v1971
      %v2412 = vmul.f32 %v1781, %v1975
      %v2413 = vmul.f32 %v1781, %v1979
      %v2414 = vmul.f32 %v1781, %v1983
      %v2415 = vmul.f32 %v1781, %v1987
      %v2416 = vmul.f32 %v1781, %v1991
      %v2417 = vmul.f32 %v1781, %v1995
      %v2418 = vmul.f32 %v1781, %v1999
      %v2419 = vmul.f32 %v1781, %v2003
      %v2420 = vmul.f32 %v1781, %v2007
      %v2421 = vmul.f32 %v1781, %v2011
      %v2422 = vmul.f32 %v1781, %v2015
      %v2423 = vmul.f32 %v1781, %v2019
      %v2424 = vmul.f32 %v1781, %v2023
      %v2425 = vmul.f32 %v1781, %v2027
      %v2426 = vmul.f32 %v1781, %v2031
      %v2427 = vmul.f32 %v1781, %v2035
      %v2428 = vmul.f32 %v1781, %v2039
      %v2429 = vmul.f32 %v1781, %v2043
      %v2430 = vmul.f32 %v1781, %v2047
      %v2431 = vmul.f32 %v1781, %v2051
      %v2432 = vmul.f32 %v1781, %v2055
      %v2433 = vmul.f32 %v1785, %v1943
      %v2434 = vmul.f32 %v1785, %v1947
      %v2435 = vmul.f32 %v1785, %v1951
      %v2436 = vmul.f32 %v1785, %v1955
      %v2437 = vmul.f32 %v1785, %v1959
      %v2438 = vmul.f32 %v1785, %v1963
      %v2439 = vmul.f32 %v1785, %v1967
      %v2440 = vmul.f32 %v1785, %v1971
      %v2441 = vmul.f32 %v1785, %v1975
      %v2442 = vmul.f32 %v1785, %v1979
      %v2443 = vmul.f32 %v1785, %v1983
      %v2444 = vmul.f32 %v1785, %v1987
      %v2445 = vmul.f32 %v1785, %v1991
      %v2446 = vmul.f32 %v1785, %v1995
      %v2447 = vmul.f32 %v1785, %v1999
      %v2448 = vmul.f32 %v1785, %v2003
      %v2449 = vmul.f32 %v1785, %v2007
      %v2450 = vmul.f32 %v1785, %v2011
      %v2451 = vmul.f32 %v1785, %v2015
      %v2452 = vmul.f32 %v1785, %v2019
      %v2453 = vmul.f32 %v1785, %v2023
      %v2454 = vmul.f32 %v1785, %v2027
      %v2455 = vmul.f32 %v1785, %v2031
      %v2456 = vmul.f32 %v1785, %v2035
      %v2457 = vmul.f32 %v1785, %v2039
      %v2458 = vmul.f32 %v1785, %v2043
      %v2459 = vmul.f32 %v1785, %v2047
      %v2460 = vmul.f32 %v1785, %v2051
      %v2461 = vmul.f32 %v1785, %v2055
      %v2462 = vmul.f32 %v1789, %v1943
      %v2463 = vmul.f32 %v1789, %v1947
      %v2464 = vmul.f32 %v1789, %v1951
      %v2465 = vmul.f32 %v1789, %v1955
      %v2466 = vmul.f32 %v1789, %v1959
      %v2467 = vmul.f32 %v1789, %v1963
      %v2468 = vmul.f32 %v1789, %v1967
      %v2469 = vmul.f32 %v1789, %v1971
      %v2470 = vmul.f32 %v1789, %v1975
      %v2471 = vmul.f32 %v1789, %v1979
      %v2472 = vmul.f32 %v1789, %v1983
      %v2473 = vmul.f32 %v1789, %v1987
      %v2474 = vmul.f32 %v1789, %v1991
      %v2475 = vmul.f32 %v1789, %v1995
      %v2476 = vmul.f32 %v1789, %v1999
      %v2477 = vmul.f32 %v1789, %v2003
      %v2478 = vmul.f32 %v1789, %v2007
      %v2479 = vmul.f32 %v1789, %v2011
      %v2480 = vmul.f32 %v1789, %v2015
      %v2481 = vmul.f32 %v1789, %v2019
      %v2482 = vmul.f32 %v1789, %v2023
      %v2483 = vmul.f32 %v1789, %v2027
      %v2484 = vmul.f32 %v1789, %v2031
      %v2485 = vmul.f32 %v1789, %v2035
      %v2486 = vmul.f32 %v1789, %v2039
      %v2487 = vmul.f32 %v1789, %v2043
      %v2488 = vmul.f32 %v1789, %v2047
      %v2489 = vmul.f32 %v1789, %v2051
      %v2490 = vmul.f32 %v1789, %v2055
      %v2491 = vmul.f32 %v1793, %v1943
      %v2492 = vmul.f32 %v1793, %v1947
      %v2493 = vmul.f32 %v1793, %v1951
      %v2494 = vmul.f32 %v1793, %v1955
      %v2495 = vmul.f32 %v1793, %v1959
      %v2496 = vmul.f32 %v1793, %v1963
      %v2497 = vmul.f32 %v1793, %v1967
      %v2498 = vmul.f32 %v1793, %v1971
      %v2499 = vmul.f32 %v1793, %v1975
      %v2500 = vmul.f32 %v1793, %v1979
      %v2501 = vmul.f32 %v1793, %v1983
      %v2502 = vmul.f32 %v1793, %v1987
      %v2503 = vmul.f32 %v1793, %v1991
      %v2504 = vmul.f32 %v1793, %v1995
      %v2505 = vmul.f32 %v1793, %v1999
      %v2506 = vmul.f32 %v1793, %v2003
      %v2507 = vmul.f32 %v1793, %v2007
      %v2508 = vmul.f32 %v1793, %v2011
      %v2509 = vmul.f32 %v1793, %v2015
      %v2510 = vmul.f32 %v1793, %v2019
      %v2511 = vmul.f32 %v1793, %v2023
      %v2512 = vmul.f32 %v1793, %v2027
      %v2513 = vmul.f32 %v1793, %v2031
      %v2514 = vmul.f32 %v1793, %v2035
      %v2515 = vmul.f32 %v1793, %v2039
      %v2516 = vmul.f32 %v1793, %v2043
      %v2517 = vmul.f32 %v1793, %v2047
      %v2518 = vmul.f32 %v1793, %v2051
      %v2519 = vmul.f32 %v1793, %v2055
      %v2520 = vadd.f32 %v1267, %v2056
      %v2521 = vadd.f32 %v1268, %v2057
      %v2522 = vadd.f32 %v1269, %v2058
      %v2523 = vadd.f32 %v1270, %v2059
      %v2524 = vadd.f32 %v1271, %v2060
      %v2525 = vadd.f32 %v1272, %v2061
      %v2526 = vadd.f32 %v1273, %v2062
      %v2527 = vadd.f32 %v1274, %v2063
      %v2528 = vadd.f32 %v1275, %v2064
      %v2529 = vadd.f32 %v1276, %v2065
      %v2530 = vadd.f32 %v1277, %v2066
      %v2531 = vadd.f32 %v1278, %v2067
      %v2532 = vadd.f32 %v1279, %v2068
      %v2533 = vadd.f32 %v1280, %v2069
      %v2534 = vadd.f32 %v1281, %v2070
      %v2535 = vadd.f32 %v1282, %v2071
      %v2536 = vadd.f32 %v1283, %v2072
      %v2537 = vadd.f32 %v1284, %v2073
      %v2538 = vadd.f32 %v1285, %v2074
      %v2539 = vadd.f32 %v1286, %v2075
      %v2540 = vadd.f32 %v1287, %v2076
      %v2541 = vadd.f32 %v1288, %v2077
      %v2542 = vadd.f32 %v1289, %v2078
      %v2543 = vadd.f32 %v1290, %v2079
      %v2544 = vadd.f32 %v1291, %v2080
      %v2545 = vadd.f32 %v1292, %v2081
      %v2546 = vadd.f32 %v1293, %v2082
      %v2547 = vadd.f32 %v1294, %v2083
      %v2548 = vadd.f32 %v1295, %v2084
      %v2549 = vadd.f32 %v1296, %v2085
      %v2550 = vadd.f32 %v1297, %v2086
      %v2551 = vadd.f32 %v1298, %v2087
      %v2552 = vadd.f32 %v1299, %v2088
      %v2553 = vadd.f32 %v1300, %v2089
      %v2554 = vadd.f32 %v1301, %v2090
      %v2555 = vadd.f32 %v1302, %v2091
      %v2556 = vadd.f32 %v1303, %v2092
      %v2557 = vadd.f32 %v1304, %v2093
      %v2558 = vadd.f32 %v1305, %v2094
      %v2559 = vadd.f32 %v1306, %v2095
      %v2560 = vadd.f32 %v1307, %v2096
      %v2561 = vadd.f32 %v1308, %v2097
      %v2562 = vadd.f32 %v1309, %v2098
      %v2563 = vadd.f32 %v1310, %v2099
      %v2564 = vadd.f32 %v1311, %v2100
      %v2565 = vadd.f32 %v1312, %v2101
      %v2566 = vadd.f32 %v1313, %v2102
      %v2567 = vadd.f32 %v1314, %v2103
      %v2568 = vadd.f32 %v1315, %v2104
      %v2569 = vadd.f32 %v1316, %v2105
      %v2570 = vadd.f32 %v1317, %v2106
      %v2571 = vadd.f32 %v1318, %v2107
      %v2572 = vadd.f32 %v1319, %v2108
      %v2573 = vadd.f32 %v1320, %v2109
      %v2574 = vadd.f32 %v1321, %v2110
      %v2575 = vadd.f32 %v1322, %v2111
      %v2576 = vadd.f32 %v1323, %v2112
      %v2577 = vadd.f32 %v1324, %v2113
      %v2578 = vadd.f32 %v1325, %v2114
      %v2579 = vadd.f32 %v1326, %v2115
      %v2580 = vadd.f32 %v1327, %v2116
      %v2581 = vadd.f32 %v1328, %v2117
      %v2582 = vadd.f32 %v1329, %v2118
      %v2583 = vadd.f32 %v1330, %v2119
      %v2584 = vadd.f32 %v1331, %v2120
      %v2585 = vadd.f32 %v1332, %v2121
      %v2586 = vadd.f32 %v1333, %v2122
      %v2587 = vadd.f32 %v1334, %v2123
      %v2588 = vadd.f32 %v1335, %v2124
      %v2589 = vadd.f32 %v1336, %v2125
      %v2590 = vadd.f32 %v1337, %v2126
      %v2591 = vadd.f32 %v1338, %v2127
      %v2592 = vadd.f32 %v1339, %v2128
      %v2593 = vadd.f32 %v1340, %v2129
      %v2594 = vadd.f32 %v1341, %v2130
      %v2595 = vadd.f32 %v1342, %v2131
      %v2596 = vadd.f32 %v1343, %v2132
      %v2597 = vadd.f32 %v1344, %v2133
      %v2598 = vadd.f32 %v1345, %v2134
      %v2599 = vadd.f32 %v1346, %v2135
      %v2600 = vadd.f32 %v1347, %v2136
      %v2601 = vadd.f32 %v1348, %v2137
      %v2602 = vadd.f32 %v1349, %v2138
      %v2603 = vadd.f32 %v1350, %v2139
      %v2604 = vadd.f32 %v1351, %v2140
      %v2605 = vadd.f32 %v1352, %v2141
      %v2606 = vadd.f32 %v1353, %v2142
      %v2607 = vadd.f32 %v1354, %v2143
      %v2608 = vadd.f32 %v1355, %v2144
      %v2609 = vadd.f32 %v1356, %v2145
      %v2610 = vadd.f32 %v1357, %v2146
      %v2611 = vadd.f32 %v1358, %v2147
      %v2612 = vadd.f32 %v1359, %v2148
      %v2613 = vadd.f32 %v1360, %v2149
      %v2614 = vadd.f32 %v1361, %v2150
      %v2615 = vadd.f32 %v1362, %v2151
      %v2616 = vadd.f32 %v1363, %v2152
      %v2617 = vadd.f32 %v1364, %v2153
      %v2618 = vadd.f32 %v1365, %v2154
      %v2619 = vadd.f32 %v1366, %v2155
      %v2620 = vadd.f32 %v1367, %v2156
      %v2621 = vadd.f32 %v1368, %v2157
      %v2622 = vadd.f32 %v1369, %v2158
      %v2623 = vadd.f32 %v1370, %v2159
      %v2624 = vadd.f32 %v1371, %v2160
      %v2625 = vadd.f32 %v1372, %v2161
      %v2626 = vadd.f32 %v1373, %v2162
      %v2627 = vadd.f32 %v1374, %v2163
      %v2628 = vadd.f32 %v1375, %v2164
      %v2629 = vadd.f32 %v1376, %v2165
      %v2630 = vadd.f32 %v1377, %v2166
      %v2631 = vadd.f32 %v1378, %v2167
      %v2632 = vadd.f32 %v1379, %v2168
      %v2633 = vadd.f32 %v1380, %v2169
      %v2634 = vadd.f32 %v1381, %v2170
      %v2635 = vadd.f32 %v1382, %v2171
      %v2636 = vadd.f32 %v1383, %v2172
      %v2637 = vadd.f32 %v1384, %v2173
      %v2638 = vadd.f32 %v1385, %v2174
      %v2639 = vadd.f32 %v1386, %v2175
      %v2640 = vadd.f32 %v1387, %v2176
      %v2641 = vadd.f32 %v1388, %v2177
      %v2642 = vadd.f32 %v1389, %v2178
      %v2643 = vadd.f32 %v1390, %v2179
      %v2644 = vadd.f32 %v1391, %v2180
      %v2645 = vadd.f32 %v1392, %v2181
      %v2646 = vadd.f32 %v1393, %v2182
      %v2647 = vadd.f32 %v1394, %v2183
      %v2648 = vadd.f32 %v1395, %v2184
      %v2649 = vadd.f32 %v1396, %v2185
      %v2650 = vadd.f32 %v1397, %v2186
      %v2651 = vadd.f32 %v1398, %v2187
      %v2652 = vadd.f32 %v1399, %v2188
      %v2653 = vadd.f32 %v1400, %v2189
      %v2654 = vadd.f32 %v1401, %v2190
      %v2655 = vadd.f32 %v1402, %v2191
      %v2656 = vadd.f32 %v1403, %v2192
      %v2657 = vadd.f32 %v1404, %v2193
      %v2658 = vadd.f32 %v1405, %v2194
      %v2659 = vadd.f32 %v1406, %v2195
      %v2660 = vadd.f32 %v1407, %v2196
      %v2661 = vadd.f32 %v1408, %v2197
      %v2662 = vadd.f32 %v1409, %v2198
      %v2663 = vadd.f32 %v1410, %v2199
      %v2664 = vadd.f32 %v1411, %v2200
      %v2665 = vadd.f32 %v1412, %v2201
      %v2666 = vadd.f32 %v1413, %v2202
      %v2667 = vadd.f32 %v1414, %v2203
      %v2668 = vadd.f32 %v1415, %v2204
      %v2669 = vadd.f32 %v1416, %v2205
      %v2670 = vadd.f32 %v1417, %v2206
      %v2671 = vadd.f32 %v1418, %v2207
      %v2672 = vadd.f32 %v1419, %v2208
      %v2673 = vadd.f32 %v1420, %v2209
      %v2674 = vadd.f32 %v1421, %v2210
      %v2675 = vadd.f32 %v1422, %v2211
      %v2676 = vadd.f32 %v1423, %v2212
      %v2677 = vadd.f32 %v1424, %v2213
      %v2678 = vadd.f32 %v1425, %v2214
      %v2679 = vadd.f32 %v1426, %v2215
      %v2680 = vadd.f32 %v1427, %v2216
      %v2681 = vadd.f32 %v1428, %v2217
      %v2682 = vadd.f32 %v1429, %v2218
      %v2683 = vadd.f32 %v1430, %v2219
      %v2684 = vadd.f32 %v1431, %v2220
      %v2685 = vadd.f32 %v1432, %v2221
      %v2686 = vadd.f32 %v1433, %v2222
      %v2687 = vadd.f32 %v1434, %v2223
      %v2688 = vadd.f32 %v1435, %v2224
      %v2689 = vadd.f32 %v1436, %v2225
      %v2690 = vadd.f32 %v1437, %v2226
      %v2691 = vadd.f32 %v1438, %v2227
      %v2692 = vadd.f32 %v1439, %v2228
      %v2693 = vadd.f32 %v1440, %v2229
      %v2694 = vadd.f32 %v1441, %v2230
      %v2695 = vadd.f32 %v1442, %v2231
      %v2696 = vadd.f32 %v1443, %v2232
      %v2697 = vadd.f32 %v1444, %v2233
      %v2698 = vadd.f32 %v1445, %v2234
      %v2699 = vadd.f32 %v1446, %v2235
      %v2700 = vadd.f32 %v1447, %v2236
      %v2701 = vadd.f32 %v1448, %v2237
      %v2702 = vadd.f32 %v1449, %v2238
      %v2703 = vadd.f32 %v1450, %v2239
      %v2704 = vadd.f32 %v1451, %v2240
      %v2705 = vadd.f32 %v1452, %v2241
      %v2706 = vadd.f32 %v1453, %v2242
      %v2707 = vadd.f32 %v1454, %v2243
      %v2708 = vadd.f32 %v1455, %v2244
      %v2709 = vadd.f32 %v1456, %v2245
      %v2710 = vadd.f32 %v1457, %v2246
      %v2711 = vadd.f32 %v1458, %v2247
      %v2712 = vadd.f32 %v1459, %v2248
      %v2713 = vadd.f32 %v1460, %v2249
      %v2714 = vadd.f32 %v1461, %v2250
      %v2715 = vadd.f32 %v1462, %v2251
      %v2716 = vadd.f32 %v1463, %v2252
      %v2717 = vadd.f32 %v1464, %v2253
      %v2718 = vadd.f32 %v1465, %v2254
      %v2719 = vadd.f32 %v1466, %v2255
      %v2720 = vadd.f32 %v1467, %v2256
      %v2721 = vadd.f32 %v1468, %v2257
      %v2722 = vadd.f32 %v1469, %v2258
      %v2723 = vadd.f32 %v1470, %v2259
      %v2724 = vadd.f32 %v1471, %v2260
      %v2725 = vadd.f32 %v1472, %v2261
      %v2726 = vadd.f32 %v1473, %v2262
      %v2727 = vadd.f32 %v1474, %v2263
      %v2728 = vadd.f32 %v1475, %v2264
      %v2729 = vadd.f32 %v1476, %v2265
      %v2730 = vadd.f32 %v1477, %v2266
      %v2731 = vadd.f32 %v1478, %v2267
      %v2732 = vadd.f32 %v1479, %v2268
      %v2733 = vadd.f32 %v1480, %v2269
      %v2734 = vadd.f32 %v1481, %v2270
      %v2735 = vadd.f32 %v1482, %v2271
      %v2736 = vadd.f32 %v1483, %v2272
      %v2737 = vadd.f32 %v1484, %v2273
      %v2738 = vadd.f32 %v1485, %v2274
      %v2739 = vadd.f32 %v1486, %v2275
      %v2740 = vadd.f32 %v1487, %v2276
      %v2741 = vadd.f32 %v1488, %v2277
      %v2742 = vadd.f32 %v1489, %v2278
      %v2743 = vadd.f32 %v1490, %v2279
      %v2744 = vadd.f32 %v1491, %v2280
      %v2745 = vadd.f32 %v1492, %v2281
      %v2746 = vadd.f32 %v1493, %v2282
      %v2747 = vadd.f32 %v1494, %v2283
      %v2748 = vadd.f32 %v1495, %v2284
      %v2749 = vadd.f32 %v1496, %v2285
      %v2750 = vadd.f32 %v1497, %v2286
      %v2751 = vadd.f32 %v1498, %v2287
      %v2752 = vadd.f32 %v1499, %v2288
      %v2753 = vadd.f32 %v1500, %v2289
      %v2754 = vadd.f32 %v1501, %v2290
      %v2755 = vadd.f32 %v1502, %v2291
      %v2756 = vadd.f32 %v1503, %v2292
      %v2757 = vadd.f32 %v1504, %v2293
      %v2758 = vadd.f32 %v1505, %v2294
      %v2759 = vadd.f32 %v1506, %v2295
      %v2760 = vadd.f32 %v1507, %v2296
      %v2761 = vadd.f32 %v1508, %v2297
      %v2762 = vadd.f32 %v1509, %v2298
      %v2763 = vadd.f32 %v1510, %v2299
      %v2764 = vadd.f32 %v1511, %v2300
      %v2765 = vadd.f32 %v1512, %v2301
      %v2766 = vadd.f32 %v1513, %v2302
      %v2767 = vadd.f32 %v1514, %v2303
      %v2768 = vadd.f32 %v1515, %v2304
      %v2769 = vadd.f32 %v1516, %v2305
      %v2770 = vadd.f32 %v1517, %v2306
      %v2771 = vadd.f32 %v1518, %v2307
      %v2772 = vadd.f32 %v1519, %v2308
      %v2773 = vadd.f32 %v1520, %v2309
      %v2774 = vadd.f32 %v1521, %v2310
      %v2775 = vadd.f32 %v1522, %v2311
      %v2776 = vadd.f32 %v1523, %v2312
      %v2777 = vadd.f32 %v1524, %v2313
      %v2778 = vadd.f32 %v1525, %v2314
      %v2779 = vadd.f32 %v1526, %v2315
      %v2780 = vadd.f32 %v1527, %v2316
      %v2781 = vadd.f32 %v1528, %v2317
      %v2782 = vadd.f32 %v1529, %v2318
      %v2783 = vadd.f32 %v1530, %v2319
      %v2784 = vadd.f32 %v1531, %v2320
      %v2785 = vadd.f32 %v1532, %v2321
      %v2786 = vadd.f32 %v1533, %v2322
      %v2787 = vadd.f32 %v1534, %v2323
      %v2788 = vadd.f32 %v1535, %v2324
      %v2789 = vadd.f32 %v1536, %v2325
      %v2790 = vadd.f32 %v1537, %v2326
      %v2791 = vadd.f32 %v1538, %v2327
      %v2792 = vadd.f32 %v1539, %v2328
      %v2793 = vadd.f32 %v1540, %v2329
      %v2794 = vadd.f32 %v1541, %v2330
      %v2795 = vadd.f32 %v1542, %v2331
      %v2796 = vadd.f32 %v1543, %v2332
      %v2797 = vadd.f32 %v1544, %v2333
      %v2798 = vadd.f32 %v1545, %v2334
      %v2799 = vadd.f32 %v1546, %v2335
      %v2800 = vadd.f32 %v1547, %v2336
      %v2801 = vadd.f32 %v1548, %v2337
      %v2802 = vadd.f32 %v1549, %v2338
      %v2803 = vadd.f32 %v1550, %v2339
      %v2804 = vadd.f32 %v1551, %v2340
      %v2805 = vadd.f32 %v1552, %v2341
      %v2806 = vadd.f32 %v1553, %v2342
      %v2807 = vadd.f32 %v1554, %v2343
      %v2808 = vadd.f32 %v1555, %v2344
      %v2809 = vadd.f32 %v1556, %v2345
      %v2810 = vadd.f32 %v1557, %v2346
      %v2811 = vadd.f32 %v1558, %v2347
      %v2812 = vadd.f32 %v1559, %v2348
      %v2813 = vadd.f32 %v1560, %v2349
      %v2814 = vadd.f32 %v1561, %v2350
      %v2815 = vadd.f32 %v1562, %v2351
      %v2816 = vadd.f32 %v1563, %v2352
      %v2817 = vadd.f32 %v1564, %v2353
      %v2818 = vadd.f32 %v1565, %v2354
      %v2819 = vadd.f32 %v1566, %v2355
      %v2820 = vadd.f32 %v1567, %v2356
      %v2821 = vadd.f32 %v1568, %v2357
      %v2822 = vadd.f32 %v1569, %v2358
      %v2823 = vadd.f32 %v1570, %v2359
      %v2824 = vadd.f32 %v1571, %v2360
      %v2825 = vadd.f32 %v1572, %v2361
      %v2826 = vadd.f32 %v1573, %v2362
      %v2827 = vadd.f32 %v1574, %v2363
      %v2828 = vadd.f32 %v1575, %v2364
      %v2829 = vadd.f32 %v1576, %v2365
      %v2830 = vadd.f32 %v1577, %v2366
      %v2831 = vadd.f32 %v1578, %v2367
      %v2832 = vadd.f32 %v1579, %v2368
      %v2833 = vadd.f32 %v1580, %v2369
      %v2834 = vadd.f32 %v1581, %v2370
      %v2835 = vadd.f32 %v1582, %v2371
      %v2836 = vadd.f32 %v1583, %v2372
      %v2837 = vadd.f32 %v1584, %v2373
      %v2838 = vadd.f32 %v1585, %v2374
      %v2839 = vadd.f32 %v1586, %v2375
      %v2840 = vadd.f32 %v1587, %v2376
      %v2841 = vadd.f32 %v1588, %v2377
      %v2842 = vadd.f32 %v1589, %v2378
      %v2843 = vadd.f32 %v1590, %v2379
      %v2844 = vadd.f32 %v1591, %v2380
      %v2845 = vadd.f32 %v1592, %v2381
      %v2846 = vadd.f32 %v1593, %v2382
      %v2847 = vadd.f32 %v1594, %v2383
      %v2848 = vadd.f32 %v1595, %v2384
      %v2849 = vadd.f32 %v1596, %v2385
      %v2850 = vadd.f32 %v1597, %v2386
      %v2851 = vadd.f32 %v1598, %v2387
      %v2852 = vadd.f32 %v1599, %v2388
      %v2853 = vadd.f32 %v1600, %v2389
      %v2854 = vadd.f32 %v1601, %v2390
      %v2855 = vadd.f32 %v1602, %v2391
      %v2856 = vadd.f32 %v1603, %v2392
      %v2857 = vadd.f32 %v1604, %v2393
      %v2858 = vadd.f32 %v1605, %v2394
      %v2859 = vadd.f32 %v1606, %v2395
      %v2860 = vadd.f32 %v1607, %v2396
      %v2861 = vadd.f32 %v1608, %v2397
      %v2862 = vadd.f32 %v1609, %v2398
      %v2863 = vadd.f32 %v1610, %v2399
      %v2864 = vadd.f32 %v1611, %v2400
      %v2865 = vadd.f32 %v1612, %v2401
      %v2866 = vadd.f32 %v1613, %v2402
      %v2867 = vadd.f32 %v1614, %v2403
      %v2868 = vadd.f32 %v1615, %v2404
      %v2869 = vadd.f32 %v1616, %v2405
      %v2870 = vadd.f32 %v1617, %v2406
      %v2871 = vadd.f32 %v1618, %v2407
      %v2872 = vadd.f32 %v1619, %v2408
      %v2873 = vadd.f32 %v1620, %v2409
      %v2874 = vadd.f32 %v1621, %v2410
      %v2875 = vadd.f32 %v1622, %v2411
      %v2876 = vadd.f32 %v1623, %v2412
      %v2877 = vadd.f32 %v1624, %v2413
      %v2878 = vadd.f32 %v1625, %v2414
      %v2879 = vadd.f32 %v1626, %v2415
      %v2880 = vadd.f32 %v1627, %v2416
      %v2881 = vadd.f32 %v1628, %v2417
      %v2882 = vadd.f32 %v1629, %v2418
      %v2883 = vadd.f32 %v1630, %v2419
      %v2884 = vadd.f32 %v1631, %v2420
      %v2885 = vadd.f32 %v1632, %v2421
      %v2886 = vadd.f32 %v1633, %v2422
      %v2887 = vadd.f32 %v1634, %v2423
      %v2888 = vadd.f32 %v1635, %v2424
      %v2889 = vadd.f32 %v1636, %v2425
      %v2890 = vadd.f32 %v1637, %v2426
      %v2891 = vadd.f32 %v1638, %v2427
      %v2892 = vadd.f32 %v1639, %v2428
      %v2893 = vadd.f32 %v1640, %v2429
      %v2894 = vadd.f32 %v1641, %v2430
      %v2895 = vadd.f32 %v1642, %v2431
      %v2896 = vadd.f32 %v1643, %v2432
      %v2897 = vadd.f32 %v1644, %v2433
      %v2898 = vadd.f32 %v1645, %v2434
      %v2899 = vadd.f32 %v1646, %v2435
      %v2900 = vadd.f32 %v1647, %v2436
      %v2901 = vadd.f32 %v1648, %v2437
      %v2902 = vadd.f32 %v1649, %v2438
      %v2903 = vadd.f32 %v1650, %v2439
      %v2904 = vadd.f32 %v1651, %v2440
      %v2905 = vadd.f32 %v1652, %v2441
      %v2906 = vadd.f32 %v1653, %v2442
      %v2907 = vadd.f32 %v1654, %v2443
      %v2908 = vadd.f32 %v1655, %v2444
      %v2909 = vadd.f32 %v1656, %v2445
      %v2910 = vadd.f32 %v1657, %v2446
      %v2911 = vadd.f32 %v1658, %v2447
      %v2912 = vadd.f32 %v1659, %v2448
      %v2913 = vadd.f32 %v1660, %v2449
      %v2914 = vadd.f32 %v1661, %v2450
      %v2915 = vadd.f32 %v1662, %v2451
      %v2916 = vadd.f32 %v1663, %v2452
      %v2917 = vadd.f32 %v1664, %v2453
      %v2918 = vadd.f32 %v1665, %v2454
      %v2919 = vadd.f32 %v1666, %v2455
      %v2920 = vadd.f32 %v1667, %v2456
      %v2921 = vadd.f32 %v1668, %v2457
      %v2922 = vadd.f32 %v1669, %v2458
      %v2923 = vadd.f32 %v1670, %v2459
      %v2924 = vadd.f32 %v1671, %v2460
      %v2925 = vadd.f32 %v1672, %v2461
      %v2926 = vadd.f32 %v1673, %v2462
      %v2927 = vadd.f32 %v1674, %v2463
      %v2928 = vadd.f32 %v1675, %v2464
      %v2929 = vadd.f32 %v1676, %v2465
      %v2930 = vadd.f32 %v1677, %v2466
      %v2931 = vadd.f32 %v1678, %v2467
      %v2932 = vadd.f32 %v1679, %v2468
      %v2933 = vadd.f32 %v1680, %v2469
      %v2934 = vadd.f32 %v1681, %v2470
      %v2935 = vadd.f32 %v1682, %v2471
      %v2936 = vadd.f32 %v1683, %v2472
      %v2937 = vadd.f32 %v1684, %v2473
      %v2938 = vadd.f32 %v1685, %v2474
      %v2939 = vadd.f32 %v1686, %v2475
      %v2940 = vadd.f32 %v1687, %v2476
      %v2941 = vadd.f32 %v1688, %v2477
      %v2942 = vadd.f32 %v1689, %v2478
      %v2943 = vadd.f32 %v1690, %v2479
      %v2944 = vadd.f32 %v1691, %v2480
      %v2945 = vadd.f32 %v1692, %v2481
      %v2946 = vadd.f32 %v1693, %v2482
      %v2947 = vadd.f32 %v1694, %v2483
      %v2948 = vadd.f32 %v1695, %v2484
      %v2949 = vadd.f32 %v1696, %v2485
      %v2950 = vadd.f32 %v1697, %v2486
      %v2951 = vadd.f32 %v1698, %v2487
      %v2952 = vadd.f32 %v1699, %v2488
      %v2953 = vadd.f32 %v1700, %v2489
      %v2954 = vadd.f32 %v1701, %v2490
      %v2955 = vadd.f32 %v1702, %v2491
      %v2956 = vadd.f32 %v1703, %v2492
      %v2957 = vadd.f32 %v1704, %v2493
      %v2958 = vadd.f32 %v1705, %v2494
      %v2959 = vadd.f32 %v1706, %v2495
      %v2960 = vadd.f32 %v1707, %v2496
      %v2961 = vadd.f32 %v1708, %v2497
      %v2962 = vadd.f32 %v1709, %v2498
      %v2963 = vadd.f32 %v1710, %v2499
      %v2964 = vadd.f32 %v1711, %v2500
      %v2965 = vadd.f32 %v1712, %v2501
      %v2966 = vadd.f32 %v1713, %v2502
      %v2967 = vadd.f32 %v1714, %v2503
      %v2968 = vadd.f32 %v1715, %v2504
      %v2969 = vadd.f32 %v1716, %v2505
      %v2970 = vadd.f32 %v1717, %v2506
      %v2971 = vadd.f32 %v1718, %v2507
      %v2972 = vadd.f32 %v1719, %v2508
      %v2973 = vadd.f32 %v1720, %v2509
      %v2974 = vadd.f32 %v1721, %v2510
      %v2975 = vadd.f32 %v1722, %v2511
      %v2976 = vadd.f32 %v1723, %v2512
      %v2977 = vadd.f32 %v1724, %v2513
      %v2978 = vadd.f32 %v1725, %v2514
      %v2979 = vadd.f32 %v1726, %v2515
      %v2980 = vadd.f32 %v1727, %v2516
      %v2981 = vadd.f32 %v1728, %v2517
      %v2982 = vadd.f32 %v1729, %v2518
      %v2983 = vadd.f32 %v1730, %v2519
      %2984 = vset.pattern.permute.xlu0 2
      %2985 = vperm.xlu0 %2984, %v263
      %v2986 = vpop.permute.xlu0 %2985
      %2988 = vset.pattern.permute.xlu0 2
      %2989 = vperm.xlu0 %2988, %v264
      %v2990 = vpop.permute.xlu0 %2989
      %2992 = vset.pattern.permute.xlu0 2
      %2993 = vperm.xlu0 %2992, %v265
      %v2994 = vpop.permute.xlu0 %2993
      %2996 = vset.pattern.permute.xlu0 2
      %2997 = vperm.xlu0 %2996, %v266
      %v2998 = vpop.permute.xlu0 %2997
      %3000 = vset.pattern.permute.xlu0 2
      %3001 = vperm.xlu0 %3000, %v267
      %v3002 = vpop.permute.xlu0 %3001
      %3004 = vset.pattern.permute.xlu0 2
      %3005 = vperm.xlu0 %3004, %v268
      %v3006 = vpop.permute.xlu0 %3005
      %3008 = vset.pattern.permute.xlu0 2
      %3009 = vperm.xlu0 %3008, %v269
      %v3010 = vpop.permute.xlu0 %3009
      %3012 = vset.pattern.permute.xlu0 2
      %3013 = vperm.xlu0 %3012, %v270
      %v3014 = vpop.permute.xlu0 %3013
      %3016 = vset.pattern.permute.xlu0 2
      %3017 = vperm.xlu0 %3016, %v271
      %v3018 = vpop.permute.xlu0 %3017
      %3020 = vset.pattern.permute.xlu0 2
      %3021 = vperm.xlu0 %3020, %v272
      %v3022 = vpop.permute.xlu0 %3021
      %3024 = vset.pattern.permute.xlu0 2
      %3025 = vperm.xlu0 %3024, %v273
      %v3026 = vpop.permute.xlu0 %3025
      %3028 = vset.pattern.permute.xlu0 2
      %3029 = vperm.xlu0 %3028, %v274
      %v3030 = vpop.permute.xlu0 %3029
      %3032 = vset.pattern.permute.xlu0 2
      %3033 = vperm.xlu0 %3032, %v275
      %v3034 = vpop.permute.xlu0 %3033
      %3036 = vset.pattern.permute.xlu0 2
      %3037 = vperm.xlu0 %3036, %v276
      %v3038 = vpop.permute.xlu0 %3037
      %3040 = vset.pattern.permute.xlu0 2
      %3041 = vperm.xlu0 %3040, %v277
      %v3042 = vpop.permute.xlu0 %3041
      %3044 = vset.pattern.permute.xlu0 2
      %3045 = vperm.xlu0 %3044, %v278
      %v3046 = vpop.permute.xlu0 %3045
      %v3048 = vlaneseq
      %v3049 = vshrl.u32 %v3048, 7
      %v3050 = vsub.s32 2, %v3049
      %v3051 = vrot.slane %v279, %v3050
      %v3052 = vlaneseq
      %v3053 = vshrl.u32 %v3052, 7
      %v3054 = vsub.s32 6, %v3053
      %v3055 = vrot.slane %v279, %v3054
      %v3056 = vlaneseq
      %v3057 = vshrl.u32 %v3056, 7
      %v3058 = vsub.s32 2, %v3057
      %v3059 = vrot.slane %v280, %v3058
      %v3060 = vlaneseq
      %v3061 = vshrl.u32 %v3060, 7
      %v3062 = vsub.s32 6, %v3061
      %v3063 = vrot.slane %v280, %v3062
      %v3064 = vlaneseq
      %v3065 = vshrl.u32 %v3064, 7
      %v3066 = vsub.s32 2, %v3065
      %v3067 = vrot.slane %v281, %v3066
      %v3068 = vlaneseq
      %v3069 = vshrl.u32 %v3068, 7
      %v3070 = vsub.s32 6, %v3069
      %v3071 = vrot.slane %v281, %v3070
      %v3072 = vlaneseq
      %v3073 = vshrl.u32 %v3072, 7
      %v3074 = vsub.s32 2, %v3073
      %v3075 = vrot.slane %v282, %v3074
      %v3076 = vlaneseq
      %v3077 = vshrl.u32 %v3076, 7
      %v3078 = vsub.s32 6, %v3077
      %v3079 = vrot.slane %v282, %v3078
      %v3080 = vlaneseq
      %v3081 = vshrl.u32 %v3080, 7
      %v3082 = vsub.s32 2, %v3081
      %v3083 = vrot.slane %v283, %v3082
      %v3084 = vlaneseq
      %v3085 = vshrl.u32 %v3084, 7
      %v3086 = vsub.s32 6, %v3085
      %v3087 = vrot.slane %v283, %v3086
      %v3088 = vlaneseq
      %v3089 = vshrl.u32 %v3088, 7
      %v3090 = vsub.s32 2, %v3089
      %v3091 = vrot.slane %v284, %v3090
      %v3092 = vlaneseq
      %v3093 = vshrl.u32 %v3092, 7
      %v3094 = vsub.s32 6, %v3093
      %v3095 = vrot.slane %v284, %v3094
      %v3096 = vlaneseq
      %v3097 = vshrl.u32 %v3096, 7
      %v3098 = vsub.s32 2, %v3097
      %v3099 = vrot.slane %v285, %v3098
      %v3100 = vlaneseq
      %v3101 = vshrl.u32 %v3100, 7
      %v3102 = vsub.s32 6, %v3101
      %v3103 = vrot.slane %v285, %v3102
      %v3104 = vlaneseq
      %v3105 = vshrl.u32 %v3104, 7
      %v3106 = vsub.s32 2, %v3105
      %v3107 = vrot.slane %v286, %v3106
      %v3108 = vlaneseq
      %v3109 = vshrl.u32 %v3108, 7
      %v3110 = vsub.s32 6, %v3109
      %v3111 = vrot.slane %v286, %v3110
      %v3112 = vlaneseq
      %v3113 = vshrl.u32 %v3112, 7
      %v3114 = vsub.s32 2, %v3113
      %v3115 = vrot.slane %v287, %v3114
      %v3116 = vlaneseq
      %v3117 = vshrl.u32 %v3116, 7
      %v3118 = vsub.s32 6, %v3117
      %v3119 = vrot.slane %v287, %v3118
      %v3120 = vlaneseq
      %v3121 = vshrl.u32 %v3120, 7
      %v3122 = vsub.s32 2, %v3121
      %v3123 = vrot.slane %v288, %v3122
      %v3124 = vlaneseq
      %v3125 = vshrl.u32 %v3124, 7
      %v3126 = vsub.s32 6, %v3125
      %v3127 = vrot.slane %v288, %v3126
      %v3128 = vlaneseq
      %v3129 = vshrl.u32 %v3128, 7
      %v3130 = vsub.s32 2, %v3129
      %v3131 = vrot.slane %v289, %v3130
      %v3132 = vlaneseq
      %v3133 = vshrl.u32 %v3132, 7
      %v3134 = vsub.s32 6, %v3133
      %v3135 = vrot.slane %v289, %v3134
      %v3136 = vlaneseq
      %v3137 = vshrl.u32 %v3136, 7
      %v3138 = vsub.s32 2, %v3137
      %v3139 = vrot.slane %v290, %v3138
      %v3140 = vlaneseq
      %v3141 = vshrl.u32 %v3140, 7
      %v3142 = vsub.s32 6, %v3141
      %v3143 = vrot.slane %v290, %v3142
      %v3144 = vlaneseq
      %v3145 = vshrl.u32 %v3144, 7
      %v3146 = vsub.s32 2, %v3145
      %v3147 = vrot.slane %v291, %v3146
      %v3148 = vlaneseq
      %v3149 = vshrl.u32 %v3148, 7
      %v3150 = vsub.s32 6, %v3149
      %v3151 = vrot.slane %v291, %v3150
      %v3152 = vlaneseq
      %v3153 = vshrl.u32 %v3152, 7
      %v3154 = vsub.s32 2, %v3153
      %v3155 = vrot.slane %v292, %v3154
      %v3156 = vlaneseq
      %v3157 = vshrl.u32 %v3156, 7
      %v3158 = vsub.s32 6, %v3157
      %v3159 = vrot.slane %v292, %v3158
      %v3160 = vlaneseq
      %v3161 = vshrl.u32 %v3160, 7
      %v3162 = vsub.s32 2, %v3161
      %v3163 = vrot.slane %v293, %v3162
      %v3193 = vlaneseq
      %v3194 = vshrl.u32 %v3193, 7
      %v3195 = vsub.s32 2, %v3194
      %v3196 = vrot.slane %v3051, %v3195
      %v3197 = vlaneseq
      %v3198 = vshrl.u32 %v3197, 7
      %v3199 = vsub.s32 2, %v3198
      %v3200 = vrot.slane %v3055, %v3199
      %v3201 = vlaneseq
      %v3202 = vshrl.u32 %v3201, 7
      %v3203 = vsub.s32 2, %v3202
      %v3204 = vrot.slane %v3059, %v3203
      %v3205 = vlaneseq
      %v3206 = vshrl.u32 %v3205, 7
      %v3207 = vsub.s32 2, %v3206
      %v3208 = vrot.slane %v3063, %v3207
      %v3209 = vlaneseq
      %v3210 = vshrl.u32 %v3209, 7
      %v3211 = vsub.s32 2, %v3210
      %v3212 = vrot.slane %v3067, %v3211
      %v3213 = vlaneseq
      %v3214 = vshrl.u32 %v3213, 7
      %v3215 = vsub.s32 2, %v3214
      %v3216 = vrot.slane %v3071, %v3215
      %v3217 = vlaneseq
      %v3218 = vshrl.u32 %v3217, 7
      %v3219 = vsub.s32 2, %v3218
      %v3220 = vrot.slane %v3075, %v3219
      %v3221 = vlaneseq
      %v3222 = vshrl.u32 %v3221, 7
      %v3223 = vsub.s32 2, %v3222
      %v3224 = vrot.slane %v3079, %v3223
      %v3225 = vlaneseq
      %v3226 = vshrl.u32 %v3225, 7
      %v3227 = vsub.s32 2, %v3226
      %v3228 = vrot.slane %v3083, %v3227
      %v3229 = vlaneseq
      %v3230 = vshrl.u32 %v3229, 7
      %v3231 = vsub.s32 2, %v3230
      %v3232 = vrot.slane %v3087, %v3231
      %v3233 = vlaneseq
      %v3234 = vshrl.u32 %v3233, 7
      %v3235 = vsub.s32 2, %v3234
      %v3236 = vrot.slane %v3091, %v3235
      %v3237 = vlaneseq
      %v3238 = vshrl.u32 %v3237, 7
      %v3239 = vsub.s32 2, %v3238
      %v3240 = vrot.slane %v3095, %v3239
      %v3241 = vlaneseq
      %v3242 = vshrl.u32 %v3241, 7
      %v3243 = vsub.s32 2, %v3242
      %v3244 = vrot.slane %v3099, %v3243
      %v3245 = vlaneseq
      %v3246 = vshrl.u32 %v3245, 7
      %v3247 = vsub.s32 2, %v3246
      %v3248 = vrot.slane %v3103, %v3247
      %v3249 = vlaneseq
      %v3250 = vshrl.u32 %v3249, 7
      %v3251 = vsub.s32 2, %v3250
      %v3252 = vrot.slane %v3107, %v3251
      %v3253 = vlaneseq
      %v3254 = vshrl.u32 %v3253, 7
      %v3255 = vsub.s32 2, %v3254
      %v3256 = vrot.slane %v3111, %v3255
      %v3257 = vlaneseq
      %v3258 = vshrl.u32 %v3257, 7
      %v3259 = vsub.s32 2, %v3258
      %v3260 = vrot.slane %v3115, %v3259
      %v3261 = vlaneseq
      %v3262 = vshrl.u32 %v3261, 7
      %v3263 = vsub.s32 2, %v3262
      %v3264 = vrot.slane %v3119, %v3263
      %v3265 = vlaneseq
      %v3266 = vshrl.u32 %v3265, 7
      %v3267 = vsub.s32 2, %v3266
      %v3268 = vrot.slane %v3123, %v3267
      %v3269 = vlaneseq
      %v3270 = vshrl.u32 %v3269, 7
      %v3271 = vsub.s32 2, %v3270
      %v3272 = vrot.slane %v3127, %v3271
      %v3273 = vlaneseq
      %v3274 = vshrl.u32 %v3273, 7
      %v3275 = vsub.s32 2, %v3274
      %v3276 = vrot.slane %v3131, %v3275
      %v3277 = vlaneseq
      %v3278 = vshrl.u32 %v3277, 7
      %v3279 = vsub.s32 2, %v3278
      %v3280 = vrot.slane %v3135, %v3279
      %v3281 = vlaneseq
      %v3282 = vshrl.u32 %v3281, 7
      %v3283 = vsub.s32 2, %v3282
      %v3284 = vrot.slane %v3139, %v3283
      %v3285 = vlaneseq
      %v3286 = vshrl.u32 %v3285, 7
      %v3287 = vsub.s32 2, %v3286
      %v3288 = vrot.slane %v3143, %v3287
      %v3289 = vlaneseq
      %v3290 = vshrl.u32 %v3289, 7
      %v3291 = vsub.s32 2, %v3290
      %v3292 = vrot.slane %v3147, %v3291
      %v3293 = vlaneseq
      %v3294 = vshrl.u32 %v3293, 7
      %v3295 = vsub.s32 2, %v3294
      %v3296 = vrot.slane %v3151, %v3295
      %v3297 = vlaneseq
      %v3298 = vshrl.u32 %v3297, 7
      %v3299 = vsub.s32 2, %v3298
      %v3300 = vrot.slane %v3155, %v3299
      %v3301 = vlaneseq
      %v3302 = vshrl.u32 %v3301, 7
      %v3303 = vsub.s32 2, %v3302
      %v3304 = vrot.slane %v3159, %v3303
      %v3305 = vlaneseq
      %v3306 = vshrl.u32 %v3305, 7
      %v3307 = vsub.s32 2, %v3306
      %v3308 = vrot.slane %v3163, %v3307
      %v3309 = vmul.f32 %v2986, %v3196
      %v3310 = vmul.f32 %v2986, %v3200
      %v3311 = vmul.f32 %v2986, %v3204
      %v3312 = vmul.f32 %v2986, %v3208
      %v3313 = vmul.f32 %v2986, %v3212
      %v3314 = vmul.f32 %v2986, %v3216
      %v3315 = vmul.f32 %v2986, %v3220
      %v3316 = vmul.f32 %v2986, %v3224
      %v3317 = vmul.f32 %v2986, %v3228
      %v3318 = vmul.f32 %v2986, %v3232
      %v3319 = vmul.f32 %v2986, %v3236
      %v3320 = vmul.f32 %v2986, %v3240
      %v3321 = vmul.f32 %v2986, %v3244
      %v3322 = vmul.f32 %v2986, %v3248
      %v3323 = vmul.f32 %v2986, %v3252
      %v3324 = vmul.f32 %v2986, %v3256
      %v3325 = vmul.f32 %v2986, %v3260
      %v3326 = vmul.f32 %v2986, %v3264
      %v3327 = vmul.f32 %v2986, %v3268
      %v3328 = vmul.f32 %v2986, %v3272
      %v3329 = vmul.f32 %v2986, %v3276
      %v3330 = vmul.f32 %v2986, %v3280
      %v3331 = vmul.f32 %v2986, %v3284
      %v3332 = vmul.f32 %v2986, %v3288
      %v3333 = vmul.f32 %v2986, %v3292
      %v3334 = vmul.f32 %v2986, %v3296
      %v3335 = vmul.f32 %v2986, %v3300
      %v3336 = vmul.f32 %v2986, %v3304
      %v3337 = vmul.f32 %v2986, %v3308
      %v3338 = vmul.f32 %v2990, %v3196
      %v3339 = vmul.f32 %v2990, %v3200
      %v3340 = vmul.f32 %v2990, %v3204
      %v3341 = vmul.f32 %v2990, %v3208
      %v3342 = vmul.f32 %v2990, %v3212
      %v3343 = vmul.f32 %v2990, %v3216
      %v3344 = vmul.f32 %v2990, %v3220
      %v3345 = vmul.f32 %v2990, %v3224
      %v3346 = vmul.f32 %v2990, %v3228
      %v3347 = vmul.f32 %v2990, %v3232
      %v3348 = vmul.f32 %v2990, %v3236
      %v3349 = vmul.f32 %v2990, %v3240
      %v3350 = vmul.f32 %v2990, %v3244
      %v3351 = vmul.f32 %v2990, %v3248
      %v3352 = vmul.f32 %v2990, %v3252
      %v3353 = vmul.f32 %v2990, %v3256
      %v3354 = vmul.f32 %v2990, %v3260
      %v3355 = vmul.f32 %v2990, %v3264
      %v3356 = vmul.f32 %v2990, %v3268
      %v3357 = vmul.f32 %v2990, %v3272
      %v3358 = vmul.f32 %v2990, %v3276
      %v3359 = vmul.f32 %v2990, %v3280
      %v3360 = vmul.f32 %v2990, %v3284
      %v3361 = vmul.f32 %v2990, %v3288
      %v3362 = vmul.f32 %v2990, %v3292
      %v3363 = vmul.f32 %v2990, %v3296
      %v3364 = vmul.f32 %v2990, %v3300
      %v3365 = vmul.f32 %v2990, %v3304
      %v3366 = vmul.f32 %v2990, %v3308
      %v3367 = vmul.f32 %v2994, %v3196
      %v3368 = vmul.f32 %v2994, %v3200
      %v3369 = vmul.f32 %v2994, %v3204
      %v3370 = vmul.f32 %v2994, %v3208
      %v3371 = vmul.f32 %v2994, %v3212
      %v3372 = vmul.f32 %v2994, %v3216
      %v3373 = vmul.f32 %v2994, %v3220
      %v3374 = vmul.f32 %v2994, %v3224
      %v3375 = vmul.f32 %v2994, %v3228
      %v3376 = vmul.f32 %v2994, %v3232
      %v3377 = vmul.f32 %v2994, %v3236
      %v3378 = vmul.f32 %v2994, %v3240
      %v3379 = vmul.f32 %v2994, %v3244
      %v3380 = vmul.f32 %v2994, %v3248
      %v3381 = vmul.f32 %v2994, %v3252
      %v3382 = vmul.f32 %v2994, %v3256
      %v3383 = vmul.f32 %v2994, %v3260
      %v3384 = vmul.f32 %v2994, %v3264
      %v3385 = vmul.f32 %v2994, %v3268
      %v3386 = vmul.f32 %v2994, %v3272
      %v3387 = vmul.f32 %v2994, %v3276
      %v3388 = vmul.f32 %v2994, %v3280
      %v3389 = vmul.f32 %v2994, %v3284
      %v3390 = vmul.f32 %v2994, %v3288
      %v3391 = vmul.f32 %v2994, %v3292
      %v3392 = vmul.f32 %v2994, %v3296
      %v3393 = vmul.f32 %v2994, %v3300
      %v3394 = vmul.f32 %v2994, %v3304
      %v3395 = vmul.f32 %v2994, %v3308
      %v3396 = vmul.f32 %v2998, %v3196
      %v3397 = vmul.f32 %v2998, %v3200
      %v3398 = vmul.f32 %v2998, %v3204
      %v3399 = vmul.f32 %v2998, %v3208
      %v3400 = vmul.f32 %v2998, %v3212
      %v3401 = vmul.f32 %v2998, %v3216
      %v3402 = vmul.f32 %v2998, %v3220
      %v3403 = vmul.f32 %v2998, %v3224
      %v3404 = vmul.f32 %v2998, %v3228
      %v3405 = vmul.f32 %v2998, %v3232
      %v3406 = vmul.f32 %v2998, %v3236
      %v3407 = vmul.f32 %v2998, %v3240
      %v3408 = vmul.f32 %v2998, %v3244
      %v3409 = vmul.f32 %v2998, %v3248
      %v3410 = vmul.f32 %v2998, %v3252
      %v3411 = vmul.f32 %v2998, %v3256
      %v3412 = vmul.f32 %v2998, %v3260
      %v3413 = vmul.f32 %v2998, %v3264
      %v3414 = vmul.f32 %v2998, %v3268
      %v3415 = vmul.f32 %v2998, %v3272
      %v3416 = vmul.f32 %v2998, %v3276
      %v3417 = vmul.f32 %v2998, %v3280
      %v3418 = vmul.f32 %v2998, %v3284
      %v3419 = vmul.f32 %v2998, %v3288
      %v3420 = vmul.f32 %v2998, %v3292
      %v3421 = vmul.f32 %v2998, %v3296
      %v3422 = vmul.f32 %v2998, %v3300
      %v3423 = vmul.f32 %v2998, %v3304
      %v3424 = vmul.f32 %v2998, %v3308
      %v3425 = vmul.f32 %v3002, %v3196
      %v3426 = vmul.f32 %v3002, %v3200
      %v3427 = vmul.f32 %v3002, %v3204
      %v3428 = vmul.f32 %v3002, %v3208
      %v3429 = vmul.f32 %v3002, %v3212
      %v3430 = vmul.f32 %v3002, %v3216
      %v3431 = vmul.f32 %v3002, %v3220
      %v3432 = vmul.f32 %v3002, %v3224
      %v3433 = vmul.f32 %v3002, %v3228
      %v3434 = vmul.f32 %v3002, %v3232
      %v3435 = vmul.f32 %v3002, %v3236
      %v3436 = vmul.f32 %v3002, %v3240
      %v3437 = vmul.f32 %v3002, %v3244
      %v3438 = vmul.f32 %v3002, %v3248
      %v3439 = vmul.f32 %v3002, %v3252
      %v3440 = vmul.f32 %v3002, %v3256
      %v3441 = vmul.f32 %v3002, %v3260
      %v3442 = vmul.f32 %v3002, %v3264
      %v3443 = vmul.f32 %v3002, %v3268
      %v3444 = vmul.f32 %v3002, %v3272
      %v3445 = vmul.f32 %v3002, %v3276
      %v3446 = vmul.f32 %v3002, %v3280
      %v3447 = vmul.f32 %v3002, %v3284
      %v3448 = vmul.f32 %v3002, %v3288
      %v3449 = vmul.f32 %v3002, %v3292
      %v3450 = vmul.f32 %v3002, %v3296
      %v3451 = vmul.f32 %v3002, %v3300
      %v3452 = vmul.f32 %v3002, %v3304
      %v3453 = vmul.f32 %v3002, %v3308
      %v3454 = vmul.f32 %v3006, %v3196
      %v3455 = vmul.f32 %v3006, %v3200
      %v3456 = vmul.f32 %v3006, %v3204
      %v3457 = vmul.f32 %v3006, %v3208
      %v3458 = vmul.f32 %v3006, %v3212
      %v3459 = vmul.f32 %v3006, %v3216
      %v3460 = vmul.f32 %v3006, %v3220
      %v3461 = vmul.f32 %v3006, %v3224
      %v3462 = vmul.f32 %v3006, %v3228
      %v3463 = vmul.f32 %v3006, %v3232
      %v3464 = vmul.f32 %v3006, %v3236
      %v3465 = vmul.f32 %v3006, %v3240
      %v3466 = vmul.f32 %v3006, %v3244
      %v3467 = vmul.f32 %v3006, %v3248
      %v3468 = vmul.f32 %v3006, %v3252
      %v3469 = vmul.f32 %v3006, %v3256
      %v3470 = vmul.f32 %v3006, %v3260
      %v3471 = vmul.f32 %v3006, %v3264
      %v3472 = vmul.f32 %v3006, %v3268
      %v3473 = vmul.f32 %v3006, %v3272
      %v3474 = vmul.f32 %v3006, %v3276
      %v3475 = vmul.f32 %v3006, %v3280
      %v3476 = vmul.f32 %v3006, %v3284
      %v3477 = vmul.f32 %v3006, %v3288
      %v3478 = vmul.f32 %v3006, %v3292
      %v3479 = vmul.f32 %v3006, %v3296
      %v3480 = vmul.f32 %v3006, %v3300
      %v3481 = vmul.f32 %v3006, %v3304
      %v3482 = vmul.f32 %v3006, %v3308
      %v3483 = vmul.f32 %v3010, %v3196
      %v3484 = vmul.f32 %v3010, %v3200
      %v3485 = vmul.f32 %v3010, %v3204
      %v3486 = vmul.f32 %v3010, %v3208
      %v3487 = vmul.f32 %v3010, %v3212
      %v3488 = vmul.f32 %v3010, %v3216
      %v3489 = vmul.f32 %v3010, %v3220
      %v3490 = vmul.f32 %v3010, %v3224
      %v3491 = vmul.f32 %v3010, %v3228
      %v3492 = vmul.f32 %v3010, %v3232
      %v3493 = vmul.f32 %v3010, %v3236
      %v3494 = vmul.f32 %v3010, %v3240
      %v3495 = vmul.f32 %v3010, %v3244
      %v3496 = vmul.f32 %v3010, %v3248
      %v3497 = vmul.f32 %v3010, %v3252
      %v3498 = vmul.f32 %v3010, %v3256
      %v3499 = vmul.f32 %v3010, %v3260
      %v3500 = vmul.f32 %v3010, %v3264
      %v3501 = vmul.f32 %v3010, %v3268
      %v3502 = vmul.f32 %v3010, %v3272
      %v3503 = vmul.f32 %v3010, %v3276
      %v3504 = vmul.f32 %v3010, %v3280
      %v3505 = vmul.f32 %v3010, %v3284
      %v3506 = vmul.f32 %v3010, %v3288
      %v3507 = vmul.f32 %v3010, %v3292
      %v3508 = vmul.f32 %v3010, %v3296
      %v3509 = vmul.f32 %v3010, %v3300
      %v3510 = vmul.f32 %v3010, %v3304
      %v3511 = vmul.f32 %v3010, %v3308
      %v3512 = vmul.f32 %v3014, %v3196
      %v3513 = vmul.f32 %v3014, %v3200
      %v3514 = vmul.f32 %v3014, %v3204
      %v3515 = vmul.f32 %v3014, %v3208
      %v3516 = vmul.f32 %v3014, %v3212
      %v3517 = vmul.f32 %v3014, %v3216
      %v3518 = vmul.f32 %v3014, %v3220
      %v3519 = vmul.f32 %v3014, %v3224
      %v3520 = vmul.f32 %v3014, %v3228
      %v3521 = vmul.f32 %v3014, %v3232
      %v3522 = vmul.f32 %v3014, %v3236
      %v3523 = vmul.f32 %v3014, %v3240
      %v3524 = vmul.f32 %v3014, %v3244
      %v3525 = vmul.f32 %v3014, %v3248
      %v3526 = vmul.f32 %v3014, %v3252
      %v3527 = vmul.f32 %v3014, %v3256
      %v3528 = vmul.f32 %v3014, %v3260
      %v3529 = vmul.f32 %v3014, %v3264
      %v3530 = vmul.f32 %v3014, %v3268
      %v3531 = vmul.f32 %v3014, %v3272
      %v3532 = vmul.f32 %v3014, %v3276
      %v3533 = vmul.f32 %v3014, %v3280
      %v3534 = vmul.f32 %v3014, %v3284
      %v3535 = vmul.f32 %v3014, %v3288
      %v3536 = vmul.f32 %v3014, %v3292
      %v3537 = vmul.f32 %v3014, %v3296
      %v3538 = vmul.f32 %v3014, %v3300
      %v3539 = vmul.f32 %v3014, %v3304
      %v3540 = vmul.f32 %v3014, %v3308
      %v3541 = vmul.f32 %v3018, %v3196
      %v3542 = vmul.f32 %v3018, %v3200
      %v3543 = vmul.f32 %v3018, %v3204
      %v3544 = vmul.f32 %v3018, %v3208
      %v3545 = vmul.f32 %v3018, %v3212
      %v3546 = vmul.f32 %v3018, %v3216
      %v3547 = vmul.f32 %v3018, %v3220
      %v3548 = vmul.f32 %v3018, %v3224
      %v3549 = vmul.f32 %v3018, %v3228
      %v3550 = vmul.f32 %v3018, %v3232
      %v3551 = vmul.f32 %v3018, %v3236
      %v3552 = vmul.f32 %v3018, %v3240
      %v3553 = vmul.f32 %v3018, %v3244
      %v3554 = vmul.f32 %v3018, %v3248
      %v3555 = vmul.f32 %v3018, %v3252
      %v3556 = vmul.f32 %v3018, %v3256
      %v3557 = vmul.f32 %v3018, %v3260
      %v3558 = vmul.f32 %v3018, %v3264
      %v3559 = vmul.f32 %v3018, %v3268
      %v3560 = vmul.f32 %v3018, %v3272
      %v3561 = vmul.f32 %v3018, %v3276
      %v3562 = vmul.f32 %v3018, %v3280
      %v3563 = vmul.f32 %v3018, %v3284
      %v3564 = vmul.f32 %v3018, %v3288
      %v3565 = vmul.f32 %v3018, %v3292
      %v3566 = vmul.f32 %v3018, %v3296
      %v3567 = vmul.f32 %v3018, %v3300
      %v3568 = vmul.f32 %v3018, %v3304
      %v3569 = vmul.f32 %v3018, %v3308
      %v3570 = vmul.f32 %v3022, %v3196
      %v3571 = vmul.f32 %v3022, %v3200
      %v3572 = vmul.f32 %v3022, %v3204
      %v3573 = vmul.f32 %v3022, %v3208
      %v3574 = vmul.f32 %v3022, %v3212
      %v3575 = vmul.f32 %v3022, %v3216
      %v3576 = vmul.f32 %v3022, %v3220
      %v3577 = vmul.f32 %v3022, %v3224
      %v3578 = vmul.f32 %v3022, %v3228
      %v3579 = vmul.f32 %v3022, %v3232
      %v3580 = vmul.f32 %v3022, %v3236
      %v3581 = vmul.f32 %v3022, %v3240
      %v3582 = vmul.f32 %v3022, %v3244
      %v3583 = vmul.f32 %v3022, %v3248
      %v3584 = vmul.f32 %v3022, %v3252
      %v3585 = vmul.f32 %v3022, %v3256
      %v3586 = vmul.f32 %v3022, %v3260
      %v3587 = vmul.f32 %v3022, %v3264
      %v3588 = vmul.f32 %v3022, %v3268
      %v3589 = vmul.f32 %v3022, %v3272
      %v3590 = vmul.f32 %v3022, %v3276
      %v3591 = vmul.f32 %v3022, %v3280
      %v3592 = vmul.f32 %v3022, %v3284
      %v3593 = vmul.f32 %v3022, %v3288
      %v3594 = vmul.f32 %v3022, %v3292
      %v3595 = vmul.f32 %v3022, %v3296
      %v3596 = vmul.f32 %v3022, %v3300
      %v3597 = vmul.f32 %v3022, %v3304
      %v3598 = vmul.f32 %v3022, %v3308
      %v3599 = vmul.f32 %v3026, %v3196
      %v3600 = vmul.f32 %v3026, %v3200
      %v3601 = vmul.f32 %v3026, %v3204
      %v3602 = vmul.f32 %v3026, %v3208
      %v3603 = vmul.f32 %v3026, %v3212
      %v3604 = vmul.f32 %v3026, %v3216
      %v3605 = vmul.f32 %v3026, %v3220
      %v3606 = vmul.f32 %v3026, %v3224
      %v3607 = vmul.f32 %v3026, %v3228
      %v3608 = vmul.f32 %v3026, %v3232
      %v3609 = vmul.f32 %v3026, %v3236
      %v3610 = vmul.f32 %v3026, %v3240
      %v3611 = vmul.f32 %v3026, %v3244
      %v3612 = vmul.f32 %v3026, %v3248
      %v3613 = vmul.f32 %v3026, %v3252
      %v3614 = vmul.f32 %v3026, %v3256
      %v3615 = vmul.f32 %v3026, %v3260
      %v3616 = vmul.f32 %v3026, %v3264
      %v3617 = vmul.f32 %v3026, %v3268
      %v3618 = vmul.f32 %v3026, %v3272
      %v3619 = vmul.f32 %v3026, %v3276
      %v3620 = vmul.f32 %v3026, %v3280
      %v3621 = vmul.f32 %v3026, %v3284
      %v3622 = vmul.f32 %v3026, %v3288
      %v3623 = vmul.f32 %v3026, %v3292
      %v3624 = vmul.f32 %v3026, %v3296
      %v3625 = vmul.f32 %v3026, %v3300
      %v3626 = vmul.f32 %v3026, %v3304
      %v3627 = vmul.f32 %v3026, %v3308
      %v3628 = vmul.f32 %v3030, %v3196
      %v3629 = vmul.f32 %v3030, %v3200
      %v3630 = vmul.f32 %v3030, %v3204
      %v3631 = vmul.f32 %v3030, %v3208
      %v3632 = vmul.f32 %v3030, %v3212
      %v3633 = vmul.f32 %v3030, %v3216
      %v3634 = vmul.f32 %v3030, %v3220
      %v3635 = vmul.f32 %v3030, %v3224
      %v3636 = vmul.f32 %v3030, %v3228
      %v3637 = vmul.f32 %v3030, %v3232
      %v3638 = vmul.f32 %v3030, %v3236
      %v3639 = vmul.f32 %v3030, %v3240
      %v3640 = vmul.f32 %v3030, %v3244
      %v3641 = vmul.f32 %v3030, %v3248
      %v3642 = vmul.f32 %v3030, %v3252
      %v3643 = vmul.f32 %v3030, %v3256
      %v3644 = vmul.f32 %v3030, %v3260
      %v3645 = vmul.f32 %v3030, %v3264
      %v3646 = vmul.f32 %v3030, %v3268
      %v3647 = vmul.f32 %v3030, %v3272
      %v3648 = vmul.f32 %v3030, %v3276
      %v3649 = vmul.f32 %v3030, %v3280
      %v3650 = vmul.f32 %v3030, %v3284
      %v3651 = vmul.f32 %v3030, %v3288
      %v3652 = vmul.f32 %v3030, %v3292
      %v3653 = vmul.f32 %v3030, %v3296
      %v3654 = vmul.f32 %v3030, %v3300
      %v3655 = vmul.f32 %v3030, %v3304
      %v3656 = vmul.f32 %v3030, %v3308
      %v3657 = vmul.f32 %v3034, %v3196
      %v3658 = vmul.f32 %v3034, %v3200
      %v3659 = vmul.f32 %v3034, %v3204
      %v3660 = vmul.f32 %v3034, %v3208
      %v3661 = vmul.f32 %v3034, %v3212
      %v3662 = vmul.f32 %v3034, %v3216
      %v3663 = vmul.f32 %v3034, %v3220
      %v3664 = vmul.f32 %v3034, %v3224
      %v3665 = vmul.f32 %v3034, %v3228
      %v3666 = vmul.f32 %v3034, %v3232
      %v3667 = vmul.f32 %v3034, %v3236
      %v3668 = vmul.f32 %v3034, %v3240
      %v3669 = vmul.f32 %v3034, %v3244
      %v3670 = vmul.f32 %v3034, %v3248
      %v3671 = vmul.f32 %v3034, %v3252
      %v3672 = vmul.f32 %v3034, %v3256
      %v3673 = vmul.f32 %v3034, %v3260
      %v3674 = vmul.f32 %v3034, %v3264
      %v3675 = vmul.f32 %v3034, %v3268
      %v3676 = vmul.f32 %v3034, %v3272
      %v3677 = vmul.f32 %v3034, %v3276
      %v3678 = vmul.f32 %v3034, %v3280
      %v3679 = vmul.f32 %v3034, %v3284
      %v3680 = vmul.f32 %v3034, %v3288
      %v3681 = vmul.f32 %v3034, %v3292
      %v3682 = vmul.f32 %v3034, %v3296
      %v3683 = vmul.f32 %v3034, %v3300
      %v3684 = vmul.f32 %v3034, %v3304
      %v3685 = vmul.f32 %v3034, %v3308
      %v3686 = vmul.f32 %v3038, %v3196
      %v3687 = vmul.f32 %v3038, %v3200
      %v3688 = vmul.f32 %v3038, %v3204
      %v3689 = vmul.f32 %v3038, %v3208
      %v3690 = vmul.f32 %v3038, %v3212
      %v3691 = vmul.f32 %v3038, %v3216
      %v3692 = vmul.f32 %v3038, %v3220
      %v3693 = vmul.f32 %v3038, %v3224
      %v3694 = vmul.f32 %v3038, %v3228
      %v3695 = vmul.f32 %v3038, %v3232
      %v3696 = vmul.f32 %v3038, %v3236
      %v3697 = vmul.f32 %v3038, %v3240
      %v3698 = vmul.f32 %v3038, %v3244
      %v3699 = vmul.f32 %v3038, %v3248
      %v3700 = vmul.f32 %v3038, %v3252
      %v3701 = vmul.f32 %v3038, %v3256
      %v3702 = vmul.f32 %v3038, %v3260
      %v3703 = vmul.f32 %v3038, %v3264
      %v3704 = vmul.f32 %v3038, %v3268
      %v3705 = vmul.f32 %v3038, %v3272
      %v3706 = vmul.f32 %v3038, %v3276
      %v3707 = vmul.f32 %v3038, %v3280
      %v3708 = vmul.f32 %v3038, %v3284
      %v3709 = vmul.f32 %v3038, %v3288
      %v3710 = vmul.f32 %v3038, %v3292
      %v3711 = vmul.f32 %v3038, %v3296
      %v3712 = vmul.f32 %v3038, %v3300
      %v3713 = vmul.f32 %v3038, %v3304
      %v3714 = vmul.f32 %v3038, %v3308
      %v3715 = vmul.f32 %v3042, %v3196
      %v3716 = vmul.f32 %v3042, %v3200
      %v3717 = vmul.f32 %v3042, %v3204
      %v3718 = vmul.f32 %v3042, %v3208
      %v3719 = vmul.f32 %v3042, %v3212
      %v3720 = vmul.f32 %v3042, %v3216
      %v3721 = vmul.f32 %v3042, %v3220
      %v3722 = vmul.f32 %v3042, %v3224
      %v3723 = vmul.f32 %v3042, %v3228
      %v3724 = vmul.f32 %v3042, %v3232
      %v3725 = vmul.f32 %v3042, %v3236
      %v3726 = vmul.f32 %v3042, %v3240
      %v3727 = vmul.f32 %v3042, %v3244
      %v3728 = vmul.f32 %v3042, %v3248
      %v3729 = vmul.f32 %v3042, %v3252
      %v3730 = vmul.f32 %v3042, %v3256
      %v3731 = vmul.f32 %v3042, %v3260
      %v3732 = vmul.f32 %v3042, %v3264
      %v3733 = vmul.f32 %v3042, %v3268
      %v3734 = vmul.f32 %v3042, %v3272
      %v3735 = vmul.f32 %v3042, %v3276
      %v3736 = vmul.f32 %v3042, %v3280
      %v3737 = vmul.f32 %v3042, %v3284
      %v3738 = vmul.f32 %v3042, %v3288
      %v3739 = vmul.f32 %v3042, %v3292
      %v3740 = vmul.f32 %v3042, %v3296
      %v3741 = vmul.f32 %v3042, %v3300
      %v3742 = vmul.f32 %v3042, %v3304
      %v3743 = vmul.f32 %v3042, %v3308
      %v3744 = vmul.f32 %v3046, %v3196
      %v3745 = vmul.f32 %v3046, %v3200
      %v3746 = vmul.f32 %v3046, %v3204
      %v3747 = vmul.f32 %v3046, %v3208
      %v3748 = vmul.f32 %v3046, %v3212
      %v3749 = vmul.f32 %v3046, %v3216
      %v3750 = vmul.f32 %v3046, %v3220
      %v3751 = vmul.f32 %v3046, %v3224
      %v3752 = vmul.f32 %v3046, %v3228
      %v3753 = vmul.f32 %v3046, %v3232
      %v3754 = vmul.f32 %v3046, %v3236
      %v3755 = vmul.f32 %v3046, %v3240
      %v3756 = vmul.f32 %v3046, %v3244
      %v3757 = vmul.f32 %v3046, %v3248
      %v3758 = vmul.f32 %v3046, %v3252
      %v3759 = vmul.f32 %v3046, %v3256
      %v3760 = vmul.f32 %v3046, %v3260
      %v3761 = vmul.f32 %v3046, %v3264
      %v3762 = vmul.f32 %v3046, %v3268
      %v3763 = vmul.f32 %v3046, %v3272
      %v3764 = vmul.f32 %v3046, %v3276
      %v3765 = vmul.f32 %v3046, %v3280
      %v3766 = vmul.f32 %v3046, %v3284
      %v3767 = vmul.f32 %v3046, %v3288
      %v3768 = vmul.f32 %v3046, %v3292
      %v3769 = vmul.f32 %v3046, %v3296
      %v3770 = vmul.f32 %v3046, %v3300
      %v3771 = vmul.f32 %v3046, %v3304
      %v3772 = vmul.f32 %v3046, %v3308
      %v3773 = vadd.f32 %v2520, %v3309
      %v3774 = vadd.f32 %v2521, %v3310
      %v3775 = vadd.f32 %v2522, %v3311
      %v3776 = vadd.f32 %v2523, %v3312
      %v3777 = vadd.f32 %v2524, %v3313
      %v3778 = vadd.f32 %v2525, %v3314
      %v3779 = vadd.f32 %v2526, %v3315
      %v3780 = vadd.f32 %v2527, %v3316
      %v3781 = vadd.f32 %v2528, %v3317
      %v3782 = vadd.f32 %v2529, %v3318
      %v3783 = vadd.f32 %v2530, %v3319
      %v3784 = vadd.f32 %v2531, %v3320
      %v3785 = vadd.f32 %v2532, %v3321
      %v3786 = vadd.f32 %v2533, %v3322
      %v3787 = vadd.f32 %v2534, %v3323
      %v3788 = vadd.f32 %v2535, %v3324
      %v3789 = vadd.f32 %v2536, %v3325
      %v3790 = vadd.f32 %v2537, %v3326
      %v3791 = vadd.f32 %v2538, %v3327
      %v3792 = vadd.f32 %v2539, %v3328
      %v3793 = vadd.f32 %v2540, %v3329
      %v3794 = vadd.f32 %v2541, %v3330
      %v3795 = vadd.f32 %v2542, %v3331
      %v3796 = vadd.f32 %v2543, %v3332
      %v3797 = vadd.f32 %v2544, %v3333
      %v3798 = vadd.f32 %v2545, %v3334
      %v3799 = vadd.f32 %v2546, %v3335
      %v3800 = vadd.f32 %v2547, %v3336
      %v3801 = vadd.f32 %v2548, %v3337
      %v3802 = vadd.f32 %v2549, %v3338
      %v3803 = vadd.f32 %v2550, %v3339
      %v3804 = vadd.f32 %v2551, %v3340
      %v3805 = vadd.f32 %v2552, %v3341
      %v3806 = vadd.f32 %v2553, %v3342
      %v3807 = vadd.f32 %v2554, %v3343
      %v3808 = vadd.f32 %v2555, %v3344
      %v3809 = vadd.f32 %v2556, %v3345
      %v3810 = vadd.f32 %v2557, %v3346
      %v3811 = vadd.f32 %v2558, %v3347
      %v3812 = vadd.f32 %v2559, %v3348
      %v3813 = vadd.f32 %v2560, %v3349
      %v3814 = vadd.f32 %v2561, %v3350
      %v3815 = vadd.f32 %v2562, %v3351
      %v3816 = vadd.f32 %v2563, %v3352
      %v3817 = vadd.f32 %v2564, %v3353
      %v3818 = vadd.f32 %v2565, %v3354
      %v3819 = vadd.f32 %v2566, %v3355
      %v3820 = vadd.f32 %v2567, %v3356
      %v3821 = vadd.f32 %v2568, %v3357
      %v3822 = vadd.f32 %v2569, %v3358
      %v3823 = vadd.f32 %v2570, %v3359
      %v3824 = vadd.f32 %v2571, %v3360
      %v3825 = vadd.f32 %v2572, %v3361
      %v3826 = vadd.f32 %v2573, %v3362
      %v3827 = vadd.f32 %v2574, %v3363
      %v3828 = vadd.f32 %v2575, %v3364
      %v3829 = vadd.f32 %v2576, %v3365
      %v3830 = vadd.f32 %v2577, %v3366
      %v3831 = vadd.f32 %v2578, %v3367
      %v3832 = vadd.f32 %v2579, %v3368
      %v3833 = vadd.f32 %v2580, %v3369
      %v3834 = vadd.f32 %v2581, %v3370
      %v3835 = vadd.f32 %v2582, %v3371
      %v3836 = vadd.f32 %v2583, %v3372
      %v3837 = vadd.f32 %v2584, %v3373
      %v3838 = vadd.f32 %v2585, %v3374
      %v3839 = vadd.f32 %v2586, %v3375
      %v3840 = vadd.f32 %v2587, %v3376
      %v3841 = vadd.f32 %v2588, %v3377
      %v3842 = vadd.f32 %v2589, %v3378
      %v3843 = vadd.f32 %v2590, %v3379
      %v3844 = vadd.f32 %v2591, %v3380
      %v3845 = vadd.f32 %v2592, %v3381
      %v3846 = vadd.f32 %v2593, %v3382
      %v3847 = vadd.f32 %v2594, %v3383
      %v3848 = vadd.f32 %v2595, %v3384
      %v3849 = vadd.f32 %v2596, %v3385
      %v3850 = vadd.f32 %v2597, %v3386
      %v3851 = vadd.f32 %v2598, %v3387
      %v3852 = vadd.f32 %v2599, %v3388
      %v3853 = vadd.f32 %v2600, %v3389
      %v3854 = vadd.f32 %v2601, %v3390
      %v3855 = vadd.f32 %v2602, %v3391
      %v3856 = vadd.f32 %v2603, %v3392
      %v3857 = vadd.f32 %v2604, %v3393
      %v3858 = vadd.f32 %v2605, %v3394
      %v3859 = vadd.f32 %v2606, %v3395
      %v3860 = vadd.f32 %v2607, %v3396
      %v3861 = vadd.f32 %v2608, %v3397
      %v3862 = vadd.f32 %v2609, %v3398
      %v3863 = vadd.f32 %v2610, %v3399
      %v3864 = vadd.f32 %v2611, %v3400
      %v3865 = vadd.f32 %v2612, %v3401
      %v3866 = vadd.f32 %v2613, %v3402
      %v3867 = vadd.f32 %v2614, %v3403
      %v3868 = vadd.f32 %v2615, %v3404
      %v3869 = vadd.f32 %v2616, %v3405
      %v3870 = vadd.f32 %v2617, %v3406
      %v3871 = vadd.f32 %v2618, %v3407
      %v3872 = vadd.f32 %v2619, %v3408
      %v3873 = vadd.f32 %v2620, %v3409
      %v3874 = vadd.f32 %v2621, %v3410
      %v3875 = vadd.f32 %v2622, %v3411
      %v3876 = vadd.f32 %v2623, %v3412
      %v3877 = vadd.f32 %v2624, %v3413
      %v3878 = vadd.f32 %v2625, %v3414
      %v3879 = vadd.f32 %v2626, %v3415
      %v3880 = vadd.f32 %v2627, %v3416
      %v3881 = vadd.f32 %v2628, %v3417
      %v3882 = vadd.f32 %v2629, %v3418
      %v3883 = vadd.f32 %v2630, %v3419
      %v3884 = vadd.f32 %v2631, %v3420
      %v3885 = vadd.f32 %v2632, %v3421
      %v3886 = vadd.f32 %v2633, %v3422
      %v3887 = vadd.f32 %v2634, %v3423
      %v3888 = vadd.f32 %v2635, %v3424
      %v3889 = vadd.f32 %v2636, %v3425
      %v3890 = vadd.f32 %v2637, %v3426
      %v3891 = vadd.f32 %v2638, %v3427
      %v3892 = vadd.f32 %v2639, %v3428
      %v3893 = vadd.f32 %v2640, %v3429
      %v3894 = vadd.f32 %v2641, %v3430
      %v3895 = vadd.f32 %v2642, %v3431
      %v3896 = vadd.f32 %v2643, %v3432
      %v3897 = vadd.f32 %v2644, %v3433
      %v3898 = vadd.f32 %v2645, %v3434
      %v3899 = vadd.f32 %v2646, %v3435
      %v3900 = vadd.f32 %v2647, %v3436
      %v3901 = vadd.f32 %v2648, %v3437
      %v3902 = vadd.f32 %v2649, %v3438
      %v3903 = vadd.f32 %v2650, %v3439
      %v3904 = vadd.f32 %v2651, %v3440
      %v3905 = vadd.f32 %v2652, %v3441
      %v3906 = vadd.f32 %v2653, %v3442
      %v3907 = vadd.f32 %v2654, %v3443
      %v3908 = vadd.f32 %v2655, %v3444
      %v3909 = vadd.f32 %v2656, %v3445
      %v3910 = vadd.f32 %v2657, %v3446
      %v3911 = vadd.f32 %v2658, %v3447
      %v3912 = vadd.f32 %v2659, %v3448
      %v3913 = vadd.f32 %v2660, %v3449
      %v3914 = vadd.f32 %v2661, %v3450
      %v3915 = vadd.f32 %v2662, %v3451
      %v3916 = vadd.f32 %v2663, %v3452
      %v3917 = vadd.f32 %v2664, %v3453
      %v3918 = vadd.f32 %v2665, %v3454
      %v3919 = vadd.f32 %v2666, %v3455
      %v3920 = vadd.f32 %v2667, %v3456
      %v3921 = vadd.f32 %v2668, %v3457
      %v3922 = vadd.f32 %v2669, %v3458
      %v3923 = vadd.f32 %v2670, %v3459
      %v3924 = vadd.f32 %v2671, %v3460
      %v3925 = vadd.f32 %v2672, %v3461
      %v3926 = vadd.f32 %v2673, %v3462
      %v3927 = vadd.f32 %v2674, %v3463
      %v3928 = vadd.f32 %v2675, %v3464
      %v3929 = vadd.f32 %v2676, %v3465
      %v3930 = vadd.f32 %v2677, %v3466
      %v3931 = vadd.f32 %v2678, %v3467
      %v3932 = vadd.f32 %v2679, %v3468
      %v3933 = vadd.f32 %v2680, %v3469
      %v3934 = vadd.f32 %v2681, %v3470
      %v3935 = vadd.f32 %v2682, %v3471
      %v3936 = vadd.f32 %v2683, %v3472
      %v3937 = vadd.f32 %v2684, %v3473
      %v3938 = vadd.f32 %v2685, %v3474
      %v3939 = vadd.f32 %v2686, %v3475
      %v3940 = vadd.f32 %v2687, %v3476
      %v3941 = vadd.f32 %v2688, %v3477
      %v3942 = vadd.f32 %v2689, %v3478
      %v3943 = vadd.f32 %v2690, %v3479
      %v3944 = vadd.f32 %v2691, %v3480
      %v3945 = vadd.f32 %v2692, %v3481
      %v3946 = vadd.f32 %v2693, %v3482
      %v3947 = vadd.f32 %v2694, %v3483
      %v3948 = vadd.f32 %v2695, %v3484
      %v3949 = vadd.f32 %v2696, %v3485
      %v3950 = vadd.f32 %v2697, %v3486
      %v3951 = vadd.f32 %v2698, %v3487
      %v3952 = vadd.f32 %v2699, %v3488
      %v3953 = vadd.f32 %v2700, %v3489
      %v3954 = vadd.f32 %v2701, %v3490
      %v3955 = vadd.f32 %v2702, %v3491
      %v3956 = vadd.f32 %v2703, %v3492
      %v3957 = vadd.f32 %v2704, %v3493
      %v3958 = vadd.f32 %v2705, %v3494
      %v3959 = vadd.f32 %v2706, %v3495
      %v3960 = vadd.f32 %v2707, %v3496
      %v3961 = vadd.f32 %v2708, %v3497
      %v3962 = vadd.f32 %v2709, %v3498
      %v3963 = vadd.f32 %v2710, %v3499
      %v3964 = vadd.f32 %v2711, %v3500
      %v3965 = vadd.f32 %v2712, %v3501
      %v3966 = vadd.f32 %v2713, %v3502
      %v3967 = vadd.f32 %v2714, %v3503
      %v3968 = vadd.f32 %v2715, %v3504
      %v3969 = vadd.f32 %v2716, %v3505
      %v3970 = vadd.f32 %v2717, %v3506
      %v3971 = vadd.f32 %v2718, %v3507
      %v3972 = vadd.f32 %v2719, %v3508
      %v3973 = vadd.f32 %v2720, %v3509
      %v3974 = vadd.f32 %v2721, %v3510
      %v3975 = vadd.f32 %v2722, %v3511
      %v3976 = vadd.f32 %v2723, %v3512
      %v3977 = vadd.f32 %v2724, %v3513
      %v3978 = vadd.f32 %v2725, %v3514
      %v3979 = vadd.f32 %v2726, %v3515
      %v3980 = vadd.f32 %v2727, %v3516
      %v3981 = vadd.f32 %v2728, %v3517
      %v3982 = vadd.f32 %v2729, %v3518
      %v3983 = vadd.f32 %v2730, %v3519
      %v3984 = vadd.f32 %v2731, %v3520
      %v3985 = vadd.f32 %v2732, %v3521
      %v3986 = vadd.f32 %v2733, %v3522
      %v3987 = vadd.f32 %v2734, %v3523
      %v3988 = vadd.f32 %v2735, %v3524
      %v3989 = vadd.f32 %v2736, %v3525
      %v3990 = vadd.f32 %v2737, %v3526
      %v3991 = vadd.f32 %v2738, %v3527
      %v3992 = vadd.f32 %v2739, %v3528
      %v3993 = vadd.f32 %v2740, %v3529
      %v3994 = vadd.f32 %v2741, %v3530
      %v3995 = vadd.f32 %v2742, %v3531
      %v3996 = vadd.f32 %v2743, %v3532
      %v3997 = vadd.f32 %v2744, %v3533
      %v3998 = vadd.f32 %v2745, %v3534
      %v3999 = vadd.f32 %v2746, %v3535
      %v4000 = vadd.f32 %v2747, %v3536
      %v4001 = vadd.f32 %v2748, %v3537
      %v4002 = vadd.f32 %v2749, %v3538
      %v4003 = vadd.f32 %v2750, %v3539
      %v4004 = vadd.f32 %v2751, %v3540
      %v4005 = vadd.f32 %v2752, %v3541
      %v4006 = vadd.f32 %v2753, %v3542
      %v4007 = vadd.f32 %v2754, %v3543
      %v4008 = vadd.f32 %v2755, %v3544
      %v4009 = vadd.f32 %v2756, %v3545
      %v4010 = vadd.f32 %v2757, %v3546
      %v4011 = vadd.f32 %v2758, %v3547
      %v4012 = vadd.f32 %v2759, %v3548
      %v4013 = vadd.f32 %v2760, %v3549
      %v4014 = vadd.f32 %v2761, %v3550
      %v4015 = vadd.f32 %v2762, %v3551
      %v4016 = vadd.f32 %v2763, %v3552
      %v4017 = vadd.f32 %v2764, %v3553
      %v4018 = vadd.f32 %v2765, %v3554
      %v4019 = vadd.f32 %v2766, %v3555
      %v4020 = vadd.f32 %v2767, %v3556
      %v4021 = vadd.f32 %v2768, %v3557
      %v4022 = vadd.f32 %v2769, %v3558
      %v4023 = vadd.f32 %v2770, %v3559
      %v4024 = vadd.f32 %v2771, %v3560
      %v4025 = vadd.f32 %v2772, %v3561
      %v4026 = vadd.f32 %v2773, %v3562
      %v4027 = vadd.f32 %v2774, %v3563
      %v4028 = vadd.f32 %v2775, %v3564
      %v4029 = vadd.f32 %v2776, %v3565
      %v4030 = vadd.f32 %v2777, %v3566
      %v4031 = vadd.f32 %v2778, %v3567
      %v4032 = vadd.f32 %v2779, %v3568
      %v4033 = vadd.f32 %v2780, %v3569
      %v4034 = vadd.f32 %v2781, %v3570
      %v4035 = vadd.f32 %v2782, %v3571
      %v4036 = vadd.f32 %v2783, %v3572
      %v4037 = vadd.f32 %v2784, %v3573
      %v4038 = vadd.f32 %v2785, %v3574
      %v4039 = vadd.f32 %v2786, %v3575
      %v4040 = vadd.f32 %v2787, %v3576
      %v4041 = vadd.f32 %v2788, %v3577
      %v4042 = vadd.f32 %v2789, %v3578
      %v4043 = vadd.f32 %v2790, %v3579
      %v4044 = vadd.f32 %v2791, %v3580
      %v4045 = vadd.f32 %v2792, %v3581
      %v4046 = vadd.f32 %v2793, %v3582
      %v4047 = vadd.f32 %v2794, %v3583
      %v4048 = vadd.f32 %v2795, %v3584
      %v4049 = vadd.f32 %v2796, %v3585
      %v4050 = vadd.f32 %v2797, %v3586
      %v4051 = vadd.f32 %v2798, %v3587
      %v4052 = vadd.f32 %v2799, %v3588
      %v4053 = vadd.f32 %v2800, %v3589
      %v4054 = vadd.f32 %v2801, %v3590
      %v4055 = vadd.f32 %v2802, %v3591
      %v4056 = vadd.f32 %v2803, %v3592
      %v4057 = vadd.f32 %v2804, %v3593
      %v4058 = vadd.f32 %v2805, %v3594
      %v4059 = vadd.f32 %v2806, %v3595
      %v4060 = vadd.f32 %v2807, %v3596
      %v4061 = vadd.f32 %v2808, %v3597
      %v4062 = vadd.f32 %v2809, %v3598
      %v4063 = vadd.f32 %v2810, %v3599
      %v4064 = vadd.f32 %v2811, %v3600
      %v4065 = vadd.f32 %v2812, %v3601
      %v4066 = vadd.f32 %v2813, %v3602
      %v4067 = vadd.f32 %v2814, %v3603
      %v4068 = vadd.f32 %v2815, %v3604
      %v4069 = vadd.f32 %v2816, %v3605
      %v4070 = vadd.f32 %v2817, %v3606
      %v4071 = vadd.f32 %v2818, %v3607
      %v4072 = vadd.f32 %v2819, %v3608
      %v4073 = vadd.f32 %v2820, %v3609
      %v4074 = vadd.f32 %v2821, %v3610
      %v4075 = vadd.f32 %v2822, %v3611
      %v4076 = vadd.f32 %v2823, %v3612
      %v4077 = vadd.f32 %v2824, %v3613
      %v4078 = vadd.f32 %v2825, %v3614
      %v4079 = vadd.f32 %v2826, %v3615
      %v4080 = vadd.f32 %v2827, %v3616
      %v4081 = vadd.f32 %v2828, %v3617
      %v4082 = vadd.f32 %v2829, %v3618
      %v4083 = vadd.f32 %v2830, %v3619
      %v4084 = vadd.f32 %v2831, %v3620
      %v4085 = vadd.f32 %v2832, %v3621
      %v4086 = vadd.f32 %v2833, %v3622
      %v4087 = vadd.f32 %v2834, %v3623
      %v4088 = vadd.f32 %v2835, %v3624
      %v4089 = vadd.f32 %v2836, %v3625
      %v4090 = vadd.f32 %v2837, %v3626
      %v4091 = vadd.f32 %v2838, %v3627
      %v4092 = vadd.f32 %v2839, %v3628
      %v4093 = vadd.f32 %v2840, %v3629
      %v4094 = vadd.f32 %v2841, %v3630
      %v4095 = vadd.f32 %v2842, %v3631
      %v4096 = vadd.f32 %v2843, %v3632
      %v4097 = vadd.f32 %v2844, %v3633
      %v4098 = vadd.f32 %v2845, %v3634
      %v4099 = vadd.f32 %v2846, %v3635
      %v4100 = vadd.f32 %v2847, %v3636
      %v4101 = vadd.f32 %v2848, %v3637
      %v4102 = vadd.f32 %v2849, %v3638
      %v4103 = vadd.f32 %v2850, %v3639
      %v4104 = vadd.f32 %v2851, %v3640
      %v4105 = vadd.f32 %v2852, %v3641
      %v4106 = vadd.f32 %v2853, %v3642
      %v4107 = vadd.f32 %v2854, %v3643
      %v4108 = vadd.f32 %v2855, %v3644
      %v4109 = vadd.f32 %v2856, %v3645
      %v4110 = vadd.f32 %v2857, %v3646
      %v4111 = vadd.f32 %v2858, %v3647
      %v4112 = vadd.f32 %v2859, %v3648
      %v4113 = vadd.f32 %v2860, %v3649
      %v4114 = vadd.f32 %v2861, %v3650
      %v4115 = vadd.f32 %v2862, %v3651
      %v4116 = vadd.f32 %v2863, %v3652
      %v4117 = vadd.f32 %v2864, %v3653
      %v4118 = vadd.f32 %v2865, %v3654
      %v4119 = vadd.f32 %v2866, %v3655
      %v4120 = vadd.f32 %v2867, %v3656
      %v4121 = vadd.f32 %v2868, %v3657
      %v4122 = vadd.f32 %v2869, %v3658
      %v4123 = vadd.f32 %v2870, %v3659
      %v4124 = vadd.f32 %v2871, %v3660
      %v4125 = vadd.f32 %v2872, %v3661
      %v4126 = vadd.f32 %v2873, %v3662
      %v4127 = vadd.f32 %v2874, %v3663
      %v4128 = vadd.f32 %v2875, %v3664
      %v4129 = vadd.f32 %v2876, %v3665
      %v4130 = vadd.f32 %v2877, %v3666
      %v4131 = vadd.f32 %v2878, %v3667
      %v4132 = vadd.f32 %v2879, %v3668
      %v4133 = vadd.f32 %v2880, %v3669
      %v4134 = vadd.f32 %v2881, %v3670
      %v4135 = vadd.f32 %v2882, %v3671
      %v4136 = vadd.f32 %v2883, %v3672
      %v4137 = vadd.f32 %v2884, %v3673
      %v4138 = vadd.f32 %v2885, %v3674
      %v4139 = vadd.f32 %v2886, %v3675
      %v4140 = vadd.f32 %v2887, %v3676
      %v4141 = vadd.f32 %v2888, %v3677
      %v4142 = vadd.f32 %v2889, %v3678
      %v4143 = vadd.f32 %v2890, %v3679
      %v4144 = vadd.f32 %v2891, %v3680
      %v4145 = vadd.f32 %v2892, %v3681
      %v4146 = vadd.f32 %v2893, %v3682
      %v4147 = vadd.f32 %v2894, %v3683
      %v4148 = vadd.f32 %v2895, %v3684
      %v4149 = vadd.f32 %v2896, %v3685
      %v4150 = vadd.f32 %v2897, %v3686
      %v4151 = vadd.f32 %v2898, %v3687
      %v4152 = vadd.f32 %v2899, %v3688
      %v4153 = vadd.f32 %v2900, %v3689
      %v4154 = vadd.f32 %v2901, %v3690
      %v4155 = vadd.f32 %v2902, %v3691
      %v4156 = vadd.f32 %v2903, %v3692
      %v4157 = vadd.f32 %v2904, %v3693
      %v4158 = vadd.f32 %v2905, %v3694
      %v4159 = vadd.f32 %v2906, %v3695
      %v4160 = vadd.f32 %v2907, %v3696
      %v4161 = vadd.f32 %v2908, %v3697
      %v4162 = vadd.f32 %v2909, %v3698
      %v4163 = vadd.f32 %v2910, %v3699
      %v4164 = vadd.f32 %v2911, %v3700
      %v4165 = vadd.f32 %v2912, %v3701
      %v4166 = vadd.f32 %v2913, %v3702
      %v4167 = vadd.f32 %v2914, %v3703
      %v4168 = vadd.f32 %v2915, %v3704
      %v4169 = vadd.f32 %v2916, %v3705
      %v4170 = vadd.f32 %v2917, %v3706
      %v4171 = vadd.f32 %v2918, %v3707
      %v4172 = vadd.f32 %v2919, %v3708
      %v4173 = vadd.f32 %v2920, %v3709
      %v4174 = vadd.f32 %v2921, %v3710
      %v4175 = vadd.f32 %v2922, %v3711
      %v4176 = vadd.f32 %v2923, %v3712
      %v4177 = vadd.f32 %v2924, %v3713
      %v4178 = vadd.f32 %v2925, %v3714
      %v4179 = vadd.f32 %v2926, %v3715
      %v4180 = vadd.f32 %v2927, %v3716
      %v4181 = vadd.f32 %v2928, %v3717
      %v4182 = vadd.f32 %v2929, %v3718
      %v4183 = vadd.f32 %v2930, %v3719
      %v4184 = vadd.f32 %v2931, %v3720
      %v4185 = vadd.f32 %v2932, %v3721
      %v4186 = vadd.f32 %v2933, %v3722
      %v4187 = vadd.f32 %v2934, %v3723
      %v4188 = vadd.f32 %v2935, %v3724
      %v4189 = vadd.f32 %v2936, %v3725
      %v4190 = vadd.f32 %v2937, %v3726
      %v4191 = vadd.f32 %v2938, %v3727
      %v4192 = vadd.f32 %v2939, %v3728
      %v4193 = vadd.f32 %v2940, %v3729
      %v4194 = vadd.f32 %v2941, %v3730
      %v4195 = vadd.f32 %v2942, %v3731
      %v4196 = vadd.f32 %v2943, %v3732
      %v4197 = vadd.f32 %v2944, %v3733
      %v4198 = vadd.f32 %v2945, %v3734
      %v4199 = vadd.f32 %v2946, %v3735
      %v4200 = vadd.f32 %v2947, %v3736
      %v4201 = vadd.f32 %v2948, %v3737
      %v4202 = vadd.f32 %v2949, %v3738
      %v4203 = vadd.f32 %v2950, %v3739
      %v4204 = vadd.f32 %v2951, %v3740
      %v4205 = vadd.f32 %v2952, %v3741
      %v4206 = vadd.f32 %v2953, %v3742
      %v4207 = vadd.f32 %v2954, %v3743
      %v4208 = vadd.f32 %v2955, %v3744
      %v4209 = vadd.f32 %v2956, %v3745
      %v4210 = vadd.f32 %v2957, %v3746
      %v4211 = vadd.f32 %v2958, %v3747
      %v4212 = vadd.f32 %v2959, %v3748
      %v4213 = vadd.f32 %v2960, %v3749
      %v4214 = vadd.f32 %v2961, %v3750
      %v4215 = vadd.f32 %v2962, %v3751
      %v4216 = vadd.f32 %v2963, %v3752
      %v4217 = vadd.f32 %v2964, %v3753
      %v4218 = vadd.f32 %v2965, %v3754
      %v4219 = vadd.f32 %v2966, %v3755
      %v4220 = vadd.f32 %v2967, %v3756
      %v4221 = vadd.f32 %v2968, %v3757
      %v4222 = vadd.f32 %v2969, %v3758
      %v4223 = vadd.f32 %v2970, %v3759
      %v4224 = vadd.f32 %v2971, %v3760
      %v4225 = vadd.f32 %v2972, %v3761
      %v4226 = vadd.f32 %v2973, %v3762
      %v4227 = vadd.f32 %v2974, %v3763
      %v4228 = vadd.f32 %v2975, %v3764
      %v4229 = vadd.f32 %v2976, %v3765
      %v4230 = vadd.f32 %v2977, %v3766
      %v4231 = vadd.f32 %v2978, %v3767
      %v4232 = vadd.f32 %v2979, %v3768
      %v4233 = vadd.f32 %v2980, %v3769
      %v4234 = vadd.f32 %v2981, %v3770
      %v4235 = vadd.f32 %v2982, %v3771
      %v4236 = vadd.f32 %v2983, %v3772
      %v4237 = vmax.f32 %v3773, 0.0
      %v4238 = vmax.f32 %v3774, 0.0
      %v4239 = vmax.f32 %v3775, 0.0
      %v4240 = vmax.f32 %v3776, 0.0
      %v4241 = vmax.f32 %v3777, 0.0
      %v4242 = vmax.f32 %v3778, 0.0
      %v4243 = vmax.f32 %v3779, 0.0
      %v4244 = vmax.f32 %v3780, 0.0
      %v4245 = vmax.f32 %v3781, 0.0
      %v4246 = vmax.f32 %v3782, 0.0
      %v4247 = vmax.f32 %v3783, 0.0
      %v4248 = vmax.f32 %v3784, 0.0
      %v4249 = vmax.f32 %v3785, 0.0
      %v4250 = vmax.f32 %v3786, 0.0
      %v4251 = vmax.f32 %v3787, 0.0
      %v4252 = vmax.f32 %v3788, 0.0
      %v4253 = vmax.f32 %v3789, 0.0
      %v4254 = vmax.f32 %v3790, 0.0
      %v4255 = vmax.f32 %v3791, 0.0
      %v4256 = vmax.f32 %v3792, 0.0
      %v4257 = vmax.f32 %v3793, 0.0
      %v4258 = vmax.f32 %v3794, 0.0
      %v4259 = vmax.f32 %v3795, 0.0
      %v4260 = vmax.f32 %v3796, 0.0
      %v4261 = vmax.f32 %v3797, 0.0
      %v4262 = vmax.f32 %v3798, 0.0
      %v4263 = vmax.f32 %v3799, 0.0
      %v4264 = vmax.f32 %v3800, 0.0
      %v4265 = vmax.f32 %v3801, 0.0
      %v4266 = vmax.f32 %v3802, 0.0
      %v4267 = vmax.f32 %v3803, 0.0
      %v4268 = vmax.f32 %v3804, 0.0
      %v4269 = vmax.f32 %v3805, 0.0
      %v4270 = vmax.f32 %v3806, 0.0
      %v4271 = vmax.f32 %v3807, 0.0
      %v4272 = vmax.f32 %v3808, 0.0
      %v4273 = vmax.f32 %v3809, 0.0
      %v4274 = vmax.f32 %v3810, 0.0
      %v4275 = vmax.f32 %v3811, 0.0
      %v4276 = vmax.f32 %v3812, 0.0
      %v4277 = vmax.f32 %v3813, 0.0
      %v4278 = vmax.f32 %v3814, 0.0
      %v4279 = vmax.f32 %v3815, 0.0
      %v4280 = vmax.f32 %v3816, 0.0
      %v4281 = vmax.f32 %v3817, 0.0
      %v4282 = vmax.f32 %v3818, 0.0
      %v4283 = vmax.f32 %v3819, 0.0
      %v4284 = vmax.f32 %v3820, 0.0
      %v4285 = vmax.f32 %v3821, 0.0
      %v4286 = vmax.f32 %v3822, 0.0
      %v4287 = vmax.f32 %v3823, 0.0
      %v4288 = vmax.f32 %v3824, 0.0
      %v4289 = vmax.f32 %v3825, 0.0
      %v4290 = vmax.f32 %v3826, 0.0
      %v4291 = vmax.f32 %v3827, 0.0
      %v4292 = vmax.f32 %v3828, 0.0
      %v4293 = vmax.f32 %v3829, 0.0
      %v4294 = vmax.f32 %v3830, 0.0
      %v4295 = vmax.f32 %v3831, 0.0
      %v4296 = vmax.f32 %v3832, 0.0
      %v4297 = vmax.f32 %v3833, 0.0
      %v4298 = vmax.f32 %v3834, 0.0
      %v4299 = vmax.f32 %v3835, 0.0
      %v4300 = vmax.f32 %v3836, 0.0
      %v4301 = vmax.f32 %v3837, 0.0
      %v4302 = vmax.f32 %v3838, 0.0
      %v4303 = vmax.f32 %v3839, 0.0
      %v4304 = vmax.f32 %v3840, 0.0
      %v4305 = vmax.f32 %v3841, 0.0
      %v4306 = vmax.f32 %v3842, 0.0
      %v4307 = vmax.f32 %v3843, 0.0
      %v4308 = vmax.f32 %v3844, 0.0
      %v4309 = vmax.f32 %v3845, 0.0
      %v4310 = vmax.f32 %v3846, 0.0
      %v4311 = vmax.f32 %v3847, 0.0
      %v4312 = vmax.f32 %v3848, 0.0
      %v4313 = vmax.f32 %v3849, 0.0
      %v4314 = vmax.f32 %v3850, 0.0
      %v4315 = vmax.f32 %v3851, 0.0
      %v4316 = vmax.f32 %v3852, 0.0
      %v4317 = vmax.f32 %v3853, 0.0
      %v4318 = vmax.f32 %v3854, 0.0
      %v4319 = vmax.f32 %v3855, 0.0
      %v4320 = vmax.f32 %v3856, 0.0
      %v4321 = vmax.f32 %v3857, 0.0
      %v4322 = vmax.f32 %v3858, 0.0
      %v4323 = vmax.f32 %v3859, 0.0
      %v4324 = vmax.f32 %v3860, 0.0
      %v4325 = vmax.f32 %v3861, 0.0
      %v4326 = vmax.f32 %v3862, 0.0
      %v4327 = vmax.f32 %v3863, 0.0
      %v4328 = vmax.f32 %v3864, 0.0
      %v4329 = vmax.f32 %v3865, 0.0
      %v4330 = vmax.f32 %v3866, 0.0
      %v4331 = vmax.f32 %v3867, 0.0
      %v4332 = vmax.f32 %v3868, 0.0
      %v4333 = vmax.f32 %v3869, 0.0
      %v4334 = vmax.f32 %v3870, 0.0
      %v4335 = vmax.f32 %v3871, 0.0
      %v4336 = vmax.f32 %v3872, 0.0
      %v4337 = vmax.f32 %v3873, 0.0
      %v4338 = vmax.f32 %v3874, 0.0
      %v4339 = vmax.f32 %v3875, 0.0
      %v4340 = vmax.f32 %v3876, 0.0
      %v4341 = vmax.f32 %v3877, 0.0
      %v4342 = vmax.f32 %v3878, 0.0
      %v4343 = vmax.f32 %v3879, 0.0
      %v4344 = vmax.f32 %v3880, 0.0
      %v4345 = vmax.f32 %v3881, 0.0
      %v4346 = vmax.f32 %v3882, 0.0
      %v4347 = vmax.f32 %v3883, 0.0
      %v4348 = vmax.f32 %v3884, 0.0
      %v4349 = vmax.f32 %v3885, 0.0
      %v4350 = vmax.f32 %v3886, 0.0
      %v4351 = vmax.f32 %v3887, 0.0
      %v4352 = vmax.f32 %v3888, 0.0
      %v4353 = vmax.f32 %v3889, 0.0
      %v4354 = vmax.f32 %v3890, 0.0
      %v4355 = vmax.f32 %v3891, 0.0
      %v4356 = vmax.f32 %v3892, 0.0
      %v4357 = vmax.f32 %v3893, 0.0
      %v4358 = vmax.f32 %v3894, 0.0
      %v4359 = vmax.f32 %v3895, 0.0
      %v4360 = vmax.f32 %v3896, 0.0
      %v4361 = vmax.f32 %v3897, 0.0
      %v4362 = vmax.f32 %v3898, 0.0
      %v4363 = vmax.f32 %v3899, 0.0
      %v4364 = vmax.f32 %v3900, 0.0
      %v4365 = vmax.f32 %v3901, 0.0
      %v4366 = vmax.f32 %v3902, 0.0
      %v4367 = vmax.f32 %v3903, 0.0
      %v4368 = vmax.f32 %v3904, 0.0
      %v4369 = vmax.f32 %v3905, 0.0
      %v4370 = vmax.f32 %v3906, 0.0
      %v4371 = vmax.f32 %v3907, 0.0
      %v4372 = vmax.f32 %v3908, 0.0
      %v4373 = vmax.f32 %v3909, 0.0
      %v4374 = vmax.f32 %v3910, 0.0
      %v4375 = vmax.f32 %v3911, 0.0
      %v4376 = vmax.f32 %v3912, 0.0
      %v4377 = vmax.f32 %v3913, 0.0
      %v4378 = vmax.f32 %v3914, 0.0
      %v4379 = vmax.f32 %v3915, 0.0
      %v4380 = vmax.f32 %v3916, 0.0
      %v4381 = vmax.f32 %v3917, 0.0
      %v4382 = vmax.f32 %v3918, 0.0
      %v4383 = vmax.f32 %v3919, 0.0
      %v4384 = vmax.f32 %v3920, 0.0
      %v4385 = vmax.f32 %v3921, 0.0
      %v4386 = vmax.f32 %v3922, 0.0
      %v4387 = vmax.f32 %v3923, 0.0
      %v4388 = vmax.f32 %v3924, 0.0
      %v4389 = vmax.f32 %v3925, 0.0
      %v4390 = vmax.f32 %v3926, 0.0
      %v4391 = vmax.f32 %v3927, 0.0
      %v4392 = vmax.f32 %v3928, 0.0
      %v4393 = vmax.f32 %v3929, 0.0
      %v4394 = vmax.f32 %v3930, 0.0
      %v4395 = vmax.f32 %v3931, 0.0
      %v4396 = vmax.f32 %v3932, 0.0
      %v4397 = vmax.f32 %v3933, 0.0
      %v4398 = vmax.f32 %v3934, 0.0
      %v4399 = vmax.f32 %v3935, 0.0
      %v4400 = vmax.f32 %v3936, 0.0
      %v4401 = vmax.f32 %v3937, 0.0
      %v4402 = vmax.f32 %v3938, 0.0
      %v4403 = vmax.f32 %v3939, 0.0
      %v4404 = vmax.f32 %v3940, 0.0
      %v4405 = vmax.f32 %v3941, 0.0
      %v4406 = vmax.f32 %v3942, 0.0
      %v4407 = vmax.f32 %v3943, 0.0
      %v4408 = vmax.f32 %v3944, 0.0
      %v4409 = vmax.f32 %v3945, 0.0
      %v4410 = vmax.f32 %v3946, 0.0
      %v4411 = vmax.f32 %v3947, 0.0
      %v4412 = vmax.f32 %v3948, 0.0
      %v4413 = vmax.f32 %v3949, 0.0
      %v4414 = vmax.f32 %v3950, 0.0
      %v4415 = vmax.f32 %v3951, 0.0
      %v4416 = vmax.f32 %v3952, 0.0
      %v4417 = vmax.f32 %v3953, 0.0
      %v4418 = vmax.f32 %v3954, 0.0
      %v4419 = vmax.f32 %v3955, 0.0
      %v4420 = vmax.f32 %v3956, 0.0
      %v4421 = vmax.f32 %v3957, 0.0
      %v4422 = vmax.f32 %v3958, 0.0
      %v4423 = vmax.f32 %v3959, 0.0
      %v4424 = vmax.f32 %v3960, 0.0
      %v4425 = vmax.f32 %v3961, 0.0
      %v4426 = vmax.f32 %v3962, 0.0
      %v4427 = vmax.f32 %v3963, 0.0
      %v4428 = vmax.f32 %v3964, 0.0
      %v4429 = vmax.f32 %v3965, 0.0
      %v4430 = vmax.f32 %v3966, 0.0
      %v4431 = vmax.f32 %v3967, 0.0
      %v4432 = vmax.f32 %v3968, 0.0
      %v4433 = vmax.f32 %v3969, 0.0
      %v4434 = vmax.f32 %v3970, 0.0
      %v4435 = vmax.f32 %v3971, 0.0
      %v4436 = vmax.f32 %v3972, 0.0
      %v4437 = vmax.f32 %v3973, 0.0
      %v4438 = vmax.f32 %v3974, 0.0
      %v4439 = vmax.f32 %v3975, 0.0
      %v4440 = vmax.f32 %v3976, 0.0
      %v4441 = vmax.f32 %v3977, 0.0
      %v4442 = vmax.f32 %v3978, 0.0
      %v4443 = vmax.f32 %v3979, 0.0
      %v4444 = vmax.f32 %v3980, 0.0
      %v4445 = vmax.f32 %v3981, 0.0
      %v4446 = vmax.f32 %v3982, 0.0
      %v4447 = vmax.f32 %v3983, 0.0
      %v4448 = vmax.f32 %v3984, 0.0
      %v4449 = vmax.f32 %v3985, 0.0
      %v4450 = vmax.f32 %v3986, 0.0
      %v4451 = vmax.f32 %v3987, 0.0
      %v4452 = vmax.f32 %v3988, 0.0
      %v4453 = vmax.f32 %v3989, 0.0
      %v4454 = vmax.f32 %v3990, 0.0
      %v4455 = vmax.f32 %v3991, 0.0
      %v4456 = vmax.f32 %v3992, 0.0
      %v4457 = vmax.f32 %v3993, 0.0
      %v4458 = vmax.f32 %v3994, 0.0
      %v4459 = vmax.f32 %v3995, 0.0
      %v4460 = vmax.f32 %v3996, 0.0
      %v4461 = vmax.f32 %v3997, 0.0
      %v4462 = vmax.f32 %v3998, 0.0
      %v4463 = vmax.f32 %v3999, 0.0
      %v4464 = vmax.f32 %v4000, 0.0
      %v4465 = vmax.f32 %v4001, 0.0
      %v4466 = vmax.f32 %v4002, 0.0
      %v4467 = vmax.f32 %v4003, 0.0
      %v4468 = vmax.f32 %v4004, 0.0
      %v4469 = vmax.f32 %v4005, 0.0
      %v4470 = vmax.f32 %v4006, 0.0
      %v4471 = vmax.f32 %v4007, 0.0
      %v4472 = vmax.f32 %v4008, 0.0
      %v4473 = vmax.f32 %v4009, 0.0
      %v4474 = vmax.f32 %v4010, 0.0
      %v4475 = vmax.f32 %v4011, 0.0
      %v4476 = vmax.f32 %v4012, 0.0
      %v4477 = vmax.f32 %v4013, 0.0
      %v4478 = vmax.f32 %v4014, 0.0
      %v4479 = vmax.f32 %v4015, 0.0
      %v4480 = vmax.f32 %v4016, 0.0
      %v4481 = vmax.f32 %v4017, 0.0
      %v4482 = vmax.f32 %v4018, 0.0
      %v4483 = vmax.f32 %v4019, 0.0
      %v4484 = vmax.f32 %v4020, 0.0
      %v4485 = vmax.f32 %v4021, 0.0
      %v4486 = vmax.f32 %v4022, 0.0
      %v4487 = vmax.f32 %v4023, 0.0
      %v4488 = vmax.f32 %v4024, 0.0
      %v4489 = vmax.f32 %v4025, 0.0
      %v4490 = vmax.f32 %v4026, 0.0
      %v4491 = vmax.f32 %v4027, 0.0
      %v4492 = vmax.f32 %v4028, 0.0
      %v4493 = vmax.f32 %v4029, 0.0
      %v4494 = vmax.f32 %v4030, 0.0
      %v4495 = vmax.f32 %v4031, 0.0
      %v4496 = vmax.f32 %v4032, 0.0
      %v4497 = vmax.f32 %v4033, 0.0
      %v4498 = vmax.f32 %v4034, 0.0
      %v4499 = vmax.f32 %v4035, 0.0
      %v4500 = vmax.f32 %v4036, 0.0
      %v4501 = vmax.f32 %v4037, 0.0
      %v4502 = vmax.f32 %v4038, 0.0
      %v4503 = vmax.f32 %v4039, 0.0
      %v4504 = vmax.f32 %v4040, 0.0
      %v4505 = vmax.f32 %v4041, 0.0
      %v4506 = vmax.f32 %v4042, 0.0
      %v4507 = vmax.f32 %v4043, 0.0
      %v4508 = vmax.f32 %v4044, 0.0
      %v4509 = vmax.f32 %v4045, 0.0
      %v4510 = vmax.f32 %v4046, 0.0
      %v4511 = vmax.f32 %v4047, 0.0
      %v4512 = vmax.f32 %v4048, 0.0
      %v4513 = vmax.f32 %v4049, 0.0
      %v4514 = vmax.f32 %v4050, 0.0
      %v4515 = vmax.f32 %v4051, 0.0
      %v4516 = vmax.f32 %v4052, 0.0
      %v4517 = vmax.f32 %v4053, 0.0
      %v4518 = vmax.f32 %v4054, 0.0
      %v4519 = vmax.f32 %v4055, 0.0
      %v4520 = vmax.f32 %v4056, 0.0
      %v4521 = vmax.f32 %v4057, 0.0
      %v4522 = vmax.f32 %v4058, 0.0
      %v4523 = vmax.f32 %v4059, 0.0
      %v4524 = vmax.f32 %v4060, 0.0
      %v4525 = vmax.f32 %v4061, 0.0
      %v4526 = vmax.f32 %v4062, 0.0
      %v4527 = vmax.f32 %v4063, 0.0
      %v4528 = vmax.f32 %v4064, 0.0
      %v4529 = vmax.f32 %v4065, 0.0
      %v4530 = vmax.f32 %v4066, 0.0
      %v4531 = vmax.f32 %v4067, 0.0
      %v4532 = vmax.f32 %v4068, 0.0
      %v4533 = vmax.f32 %v4069, 0.0
      %v4534 = vmax.f32 %v4070, 0.0
      %v4535 = vmax.f32 %v4071, 0.0
      %v4536 = vmax.f32 %v4072, 0.0
      %v4537 = vmax.f32 %v4073, 0.0
      %v4538 = vmax.f32 %v4074, 0.0
      %v4539 = vmax.f32 %v4075, 0.0
      %v4540 = vmax.f32 %v4076, 0.0
      %v4541 = vmax.f32 %v4077, 0.0
      %v4542 = vmax.f32 %v4078, 0.0
      %v4543 = vmax.f32 %v4079, 0.0
      %v4544 = vmax.f32 %v4080, 0.0
      %v4545 = vmax.f32 %v4081, 0.0
      %v4546 = vmax.f32 %v4082, 0.0
      %v4547 = vmax.f32 %v4083, 0.0
      %v4548 = vmax.f32 %v4084, 0.0
      %v4549 = vmax.f32 %v4085, 0.0
      %v4550 = vmax.f32 %v4086, 0.0
      %v4551 = vmax.f32 %v4087, 0.0
      %v4552 = vmax.f32 %v4088, 0.0
      %v4553 = vmax.f32 %v4089, 0.0
      %v4554 = vmax.f32 %v4090, 0.0
      %v4555 = vmax.f32 %v4091, 0.0
      %v4556 = vmax.f32 %v4092, 0.0
      %v4557 = vmax.f32 %v4093, 0.0
      %v4558 = vmax.f32 %v4094, 0.0
      %v4559 = vmax.f32 %v4095, 0.0
      %v4560 = vmax.f32 %v4096, 0.0
      %v4561 = vmax.f32 %v4097, 0.0
      %v4562 = vmax.f32 %v4098, 0.0
      %v4563 = vmax.f32 %v4099, 0.0
      %v4564 = vmax.f32 %v4100, 0.0
      %v4565 = vmax.f32 %v4101, 0.0
      %v4566 = vmax.f32 %v4102, 0.0
      %v4567 = vmax.f32 %v4103, 0.0
      %v4568 = vmax.f32 %v4104, 0.0
      %v4569 = vmax.f32 %v4105, 0.0
      %v4570 = vmax.f32 %v4106, 0.0
      %v4571 = vmax.f32 %v4107, 0.0
      %v4572 = vmax.f32 %v4108, 0.0
      %v4573 = vmax.f32 %v4109, 0.0
      %v4574 = vmax.f32 %v4110, 0.0
      %v4575 = vmax.f32 %v4111, 0.0
      %v4576 = vmax.f32 %v4112, 0.0
      %v4577 = vmax.f32 %v4113, 0.0
      %v4578 = vmax.f32 %v4114, 0.0
      %v4579 = vmax.f32 %v4115, 0.0
      %v4580 = vmax.f32 %v4116, 0.0
      %v4581 = vmax.f32 %v4117, 0.0
      %v4582 = vmax.f32 %v4118, 0.0
      %v4583 = vmax.f32 %v4119, 0.0
      %v4584 = vmax.f32 %v4120, 0.0
      %v4585 = vmax.f32 %v4121, 0.0
      %v4586 = vmax.f32 %v4122, 0.0
      %v4587 = vmax.f32 %v4123, 0.0
      %v4588 = vmax.f32 %v4124, 0.0
      %v4589 = vmax.f32 %v4125, 0.0
      %v4590 = vmax.f32 %v4126, 0.0
      %v4591 = vmax.f32 %v4127, 0.0
      %v4592 = vmax.f32 %v4128, 0.0
      %v4593 = vmax.f32 %v4129, 0.0
      %v4594 = vmax.f32 %v4130, 0.0
      %v4595 = vmax.f32 %v4131, 0.0
      %v4596 = vmax.f32 %v4132, 0.0
      %v4597 = vmax.f32 %v4133, 0.0
      %v4598 = vmax.f32 %v4134, 0.0
      %v4599 = vmax.f32 %v4135, 0.0
      %v4600 = vmax.f32 %v4136, 0.0
      %v4601 = vmax.f32 %v4137, 0.0
      %v4602 = vmax.f32 %v4138, 0.0
      %v4603 = vmax.f32 %v4139, 0.0
      %v4604 = vmax.f32 %v4140, 0.0
      %v4605 = vmax.f32 %v4141, 0.0
      %v4606 = vmax.f32 %v4142, 0.0
      %v4607 = vmax.f32 %v4143, 0.0
      %v4608 = vmax.f32 %v4144, 0.0
      %v4609 = vmax.f32 %v4145, 0.0
      %v4610 = vmax.f32 %v4146, 0.0
      %v4611 = vmax.f32 %v4147, 0.0
      %v4612 = vmax.f32 %v4148, 0.0
      %v4613 = vmax.f32 %v4149, 0.0
      %v4614 = vmax.f32 %v4150, 0.0
      %v4615 = vmax.f32 %v4151, 0.0
      %v4616 = vmax.f32 %v4152, 0.0
      %v4617 = vmax.f32 %v4153, 0.0
      %v4618 = vmax.f32 %v4154, 0.0
      %v4619 = vmax.f32 %v4155, 0.0
      %v4620 = vmax.f32 %v4156, 0.0
      %v4621 = vmax.f32 %v4157, 0.0
      %v4622 = vmax.f32 %v4158, 0.0
      %v4623 = vmax.f32 %v4159, 0.0
      %v4624 = vmax.f32 %v4160, 0.0
      %v4625 = vmax.f32 %v4161, 0.0
      %v4626 = vmax.f32 %v4162, 0.0
      %v4627 = vmax.f32 %v4163, 0.0
      %v4628 = vmax.f32 %v4164, 0.0
      %v4629 = vmax.f32 %v4165, 0.0
      %v4630 = vmax.f32 %v4166, 0.0
      %v4631 = vmax.f32 %v4167, 0.0
      %v4632 = vmax.f32 %v4168, 0.0
      %v4633 = vmax.f32 %v4169, 0.0
      %v4634 = vmax.f32 %v4170, 0.0
      %v4635 = vmax.f32 %v4171, 0.0
      %v4636 = vmax.f32 %v4172, 0.0
      %v4637 = vmax.f32 %v4173, 0.0
      %v4638 = vmax.f32 %v4174, 0.0
      %v4639 = vmax.f32 %v4175, 0.0
      %v4640 = vmax.f32 %v4176, 0.0
      %v4641 = vmax.f32 %v4177, 0.0
      %v4642 = vmax.f32 %v4178, 0.0
      %v4643 = vmax.f32 %v4179, 0.0
      %v4644 = vmax.f32 %v4180, 0.0
      %v4645 = vmax.f32 %v4181, 0.0
      %v4646 = vmax.f32 %v4182, 0.0
      %v4647 = vmax.f32 %v4183, 0.0
      %v4648 = vmax.f32 %v4184, 0.0
      %v4649 = vmax.f32 %v4185, 0.0
      %v4650 = vmax.f32 %v4186, 0.0
      %v4651 = vmax.f32 %v4187, 0.0
      %v4652 = vmax.f32 %v4188, 0.0
      %v4653 = vmax.f32 %v4189, 0.0
      %v4654 = vmax.f32 %v4190, 0.0
      %v4655 = vmax.f32 %v4191, 0.0
      %v4656 = vmax.f32 %v4192, 0.0
      %v4657 = vmax.f32 %v4193, 0.0
      %v4658 = vmax.f32 %v4194, 0.0
      %v4659 = vmax.f32 %v4195, 0.0
      %v4660 = vmax.f32 %v4196, 0.0
      %v4661 = vmax.f32 %v4197, 0.0
      %v4662 = vmax.f32 %v4198, 0.0
      %v4663 = vmax.f32 %v4199, 0.0
      %v4664 = vmax.f32 %v4200, 0.0
      %v4665 = vmax.f32 %v4201, 0.0
      %v4666 = vmax.f32 %v4202, 0.0
      %v4667 = vmax.f32 %v4203, 0.0
      %v4668 = vmax.f32 %v4204, 0.0
      %v4669 = vmax.f32 %v4205, 0.0
      %v4670 = vmax.f32 %v4206, 0.0
      %v4671 = vmax.f32 %v4207, 0.0
      %v4672 = vmax.f32 %v4208, 0.0
      %v4673 = vmax.f32 %v4209, 0.0
      %v4674 = vmax.f32 %v4210, 0.0
      %v4675 = vmax.f32 %v4211, 0.0
      %v4676 = vmax.f32 %v4212, 0.0
      %v4677 = vmax.f32 %v4213, 0.0
      %v4678 = vmax.f32 %v4214, 0.0
      %v4679 = vmax.f32 %v4215, 0.0
      %v4680 = vmax.f32 %v4216, 0.0
      %v4681 = vmax.f32 %v4217, 0.0
      %v4682 = vmax.f32 %v4218, 0.0
      %v4683 = vmax.f32 %v4219, 0.0
      %v4684 = vmax.f32 %v4220, 0.0
      %v4685 = vmax.f32 %v4221, 0.0
      %v4686 = vmax.f32 %v4222, 0.0
      %v4687 = vmax.f32 %v4223, 0.0
      %v4688 = vmax.f32 %v4224, 0.0
      %v4689 = vmax.f32 %v4225, 0.0
      %v4690 = vmax.f32 %v4226, 0.0
      %v4691 = vmax.f32 %v4227, 0.0
      %v4692 = vmax.f32 %v4228, 0.0
      %v4693 = vmax.f32 %v4229, 0.0
      %v4694 = vmax.f32 %v4230, 0.0
      %v4695 = vmax.f32 %v4231, 0.0
      %v4696 = vmax.f32 %v4232, 0.0
      %v4697 = vmax.f32 %v4233, 0.0
      %v4698 = vmax.f32 %v4234, 0.0
      %v4699 = vmax.f32 %v4235, 0.0
      %v4700 = vmax.f32 %v4236, 0.0
      %v4701 = vld [vmem:[#allocation2] sm:$0xff]
      %v4702 = vld [vmem:[#allocation2 + $0x8] sm:$0xff]
      %v4703 = vld [vmem:[#allocation2 + $0x10] sm:$0xff]
      %v4704 = vld [vmem:[#allocation2 + $0x18] sm:$0x1f]
      %v4705 = vadd.f32 %v4237, %v4266
      %v4706 = vadd.f32 %v4705, %v4295
      %v4707 = vadd.f32 %v4706, %v4324
      %v4708 = vadd.f32 %v4707, %v4353
      %v4709 = vadd.f32 %v4708, %v4382
      %v4710 = vadd.f32 %v4709, %v4411
      %v4711 = vadd.f32 %v4710, %v4440
      %v4712 = vadd.f32 %v4711, %v4469
      %v4713 = vadd.f32 %v4712, %v4498
      %v4714 = vadd.f32 %v4713, %v4527
      %v4715 = vadd.f32 %v4714, %v4556
      %v4716 = vadd.f32 %v4715, %v4585
      %v4717 = vadd.f32 %v4716, %v4614
      %v4718 = vadd.f32 %v4717, %v4643
      %v4719 = vadd.f32 %v4718, %v4672
      %v4720 = vrot.slane %v4719, 4
      %v4721 = vadd.f32 %v4719, %v4720
      %v4722 = vrot.slane %v4721, 2
      %v4723 = vadd.f32 %v4721, %v4722
      %v4724 = vrot.slane %v4723, 1
      %v4725 = vadd.f32 %v4723, %v4724
      %v4726 = vadd.f32 %v4238, %v4267
      %v4727 = vadd.f32 %v4726, %v4296
      %v4728 = vadd.f32 %v4727, %v4325
      %v4729 = vadd.f32 %v4728, %v4354
      %v4730 = vadd.f32 %v4729, %v4383
      %v4731 = vadd.f32 %v4730, %v4412
      %v4732 = vadd.f32 %v4731, %v4441
      %v4733 = vadd.f32 %v4732, %v4470
      %v4734 = vadd.f32 %v4733, %v4499
      %v4735 = vadd.f32 %v4734, %v4528
      %v4736 = vadd.f32 %v4735, %v4557
      %v4737 = vadd.f32 %v4736, %v4586
      %v4738 = vadd.f32 %v4737, %v4615
      %v4739 = vadd.f32 %v4738, %v4644
      %v4740 = vadd.f32 %v4739, %v4673
      %v4741 = vrot.slane %v4740, 4
      %v4742 = vadd.f32 %v4740, %v4741
      %v4743 = vrot.slane %v4742, 2
      %v4744 = vadd.f32 %v4742, %v4743
      %v4745 = vrot.slane %v4744, 1
      %v4746 = vadd.f32 %v4744, %v4745
      %v4747 = vadd.f32 %v4239, %v4268
      %v4748 = vadd.f32 %v4747, %v4297
      %v4749 = vadd.f32 %v4748, %v4326
      %v4750 = vadd.f32 %v4749, %v4355
      %v4751 = vadd.f32 %v4750, %v4384
      %v4752 = vadd.f32 %v4751, %v4413
      %v4753 = vadd.f32 %v4752, %v4442
      %v4754 = vadd.f32 %v4753, %v4471
      %v4755 = vadd.f32 %v4754, %v4500
      %v4756 = vadd.f32 %v4755, %v4529
      %v4757 = vadd.f32 %v4756, %v4558
      %v4758 = vadd.f32 %v4757, %v4587
      %v4759 = vadd.f32 %v4758, %v4616
      %v4760 = vadd.f32 %v4759, %v4645
      %v4761 = vadd.f32 %v4760, %v4674
      %v4762 = vrot.slane %v4761, 4
      %v4763 = vadd.f32 %v4761, %v4762
      %v4764 = vrot.slane %v4763, 2
      %v4765 = vadd.f32 %v4763, %v4764
      %v4766 = vrot.slane %v4765, 1
      %v4767 = vadd.f32 %v4765, %v4766
      %v4768 = vadd.f32 %v4240, %v4269
      %v4769 = vadd.f32 %v4768, %v4298
      %v4770 = vadd.f32 %v4769, %v4327
      %v4771 = vadd.f32 %v4770, %v4356
      %v4772 = vadd.f32 %v4771, %v4385
      %v4773 = vadd.f32 %v4772, %v4414
      %v4774 = vadd.f32 %v4773, %v4443
      %v4775 = vadd.f32 %v4774, %v4472
      %v4776 = vadd.f32 %v4775, %v4501
      %v4777 = vadd.f32 %v4776, %v4530
      %v4778 = vadd.f32 %v4777, %v4559
      %v4779 = vadd.f32 %v4778, %v4588
      %v4780 = vadd.f32 %v4779, %v4617
      %v4781 = vadd.f32 %v4780, %v4646
      %v4782 = vadd.f32 %v4781, %v4675
      %v4783 = vrot.slane %v4782, 4
      %v4784 = vadd.f32 %v4782, %v4783
      %v4785 = vrot.slane %v4784, 2
      %v4786 = vadd.f32 %v4784, %v4785
      %v4787 = vrot.slane %v4786, 1
      %v4788 = vadd.f32 %v4786, %v4787
      %v4789 = vadd.f32 %v4241, %v4270
      %v4790 = vadd.f32 %v4789, %v4299
      %v4791 = vadd.f32 %v4790, %v4328
      %v4792 = vadd.f32 %v4791, %v4357
      %v4793 = vadd.f32 %v4792, %v4386
      %v4794 = vadd.f32 %v4793, %v4415
      %v4795 = vadd.f32 %v4794, %v4444
      %v4796 = vadd.f32 %v4795, %v4473
      %v4797 = vadd.f32 %v4796, %v4502
      %v4798 = vadd.f32 %v4797, %v4531
      %v4799 = vadd.f32 %v4798, %v4560
      %v4800 = vadd.f32 %v4799, %v4589
      %v4801 = vadd.f32 %v4800, %v4618
      %v4802 = vadd.f32 %v4801, %v4647
      %v4803 = vadd.f32 %v4802, %v4676
      %v4804 = vrot.slane %v4803, 4
      %v4805 = vadd.f32 %v4803, %v4804
      %v4806 = vrot.slane %v4805, 2
      %v4807 = vadd.f32 %v4805, %v4806
      %v4808 = vrot.slane %v4807, 1
      %v4809 = vadd.f32 %v4807, %v4808
      %v4810 = vadd.f32 %v4242, %v4271
      %v4811 = vadd.f32 %v4810, %v4300
      %v4812 = vadd.f32 %v4811, %v4329
      %v4813 = vadd.f32 %v4812, %v4358
      %v4814 = vadd.f32 %v4813, %v4387
      %v4815 = vadd.f32 %v4814, %v4416
      %v4816 = vadd.f32 %v4815, %v4445
      %v4817 = vadd.f32 %v4816, %v4474
      %v4818 = vadd.f32 %v4817, %v4503
      %v4819 = vadd.f32 %v4818, %v4532
      %v4820 = vadd.f32 %v4819, %v4561
      %v4821 = vadd.f32 %v4820, %v4590
      %v4822 = vadd.f32 %v4821, %v4619
      %v4823 = vadd.f32 %v4822, %v4648
      %v4824 = vadd.f32 %v4823, %v4677
      %v4825 = vrot.slane %v4824, 4
      %v4826 = vadd.f32 %v4824, %v4825
      %v4827 = vrot.slane %v4826, 2
      %v4828 = vadd.f32 %v4826, %v4827
      %v4829 = vrot.slane %v4828, 1
      %v4830 = vadd.f32 %v4828, %v4829
      %v4831 = vadd.f32 %v4243, %v4272
      %v4832 = vadd.f32 %v4831, %v4301
      %v4833 = vadd.f32 %v4832, %v4330
      %v4834 = vadd.f32 %v4833, %v4359
      %v4835 = vadd.f32 %v4834, %v4388
      %v4836 = vadd.f32 %v4835, %v4417
      %v4837 = vadd.f32 %v4836, %v4446
      %v4838 = vadd.f32 %v4837, %v4475
      %v4839 = vadd.f32 %v4838, %v4504
      %v4840 = vadd.f32 %v4839, %v4533
      %v4841 = vadd.f32 %v4840, %v4562
      %v4842 = vadd.f32 %v4841, %v4591
      %v4843 = vadd.f32 %v4842, %v4620
      %v4844 = vadd.f32 %v4843, %v4649
      %v4845 = vadd.f32 %v4844, %v4678
      %v4846 = vrot.slane %v4845, 4
      %v4847 = vadd.f32 %v4845, %v4846
      %v4848 = vrot.slane %v4847, 2
      %v4849 = vadd.f32 %v4847, %v4848
      %v4850 = vrot.slane %v4849, 1
      %v4851 = vadd.f32 %v4849, %v4850
      %v4852 = vadd.f32 %v4244, %v4273
      %v4853 = vadd.f32 %v4852, %v4302
      %v4854 = vadd.f32 %v4853, %v4331
      %v4855 = vadd.f32 %v4854, %v4360
      %v4856 = vadd.f32 %v4855, %v4389
      %v4857 = vadd.f32 %v4856, %v4418
      %v4858 = vadd.f32 %v4857, %v4447
      %v4859 = vadd.f32 %v4858, %v4476
      %v4860 = vadd.f32 %v4859, %v4505
      %v4861 = vadd.f32 %v4860, %v4534
      %v4862 = vadd.f32 %v4861, %v4563
      %v4863 = vadd.f32 %v4862, %v4592
      %v4864 = vadd.f32 %v4863, %v4621
      %v4865 = vadd.f32 %v4864, %v4650
      %v4866 = vadd.f32 %v4865, %v4679
      %v4867 = vrot.slane %v4866, 4
      %v4868 = vadd.f32 %v4866, %v4867
      %v4869 = vrot.slane %v4868, 2
      %v4870 = vadd.f32 %v4868, %v4869
      %v4871 = vrot.slane %v4870, 1
      %v4872 = vadd.f32 %v4870, %v4871
      %v4873 = vadd.f32 %v4245, %v4274
      %v4874 = vadd.f32 %v4873, %v4303
      %v4875 = vadd.f32 %v4874, %v4332
      %v4876 = vadd.f32 %v4875, %v4361
      %v4877 = vadd.f32 %v4876, %v4390
      %v4878 = vadd.f32 %v4877, %v4419
      %v4879 = vadd.f32 %v4878, %v4448
      %v4880 = vadd.f32 %v4879, %v4477
      %v4881 = vadd.f32 %v4880, %v4506
      %v4882 = vadd.f32 %v4881, %v4535
      %v4883 = vadd.f32 %v4882, %v4564
      %v4884 = vadd.f32 %v4883, %v4593
      %v4885 = vadd.f32 %v4884, %v4622
      %v4886 = vadd.f32 %v4885, %v4651
      %v4887 = vadd.f32 %v4886, %v4680
      %v4888 = vrot.slane %v4887, 4
      %v4889 = vadd.f32 %v4887, %v4888
      %v4890 = vrot.slane %v4889, 2
      %v4891 = vadd.f32 %v4889, %v4890
      %v4892 = vrot.slane %v4891, 1
      %v4893 = vadd.f32 %v4891, %v4892
      %v4894 = vadd.f32 %v4246, %v4275
      %v4895 = vadd.f32 %v4894, %v4304
      %v4896 = vadd.f32 %v4895, %v4333
      %v4897 = vadd.f32 %v4896, %v4362
      %v4898 = vadd.f32 %v4897, %v4391
      %v4899 = vadd.f32 %v4898, %v4420
      %v4900 = vadd.f32 %v4899, %v4449
      %v4901 = vadd.f32 %v4900, %v4478
      %v4902 = vadd.f32 %v4901, %v4507
      %v4903 = vadd.f32 %v4902, %v4536
      %v4904 = vadd.f32 %v4903, %v4565
      %v4905 = vadd.f32 %v4904, %v4594
      %v4906 = vadd.f32 %v4905, %v4623
      %v4907 = vadd.f32 %v4906, %v4652
      %v4908 = vadd.f32 %v4907, %v4681
      %v4909 = vrot.slane %v4908, 4
      %v4910 = vadd.f32 %v4908, %v4909
      %v4911 = vrot.slane %v4910, 2
      %v4912 = vadd.f32 %v4910, %v4911
      %v4913 = vrot.slane %v4912, 1
      %v4914 = vadd.f32 %v4912, %v4913
      %v4915 = vadd.f32 %v4247, %v4276
      %v4916 = vadd.f32 %v4915, %v4305
      %v4917 = vadd.f32 %v4916, %v4334
      %v4918 = vadd.f32 %v4917, %v4363
      %v4919 = vadd.f32 %v4918, %v4392
      %v4920 = vadd.f32 %v4919, %v4421
      %v4921 = vadd.f32 %v4920, %v4450
      %v4922 = vadd.f32 %v4921, %v4479
      %v4923 = vadd.f32 %v4922, %v4508
      %v4924 = vadd.f32 %v4923, %v4537
      %v4925 = vadd.f32 %v4924, %v4566
      %v4926 = vadd.f32 %v4925, %v4595
      %v4927 = vadd.f32 %v4926, %v4624
      %v4928 = vadd.f32 %v4927, %v4653
      %v4929 = vadd.f32 %v4928, %v4682
      %v4930 = vrot.slane %v4929, 4
      %v4931 = vadd.f32 %v4929, %v4930
      %v4932 = vrot.slane %v4931, 2
      %v4933 = vadd.f32 %v4931, %v4932
      %v4934 = vrot.slane %v4933, 1
      %v4935 = vadd.f32 %v4933, %v4934
      %v4936 = vadd.f32 %v4248, %v4277
      %v4937 = vadd.f32 %v4936, %v4306
      %v4938 = vadd.f32 %v4937, %v4335
      %v4939 = vadd.f32 %v4938, %v4364
      %v4940 = vadd.f32 %v4939, %v4393
      %v4941 = vadd.f32 %v4940, %v4422
      %v4942 = vadd.f32 %v4941, %v4451
      %v4943 = vadd.f32 %v4942, %v4480
      %v4944 = vadd.f32 %v4943, %v4509
      %v4945 = vadd.f32 %v4944, %v4538
      %v4946 = vadd.f32 %v4945, %v4567
      %v4947 = vadd.f32 %v4946, %v4596
      %v4948 = vadd.f32 %v4947, %v4625
      %v4949 = vadd.f32 %v4948, %v4654
      %v4950 = vadd.f32 %v4949, %v4683
      %v4951 = vrot.slane %v4950, 4
      %v4952 = vadd.f32 %v4950, %v4951
      %v4953 = vrot.slane %v4952, 2
      %v4954 = vadd.f32 %v4952, %v4953
      %v4955 = vrot.slane %v4954, 1
      %v4956 = vadd.f32 %v4954, %v4955
      %v4957 = vadd.f32 %v4249, %v4278
      %v4958 = vadd.f32 %v4957, %v4307
      %v4959 = vadd.f32 %v4958, %v4336
      %v4960 = vadd.f32 %v4959, %v4365
      %v4961 = vadd.f32 %v4960, %v4394
      %v4962 = vadd.f32 %v4961, %v4423
      %v4963 = vadd.f32 %v4962, %v4452
      %v4964 = vadd.f32 %v4963, %v4481
      %v4965 = vadd.f32 %v4964, %v4510
      %v4966 = vadd.f32 %v4965, %v4539
      %v4967 = vadd.f32 %v4966, %v4568
      %v4968 = vadd.f32 %v4967, %v4597
      %v4969 = vadd.f32 %v4968, %v4626
      %v4970 = vadd.f32 %v4969, %v4655
      %v4971 = vadd.f32 %v4970, %v4684
      %v4972 = vrot.slane %v4971, 4
      %v4973 = vadd.f32 %v4971, %v4972
      %v4974 = vrot.slane %v4973, 2
      %v4975 = vadd.f32 %v4973, %v4974
      %v4976 = vrot.slane %v4975, 1
      %v4977 = vadd.f32 %v4975, %v4976
      %v4978 = vadd.f32 %v4250, %v4279
      %v4979 = vadd.f32 %v4978, %v4308
      %v4980 = vadd.f32 %v4979, %v4337
      %v4981 = vadd.f32 %v4980, %v4366
      %v4982 = vadd.f32 %v4981, %v4395
      %v4983 = vadd.f32 %v4982, %v4424
      %v4984 = vadd.f32 %v4983, %v4453
      %v4985 = vadd.f32 %v4984, %v4482
      %v4986 = vadd.f32 %v4985, %v4511
      %v4987 = vadd.f32 %v4986, %v4540
      %v4988 = vadd.f32 %v4987, %v4569
      %v4989 = vadd.f32 %v4988, %v4598
      %v4990 = vadd.f32 %v4989, %v4627
      %v4991 = vadd.f32 %v4990, %v4656
      %v4992 = vadd.f32 %v4991, %v4685
      %v4993 = vrot.slane %v4992, 4
      %v4994 = vadd.f32 %v4992, %v4993
      %v4995 = vrot.slane %v4994, 2
      %v4996 = vadd.f32 %v4994, %v4995
      %v4997 = vrot.slane %v4996, 1
      %v4998 = vadd.f32 %v4996, %v4997
      %v4999 = vadd.f32 %v4251, %v4280
      %v5000 = vadd.f32 %v4999, %v4309
      %v5001 = vadd.f32 %v5000, %v4338
      %v5002 = vadd.f32 %v5001, %v4367
      %v5003 = vadd.f32 %v5002, %v4396
      %v5004 = vadd.f32 %v5003, %v4425
      %v5005 = vadd.f32 %v5004, %v4454
      %v5006 = vadd.f32 %v5005, %v4483
      %v5007 = vadd.f32 %v5006, %v4512
      %v5008 = vadd.f32 %v5007, %v4541
      %v5009 = vadd.f32 %v5008, %v4570
      %v5010 = vadd.f32 %v5009, %v4599
      %v5011 = vadd.f32 %v5010, %v4628
      %v5012 = vadd.f32 %v5011, %v4657
      %v5013 = vadd.f32 %v5012, %v4686
      %v5014 = vrot.slane %v5013, 4
      %v5015 = vadd.f32 %v5013, %v5014
      %v5016 = vrot.slane %v5015, 2
      %v5017 = vadd.f32 %v5015, %v5016
      %v5018 = vrot.slane %v5017, 1
      %v5019 = vadd.f32 %v5017, %v5018
      %v5020 = vadd.f32 %v4252, %v4281
      %v5021 = vadd.f32 %v5020, %v4310
      %v5022 = vadd.f32 %v5021, %v4339
      %v5023 = vadd.f32 %v5022, %v4368
      %v5024 = vadd.f32 %v5023, %v4397
      %v5025 = vadd.f32 %v5024, %v4426
      %v5026 = vadd.f32 %v5025, %v4455
      %v5027 = vadd.f32 %v5026, %v4484
      %v5028 = vadd.f32 %v5027, %v4513
      %v5029 = vadd.f32 %v5028, %v4542
      %v5030 = vadd.f32 %v5029, %v4571
      %v5031 = vadd.f32 %v5030, %v4600
      %v5032 = vadd.f32 %v5031, %v4629
      %v5033 = vadd.f32 %v5032, %v4658
      %v5034 = vadd.f32 %v5033, %v4687
      %v5035 = vrot.slane %v5034, 4
      %v5036 = vadd.f32 %v5034, %v5035
      %v5037 = vrot.slane %v5036, 2
      %v5038 = vadd.f32 %v5036, %v5037
      %v5039 = vrot.slane %v5038, 1
      %v5040 = vadd.f32 %v5038, %v5039
      %v5041 = vadd.f32 %v4253, %v4282
      %v5042 = vadd.f32 %v5041, %v4311
      %v5043 = vadd.f32 %v5042, %v4340
      %v5044 = vadd.f32 %v5043, %v4369
      %v5045 = vadd.f32 %v5044, %v4398
      %v5046 = vadd.f32 %v5045, %v4427
      %v5047 = vadd.f32 %v5046, %v4456
      %v5048 = vadd.f32 %v5047, %v4485
      %v5049 = vadd.f32 %v5048, %v4514
      %v5050 = vadd.f32 %v5049, %v4543
      %v5051 = vadd.f32 %v5050, %v4572
      %v5052 = vadd.f32 %v5051, %v4601
      %v5053 = vadd.f32 %v5052, %v4630
      %v5054 = vadd.f32 %v5053, %v4659
      %v5055 = vadd.f32 %v5054, %v4688
      %v5056 = vrot.slane %v5055, 4
      %v5057 = vadd.f32 %v5055, %v5056
      %v5058 = vrot.slane %v5057, 2
      %v5059 = vadd.f32 %v5057, %v5058
      %v5060 = vrot.slane %v5059, 1
      %v5061 = vadd.f32 %v5059, %v5060
      %v5062 = vadd.f32 %v4254, %v4283
      %v5063 = vadd.f32 %v5062, %v4312
      %v5064 = vadd.f32 %v5063, %v4341
      %v5065 = vadd.f32 %v5064, %v4370
      %v5066 = vadd.f32 %v5065, %v4399
      %v5067 = vadd.f32 %v5066, %v4428
      %v5068 = vadd.f32 %v5067, %v4457
      %v5069 = vadd.f32 %v5068, %v4486
      %v5070 = vadd.f32 %v5069, %v4515
      %v5071 = vadd.f32 %v5070, %v4544
      %v5072 = vadd.f32 %v5071, %v4573
      %v5073 = vadd.f32 %v5072, %v4602
      %v5074 = vadd.f32 %v5073, %v4631
      %v5075 = vadd.f32 %v5074, %v4660
      %v5076 = vadd.f32 %v5075, %v4689
      %v5077 = vrot.slane %v5076, 4
      %v5078 = vadd.f32 %v5076, %v5077
      %v5079 = vrot.slane %v5078, 2
      %v5080 = vadd.f32 %v5078, %v5079
      %v5081 = vrot.slane %v5080, 1
      %v5082 = vadd.f32 %v5080, %v5081
      %v5083 = vadd.f32 %v4255, %v4284
      %v5084 = vadd.f32 %v5083, %v4313
      %v5085 = vadd.f32 %v5084, %v4342
      %v5086 = vadd.f32 %v5085, %v4371
      %v5087 = vadd.f32 %v5086, %v4400
      %v5088 = vadd.f32 %v5087, %v4429
      %v5089 = vadd.f32 %v5088, %v4458
      %v5090 = vadd.f32 %v5089, %v4487
      %v5091 = vadd.f32 %v5090, %v4516
      %v5092 = vadd.f32 %v5091, %v4545
      %v5093 = vadd.f32 %v5092, %v4574
      %v5094 = vadd.f32 %v5093, %v4603
      %v5095 = vadd.f32 %v5094, %v4632
      %v5096 = vadd.f32 %v5095, %v4661
      %v5097 = vadd.f32 %v5096, %v4690
      %v5098 = vrot.slane %v5097, 4
      %v5099 = vadd.f32 %v5097, %v5098
      %v5100 = vrot.slane %v5099, 2
      %v5101 = vadd.f32 %v5099, %v5100
      %v5102 = vrot.slane %v5101, 1
      %v5103 = vadd.f32 %v5101, %v5102
      %v5104 = vadd.f32 %v4256, %v4285
      %v5105 = vadd.f32 %v5104, %v4314
      %v5106 = vadd.f32 %v5105, %v4343
      %v5107 = vadd.f32 %v5106, %v4372
      %v5108 = vadd.f32 %v5107, %v4401
      %v5109 = vadd.f32 %v5108, %v4430
      %v5110 = vadd.f32 %v5109, %v4459
      %v5111 = vadd.f32 %v5110, %v4488
      %v5112 = vadd.f32 %v5111, %v4517
      %v5113 = vadd.f32 %v5112, %v4546
      %v5114 = vadd.f32 %v5113, %v4575
      %v5115 = vadd.f32 %v5114, %v4604
      %v5116 = vadd.f32 %v5115, %v4633
      %v5117 = vadd.f32 %v5116, %v4662
      %v5118 = vadd.f32 %v5117, %v4691
      %v5119 = vrot.slane %v5118, 4
      %v5120 = vadd.f32 %v5118, %v5119
      %v5121 = vrot.slane %v5120, 2
      %v5122 = vadd.f32 %v5120, %v5121
      %v5123 = vrot.slane %v5122, 1
      %v5124 = vadd.f32 %v5122, %v5123
      %v5125 = vadd.f32 %v4257, %v4286
      %v5126 = vadd.f32 %v5125, %v4315
      %v5127 = vadd.f32 %v5126, %v4344
      %v5128 = vadd.f32 %v5127, %v4373
      %v5129 = vadd.f32 %v5128, %v4402
      %v5130 = vadd.f32 %v5129, %v4431
      %v5131 = vadd.f32 %v5130, %v4460
      %v5132 = vadd.f32 %v5131, %v4489
      %v5133 = vadd.f32 %v5132, %v4518
      %v5134 = vadd.f32 %v5133, %v4547
      %v5135 = vadd.f32 %v5134, %v4576
      %v5136 = vadd.f32 %v5135, %v4605
      %v5137 = vadd.f32 %v5136, %v4634
      %v5138 = vadd.f32 %v5137, %v4663
      %v5139 = vadd.f32 %v5138, %v4692
      %v5140 = vrot.slane %v5139, 4
      %v5141 = vadd.f32 %v5139, %v5140
      %v5142 = vrot.slane %v5141, 2
      %v5143 = vadd.f32 %v5141, %v5142
      %v5144 = vrot.slane %v5143, 1
      %v5145 = vadd.f32 %v5143, %v5144
      %v5146 = vadd.f32 %v4258, %v4287
      %v5147 = vadd.f32 %v5146, %v4316
      %v5148 = vadd.f32 %v5147, %v4345
      %v5149 = vadd.f32 %v5148, %v4374
      %v5150 = vadd.f32 %v5149, %v4403
      %v5151 = vadd.f32 %v5150, %v4432
      %v5152 = vadd.f32 %v5151, %v4461
      %v5153 = vadd.f32 %v5152, %v4490
      %v5154 = vadd.f32 %v5153, %v4519
      %v5155 = vadd.f32 %v5154, %v4548
      %v5156 = vadd.f32 %v5155, %v4577
      %v5157 = vadd.f32 %v5156, %v4606
      %v5158 = vadd.f32 %v5157, %v4635
      %v5159 = vadd.f32 %v5158, %v4664
      %v5160 = vadd.f32 %v5159, %v4693
      %v5161 = vrot.slane %v5160, 4
      %v5162 = vadd.f32 %v5160, %v5161
      %v5163 = vrot.slane %v5162, 2
      %v5164 = vadd.f32 %v5162, %v5163
      %v5165 = vrot.slane %v5164, 1
      %v5166 = vadd.f32 %v5164, %v5165
      %v5167 = vadd.f32 %v4259, %v4288
      %v5168 = vadd.f32 %v5167, %v4317
      %v5169 = vadd.f32 %v5168, %v4346
      %v5170 = vadd.f32 %v5169, %v4375
      %v5171 = vadd.f32 %v5170, %v4404
      %v5172 = vadd.f32 %v5171, %v4433
      %v5173 = vadd.f32 %v5172, %v4462
      %v5174 = vadd.f32 %v5173, %v4491
      %v5175 = vadd.f32 %v5174, %v4520
      %v5176 = vadd.f32 %v5175, %v4549
      %v5177 = vadd.f32 %v5176, %v4578
      %v5178 = vadd.f32 %v5177, %v4607
      %v5179 = vadd.f32 %v5178, %v4636
      %v5180 = vadd.f32 %v5179, %v4665
      %v5181 = vadd.f32 %v5180, %v4694
      %v5182 = vrot.slane %v5181, 4
      %v5183 = vadd.f32 %v5181, %v5182
      %v5184 = vrot.slane %v5183, 2
      %v5185 = vadd.f32 %v5183, %v5184
      %v5186 = vrot.slane %v5185, 1
      %v5187 = vadd.f32 %v5185, %v5186
      %v5188 = vadd.f32 %v4260, %v4289
      %v5189 = vadd.f32 %v5188, %v4318
      %v5190 = vadd.f32 %v5189, %v4347
      %v5191 = vadd.f32 %v5190, %v4376
      %v5192 = vadd.f32 %v5191, %v4405
      %v5193 = vadd.f32 %v5192, %v4434
      %v5194 = vadd.f32 %v5193, %v4463
      %v5195 = vadd.f32 %v5194, %v4492
      %v5196 = vadd.f32 %v5195, %v4521
      %v5197 = vadd.f32 %v5196, %v4550
      %v5198 = vadd.f32 %v5197, %v4579
      %v5199 = vadd.f32 %v5198, %v4608
      %v5200 = vadd.f32 %v5199, %v4637
      %v5201 = vadd.f32 %v5200, %v4666
      %v5202 = vadd.f32 %v5201, %v4695
      %v5203 = vrot.slane %v5202, 4
      %v5204 = vadd.f32 %v5202, %v5203
      %v5205 = vrot.slane %v5204, 2
      %v5206 = vadd.f32 %v5204, %v5205
      %v5207 = vrot.slane %v5206, 1
      %v5208 = vadd.f32 %v5206, %v5207
      %v5209 = vadd.f32 %v4261, %v4290
      %v5210 = vadd.f32 %v5209, %v4319
      %v5211 = vadd.f32 %v5210, %v4348
      %v5212 = vadd.f32 %v5211, %v4377
      %v5213 = vadd.f32 %v5212, %v4406
      %v5214 = vadd.f32 %v5213, %v4435
      %v5215 = vadd.f32 %v5214, %v4464
      %v5216 = vadd.f32 %v5215, %v4493
      %v5217 = vadd.f32 %v5216, %v4522
      %v5218 = vadd.f32 %v5217, %v4551
      %v5219 = vadd.f32 %v5218, %v4580
      %v5220 = vadd.f32 %v5219, %v4609
      %v5221 = vadd.f32 %v5220, %v4638
      %v5222 = vadd.f32 %v5221, %v4667
      %v5223 = vadd.f32 %v5222, %v4696
      %v5224 = vrot.slane %v5223, 4
      %v5225 = vadd.f32 %v5223, %v5224
      %v5226 = vrot.slane %v5225, 2
      %v5227 = vadd.f32 %v5225, %v5226
      %v5228 = vrot.slane %v5227, 1
      %v5229 = vadd.f32 %v5227, %v5228
      %v5230 = vadd.f32 %v4262, %v4291
      %v5231 = vadd.f32 %v5230, %v4320
      %v5232 = vadd.f32 %v5231, %v4349
      %v5233 = vadd.f32 %v5232, %v4378
      %v5234 = vadd.f32 %v5233, %v4407
      %v5235 = vadd.f32 %v5234, %v4436
      %v5236 = vadd.f32 %v5235, %v4465
      %v5237 = vadd.f32 %v5236, %v4494
      %v5238 = vadd.f32 %v5237, %v4523
      %v5239 = vadd.f32 %v5238, %v4552
      %v5240 = vadd.f32 %v5239, %v4581
      %v5241 = vadd.f32 %v5240, %v4610
      %v5242 = vadd.f32 %v5241, %v4639
      %v5243 = vadd.f32 %v5242, %v4668
      %v5244 = vadd.f32 %v5243, %v4697
      %v5245 = vrot.slane %v5244, 4
      %v5246 = vadd.f32 %v5244, %v5245
      %v5247 = vrot.slane %v5246, 2
      %v5248 = vadd.f32 %v5246, %v5247
      %v5249 = vrot.slane %v5248, 1
      %v5250 = vadd.f32 %v5248, %v5249
      %v5251 = vadd.f32 %v4263, %v4292
      %v5252 = vadd.f32 %v5251, %v4321
      %v5253 = vadd.f32 %v5252, %v4350
      %v5254 = vadd.f32 %v5253, %v4379
      %v5255 = vadd.f32 %v5254, %v4408
      %v5256 = vadd.f32 %v5255, %v4437
      %v5257 = vadd.f32 %v5256, %v4466
      %v5258 = vadd.f32 %v5257, %v4495
      %v5259 = vadd.f32 %v5258, %v4524
      %v5260 = vadd.f32 %v5259, %v4553
      %v5261 = vadd.f32 %v5260, %v4582
      %v5262 = vadd.f32 %v5261, %v4611
      %v5263 = vadd.f32 %v5262, %v4640
      %v5264 = vadd.f32 %v5263, %v4669
      %v5265 = vadd.f32 %v5264, %v4698
      %v5266 = vrot.slane %v5265, 4
      %v5267 = vadd.f32 %v5265, %v5266
      %v5268 = vrot.slane %v5267, 2
      %v5269 = vadd.f32 %v5267, %v5268
      %v5270 = vrot.slane %v5269, 1
      %v5271 = vadd.f32 %v5269, %v5270
      %v5272 = vadd.f32 %v4264, %v4293
      %v5273 = vadd.f32 %v5272, %v4322
      %v5274 = vadd.f32 %v5273, %v4351
      %v5275 = vadd.f32 %v5274, %v4380
      %v5276 = vadd.f32 %v5275, %v4409
      %v5277 = vadd.f32 %v5276, %v4438
      %v5278 = vadd.f32 %v5277, %v4467
      %v5279 = vadd.f32 %v5278, %v4496
      %v5280 = vadd.f32 %v5279, %v4525
      %v5281 = vadd.f32 %v5280, %v4554
      %v5282 = vadd.f32 %v5281, %v4583
      %v5283 = vadd.f32 %v5282, %v4612
      %v5284 = vadd.f32 %v5283, %v4641
      %v5285 = vadd.f32 %v5284, %v4670
      %v5286 = vadd.f32 %v5285, %v4699
      %v5287 = vrot.slane %v5286, 4
      %v5288 = vadd.f32 %v5286, %v5287
      %v5289 = vrot.slane %v5288, 2
      %v5290 = vadd.f32 %v5288, %v5289
      %v5291 = vrot.slane %v5290, 1
      %v5292 = vadd.f32 %v5290, %v5291
      %v5293 = vadd.f32 %v4265, %v4294
      %v5294 = vadd.f32 %v5293, %v4323
      %v5295 = vadd.f32 %v5294, %v4352
      %v5296 = vadd.f32 %v5295, %v4381
      %v5297 = vadd.f32 %v5296, %v4410
      %v5298 = vadd.f32 %v5297, %v4439
      %v5299 = vadd.f32 %v5298, %v4468
      %v5300 = vadd.f32 %v5299, %v4497
      %v5301 = vadd.f32 %v5300, %v4526
      %v5302 = vadd.f32 %v5301, %v4555
      %v5303 = vadd.f32 %v5302, %v4584
      %v5304 = vadd.f32 %v5303, %v4613
      %v5305 = vadd.f32 %v5304, %v4642
      %v5306 = vadd.f32 %v5305, %v4671
      %v5307 = vadd.f32 %v5306, %v4700
      %v5308 = vrot.slane %v5307, 4
      %v5309 = vadd.f32 %v5307, %v5308
      %v5310 = vrot.slane %v5309, 2
      %v5311 = vadd.f32 %v5309, %v5310
      %v5312 = vrot.slane %v5311, 1
      %v5313 = vadd.f32 %v5311, %v5312
      %v5343 = vcombine.low %v4725, %v4746
      %v5344 = vcombine.low %v4767, %v4788
      %v5345 = vcombine.low %v4809, %v4830
      %v5346 = vcombine.low %v4851, %v4872
      %v5348 = vunpack.c.l.s4 1966171168
      %v5349 = vunpack.c.0.s8 %v5348
      %v5350 = vlaneseq
      %v5351 = vshrl.u32 %v5350, 7
      %v5352 = vsub.s32 %v5349, %v5351
      %v5353 = vrot.slane %v5343, %v5352
      %v5355 = vunpack.c.l.s4 1966171168
      %v5356 = vunpack.c.0.s8 %v5355
      %v5357 = vlaneseq
      %v5358 = vshrl.u32 %v5357, 7
      %v5359 = vsub.s32 %v5356, %v5358
      %v5360 = vrot.slane %v5344, %v5359
      %v5362 = vunpack.c.l.s4 1966171168
      %v5363 = vunpack.c.0.s8 %v5362
      %v5364 = vlaneseq
      %v5365 = vshrl.u32 %v5364, 7
      %v5366 = vsub.s32 %v5363, %v5365
      %v5367 = vrot.slane %v5345, %v5366
      %v5369 = vunpack.c.l.s4 1966171168
      %v5370 = vunpack.c.0.s8 %v5369
      %v5371 = vlaneseq
      %v5372 = vshrl.u32 %v5371, 7
      %v5373 = vsub.s32 %v5370, %v5372
      %v5374 = vrot.slane %v5346, %v5373
      %v5375 = vcombine.low %v5353, %v5360
      %v5376 = vcombine.low %v5367, %v5374
      %v5378 = vunpack.c.l.s4 1966171168
      %v5379 = vunpack.c.0.s8 %v5378
      %v5380 = vlaneseq
      %v5381 = vshrl.u32 %v5380, 7
      %v5382 = vsub.s32 %v5379, %v5381
      %v5383 = vrot.slane %v5375, %v5382
      %v5385 = vunpack.c.l.s4 1966171168
      %v5386 = vunpack.c.0.s8 %v5385
      %v5387 = vlaneseq
      %v5388 = vshrl.u32 %v5387, 7
      %v5389 = vsub.s32 %v5386, %v5388
      %v5390 = vrot.slane %v5376, %v5389
      %v5391 = vcombine.low %v5383, %v5390
      %v5392 = vcombine.low %v4893, %v4914
      %v5393 = vcombine.low %v4935, %v4956
      %v5394 = vcombine.low %v4977, %v4998
      %v5395 = vcombine.low %v5019, %v5040
      %v5397 = vunpack.c.l.s4 1966171168
      %v5398 = vunpack.c.0.s8 %v5397
      %v5399 = vlaneseq
      %v5400 = vshrl.u32 %v5399, 7
      %v5401 = vsub.s32 %v5398, %v5400
      %v5402 = vrot.slane %v5392, %v5401
      %v5404 = vunpack.c.l.s4 1966171168
      %v5405 = vunpack.c.0.s8 %v5404
      %v5406 = vlaneseq
      %v5407 = vshrl.u32 %v5406, 7
      %v5408 = vsub.s32 %v5405, %v5407
      %v5409 = vrot.slane %v5393, %v5408
      %v5411 = vunpack.c.l.s4 1966171168
      %v5412 = vunpack.c.0.s8 %v5411
      %v5413 = vlaneseq
      %v5414 = vshrl.u32 %v5413, 7
      %v5415 = vsub.s32 %v5412, %v5414
      %v5416 = vrot.slane %v5394, %v5415
      %v5418 = vunpack.c.l.s4 1966171168
      %v5419 = vunpack.c.0.s8 %v5418
      %v5420 = vlaneseq
      %v5421 = vshrl.u32 %v5420, 7
      %v5422 = vsub.s32 %v5419, %v5421
      %v5423 = vrot.slane %v5395, %v5422
      %v5424 = vcombine.low %v5402, %v5409
      %v5425 = vcombine.low %v5416, %v5423
      %v5427 = vunpack.c.l.s4 1966171168
      %v5428 = vunpack.c.0.s8 %v5427
      %v5429 = vlaneseq
      %v5430 = vshrl.u32 %v5429, 7
      %v5431 = vsub.s32 %v5428, %v5430
      %v5432 = vrot.slane %v5424, %v5431
      %v5434 = vunpack.c.l.s4 1966171168
      %v5435 = vunpack.c.0.s8 %v5434
      %v5436 = vlaneseq
      %v5437 = vshrl.u32 %v5436, 7
      %v5438 = vsub.s32 %v5435, %v5437
      %v5439 = vrot.slane %v5425, %v5438
      %v5440 = vcombine.low %v5432, %v5439
      %v5441 = vcombine.low %v5061, %v5082
      %v5442 = vcombine.low %v5103, %v5124
      %v5443 = vcombine.low %v5145, %v5166
      %v5444 = vcombine.low %v5187, %v5208
      %v5446 = vunpack.c.l.s4 1966171168
      %v5447 = vunpack.c.0.s8 %v5446
      %v5448 = vlaneseq
      %v5449 = vshrl.u32 %v5448, 7
      %v5450 = vsub.s32 %v5447, %v5449
      %v5451 = vrot.slane %v5441, %v5450
      %v5453 = vunpack.c.l.s4 1966171168
      %v5454 = vunpack.c.0.s8 %v5453
      %v5455 = vlaneseq
      %v5456 = vshrl.u32 %v5455, 7
      %v5457 = vsub.s32 %v5454, %v5456
      %v5458 = vrot.slane %v5442, %v5457
      %v5460 = vunpack.c.l.s4 1966171168
      %v5461 = vunpack.c.0.s8 %v5460
      %v5462 = vlaneseq
      %v5463 = vshrl.u32 %v5462, 7
      %v5464 = vsub.s32 %v5461, %v5463
      %v5465 = vrot.slane %v5443, %v5464
      %v5467 = vunpack.c.l.s4 1966171168
      %v5468 = vunpack.c.0.s8 %v5467
      %v5469 = vlaneseq
      %v5470 = vshrl.u32 %v5469, 7
      %v5471 = vsub.s32 %v5468, %v5470
      %v5472 = vrot.slane %v5444, %v5471
      %v5473 = vcombine.low %v5451, %v5458
      %v5474 = vcombine.low %v5465, %v5472
      %v5476 = vunpack.c.l.s4 1966171168
      %v5477 = vunpack.c.0.s8 %v5476
      %v5478 = vlaneseq
      %v5479 = vshrl.u32 %v5478, 7
      %v5480 = vsub.s32 %v5477, %v5479
      %v5481 = vrot.slane %v5473, %v5480
      %v5483 = vunpack.c.l.s4 1966171168
      %v5484 = vunpack.c.0.s8 %v5483
      %v5485 = vlaneseq
      %v5486 = vshrl.u32 %v5485, 7
      %v5487 = vsub.s32 %v5484, %v5486
      %v5488 = vrot.slane %v5474, %v5487
      %v5489 = vcombine.low %v5481, %v5488
      %v5490 = vcombine.low %v5229, %v5250
      %v5491 = vcombine.low %v5271, %v5292
      %v5493 = vunpack.c.l.s4 1966171168
      %v5494 = vunpack.c.0.s8 %v5493
      %v5495 = vlaneseq
      %v5496 = vshrl.u32 %v5495, 7
      %v5497 = vsub.s32 %v5494, %v5496
      %v5498 = vrot.slane %v5490, %v5497
      %v5500 = vunpack.c.l.s4 1966171168
      %v5501 = vunpack.c.0.s8 %v5500
      %v5502 = vlaneseq
      %v5503 = vshrl.u32 %v5502, 7
      %v5504 = vsub.s32 %v5501, %v5503
      %v5505 = vrot.slane %v5491, %v5504
      %v5507 = vunpack.c.l.s4 1966171168
      %v5508 = vunpack.c.0.s8 %v5507
      %v5509 = vlaneseq
      %v5510 = vshrl.u32 %v5509, 7
      %v5511 = vsub.s32 %v5508, %v5510
      %v5512 = vrot.slane %v5313, %v5511
      %v5513 = vcombine.low %v5498, %v5505
      %v5515 = vunpack.c.l.s4 1966171168
      %v5516 = vunpack.c.0.s8 %v5515
      %v5517 = vlaneseq
      %v5518 = vshrl.u32 %v5517, 7
      %v5519 = vsub.s32 %v5516, %v5518
      %v5520 = vrot.slane %v5513, %v5519
      %v5522 = vunpack.c.l.s4 1966171168
      %v5523 = vunpack.c.0.s8 %v5522
      %v5524 = vlaneseq
      %v5525 = vshrl.u32 %v5524, 7
      %v5526 = vsub.s32 %v5523, %v5525
      %v5527 = vrot.slane %v5512, %v5526
      %v5528 = vcombine.low %v5520, %v5527
      %v5533 = vadd.f32 %v4701, %v5391
      %v5534 = vadd.f32 %v4702, %v5440
      %v5535 = vadd.f32 %v4703, %v5489
      %v5536 = vadd.f32 %v4704, %v5528
      %5537 = vst [vmem:[#allocation2] sm:$0xff] %v5533
      %5538 = vst [vmem:[#allocation2 + $0x8] sm:$0xff] %v5534
      %5539 = vst [vmem:[#allocation2 + $0x10] sm:$0xff] %v5535
      %v5540 = vlaneseq
      %vm5541 = vcmp.ge.s32.totalorder %v5540, 0
      %vm5542 = vcmp.lt.s32.totalorder %v5540, 640
      %vm5543 = vmand %vm5541, %vm5542
      %5544 = vst.msk [vmem:[#allocation2 + $0x18] sm:$0x1f] %vm5543, %v5536
      %p5545 = scmp.eq.s32.totalorder %s21, 1
      // Predicated region
      $region45: #{regnet_forward.1} parent=39 // pred_check
        %p5546 = pneg %p5545
      $region46: #{regnet_forward.1} parent=39 // pred_check_branch
        %5548 = sbr.rel (%p5546) target = $region48
      $region47: #{regnet_forward.1} parent=39 // pred_region
        %v5549 = vld [vmem:[#allocation2] sm:$0xff]
        %v5550 = vld [vmem:[#allocation2 + $0x8] sm:$0xff]
        %v5551 = vld [vmem:[#allocation2 + $0x10] sm:$0xff]
        %v5552 = vld [vmem:[#allocation2 + $0x18] sm:$0x1f]
        %v5553 = vmul.f32 %v5549, 0.00390625
        %v5554 = vmul.f32 %v5550, 0.00390625
        %v5555 = vmul.f32 %v5551, 0.00390625
        %v5556 = vmul.f32 %v5552, 0.00390625
        %v5557 = vld [vmem:[%s3] sm:$0xff]
        %v5558 = vld [vmem:[%s3 + $0x8] sm:$0xff]
        %v5559 = vld [vmem:[%s3 + $0x10] sm:$0xff]
        %v5560 = vld [vmem:[%s3 + $0x18] sm:$0xff]
        %v5561 = vld [vmem:[%s3 + $0x20] sm:$0xff]
        %v5562 = vld [vmem:[%s3 + $0x28] sm:$0xff]
        %v5563 = vld [vmem:[%s3 + $0x30] sm:$0xff]
        %v5564 = vld [vmem:[%s3 + $0x38] sm:$0xff]
        %v5565 = vld [vmem:[%s3 + $0x40] sm:$0xff]
        %v5566 = vld [vmem:[%s3 + $0x48] sm:$0xff]
        %v5567 = vld [vmem:[%s3 + $0x50] sm:$0xff]
        %v5568 = vld [vmem:[%s3 + $0x58] sm:$0xff]
        %v5569 = vld [vmem:[%s3 + $0x60] sm:$0xff]
        %v5570 = vld [vmem:[%s3 + $0x68] sm:$0xff]
        %v5571 = vld [vmem:[%s3 + $0x70] sm:$0xff]
        %v5572 = vld [vmem:[%s3 + $0x78] sm:$0xff]
        %v5573 = vld [vmem:[%s3 + $0x80] sm:$0xff]
        %v5574 = vld [vmem:[%s3 + $0x88] sm:$0xff]
        %v5575 = vld [vmem:[%s3 + $0x90] sm:$0xff]
        %v5576 = vld [vmem:[%s3 + $0x98] sm:$0xff]
        %v5577 = vld [vmem:[%s3 + $0xa0] sm:$0xff]
        %v5578 = vld [vmem:[%s3 + $0xa8] sm:$0xff]
        %v5579 = vld [vmem:[%s3 + $0xb0] sm:$0xff]
        %v5580 = vld [vmem:[%s3 + $0xb8] sm:$0xff]
        %v5581 = vld [vmem:[%s3 + $0xc0] sm:$0xff]
        %v5582 = vld [vmem:[%s3 + $0xc8] sm:$0xff]
        %v5583 = vld [vmem:[%s3 + $0xd0] sm:$0xff]
        %v5584 = vld [vmem:[%s3 + $0xd8] sm:$0xff]
        %v5585 = vld [vmem:[%s3 + $0xe0] sm:$0xff]
        %v5586 = vld [vmem:[%s3 + $0xe8] sm:$0xff]
        %v5587 = vld [vmem:[%s3 + $0xf0] sm:$0xff]
        %v5588 = vld [vmem:[%s3 + $0xf8] sm:$0xff]
        %v5589 = vld [vmem:[%s3 + $0x100] sm:$0xff]
        %v5590 = vld [vmem:[%s3 + $0x108] sm:$0xff]
        %v5591 = vld [vmem:[%s3 + $0x110] sm:$0xff]
        %v5592 = vld [vmem:[%s3 + $0x118] sm:$0xff]
        %v5593 = vld [vmem:[%s3 + $0x120] sm:$0xff]
        %v5594 = vld [vmem:[%s3 + $0x128] sm:$0xff]
        %v5595 = vld [vmem:[%s3 + $0x130] sm:$0xff]
        %v5596 = vld [vmem:[%s3 + $0x138] sm:$0xff]
        %v5597 = vld [vmem:[%s3 + $0x140] sm:$0xff]
        %v5598 = vld [vmem:[%s3 + $0x148] sm:$0xff]
        %v5599 = vld [vmem:[%s3 + $0x150] sm:$0xff]
        %v5600 = vld [vmem:[%s3 + $0x158] sm:$0xff]
        %v5601 = vld [vmem:[%s3 + $0x160] sm:$0xff]
        %v5602 = vld [vmem:[%s3 + $0x168] sm:$0xff]
        %v5603 = vld [vmem:[%s3 + $0x170] sm:$0xff]
        %v5604 = vld [vmem:[%s3 + $0x178] sm:$0xff]
        %v5605 = vld [vmem:[%s3 + $0x180] sm:$0xff]
        %v5606 = vld [vmem:[%s3 + $0x188] sm:$0xff]
        %v5607 = vld [vmem:[%s3 + $0x190] sm:$0xff]
        %v5608 = vld [vmem:[%s3 + $0x198] sm:$0xff]
        %v5609 = vld [vmem:[%s3 + $0x1a0] sm:$0xff]
        %v5610 = vld [vmem:[%s3 + $0x1a8] sm:$0xff]
        %v5611 = vld [vmem:[%s3 + $0x1b0] sm:$0xff]
        %v5612 = vld [vmem:[%s3 + $0x1b8] sm:$0xff]
        %v5613 = vld [vmem:[%s3 + $0x1c0] sm:$0xff]
        %v5614 = vld [vmem:[%s3 + $0x1c8] sm:$0xff]
        %v5615 = vld [vmem:[%s3 + $0x1d0] sm:$0xff]
        %v5616 = vld [vmem:[%s3 + $0x1d8] sm:$0xff]
        %v5617 = vld [vmem:[%s3 + $0x1e0] sm:$0xff]
        %v5618 = vld [vmem:[%s3 + $0x1e8] sm:$0xff]
        %v5619 = vld [vmem:[%s3 + $0x1f0] sm:$0xff]
        %v5620 = vld [vmem:[%s3 + $0x1f8] sm:$0xff]
        %v5621 = vld [vmem:[%s3 + $0x200] sm:$0xff]
        %v5622 = vld [vmem:[%s3 + $0x208] sm:$0xff]
        %v5623 = vld [vmem:[%s3 + $0x210] sm:$0xff]
        %v5624 = vld [vmem:[%s3 + $0x218] sm:$0xff]
        %v5625 = vld [vmem:[%s3 + $0x220] sm:$0xff]
        %v5626 = vld [vmem:[%s3 + $0x228] sm:$0xff]
        %v5627 = vld [vmem:[%s3 + $0x230] sm:$0xff]
        %v5628 = vld [vmem:[%s3 + $0x238] sm:$0xff]
        %v5629 = vld [vmem:[%s3 + $0x240] sm:$0xff]
        %v5630 = vld [vmem:[%s3 + $0x248] sm:$0xff]
        %v5631 = vld [vmem:[%s3 + $0x250] sm:$0xff]
        %v5632 = vld [vmem:[%s3 + $0x258] sm:$0xff]
        %v5633 = vld [vmem:[%s3 + $0x260] sm:$0xff]
        %v5634 = vld [vmem:[%s3 + $0x268] sm:$0xff]
        %v5635 = vld [vmem:[%s3 + $0x270] sm:$0xff]
        %v5636 = vld [vmem:[%s3 + $0x278] sm:$0xff]
        %v5637 = vld [vmem:[%s3 + $0x280] sm:$0xff]
        %v5638 = vld [vmem:[%s3 + $0x288] sm:$0xff]
        %v5639 = vld [vmem:[%s3 + $0x290] sm:$0xff]
        %v5640 = vld [vmem:[%s3 + $0x298] sm:$0xff]
        %v5641 = vld [vmem:[%s3 + $0x2a0] sm:$0xff]
        %v5642 = vld [vmem:[%s3 + $0x2a8] sm:$0xff]
        %v5643 = vld [vmem:[%s3 + $0x2b0] sm:$0xff]
        %v5644 = vld [vmem:[%s3 + $0x2b8] sm:$0xff]
        %v5645 = vld [vmem:[%s3 + $0x2c0] sm:$0xff]
        %v5646 = vld [vmem:[%s3 + $0x2c8] sm:$0xff]
        %v5647 = vld [vmem:[%s3 + $0x2d0] sm:$0xff]
        %v5648 = vld [vmem:[%s3 + $0x2d8] sm:$0xff]
        %v5649 = vld [vmem:[%s3 + $0x2e0] sm:$0xff]
        %v5650 = vld [vmem:[%s3 + $0x2e8] sm:$0xff]
        %v5651 = vld [vmem:[%s3 + $0x2f0] sm:$0xff]
        %v5652 = vld [vmem:[%s3 + $0x2f8] sm:$0xff]
        %v5653 = vld [vmem:[%s3 + $0x300] sm:$0xff]
        %v5654 = vld [vmem:[%s3 + $0x308] sm:$0xff]
        %v5655 = vld [vmem:[%s3 + $0x310] sm:$0xff]
        %v5656 = vld [vmem:[%s3 + $0x318] sm:$0xff]
        %v5657 = vld [vmem:[%s3 + $0x320] sm:$0xff]
        %v5658 = vld [vmem:[%s3 + $0x328] sm:$0xff]
        %v5659 = vld [vmem:[%s3 + $0x330] sm:$0xff]
        %v5660 = vld [vmem:[%s3 + $0x338] sm:$0xff]
        %v5661 = vld [vmem:[%s3 + $0x340] sm:$0xff]
        %v5662 = vld [vmem:[%s3 + $0x348] sm:$0xff]
        %v5663 = vld [vmem:[%s3 + $0x350] sm:$0xff]
        %v5664 = vld [vmem:[%s3 + $0x358] sm:$0xff]
        %v5665 = vld [vmem:[%s3 + $0x360] sm:$0xff]
        %v5666 = vld [vmem:[%s3 + $0x368] sm:$0xff]
        %v5667 = vld [vmem:[%s3 + $0x370] sm:$0xff]
        %v5668 = vld [vmem:[%s3 + $0x378] sm:$0xff]
        %v5669 = vld [vmem:[%s3 + $0x380] sm:$0xff]
        %v5670 = vld [vmem:[%s3 + $0x388] sm:$0xff]
        %v5671 = vld [vmem:[%s3 + $0x390] sm:$0xff]
        %v5672 = vld [vmem:[%s3 + $0x398] sm:$0xff]
        %v5673 = vld [vmem:[%s3 + $0x3a0] sm:$0xff]
        %v5674 = vld [vmem:[%s3 + $0x3a8] sm:$0xff]
        %v5675 = vld [vmem:[%s3 + $0x3b0] sm:$0xff]
        %v5676 = vld [vmem:[%s3 + $0x3b8] sm:$0xff]
        %v5677 = vld [vmem:[%s3 + $0x3c0] sm:$0xff]
        %v5678 = vld [vmem:[%s3 + $0x3c8] sm:$0xff]
        %v5679 = vld [vmem:[%s3 + $0x3d0] sm:$0xff]
        %v5680 = vld [vmem:[%s3 + $0x3d8] sm:$0xff]
        %v5681 = vld [vmem:[%s3 + $0x3e0] sm:$0xff]
        %v5682 = vld [vmem:[%s3 + $0x3e8] sm:$0xff]
        %v5683 = vld [vmem:[%s3 + $0x3f0] sm:$0xff]
        %v5684 = vld [vmem:[%s3 + $0x3f8] sm:$0xff]
        %v5685 = vld [vmem:[%s3 + $0x400] sm:$0xff]
        %v5686 = vld [vmem:[%s3 + $0x408] sm:$0xff]
        %v5687 = vld [vmem:[%s3 + $0x410] sm:$0xff]
        %v5688 = vld [vmem:[%s3 + $0x418] sm:$0xff]
        %v5689 = vld [vmem:[%s3 + $0x420] sm:$0xff]
        %v5690 = vld [vmem:[%s3 + $0x428] sm:$0xff]
        %v5691 = vld [vmem:[%s3 + $0x430] sm:$0xff]
        %v5692 = vld [vmem:[%s3 + $0x438] sm:$0xff]
        %v5693 = vld [vmem:[%s3 + $0x440] sm:$0xff]
        %v5694 = vld [vmem:[%s3 + $0x448] sm:$0xff]
        %v5695 = vld [vmem:[%s3 + $0x450] sm:$0xff]
        %v5696 = vld [vmem:[%s3 + $0x458] sm:$0xff]
        %v5697 = vld [vmem:[%s3 + $0x460] sm:$0xff]
        %v5698 = vld [vmem:[%s3 + $0x468] sm:$0xff]
        %v5699 = vld [vmem:[%s3 + $0x470] sm:$0xff]
        %v5700 = vld [vmem:[%s3 + $0x478] sm:$0xff]
        %v5701 = vld [vmem:[%s3 + $0x480] sm:$0xff]
        %v5702 = vld [vmem:[%s3 + $0x488] sm:$0xff]
        %v5703 = vld [vmem:[%s3 + $0x490] sm:$0xff]
        %v5704 = vld [vmem:[%s3 + $0x498] sm:$0xff]
        %v5705 = vld [vmem:[%s3 + $0x4a0] sm:$0xff]
        %v5706 = vld [vmem:[%s3 + $0x4a8] sm:$0xff]
        %v5707 = vld [vmem:[%s3 + $0x4b0] sm:$0xff]
        %v5708 = vld [vmem:[%s3 + $0x4b8] sm:$0xff]
        %v5709 = vld [vmem:[%s3 + $0x4c0] sm:$0xff]
        %v5710 = vld [vmem:[%s3 + $0x4c8] sm:$0xff]
        %v5711 = vld [vmem:[%s3 + $0x4d0] sm:$0xff]
        %v5712 = vld [vmem:[%s3 + $0x4d8] sm:$0xff]
        %v5713 = vld [vmem:[%s3 + $0x4e0] sm:$0xff]
        %v5714 = vld [vmem:[%s3 + $0x4e8] sm:$0xff]
        %v5715 = vld [vmem:[%s3 + $0x4f0] sm:$0xff]
        %v5716 = vld [vmem:[%s3 + $0x4f8] sm:$0xff]
        %v5717 = vld [vmem:[%s3 + $0x500] sm:$0xff]
        %v5718 = vld [vmem:[%s3 + $0x508] sm:$0xff]
        %v5719 = vld [vmem:[%s3 + $0x510] sm:$0xff]
        %v5720 = vld [vmem:[%s3 + $0x518] sm:$0xff]
        %v5721 = vld [vmem:[%s3 + $0x520] sm:$0xff]
        %v5722 = vld [vmem:[%s3 + $0x528] sm:$0xff]
        %v5723 = vld [vmem:[%s3 + $0x530] sm:$0xff]
        %v5724 = vld [vmem:[%s3 + $0x538] sm:$0xff]
        %v5725 = vld [vmem:[%s3 + $0x540] sm:$0xff]
        %v5726 = vld [vmem:[%s3 + $0x548] sm:$0xff]
        %v5727 = vld [vmem:[%s3 + $0x550] sm:$0xff]
        %v5728 = vld [vmem:[%s3 + $0x558] sm:$0xff]
        %v5729 = vld [vmem:[%s3 + $0x560] sm:$0xff]
        %v5730 = vld [vmem:[%s3 + $0x568] sm:$0xff]
        %v5731 = vld [vmem:[%s3 + $0x570] sm:$0xff]
        %v5732 = vld [vmem:[%s3 + $0x578] sm:$0xff]
        %v5733 = vld [vmem:[%s3 + $0x580] sm:$0xff]
        %v5734 = vld [vmem:[%s3 + $0x588] sm:$0xff]
        %v5735 = vld [vmem:[%s3 + $0x590] sm:$0xff]
        %v5736 = vld [vmem:[%s3 + $0x598] sm:$0xff]
        %v5737 = vld [vmem:[%s3 + $0x5a0] sm:$0xff]
        %v5738 = vld [vmem:[%s3 + $0x5a8] sm:$0xff]
        %v5739 = vld [vmem:[%s3 + $0x5b0] sm:$0xff]
        %v5740 = vld [vmem:[%s3 + $0x5b8] sm:$0xff]
        %v5741 = vld [vmem:[%s3 + $0x5c0] sm:$0xff]
        %v5742 = vld [vmem:[%s3 + $0x5c8] sm:$0xff]
        %v5743 = vld [vmem:[%s3 + $0x5d0] sm:$0xff]
        %v5744 = vld [vmem:[%s3 + $0x5d8] sm:$0xff]
        %v5745 = vld [vmem:[%s3 + $0x5e0] sm:$0xff]
        %v5746 = vld [vmem:[%s3 + $0x5e8] sm:$0xff]
        %v5747 = vld [vmem:[%s3 + $0x5f0] sm:$0xff]
        %v5748 = vld [vmem:[%s3 + $0x5f8] sm:$0xff]
        %v5749 = vld [vmem:[%s3 + $0x600] sm:$0xff]
        %v5750 = vld [vmem:[%s3 + $0x608] sm:$0xff]
        %v5751 = vld [vmem:[%s3 + $0x610] sm:$0xff]
        %v5752 = vld [vmem:[%s3 + $0x618] sm:$0xff]
        %v5753 = vld [vmem:[%s3 + $0x620] sm:$0xff]
        %v5754 = vld [vmem:[%s3 + $0x628] sm:$0xff]
        %v5755 = vld [vmem:[%s3 + $0x630] sm:$0xff]
        %v5756 = vld [vmem:[%s3 + $0x638] sm:$0xff]
        %v5757 = vld [vmem:[%s3 + $0x640] sm:$0xff]
        %v5758 = vld [vmem:[%s3 + $0x648] sm:$0xff]
        %v5759 = vld [vmem:[%s3 + $0x650] sm:$0xff]
        %v5760 = vld [vmem:[%s3 + $0x658] sm:$0xff]
        %v5761 = vld [vmem:[%s3 + $0x660] sm:$0xff]
        %v5762 = vld [vmem:[%s3 + $0x668] sm:$0xff]
        %v5763 = vld [vmem:[%s3 + $0x670] sm:$0xff]
        %v5764 = vld [vmem:[%s3 + $0x678] sm:$0xff]
        %v5765 = vld [vmem:[%s3 + $0x680] sm:$0xff]
        %v5766 = vld [vmem:[%s3 + $0x688] sm:$0xff]
        %v5767 = vld [vmem:[%s3 + $0x690] sm:$0xff]
        %v5768 = vld [vmem:[%s3 + $0x698] sm:$0xff]
        %v5769 = vld [vmem:[%s3 + $0x6a0] sm:$0xff]
        %v5770 = vld [vmem:[%s3 + $0x6a8] sm:$0xff]
        %v5771 = vld [vmem:[%s3 + $0x6b0] sm:$0xff]
        %v5772 = vld [vmem:[%s3 + $0x6b8] sm:$0xff]
        %v5773 = vld [vmem:[%s3 + $0x6c0] sm:$0xff]
        %v5774 = vld [vmem:[%s3 + $0x6c8] sm:$0xff]
        %v5775 = vld [vmem:[%s3 + $0x6d0] sm:$0xff]
        %v5776 = vld [vmem:[%s3 + $0x6d8] sm:$0xff]
        %v5777 = vld [vmem:[%s3 + $0x6e0] sm:$0xff]
        %v5778 = vld [vmem:[%s3 + $0x6e8] sm:$0xff]
        %v5779 = vld [vmem:[%s3 + $0x6f0] sm:$0xff]
        %v5780 = vld [vmem:[%s3 + $0x6f8] sm:$0xff]
        %v5781 = vld [vmem:[%s3 + $0x700] sm:$0xff]
        %v5782 = vld [vmem:[%s3 + $0x708] sm:$0xff]
        %v5783 = vld [vmem:[%s3 + $0x710] sm:$0xff]
        %v5784 = vld [vmem:[%s3 + $0x718] sm:$0xff]
        %v5785 = vld [vmem:[%s3 + $0x720] sm:$0xff]
        %v5786 = vld [vmem:[%s3 + $0x728] sm:$0xff]
        %v5787 = vld [vmem:[%s3 + $0x730] sm:$0xff]
        %v5788 = vld [vmem:[%s3 + $0x738] sm:$0xff]
        %v5789 = vld [vmem:[%s3 + $0x740] sm:$0xff]
        %v5790 = vld [vmem:[%s3 + $0x748] sm:$0xff]
        %v5791 = vld [vmem:[%s3 + $0x750] sm:$0xff]
        %v5792 = vld [vmem:[%s3 + $0x758] sm:$0xff]
        %v5793 = vld [vmem:[%s3 + $0x760] sm:$0xff]
        %v5794 = vld [vmem:[%s3 + $0x768] sm:$0xff]
        %v5795 = vld [vmem:[%s3 + $0x770] sm:$0xff]
        %v5796 = vld [vmem:[%s3 + $0x778] sm:$0xff]
        %v5797 = vld [vmem:[%s3 + $0x780] sm:$0xff]
        %v5798 = vld [vmem:[%s3 + $0x788] sm:$0xff]
        %v5799 = vld [vmem:[%s3 + $0x790] sm:$0xff]
        %v5800 = vld [vmem:[%s3 + $0x798] sm:$0xff]
        %v5801 = vld [vmem:[%s3 + $0x7a0] sm:$0xff]
        %v5802 = vld [vmem:[%s3 + $0x7a8] sm:$0xff]
        %v5803 = vld [vmem:[%s3 + $0x7b0] sm:$0xff]
        %v5804 = vld [vmem:[%s3 + $0x7b8] sm:$0xff]
        %v5805 = vld [vmem:[%s3 + $0x7c0] sm:$0xff]
        %v5806 = vld [vmem:[%s3 + $0x7c8] sm:$0xff]
        %v5807 = vld [vmem:[%s3 + $0x7d0] sm:$0xff]
        %v5808 = vld [vmem:[%s3 + $0x7d8] sm:$0xff]
        %v5809 = vld [vmem:[%s3 + $0x7e0] sm:$0xff]
        %v5810 = vld [vmem:[%s3 + $0x7e8] sm:$0xff]
        %v5811 = vld [vmem:[%s3 + $0x7f0] sm:$0xff]
        %v5812 = vld [vmem:[%s3 + $0x7f8] sm:$0xff]
        %v5813 = vld [vmem:[%s3 + $0x800] sm:$0xff]
        %v5814 = vld [vmem:[%s3 + $0x808] sm:$0xff]
        %v5815 = vld [vmem:[%s3 + $0x810] sm:$0xff]
        %v5816 = vld [vmem:[%s3 + $0x818] sm:$0xff]
        %v5817 = vld [vmem:[%s3 + $0x820] sm:$0xff]
        %v5818 = vld [vmem:[%s3 + $0x828] sm:$0xff]
        %v5819 = vld [vmem:[%s3 + $0x830] sm:$0xff]
        %v5820 = vld [vmem:[%s3 + $0x838] sm:$0xff]
        %v5821 = vld [vmem:[%s3 + $0x840] sm:$0xff]
        %v5822 = vld [vmem:[%s3 + $0x848] sm:$0xff]
        %v5823 = vld [vmem:[%s3 + $0x850] sm:$0xff]
        %v5824 = vld [vmem:[%s3 + $0x858] sm:$0xff]
        %v5825 = vld [vmem:[%s3 + $0x860] sm:$0xff]
        %v5826 = vld [vmem:[%s3 + $0x868] sm:$0xff]
        %v5827 = vld [vmem:[%s3 + $0x870] sm:$0xff]
        %v5828 = vld [vmem:[%s3 + $0x878] sm:$0xff]
        %v5829 = vld [vmem:[%s3 + $0x880] sm:$0xff]
        %v5830 = vld [vmem:[%s3 + $0x888] sm:$0xff]
        %v5831 = vld [vmem:[%s3 + $0x890] sm:$0xff]
        %v5832 = vld [vmem:[%s3 + $0x898] sm:$0xff]
        %v5833 = vld [vmem:[%s3 + $0x8a0] sm:$0xff]
        %v5834 = vld [vmem:[%s3 + $0x8a8] sm:$0xff]
        %v5835 = vld [vmem:[%s3 + $0x8b0] sm:$0xff]
        %v5836 = vld [vmem:[%s3 + $0x8b8] sm:$0xff]
        %v5837 = vld [vmem:[%s3 + $0x8c0] sm:$0xff]
        %v5838 = vld [vmem:[%s3 + $0x8c8] sm:$0xff]
        %v5839 = vld [vmem:[%s3 + $0x8d0] sm:$0xff]
        %v5840 = vld [vmem:[%s3 + $0x8d8] sm:$0xff]
        %v5841 = vld [vmem:[%s3 + $0x8e0] sm:$0xff]
        %v5842 = vld [vmem:[%s3 + $0x8e8] sm:$0xff]
        %v5843 = vld [vmem:[%s3 + $0x8f0] sm:$0xff]
        %v5844 = vld [vmem:[%s3 + $0x8f8] sm:$0xff]
        %v5845 = vld [vmem:[%s3 + $0x900] sm:$0xff]
        %v5846 = vld [vmem:[%s3 + $0x908] sm:$0xff]
        %v5847 = vld [vmem:[%s3 + $0x910] sm:$0xff]
        %v5848 = vld [vmem:[%s3 + $0x918] sm:$0xff]
        %v5849 = vld [vmem:[%s3 + $0x920] sm:$0xff]
        %v5850 = vld [vmem:[%s3 + $0x928] sm:$0xff]
        %v5851 = vld [vmem:[%s3 + $0x930] sm:$0xff]
        %v5852 = vld [vmem:[%s3 + $0x938] sm:$0xff]
        %v5853 = vld [vmem:[%s3 + $0x940] sm:$0xff]
        %v5854 = vld [vmem:[%s3 + $0x948] sm:$0xff]
        %v5855 = vld [vmem:[%s3 + $0x950] sm:$0xff]
        %v5856 = vld [vmem:[%s3 + $0x958] sm:$0xff]
        %v5857 = vld [vmem:[%s3 + $0x960] sm:$0xff]
        %v5858 = vld [vmem:[%s3 + $0x968] sm:$0xff]
        %v5859 = vld [vmem:[%s3 + $0x970] sm:$0xff]
        %v5860 = vld [vmem:[%s3 + $0x978] sm:$0xff]
        %v5861 = vld [vmem:[%s3 + $0x980] sm:$0xff]
        %v5862 = vld [vmem:[%s3 + $0x988] sm:$0xff]
        %v5863 = vld [vmem:[%s3 + $0x990] sm:$0xff]
        %v5864 = vld [vmem:[%s3 + $0x998] sm:$0xff]
        %v5865 = vld [vmem:[%s3 + $0x9a0] sm:$0xff]
        %v5866 = vld [vmem:[%s3 + $0x9a8] sm:$0xff]
        %v5867 = vld [vmem:[%s3 + $0x9b0] sm:$0xff]
        %v5868 = vld [vmem:[%s3 + $0x9b8] sm:$0xff]
        %v5869 = vld [vmem:[%s3 + $0x9c0] sm:$0xff]
        %v5870 = vld [vmem:[%s3 + $0x9c8] sm:$0xff]
        %v5871 = vld [vmem:[%s3 + $0x9d0] sm:$0xff]
        %v5872 = vld [vmem:[%s3 + $0x9d8] sm:$0xff]
        %v5873 = vld [vmem:[%s3 + $0x9e0] sm:$0xff]
        %v5874 = vld [vmem:[%s3 + $0x9e8] sm:$0xff]
        %v5875 = vld [vmem:[%s3 + $0x9f0] sm:$0xff]
        %v5876 = vld [vmem:[%s3 + $0x9f8] sm:$0xff]
        %v5877 = vld [vmem:[%s3 + $0xa00] sm:$0xff]
        %v5878 = vld [vmem:[%s3 + $0xa08] sm:$0xff]
        %v5879 = vld [vmem:[%s3 + $0xa10] sm:$0xff]
        %v5880 = vld [vmem:[%s3 + $0xa18] sm:$0xff]
        %v5881 = vld [vmem:[%s3 + $0xa20] sm:$0xff]
        %v5882 = vld [vmem:[%s3 + $0xa28] sm:$0xff]
        %v5883 = vld [vmem:[%s3 + $0xa30] sm:$0xff]
        %v5884 = vld [vmem:[%s3 + $0xa38] sm:$0xff]
        %v5885 = vld [vmem:[%s3 + $0xa40] sm:$0xff]
        %v5886 = vld [vmem:[%s3 + $0xa48] sm:$0xff]
        %v5887 = vld [vmem:[%s3 + $0xa50] sm:$0xff]
        %v5888 = vld [vmem:[%s3 + $0xa58] sm:$0xff]
        %v5889 = vld [vmem:[%s3 + $0xa60] sm:$0xff]
        %v5890 = vld [vmem:[%s3 + $0xa68] sm:$0xff]
        %v5891 = vld [vmem:[%s3 + $0xa70] sm:$0xff]
        %v5892 = vld [vmem:[%s3 + $0xa78] sm:$0xff]
        %v5893 = vld [vmem:[%s3 + $0xa80] sm:$0xff]
        %v5894 = vld [vmem:[%s3 + $0xa88] sm:$0xff]
        %v5895 = vld [vmem:[%s3 + $0xa90] sm:$0xff]
        %v5896 = vld [vmem:[%s3 + $0xa98] sm:$0xff]
        %v5897 = vld [vmem:[%s3 + $0xaa0] sm:$0xff]
        %v5898 = vld [vmem:[%s3 + $0xaa8] sm:$0xff]
        %v5899 = vld [vmem:[%s3 + $0xab0] sm:$0xff]
        %v5900 = vld [vmem:[%s3 + $0xab8] sm:$0xff]
        %v5901 = vld [vmem:[%s3 + $0xac0] sm:$0xff]
        %v5902 = vld [vmem:[%s3 + $0xac8] sm:$0xff]
        %v5903 = vld [vmem:[%s3 + $0xad0] sm:$0xff]
        %v5904 = vld [vmem:[%s3 + $0xad8] sm:$0xff]
        %v5905 = vld [vmem:[%s3 + $0xae0] sm:$0xff]
        %v5906 = vld [vmem:[%s3 + $0xae8] sm:$0xff]
        %v5907 = vld [vmem:[%s3 + $0xaf0] sm:$0xff]
        %v5908 = vld [vmem:[%s3 + $0xaf8] sm:$0xff]
        %v5909 = vld [vmem:[%s3 + $0xb00] sm:$0xff]
        %v5910 = vld [vmem:[%s3 + $0xb08] sm:$0xff]
        %v5911 = vld [vmem:[%s3 + $0xb10] sm:$0xff]
        %v5912 = vld [vmem:[%s3 + $0xb18] sm:$0xff]
        %v5913 = vld [vmem:[%s3 + $0xb20] sm:$0xff]
        %v5914 = vld [vmem:[%s3 + $0xb28] sm:$0xff]
        %v5915 = vld [vmem:[%s3 + $0xb30] sm:$0xff]
        %v5916 = vld [vmem:[%s3 + $0xb38] sm:$0xff]
        %v5917 = vld [vmem:[%s3 + $0xb40] sm:$0xff]
        %v5918 = vld [vmem:[%s3 + $0xb48] sm:$0xff]
        %v5919 = vld [vmem:[%s3 + $0xb50] sm:$0xff]
        %v5920 = vld [vmem:[%s3 + $0xb58] sm:$0xff]
        %v5921 = vld [vmem:[%s3 + $0xb60] sm:$0xff]
        %v5922 = vld [vmem:[%s3 + $0xb68] sm:$0xff]
        %v5923 = vld [vmem:[%s3 + $0xb70] sm:$0xff]
        %v5924 = vld [vmem:[%s3 + $0xb78] sm:$0xff]
        %v5925 = vld [vmem:[%s3 + $0xb80] sm:$0xff]
        %v5926 = vld [vmem:[%s3 + $0xb88] sm:$0xff]
        %v5927 = vld [vmem:[%s3 + $0xb90] sm:$0xff]
        %v5928 = vld [vmem:[%s3 + $0xb98] sm:$0xff]
        %v5929 = vld [vmem:[%s3 + $0xba0] sm:$0xff]
        %v5930 = vld [vmem:[%s3 + $0xba8] sm:$0xff]
        %v5931 = vld [vmem:[%s3 + $0xbb0] sm:$0xff]
        %v5932 = vld [vmem:[%s3 + $0xbb8] sm:$0xff]
        %v5933 = vld [vmem:[%s3 + $0xbc0] sm:$0xff]
        %v5934 = vld [vmem:[%s3 + $0xbc8] sm:$0xff]
        %v5935 = vld [vmem:[%s3 + $0xbd0] sm:$0xff]
        %v5936 = vld [vmem:[%s3 + $0xbd8] sm:$0xff]
        %v5937 = vld [vmem:[%s3 + $0xbe0] sm:$0xff]
        %v5938 = vld [vmem:[%s3 + $0xbe8] sm:$0xff]
        %v5939 = vld [vmem:[%s3 + $0xbf0] sm:$0xff]
        %v5940 = vld [vmem:[%s3 + $0xbf8] sm:$0xff]
        %v5941 = vld [vmem:[%s3 + $0xc00] sm:$0xff]
        %v5942 = vld [vmem:[%s3 + $0xc08] sm:$0xff]
        %v5943 = vld [vmem:[%s3 + $0xc10] sm:$0xff]
        %v5944 = vld [vmem:[%s3 + $0xc18] sm:$0xff]
        %v5945 = vld [vmem:[%s3 + $0xc20] sm:$0xff]
        %v5946 = vld [vmem:[%s3 + $0xc28] sm:$0xff]
        %v5947 = vld [vmem:[%s3 + $0xc30] sm:$0xff]
        %v5948 = vld [vmem:[%s3 + $0xc38] sm:$0xff]
        %v5949 = vld [vmem:[%s3 + $0xc40] sm:$0xff]
        %v5950 = vld [vmem:[%s3 + $0xc48] sm:$0xff]
        %v5951 = vld [vmem:[%s3 + $0xc50] sm:$0xff]
        %v5952 = vld [vmem:[%s3 + $0xc58] sm:$0xff]
        %v5953 = vld [vmem:[%s3 + $0xc60] sm:$0xff]
        %v5954 = vld [vmem:[%s3 + $0xc68] sm:$0xff]
        %v5955 = vld [vmem:[%s3 + $0xc70] sm:$0xff]
        %v5956 = vld [vmem:[%s3 + $0xc78] sm:$0xff]
        %v5957 = vld [vmem:[%s3 + $0xc80] sm:$0xff]
        %v5958 = vld [vmem:[%s3 + $0xc88] sm:$0xff]
        %v5959 = vld [vmem:[%s3 + $0xc90] sm:$0xff]
        %v5960 = vld [vmem:[%s3 + $0xc98] sm:$0xff]
        %v5961 = vld [vmem:[%s3 + $0xca0] sm:$0xff]
        %v5962 = vld [vmem:[%s3 + $0xca8] sm:$0xff]
        %v5963 = vld [vmem:[%s3 + $0xcb0] sm:$0xff]
        %v5964 = vld [vmem:[%s3 + $0xcb8] sm:$0xff]
        %v5965 = vld [vmem:[%s3 + $0xcc0] sm:$0xff]
        %v5966 = vld [vmem:[%s3 + $0xcc8] sm:$0xff]
        %v5967 = vld [vmem:[%s3 + $0xcd0] sm:$0xff]
        %v5968 = vld [vmem:[%s3 + $0xcd8] sm:$0xff]
        %v5969 = vld [vmem:[%s3 + $0xce0] sm:$0xff]
        %v5970 = vld [vmem:[%s3 + $0xce8] sm:$0xff]
        %v5971 = vld [vmem:[%s3 + $0xcf0] sm:$0xff]
        %v5972 = vld [vmem:[%s3 + $0xcf8] sm:$0xff]
        %v5973 = vld [vmem:[%s3 + $0xd00] sm:$0xff]
        %v5974 = vld [vmem:[%s3 + $0xd08] sm:$0xff]
        %v5975 = vld [vmem:[%s3 + $0xd10] sm:$0xff]
        %v5976 = vld [vmem:[%s3 + $0xd18] sm:$0xff]
        %v5977 = vld [vmem:[%s3 + $0xd20] sm:$0xff]
        %v5978 = vld [vmem:[%s3 + $0xd28] sm:$0xff]
        %v5979 = vld [vmem:[%s3 + $0xd30] sm:$0xff]
        %v5980 = vld [vmem:[%s3 + $0xd38] sm:$0xff]
        %v5981 = vld [vmem:[%s3 + $0xd40] sm:$0xff]
        %v5982 = vld [vmem:[%s3 + $0xd48] sm:$0xff]
        %v5983 = vld [vmem:[%s3 + $0xd50] sm:$0xff]
        %v5984 = vld [vmem:[%s3 + $0xd58] sm:$0xff]
        %v5985 = vld [vmem:[%s3 + $0xd60] sm:$0xff]
        %v5986 = vld [vmem:[%s3 + $0xd68] sm:$0xff]
        %v5987 = vld [vmem:[%s3 + $0xd70] sm:$0xff]
        %v5988 = vld [vmem:[%s3 + $0xd78] sm:$0xff]
        %v5989 = vld [vmem:[%s3 + $0xd80] sm:$0xff]
        %v5990 = vld [vmem:[%s3 + $0xd88] sm:$0xff]
        %v5991 = vld [vmem:[%s3 + $0xd90] sm:$0xff]
        %v5992 = vld [vmem:[%s3 + $0xd98] sm:$0xff]
        %v5993 = vld [vmem:[%s3 + $0xda0] sm:$0xff]
        %v5994 = vld [vmem:[%s3 + $0xda8] sm:$0xff]
        %v5995 = vld [vmem:[%s3 + $0xdb0] sm:$0xff]
        %v5996 = vld [vmem:[%s3 + $0xdb8] sm:$0xff]
        %v5997 = vld [vmem:[%s3 + $0xdc0] sm:$0xff]
        %v5998 = vld [vmem:[%s3 + $0xdc8] sm:$0xff]
        %v5999 = vld [vmem:[%s3 + $0xdd0] sm:$0xff]
        %v6000 = vld [vmem:[%s3 + $0xdd8] sm:$0xff]
        %v6001 = vld [vmem:[%s3 + $0xde0] sm:$0xff]
        %v6002 = vld [vmem:[%s3 + $0xde8] sm:$0xff]
        %v6003 = vld [vmem:[%s3 + $0xdf0] sm:$0xff]
        %v6004 = vld [vmem:[%s3 + $0xdf8] sm:$0xff]
        %v6005 = vld [vmem:[%s3 + $0xe00] sm:$0xff]
        %v6006 = vld [vmem:[%s3 + $0xe08] sm:$0xff]
        %v6007 = vld [vmem:[%s3 + $0xe10] sm:$0xff]
        %v6008 = vld [vmem:[%s3 + $0xe18] sm:$0xff]
        %v6009 = vld [vmem:[%s3 + $0xe20] sm:$0xff]
        %v6010 = vld [vmem:[%s3 + $0xe28] sm:$0xff]
        %v6011 = vld [vmem:[%s3 + $0xe30] sm:$0xff]
        %v6012 = vld [vmem:[%s3 + $0xe38] sm:$0xff]
        %v6013 = vld [vmem:[%s3 + $0xe40] sm:$0xff]
        %v6014 = vld [vmem:[%s3 + $0xe48] sm:$0xff]
        %v6015 = vld [vmem:[%s3 + $0xe50] sm:$0xff]
        %v6016 = vld [vmem:[%s3 + $0xe58] sm:$0xff]
        %v6017 = vld [vmem:[%s3 + $0xe60] sm:$0xff]
        %v6018 = vld [vmem:[%s3 + $0xe68] sm:$0xff]
        %v6019 = vld [vmem:[%s3 + $0xe70] sm:$0xff]
        %v6020 = vld [vmem:[%s3 + $0xe78] sm:$0xff]
        %v6021 = vld [vmem:[%s4] sm:$0x1]
        %v6026 = vlaneseq
        %v6027 = vshrl.u32 %v6026, 7
        %v6028 = vsub.s32 0, %v6027
        %v6029 = vrot.slane %v5553, %v6028
        %v6030 = vlaneseq
        %v6031 = vshrl.u32 %v6030, 7
        %v6032 = vsub.s32 1, %v6031
        %v6033 = vrot.slane %v5553, %v6032
        %v6034 = vlaneseq
        %v6035 = vshrl.u32 %v6034, 7
        %v6036 = vsub.s32 2, %v6035
        %v6037 = vrot.slane %v5553, %v6036
        %v6038 = vlaneseq
        %v6039 = vshrl.u32 %v6038, 7
        %v6040 = vsub.s32 3, %v6039
        %v6041 = vrot.slane %v5553, %v6040
        %v6042 = vlaneseq
        %v6043 = vshrl.u32 %v6042, 7
        %v6044 = vsub.s32 4, %v6043
        %v6045 = vrot.slane %v5553, %v6044
        %v6046 = vlaneseq
        %v6047 = vshrl.u32 %v6046, 7
        %v6048 = vsub.s32 5, %v6047
        %v6049 = vrot.slane %v5553, %v6048
        %v6050 = vlaneseq
        %v6051 = vshrl.u32 %v6050, 7
        %v6052 = vsub.s32 6, %v6051
        %v6053 = vrot.slane %v5553, %v6052
        %v6054 = vlaneseq
        %v6055 = vshrl.u32 %v6054, 7
        %v6056 = vsub.s32 7, %v6055
        %v6057 = vrot.slane %v5553, %v6056
        %v6058 = vlaneseq
        %v6059 = vshrl.u32 %v6058, 7
        %v6060 = vsub.s32 0, %v6059
        %v6061 = vrot.slane %v5554, %v6060
        %v6062 = vlaneseq
        %v6063 = vshrl.u32 %v6062, 7
        %v6064 = vsub.s32 1, %v6063
        %v6065 = vrot.slane %v5554, %v6064
        %v6066 = vlaneseq
        %v6067 = vshrl.u32 %v6066, 7
        %v6068 = vsub.s32 2, %v6067
        %v6069 = vrot.slane %v5554, %v6068
        %v6070 = vlaneseq
        %v6071 = vshrl.u32 %v6070, 7
        %v6072 = vsub.s32 3, %v6071
        %v6073 = vrot.slane %v5554, %v6072
        %v6074 = vlaneseq
        %v6075 = vshrl.u32 %v6074, 7
        %v6076 = vsub.s32 4, %v6075
        %v6077 = vrot.slane %v5554, %v6076
        %v6078 = vlaneseq
        %v6079 = vshrl.u32 %v6078, 7
        %v6080 = vsub.s32 5, %v6079
        %v6081 = vrot.slane %v5554, %v6080
        %v6082 = vlaneseq
        %v6083 = vshrl.u32 %v6082, 7
        %v6084 = vsub.s32 6, %v6083
        %v6085 = vrot.slane %v5554, %v6084
        %v6086 = vlaneseq
        %v6087 = vshrl.u32 %v6086, 7
        %v6088 = vsub.s32 7, %v6087
        %v6089 = vrot.slane %v5554, %v6088
        %v6090 = vlaneseq
        %v6091 = vshrl.u32 %v6090, 7
        %v6092 = vsub.s32 0, %v6091
        %v6093 = vrot.slane %v5555, %v6092
        %v6094 = vlaneseq
        %v6095 = vshrl.u32 %v6094, 7
        %v6096 = vsub.s32 1, %v6095
        %v6097 = vrot.slane %v5555, %v6096
        %v6098 = vlaneseq
        %v6099 = vshrl.u32 %v6098, 7
        %v6100 = vsub.s32 2, %v6099
        %v6101 = vrot.slane %v5555, %v6100
        %v6102 = vlaneseq
        %v6103 = vshrl.u32 %v6102, 7
        %v6104 = vsub.s32 3, %v6103
        %v6105 = vrot.slane %v5555, %v6104
        %v6106 = vlaneseq
        %v6107 = vshrl.u32 %v6106, 7
        %v6108 = vsub.s32 4, %v6107
        %v6109 = vrot.slane %v5555, %v6108
        %v6110 = vlaneseq
        %v6111 = vshrl.u32 %v6110, 7
        %v6112 = vsub.s32 5, %v6111
        %v6113 = vrot.slane %v5555, %v6112
        %v6114 = vlaneseq
        %v6115 = vshrl.u32 %v6114, 7
        %v6116 = vsub.s32 6, %v6115
        %v6117 = vrot.slane %v5555, %v6116
        %v6118 = vlaneseq
        %v6119 = vshrl.u32 %v6118, 7
        %v6120 = vsub.s32 7, %v6119
        %v6121 = vrot.slane %v5555, %v6120
        %v6122 = vlaneseq
        %v6123 = vshrl.u32 %v6122, 7
        %v6124 = vsub.s32 0, %v6123
        %v6125 = vrot.slane %v5556, %v6124
        %v6126 = vlaneseq
        %v6127 = vshrl.u32 %v6126, 7
        %v6128 = vsub.s32 1, %v6127
        %v6129 = vrot.slane %v5556, %v6128
        %v6130 = vlaneseq
        %v6131 = vshrl.u32 %v6130, 7
        %v6132 = vsub.s32 2, %v6131
        %v6133 = vrot.slane %v5556, %v6132
        %v6134 = vlaneseq
        %v6135 = vshrl.u32 %v6134, 7
        %v6136 = vsub.s32 3, %v6135
        %v6137 = vrot.slane %v5556, %v6136
        %v6138 = vlaneseq
        %v6139 = vshrl.u32 %v6138, 7
        %v6140 = vsub.s32 4, %v6139
        %v6141 = vrot.slane %v5556, %v6140
        %6171 = vmatprep.subr.mxu0 0.0
        %6172 = vmatpush1.msra.mxu0 %v5572
        %6173 = vmatprep.subr.mxu0 0.0
        %6174 = vmatpush1.msra.mxu0 %v5571
        %6175 = vmatprep.subr.mxu0 0.0
        %6176 = vmatpush1.msra.mxu0 %v5570
        %6177 = vmatprep.subr.mxu0 0.0
        %6178 = vmatpush1.msra.mxu0 %v5569
        %6179 = vmatprep.subr.mxu0 0.0
        %6180 = vmatpush1.msra.mxu0 %v5568
        %6181 = vmatprep.subr.mxu0 0.0
        %6182 = vmatpush1.msra.mxu0 %v5567
        %6183 = vmatprep.subr.mxu0 0.0
        %6184 = vmatpush1.msra.mxu0 %v5566
        %6185 = vmatprep.subr.mxu0 0.0
        %6186 = vmatpush1.msra.mxu0 %v5565
        %6187 = vmatprep.subr.mxu0 0.0
        %6188 = vmatpush1.msra.mxu0 %v5564
        %6189 = vmatprep.subr.mxu0 0.0
        %6190 = vmatpush1.msra.mxu0 %v5563
        %6191 = vmatprep.subr.mxu0 0.0
        %6192 = vmatpush1.msra.mxu0 %v5562
        %6193 = vmatprep.subr.mxu0 0.0
        %6194 = vmatpush1.msra.mxu0 %v5561
        %6195 = vmatprep.subr.mxu0 0.0
        %6196 = vmatpush1.msra.mxu0 %v5560
        %6197 = vmatprep.subr.mxu0 0.0
        %6198 = vmatpush1.msra.mxu0 %v5559
        %6199 = vmatprep.subr.mxu0 0.0
        %6200 = vmatpush1.msra.mxu0 %v5558
        %6201 = vmatprep.subr.mxu0 0.0
        %6202 = vmatpush1.msra.mxu0 %v5557
        %6203 = vmatprep.subr.mxu0 0.0
        %6204 = vmatpush2.msra.mxu0 %v5588
        %6205 = vmatprep.subr.mxu0 0.0
        %6206 = vmatpush2.msra.mxu0 %v5587
        %6207 = vmatprep.subr.mxu0 0.0
        %6208 = vmatpush2.msra.mxu0 %v5586
        %6209 = vmatprep.subr.mxu0 0.0
        %6210 = vmatpush2.msra.mxu0 %v5585
        %6211 = vmatprep.subr.mxu0 0.0
        %6212 = vmatpush2.msra.mxu0 %v5584
        %6213 = vmatprep.subr.mxu0 0.0
        %6214 = vmatpush2.msra.mxu0 %v5583
        %6215 = vmatprep.subr.mxu0 0.0
        %6216 = vmatpush2.msra.mxu0 %v5582
        %6217 = vmatprep.subr.mxu0 0.0
        %6218 = vmatpush2.msra.mxu0 %v5581
        %6219 = vmatprep.subr.mxu0 0.0
        %6220 = vmatpush2.msra.mxu0 %v5580
        %6221 = vmatprep.subr.mxu0 0.0
        %6222 = vmatpush2.msra.mxu0 %v5579
        %6223 = vmatprep.subr.mxu0 0.0
        %6224 = vmatpush2.msra.mxu0 %v5578
        %6225 = vmatprep.subr.mxu0 0.0
        %6226 = vmatpush2.msra.mxu0 %v5577
        %6227 = vmatprep.subr.mxu0 0.0
        %6228 = vmatpush2.msra.mxu0 %v5576
        %6229 = vmatprep.subr.mxu0 0.0
        %6230 = vmatpush2.msra.mxu0 %v5575
        %6231 = vmatprep.subr.mxu0 0.0
        %6232 = vmatpush2.msra.mxu0 %v5574
        %6233 = vmatprep.subr.mxu0 0.0
        %6234 = vmatpush2.msra.mxu0 %v5573
        %6235 = vmatprep.mubr.f32.mxu0 %v6033
        %6236 = vmatmul.mubr.f32.gmra.mxu0 %v6029
        %v6237 = vpop.f32.mrf.mxu0
        %v6238 = vadd.f32 %v6021, %v6237
        %v6239 = vpop.f32.mrf.mxu0
        %6240 = vdwg.mxu0
        %6241 = vmatprep.subr.mxu0 0.0
        %6242 = vmatpush1.msra.mxu0 %v5604
        %6243 = vmatprep.subr.mxu0 0.0
        %6244 = vmatpush1.msra.mxu0 %v5603
        %6245 = vmatprep.subr.mxu0 0.0
        %6246 = vmatpush1.msra.mxu0 %v5602
        %6247 = vmatprep.subr.mxu0 0.0
        %6248 = vmatpush1.msra.mxu0 %v5601
        %6249 = vmatprep.subr.mxu0 0.0
        %6250 = vmatpush1.msra.mxu0 %v5600
        %6251 = vmatprep.subr.mxu0 0.0
        %6252 = vmatpush1.msra.mxu0 %v5599
        %6253 = vmatprep.subr.mxu0 0.0
        %6254 = vmatpush1.msra.mxu0 %v5598
        %6255 = vmatprep.subr.mxu0 0.0
        %6256 = vmatpush1.msra.mxu0 %v5597
        %6257 = vmatprep.subr.mxu0 0.0
        %6258 = vmatpush1.msra.mxu0 %v5596
        %6259 = vmatprep.subr.mxu0 0.0
        %6260 = vmatpush1.msra.mxu0 %v5595
        %6261 = vmatprep.subr.mxu0 0.0
        %6262 = vmatpush1.msra.mxu0 %v5594
        %6263 = vmatprep.subr.mxu0 0.0
        %6264 = vmatpush1.msra.mxu0 %v5593
        %6265 = vmatprep.subr.mxu0 0.0
        %6266 = vmatpush1.msra.mxu0 %v5592
        %6267 = vmatprep.subr.mxu0 0.0
        %6268 = vmatpush1.msra.mxu0 %v5591
        %6269 = vmatprep.subr.mxu0 0.0
        %6270 = vmatpush1.msra.mxu0 %v5590
        %6271 = vmatprep.subr.mxu0 0.0
        %6272 = vmatpush1.msra.mxu0 %v5589
        %6273 = vmatprep.subr.mxu0 0.0
        %6274 = vmatpush2.msra.mxu0 %v5620
        %6275 = vmatprep.subr.mxu0 0.0
        %6276 = vmatpush2.msra.mxu0 %v5619
        %6277 = vmatprep.subr.mxu0 0.0
        %6278 = vmatpush2.msra.mxu0 %v5618
        %6279 = vmatprep.subr.mxu0 0.0
        %6280 = vmatpush2.msra.mxu0 %v5617
        %6281 = vmatprep.subr.mxu0 0.0
        %6282 = vmatpush2.msra.mxu0 %v5616
        %6283 = vmatprep.subr.mxu0 0.0
        %6284 = vmatpush2.msra.mxu0 %v5615
        %6285 = vmatprep.subr.mxu0 0.0
        %6286 = vmatpush2.msra.mxu0 %v5614
        %6287 = vmatprep.subr.mxu0 0.0
        %6288 = vmatpush2.msra.mxu0 %v5613
        %6289 = vmatprep.subr.mxu0 0.0
        %6290 = vmatpush2.msra.mxu0 %v5612
        %6291 = vmatprep.subr.mxu0 0.0
        %6292 = vmatpush2.msra.mxu0 %v5611
        %6293 = vmatprep.subr.mxu0 0.0
        %6294 = vmatpush2.msra.mxu0 %v5610
        %6295 = vmatprep.subr.mxu0 0.0
        %6296 = vmatpush2.msra.mxu0 %v5609
        %6297 = vmatprep.subr.mxu0 0.0
        %6298 = vmatpush2.msra.mxu0 %v5608
        %6299 = vmatprep.subr.mxu0 0.0
        %6300 = vmatpush2.msra.mxu0 %v5607
        %6301 = vmatprep.subr.mxu0 0.0
        %6302 = vmatpush2.msra.mxu0 %v5606
        %6303 = vmatprep.subr.mxu0 0.0
        %6304 = vmatpush2.msra.mxu0 %v5605
        %6305 = vmatprep.mubr.f32.mxu0 %v6041
        %6306 = vmatmul.mubr.f32.gmra.mxu0 %v6037
        %v6307 = vpop.f32.mrf.mxu0
        %v6308 = vadd.f32 %v6238, %v6307
        %v6309 = vpop.f32.mrf.mxu0
        %6310 = vdwg.mxu0
        %6311 = vmatprep.subr.mxu0 0.0
        %6312 = vmatpush1.msra.mxu0 %v5636
        %6313 = vmatprep.subr.mxu0 0.0
        %6314 = vmatpush1.msra.mxu0 %v5635
        %6315 = vmatprep.subr.mxu0 0.0
        %6316 = vmatpush1.msra.mxu0 %v5634
        %6317 = vmatprep.subr.mxu0 0.0
        %6318 = vmatpush1.msra.mxu0 %v5633
        %6319 = vmatprep.subr.mxu0 0.0
        %6320 = vmatpush1.msra.mxu0 %v5632
        %6321 = vmatprep.subr.mxu0 0.0
        %6322 = vmatpush1.msra.mxu0 %v5631
        %6323 = vmatprep.subr.mxu0 0.0
        %6324 = vmatpush1.msra.mxu0 %v5630
        %6325 = vmatprep.subr.mxu0 0.0
        %6326 = vmatpush1.msra.mxu0 %v5629
        %6327 = vmatprep.subr.mxu0 0.0
        %6328 = vmatpush1.msra.mxu0 %v5628
        %6329 = vmatprep.subr.mxu0 0.0
        %6330 = vmatpush1.msra.mxu0 %v5627
        %6331 = vmatprep.subr.mxu0 0.0
        %6332 = vmatpush1.msra.mxu0 %v5626
        %6333 = vmatprep.subr.mxu0 0.0
        %6334 = vmatpush1.msra.mxu0 %v5625
        %6335 = vmatprep.subr.mxu0 0.0
        %6336 = vmatpush1.msra.mxu0 %v5624
        %6337 = vmatprep.subr.mxu0 0.0
        %6338 = vmatpush1.msra.mxu0 %v5623
        %6339 = vmatprep.subr.mxu0 0.0
        %6340 = vmatpush1.msra.mxu0 %v5622
        %6341 = vmatprep.subr.mxu0 0.0
        %6342 = vmatpush1.msra.mxu0 %v5621
        %6343 = vmatprep.subr.mxu0 0.0
        %6344 = vmatpush2.msra.mxu0 %v5652
        %6345 = vmatprep.subr.mxu0 0.0
        %6346 = vmatpush2.msra.mxu0 %v5651
        %6347 = vmatprep.subr.mxu0 0.0
        %6348 = vmatpush2.msra.mxu0 %v5650
        %6349 = vmatprep.subr.mxu0 0.0
        %6350 = vmatpush2.msra.mxu0 %v5649
        %6351 = vmatprep.subr.mxu0 0.0
        %6352 = vmatpush2.msra.mxu0 %v5648
        %6353 = vmatprep.subr.mxu0 0.0
        %6354 = vmatpush2.msra.mxu0 %v5647
        %6355 = vmatprep.subr.mxu0 0.0
        %6356 = vmatpush2.msra.mxu0 %v5646
        %6357 = vmatprep.subr.mxu0 0.0
        %6358 = vmatpush2.msra.mxu0 %v5645
        %6359 = vmatprep.subr.mxu0 0.0
        %6360 = vmatpush2.msra.mxu0 %v5644
        %6361 = vmatprep.subr.mxu0 0.0
        %6362 = vmatpush2.msra.mxu0 %v5643
        %6363 = vmatprep.subr.mxu0 0.0
        %6364 = vmatpush2.msra.mxu0 %v5642
        %6365 = vmatprep.subr.mxu0 0.0
        %6366 = vmatpush2.msra.mxu0 %v5641
        %6367 = vmatprep.subr.mxu0 0.0
        %6368 = vmatpush2.msra.mxu0 %v5640
        %6369 = vmatprep.subr.mxu0 0.0
        %6370 = vmatpush2.msra.mxu0 %v5639
        %6371 = vmatprep.subr.mxu0 0.0
        %6372 = vmatpush2.msra.mxu0 %v5638
        %6373 = vmatprep.subr.mxu0 0.0
        %6374 = vmatpush2.msra.mxu0 %v5637
        %6375 = vmatprep.mubr.f32.mxu0 %v6049
        %6376 = vmatmul.mubr.f32.gmra.mxu0 %v6045
        %v6377 = vpop.f32.mrf.mxu0
        %v6378 = vadd.f32 %v6308, %v6377
        %v6379 = vpop.f32.mrf.mxu0
        %6380 = vdwg.mxu0
        %6381 = vmatprep.subr.mxu0 0.0
        %6382 = vmatpush1.msra.mxu0 %v5668
        %6383 = vmatprep.subr.mxu0 0.0
        %6384 = vmatpush1.msra.mxu0 %v5667
        %6385 = vmatprep.subr.mxu0 0.0
        %6386 = vmatpush1.msra.mxu0 %v5666
        %6387 = vmatprep.subr.mxu0 0.0
        %6388 = vmatpush1.msra.mxu0 %v5665
        %6389 = vmatprep.subr.mxu0 0.0
        %6390 = vmatpush1.msra.mxu0 %v5664
        %6391 = vmatprep.subr.mxu0 0.0
        %6392 = vmatpush1.msra.mxu0 %v5663
        %6393 = vmatprep.subr.mxu0 0.0
        %6394 = vmatpush1.msra.mxu0 %v5662
        %6395 = vmatprep.subr.mxu0 0.0
        %6396 = vmatpush1.msra.mxu0 %v5661
        %6397 = vmatprep.subr.mxu0 0.0
        %6398 = vmatpush1.msra.mxu0 %v5660
        %6399 = vmatprep.subr.mxu0 0.0
        %6400 = vmatpush1.msra.mxu0 %v5659
        %6401 = vmatprep.subr.mxu0 0.0
        %6402 = vmatpush1.msra.mxu0 %v5658
        %6403 = vmatprep.subr.mxu0 0.0
        %6404 = vmatpush1.msra.mxu0 %v5657
        %6405 = vmatprep.subr.mxu0 0.0
        %6406 = vmatpush1.msra.mxu0 %v5656
        %6407 = vmatprep.subr.mxu0 0.0
        %6408 = vmatpush1.msra.mxu0 %v5655
        %6409 = vmatprep.subr.mxu0 0.0
        %6410 = vmatpush1.msra.mxu0 %v5654
        %6411 = vmatprep.subr.mxu0 0.0
        %6412 = vmatpush1.msra.mxu0 %v5653
        %6413 = vmatprep.subr.mxu0 0.0
        %6414 = vmatpush2.msra.mxu0 %v5684
        %6415 = vmatprep.subr.mxu0 0.0
        %6416 = vmatpush2.msra.mxu0 %v5683
        %6417 = vmatprep.subr.mxu0 0.0
        %6418 = vmatpush2.msra.mxu0 %v5682
        %6419 = vmatprep.subr.mxu0 0.0
        %6420 = vmatpush2.msra.mxu0 %v5681
        %6421 = vmatprep.subr.mxu0 0.0
        %6422 = vmatpush2.msra.mxu0 %v5680
        %6423 = vmatprep.subr.mxu0 0.0
        %6424 = vmatpush2.msra.mxu0 %v5679
        %6425 = vmatprep.subr.mxu0 0.0
        %6426 = vmatpush2.msra.mxu0 %v5678
        %6427 = vmatprep.subr.mxu0 0.0
        %6428 = vmatpush2.msra.mxu0 %v5677
        %6429 = vmatprep.subr.mxu0 0.0
        %6430 = vmatpush2.msra.mxu0 %v5676
        %6431 = vmatprep.subr.mxu0 0.0
        %6432 = vmatpush2.msra.mxu0 %v5675
        %6433 = vmatprep.subr.mxu0 0.0
        %6434 = vmatpush2.msra.mxu0 %v5674
        %6435 = vmatprep.subr.mxu0 0.0
        %6436 = vmatpush2.msra.mxu0 %v5673
        %6437 = vmatprep.subr.mxu0 0.0
        %6438 = vmatpush2.msra.mxu0 %v5672
        %6439 = vmatprep.subr.mxu0 0.0
        %6440 = vmatpush2.msra.mxu0 %v5671
        %6441 = vmatprep.subr.mxu0 0.0
        %6442 = vmatpush2.msra.mxu0 %v5670
        %6443 = vmatprep.subr.mxu0 0.0
        %6444 = vmatpush2.msra.mxu0 %v5669
        %6445 = vmatprep.mubr.f32.mxu0 %v6057
        %6446 = vmatmul.mubr.f32.gmra.mxu0 %v6053
        %v6447 = vpop.f32.mrf.mxu0
        %v6448 = vadd.f32 %v6378, %v6447
        %v6449 = vpop.f32.mrf.mxu0
        %6450 = vdwg.mxu0
        %6451 = vmatprep.subr.mxu0 0.0
        %6452 = vmatpush1.msra.mxu0 %v5700
        %6453 = vmatprep.subr.mxu0 0.0
        %6454 = vmatpush1.msra.mxu0 %v5699
        %6455 = vmatprep.subr.mxu0 0.0
        %6456 = vmatpush1.msra.mxu0 %v5698
        %6457 = vmatprep.subr.mxu0 0.0
        %6458 = vmatpush1.msra.mxu0 %v5697
        %6459 = vmatprep.subr.mxu0 0.0
        %6460 = vmatpush1.msra.mxu0 %v5696
        %6461 = vmatprep.subr.mxu0 0.0
        %6462 = vmatpush1.msra.mxu0 %v5695
        %6463 = vmatprep.subr.mxu0 0.0
        %6464 = vmatpush1.msra.mxu0 %v5694
        %6465 = vmatprep.subr.mxu0 0.0
        %6466 = vmatpush1.msra.mxu0 %v5693
        %6467 = vmatprep.subr.mxu0 0.0
        %6468 = vmatpush1.msra.mxu0 %v5692
        %6469 = vmatprep.subr.mxu0 0.0
        %6470 = vmatpush1.msra.mxu0 %v5691
        %6471 = vmatprep.subr.mxu0 0.0
        %6472 = vmatpush1.msra.mxu0 %v5690
        %6473 = vmatprep.subr.mxu0 0.0
        %6474 = vmatpush1.msra.mxu0 %v5689
        %6475 = vmatprep.subr.mxu0 0.0
        %6476 = vmatpush1.msra.mxu0 %v5688
        %6477 = vmatprep.subr.mxu0 0.0
        %6478 = vmatpush1.msra.mxu0 %v5687
        %6479 = vmatprep.subr.mxu0 0.0
        %6480 = vmatpush1.msra.mxu0 %v5686
        %6481 = vmatprep.subr.mxu0 0.0
        %6482 = vmatpush1.msra.mxu0 %v5685
        %6483 = vmatprep.subr.mxu0 0.0
        %6484 = vmatpush2.msra.mxu0 %v5716
        %6485 = vmatprep.subr.mxu0 0.0
        %6486 = vmatpush2.msra.mxu0 %v5715
        %6487 = vmatprep.subr.mxu0 0.0
        %6488 = vmatpush2.msra.mxu0 %v5714
        %6489 = vmatprep.subr.mxu0 0.0
        %6490 = vmatpush2.msra.mxu0 %v5713
        %6491 = vmatprep.subr.mxu0 0.0
        %6492 = vmatpush2.msra.mxu0 %v5712
        %6493 = vmatprep.subr.mxu0 0.0
        %6494 = vmatpush2.msra.mxu0 %v5711
        %6495 = vmatprep.subr.mxu0 0.0
        %6496 = vmatpush2.msra.mxu0 %v5710
        %6497 = vmatprep.subr.mxu0 0.0
        %6498 = vmatpush2.msra.mxu0 %v5709
        %6499 = vmatprep.subr.mxu0 0.0
        %6500 = vmatpush2.msra.mxu0 %v5708
        %6501 = vmatprep.subr.mxu0 0.0
        %6502 = vmatpush2.msra.mxu0 %v5707
        %6503 = vmatprep.subr.mxu0 0.0
        %6504 = vmatpush2.msra.mxu0 %v5706
        %6505 = vmatprep.subr.mxu0 0.0
        %6506 = vmatpush2.msra.mxu0 %v5705
        %6507 = vmatprep.subr.mxu0 0.0
        %6508 = vmatpush2.msra.mxu0 %v5704
        %6509 = vmatprep.subr.mxu0 0.0
        %6510 = vmatpush2.msra.mxu0 %v5703
        %6511 = vmatprep.subr.mxu0 0.0
        %6512 = vmatpush2.msra.mxu0 %v5702
        %6513 = vmatprep.subr.mxu0 0.0
        %6514 = vmatpush2.msra.mxu0 %v5701
        %6515 = vmatprep.mubr.f32.mxu0 %v6065
        %6516 = vmatmul.mubr.f32.gmra.mxu0 %v6061
        %v6517 = vpop.f32.mrf.mxu0
        %v6518 = vadd.f32 %v6448, %v6517
        %v6519 = vpop.f32.mrf.mxu0
        %6520 = vdwg.mxu0
        %6521 = vmatprep.subr.mxu0 0.0
        %6522 = vmatpush1.msra.mxu0 %v5732
        %6523 = vmatprep.subr.mxu0 0.0
        %6524 = vmatpush1.msra.mxu0 %v5731
        %6525 = vmatprep.subr.mxu0 0.0
        %6526 = vmatpush1.msra.mxu0 %v5730
        %6527 = vmatprep.subr.mxu0 0.0
        %6528 = vmatpush1.msra.mxu0 %v5729
        %6529 = vmatprep.subr.mxu0 0.0
        %6530 = vmatpush1.msra.mxu0 %v5728
        %6531 = vmatprep.subr.mxu0 0.0
        %6532 = vmatpush1.msra.mxu0 %v5727
        %6533 = vmatprep.subr.mxu0 0.0
        %6534 = vmatpush1.msra.mxu0 %v5726
        %6535 = vmatprep.subr.mxu0 0.0
        %6536 = vmatpush1.msra.mxu0 %v5725
        %6537 = vmatprep.subr.mxu0 0.0
        %6538 = vmatpush1.msra.mxu0 %v5724
        %6539 = vmatprep.subr.mxu0 0.0
        %6540 = vmatpush1.msra.mxu0 %v5723
        %6541 = vmatprep.subr.mxu0 0.0
        %6542 = vmatpush1.msra.mxu0 %v5722
        %6543 = vmatprep.subr.mxu0 0.0
        %6544 = vmatpush1.msra.mxu0 %v5721
        %6545 = vmatprep.subr.mxu0 0.0
        %6546 = vmatpush1.msra.mxu0 %v5720
        %6547 = vmatprep.subr.mxu0 0.0
        %6548 = vmatpush1.msra.mxu0 %v5719
        %6549 = vmatprep.subr.mxu0 0.0
        %6550 = vmatpush1.msra.mxu0 %v5718
        %6551 = vmatprep.subr.mxu0 0.0
        %6552 = vmatpush1.msra.mxu0 %v5717
        %6553 = vmatprep.subr.mxu0 0.0
        %6554 = vmatpush2.msra.mxu0 %v5748
        %6555 = vmatprep.subr.mxu0 0.0
        %6556 = vmatpush2.msra.mxu0 %v5747
        %6557 = vmatprep.subr.mxu0 0.0
        %6558 = vmatpush2.msra.mxu0 %v5746
        %6559 = vmatprep.subr.mxu0 0.0
        %6560 = vmatpush2.msra.mxu0 %v5745
        %6561 = vmatprep.subr.mxu0 0.0
        %6562 = vmatpush2.msra.mxu0 %v5744
        %6563 = vmatprep.subr.mxu0 0.0
        %6564 = vmatpush2.msra.mxu0 %v5743
        %6565 = vmatprep.subr.mxu0 0.0
        %6566 = vmatpush2.msra.mxu0 %v5742
        %6567 = vmatprep.subr.mxu0 0.0
        %6568 = vmatpush2.msra.mxu0 %v5741
        %6569 = vmatprep.subr.mxu0 0.0
        %6570 = vmatpush2.msra.mxu0 %v5740
        %6571 = vmatprep.subr.mxu0 0.0
        %6572 = vmatpush2.msra.mxu0 %v5739
        %6573 = vmatprep.subr.mxu0 0.0
        %6574 = vmatpush2.msra.mxu0 %v5738
        %6575 = vmatprep.subr.mxu0 0.0
        %6576 = vmatpush2.msra.mxu0 %v5737
        %6577 = vmatprep.subr.mxu0 0.0
        %6578 = vmatpush2.msra.mxu0 %v5736
        %6579 = vmatprep.subr.mxu0 0.0
        %6580 = vmatpush2.msra.mxu0 %v5735
        %6581 = vmatprep.subr.mxu0 0.0
        %6582 = vmatpush2.msra.mxu0 %v5734
        %6583 = vmatprep.subr.mxu0 0.0
        %6584 = vmatpush2.msra.mxu0 %v5733
        %6585 = vmatprep.mubr.f32.mxu0 %v6073
        %6586 = vmatmul.mubr.f32.gmra.mxu0 %v6069
        %v6587 = vpop.f32.mrf.mxu0
        %v6588 = vadd.f32 %v6518, %v6587
        %v6589 = vpop.f32.mrf.mxu0
        %6590 = vdwg.mxu0
        %6591 = vmatprep.subr.mxu0 0.0
        %6592 = vmatpush1.msra.mxu0 %v5764
        %6593 = vmatprep.subr.mxu0 0.0
        %6594 = vmatpush1.msra.mxu0 %v5763
        %6595 = vmatprep.subr.mxu0 0.0
        %6596 = vmatpush1.msra.mxu0 %v5762
        %6597 = vmatprep.subr.mxu0 0.0
        %6598 = vmatpush1.msra.mxu0 %v5761
        %6599 = vmatprep.subr.mxu0 0.0
        %6600 = vmatpush1.msra.mxu0 %v5760
        %6601 = vmatprep.subr.mxu0 0.0
        %6602 = vmatpush1.msra.mxu0 %v5759
        %6603 = vmatprep.subr.mxu0 0.0
        %6604 = vmatpush1.msra.mxu0 %v5758
        %6605 = vmatprep.subr.mxu0 0.0
        %6606 = vmatpush1.msra.mxu0 %v5757
        %6607 = vmatprep.subr.mxu0 0.0
        %6608 = vmatpush1.msra.mxu0 %v5756
        %6609 = vmatprep.subr.mxu0 0.0
        %6610 = vmatpush1.msra.mxu0 %v5755
        %6611 = vmatprep.subr.mxu0 0.0
        %6612 = vmatpush1.msra.mxu0 %v5754
        %6613 = vmatprep.subr.mxu0 0.0
        %6614 = vmatpush1.msra.mxu0 %v5753
        %6615 = vmatprep.subr.mxu0 0.0
        %6616 = vmatpush1.msra.mxu0 %v5752
        %6617 = vmatprep.subr.mxu0 0.0
        %6618 = vmatpush1.msra.mxu0 %v5751
        %6619 = vmatprep.subr.mxu0 0.0
        %6620 = vmatpush1.msra.mxu0 %v5750
        %6621 = vmatprep.subr.mxu0 0.0
        %6622 = vmatpush1.msra.mxu0 %v5749
        %6623 = vmatprep.subr.mxu0 0.0
        %6624 = vmatpush2.msra.mxu0 %v5780
        %6625 = vmatprep.subr.mxu0 0.0
        %6626 = vmatpush2.msra.mxu0 %v5779
        %6627 = vmatprep.subr.mxu0 0.0
        %6628 = vmatpush2.msra.mxu0 %v5778
        %6629 = vmatprep.subr.mxu0 0.0
        %6630 = vmatpush2.msra.mxu0 %v5777
        %6631 = vmatprep.subr.mxu0 0.0
        %6632 = vmatpush2.msra.mxu0 %v5776
        %6633 = vmatprep.subr.mxu0 0.0
        %6634 = vmatpush2.msra.mxu0 %v5775
        %6635 = vmatprep.subr.mxu0 0.0
        %6636 = vmatpush2.msra.mxu0 %v5774
        %6637 = vmatprep.subr.mxu0 0.0
        %6638 = vmatpush2.msra.mxu0 %v5773
        %6639 = vmatprep.subr.mxu0 0.0
        %6640 = vmatpush2.msra.mxu0 %v5772
        %6641 = vmatprep.subr.mxu0 0.0
        %6642 = vmatpush2.msra.mxu0 %v5771
        %6643 = vmatprep.subr.mxu0 0.0
        %6644 = vmatpush2.msra.mxu0 %v5770
        %6645 = vmatprep.subr.mxu0 0.0
        %6646 = vmatpush2.msra.mxu0 %v5769
        %6647 = vmatprep.subr.mxu0 0.0
        %6648 = vmatpush2.msra.mxu0 %v5768
        %6649 = vmatprep.subr.mxu0 0.0
        %6650 = vmatpush2.msra.mxu0 %v5767
        %6651 = vmatprep.subr.mxu0 0.0
        %6652 = vmatpush2.msra.mxu0 %v5766
        %6653 = vmatprep.subr.mxu0 0.0
        %6654 = vmatpush2.msra.mxu0 %v5765
        %6655 = vmatprep.mubr.f32.mxu0 %v6081
        %6656 = vmatmul.mubr.f32.gmra.mxu0 %v6077
        %v6657 = vpop.f32.mrf.mxu0
        %v6658 = vadd.f32 %v6588, %v6657
        %v6659 = vpop.f32.mrf.mxu0
        %6660 = vdwg.mxu0
        %6661 = vmatprep.subr.mxu0 0.0
        %6662 = vmatpush1.msra.mxu0 %v5796
        %6663 = vmatprep.subr.mxu0 0.0
        %6664 = vmatpush1.msra.mxu0 %v5795
        %6665 = vmatprep.subr.mxu0 0.0
        %6666 = vmatpush1.msra.mxu0 %v5794
        %6667 = vmatprep.subr.mxu0 0.0
        %6668 = vmatpush1.msra.mxu0 %v5793
        %6669 = vmatprep.subr.mxu0 0.0
        %6670 = vmatpush1.msra.mxu0 %v5792
        %6671 = vmatprep.subr.mxu0 0.0
        %6672 = vmatpush1.msra.mxu0 %v5791
        %6673 = vmatprep.subr.mxu0 0.0
        %6674 = vmatpush1.msra.mxu0 %v5790
        %6675 = vmatprep.subr.mxu0 0.0
        %6676 = vmatpush1.msra.mxu0 %v5789
        %6677 = vmatprep.subr.mxu0 0.0
        %6678 = vmatpush1.msra.mxu0 %v5788
        %6679 = vmatprep.subr.mxu0 0.0
        %6680 = vmatpush1.msra.mxu0 %v5787
        %6681 = vmatprep.subr.mxu0 0.0
        %6682 = vmatpush1.msra.mxu0 %v5786
        %6683 = vmatprep.subr.mxu0 0.0
        %6684 = vmatpush1.msra.mxu0 %v5785
        %6685 = vmatprep.subr.mxu0 0.0
        %6686 = vmatpush1.msra.mxu0 %v5784
        %6687 = vmatprep.subr.mxu0 0.0
        %6688 = vmatpush1.msra.mxu0 %v5783
        %6689 = vmatprep.subr.mxu0 0.0
        %6690 = vmatpush1.msra.mxu0 %v5782
        %6691 = vmatprep.subr.mxu0 0.0
        %6692 = vmatpush1.msra.mxu0 %v5781
        %6693 = vmatprep.subr.mxu0 0.0
        %6694 = vmatpush2.msra.mxu0 %v5812
        %6695 = vmatprep.subr.mxu0 0.0
        %6696 = vmatpush2.msra.mxu0 %v5811
        %6697 = vmatprep.subr.mxu0 0.0
        %6698 = vmatpush2.msra.mxu0 %v5810
        %6699 = vmatprep.subr.mxu0 0.0
        %6700 = vmatpush2.msra.mxu0 %v5809
        %6701 = vmatprep.subr.mxu0 0.0
        %6702 = vmatpush2.msra.mxu0 %v5808
        %6703 = vmatprep.subr.mxu0 0.0
        %6704 = vmatpush2.msra.mxu0 %v5807
        %6705 = vmatprep.subr.mxu0 0.0
        %6706 = vmatpush2.msra.mxu0 %v5806
        %6707 = vmatprep.subr.mxu0 0.0
        %6708 = vmatpush2.msra.mxu0 %v5805
        %6709 = vmatprep.subr.mxu0 0.0
        %6710 = vmatpush2.msra.mxu0 %v5804
        %6711 = vmatprep.subr.mxu0 0.0
        %6712 = vmatpush2.msra.mxu0 %v5803
        %6713 = vmatprep.subr.mxu0 0.0
        %6714 = vmatpush2.msra.mxu0 %v5802
        %6715 = vmatprep.subr.mxu0 0.0
        %6716 = vmatpush2.msra.mxu0 %v5801
        %6717 = vmatprep.subr.mxu0 0.0
        %6718 = vmatpush2.msra.mxu0 %v5800
        %6719 = vmatprep.subr.mxu0 0.0
        %6720 = vmatpush2.msra.mxu0 %v5799
        %6721 = vmatprep.subr.mxu0 0.0
        %6722 = vmatpush2.msra.mxu0 %v5798
        %6723 = vmatprep.subr.mxu0 0.0
        %6724 = vmatpush2.msra.mxu0 %v5797
        %6725 = vmatprep.mubr.f32.mxu0 %v6089
        %6726 = vmatmul.mubr.f32.gmra.mxu0 %v6085
        %v6727 = vpop.f32.mrf.mxu0
        %v6728 = vadd.f32 %v6658, %v6727
        %v6729 = vpop.f32.mrf.mxu0
        %6730 = vdwg.mxu0
        %6731 = vmatprep.subr.mxu0 0.0
        %6732 = vmatpush1.msra.mxu0 %v5828
        %6733 = vmatprep.subr.mxu0 0.0
        %6734 = vmatpush1.msra.mxu0 %v5827
        %6735 = vmatprep.subr.mxu0 0.0
        %6736 = vmatpush1.msra.mxu0 %v5826
        %6737 = vmatprep.subr.mxu0 0.0
        %6738 = vmatpush1.msra.mxu0 %v5825
        %6739 = vmatprep.subr.mxu0 0.0
        %6740 = vmatpush1.msra.mxu0 %v5824
        %6741 = vmatprep.subr.mxu0 0.0
        %6742 = vmatpush1.msra.mxu0 %v5823
        %6743 = vmatprep.subr.mxu0 0.0
        %6744 = vmatpush1.msra.mxu0 %v5822
        %6745 = vmatprep.subr.mxu0 0.0
        %6746 = vmatpush1.msra.mxu0 %v5821
        %6747 = vmatprep.subr.mxu0 0.0
        %6748 = vmatpush1.msra.mxu0 %v5820
        %6749 = vmatprep.subr.mxu0 0.0
        %6750 = vmatpush1.msra.mxu0 %v5819
        %6751 = vmatprep.subr.mxu0 0.0
        %6752 = vmatpush1.msra.mxu0 %v5818
        %6753 = vmatprep.subr.mxu0 0.0
        %6754 = vmatpush1.msra.mxu0 %v5817
        %6755 = vmatprep.subr.mxu0 0.0
        %6756 = vmatpush1.msra.mxu0 %v5816
        %6757 = vmatprep.subr.mxu0 0.0
        %6758 = vmatpush1.msra.mxu0 %v5815
        %6759 = vmatprep.subr.mxu0 0.0
        %6760 = vmatpush1.msra.mxu0 %v5814
        %6761 = vmatprep.subr.mxu0 0.0
        %6762 = vmatpush1.msra.mxu0 %v5813
        %6763 = vmatprep.subr.mxu0 0.0
        %6764 = vmatpush2.msra.mxu0 %v5844
        %6765 = vmatprep.subr.mxu0 0.0
        %6766 = vmatpush2.msra.mxu0 %v5843
        %6767 = vmatprep.subr.mxu0 0.0
        %6768 = vmatpush2.msra.mxu0 %v5842
        %6769 = vmatprep.subr.mxu0 0.0
        %6770 = vmatpush2.msra.mxu0 %v5841
        %6771 = vmatprep.subr.mxu0 0.0
        %6772 = vmatpush2.msra.mxu0 %v5840
        %6773 = vmatprep.subr.mxu0 0.0
        %6774 = vmatpush2.msra.mxu0 %v5839
        %6775 = vmatprep.subr.mxu0 0.0
        %6776 = vmatpush2.msra.mxu0 %v5838
        %6777 = vmatprep.subr.mxu0 0.0
        %6778 = vmatpush2.msra.mxu0 %v5837
        %6779 = vmatprep.subr.mxu0 0.0
        %6780 = vmatpush2.msra.mxu0 %v5836
        %6781 = vmatprep.subr.mxu0 0.0
        %6782 = vmatpush2.msra.mxu0 %v5835
        %6783 = vmatprep.subr.mxu0 0.0
        %6784 = vmatpush2.msra.mxu0 %v5834
        %6785 = vmatprep.subr.mxu0 0.0
        %6786 = vmatpush2.msra.mxu0 %v5833
        %6787 = vmatprep.subr.mxu0 0.0
        %6788 = vmatpush2.msra.mxu0 %v5832
        %6789 = vmatprep.subr.mxu0 0.0
        %6790 = vmatpush2.msra.mxu0 %v5831
        %6791 = vmatprep.subr.mxu0 0.0
        %6792 = vmatpush2.msra.mxu0 %v5830
        %6793 = vmatprep.subr.mxu0 0.0
        %6794 = vmatpush2.msra.mxu0 %v5829
        %6795 = vmatprep.mubr.f32.mxu0 %v6097
        %6796 = vmatmul.mubr.f32.gmra.mxu0 %v6093
        %v6797 = vpop.f32.mrf.mxu0
        %v6798 = vadd.f32 %v6728, %v6797
        %v6799 = vpop.f32.mrf.mxu0
        %6800 = vdwg.mxu0
        %6801 = vmatprep.subr.mxu0 0.0
        %6802 = vmatpush1.msra.mxu0 %v5860
        %6803 = vmatprep.subr.mxu0 0.0
        %6804 = vmatpush1.msra.mxu0 %v5859
        %6805 = vmatprep.subr.mxu0 0.0
        %6806 = vmatpush1.msra.mxu0 %v5858
        %6807 = vmatprep.subr.mxu0 0.0
        %6808 = vmatpush1.msra.mxu0 %v5857
        %6809 = vmatprep.subr.mxu0 0.0
        %6810 = vmatpush1.msra.mxu0 %v5856
        %6811 = vmatprep.subr.mxu0 0.0
        %6812 = vmatpush1.msra.mxu0 %v5855
        %6813 = vmatprep.subr.mxu0 0.0
        %6814 = vmatpush1.msra.mxu0 %v5854
        %6815 = vmatprep.subr.mxu0 0.0
        %6816 = vmatpush1.msra.mxu0 %v5853
        %6817 = vmatprep.subr.mxu0 0.0
        %6818 = vmatpush1.msra.mxu0 %v5852
        %6819 = vmatprep.subr.mxu0 0.0
        %6820 = vmatpush1.msra.mxu0 %v5851
        %6821 = vmatprep.subr.mxu0 0.0
        %6822 = vmatpush1.msra.mxu0 %v5850
        %6823 = vmatprep.subr.mxu0 0.0
        %6824 = vmatpush1.msra.mxu0 %v5849
        %6825 = vmatprep.subr.mxu0 0.0
        %6826 = vmatpush1.msra.mxu0 %v5848
        %6827 = vmatprep.subr.mxu0 0.0
        %6828 = vmatpush1.msra.mxu0 %v5847
        %6829 = vmatprep.subr.mxu0 0.0
        %6830 = vmatpush1.msra.mxu0 %v5846
        %6831 = vmatprep.subr.mxu0 0.0
        %6832 = vmatpush1.msra.mxu0 %v5845
        %6833 = vmatprep.subr.mxu0 0.0
        %6834 = vmatpush2.msra.mxu0 %v5876
        %6835 = vmatprep.subr.mxu0 0.0
        %6836 = vmatpush2.msra.mxu0 %v5875
        %6837 = vmatprep.subr.mxu0 0.0
        %6838 = vmatpush2.msra.mxu0 %v5874
        %6839 = vmatprep.subr.mxu0 0.0
        %6840 = vmatpush2.msra.mxu0 %v5873
        %6841 = vmatprep.subr.mxu0 0.0
        %6842 = vmatpush2.msra.mxu0 %v5872
        %6843 = vmatprep.subr.mxu0 0.0
        %6844 = vmatpush2.msra.mxu0 %v5871
        %6845 = vmatprep.subr.mxu0 0.0
        %6846 = vmatpush2.msra.mxu0 %v5870
        %6847 = vmatprep.subr.mxu0 0.0
        %6848 = vmatpush2.msra.mxu0 %v5869
        %6849 = vmatprep.subr.mxu0 0.0
        %6850 = vmatpush2.msra.mxu0 %v5868
        %6851 = vmatprep.subr.mxu0 0.0
        %6852 = vmatpush2.msra.mxu0 %v5867
        %6853 = vmatprep.subr.mxu0 0.0
        %6854 = vmatpush2.msra.mxu0 %v5866
        %6855 = vmatprep.subr.mxu0 0.0
        %6856 = vmatpush2.msra.mxu0 %v5865
        %6857 = vmatprep.subr.mxu0 0.0
        %6858 = vmatpush2.msra.mxu0 %v5864
        %6859 = vmatprep.subr.mxu0 0.0
        %6860 = vmatpush2.msra.mxu0 %v5863
        %6861 = vmatprep.subr.mxu0 0.0
        %6862 = vmatpush2.msra.mxu0 %v5862
        %6863 = vmatprep.subr.mxu0 0.0
        %6864 = vmatpush2.msra.mxu0 %v5861
        %6865 = vmatprep.mubr.f32.mxu0 %v6105
        %6866 = vmatmul.mubr.f32.gmra.mxu0 %v6101
        %v6867 = vpop.f32.mrf.mxu0
        %v6868 = vadd.f32 %v6798, %v6867
        %v6869 = vpop.f32.mrf.mxu0
        %6870 = vdwg.mxu0
        %6871 = vmatprep.subr.mxu0 0.0
        %6872 = vmatpush1.msra.mxu0 %v5892
        %6873 = vmatprep.subr.mxu0 0.0
        %6874 = vmatpush1.msra.mxu0 %v5891
        %6875 = vmatprep.subr.mxu0 0.0
        %6876 = vmatpush1.msra.mxu0 %v5890
        %6877 = vmatprep.subr.mxu0 0.0
        %6878 = vmatpush1.msra.mxu0 %v5889
        %6879 = vmatprep.subr.mxu0 0.0
        %6880 = vmatpush1.msra.mxu0 %v5888
        %6881 = vmatprep.subr.mxu0 0.0
        %6882 = vmatpush1.msra.mxu0 %v5887
        %6883 = vmatprep.subr.mxu0 0.0
        %6884 = vmatpush1.msra.mxu0 %v5886
        %6885 = vmatprep.subr.mxu0 0.0
        %6886 = vmatpush1.msra.mxu0 %v5885
        %6887 = vmatprep.subr.mxu0 0.0
        %6888 = vmatpush1.msra.mxu0 %v5884
        %6889 = vmatprep.subr.mxu0 0.0
        %6890 = vmatpush1.msra.mxu0 %v5883
        %6891 = vmatprep.subr.mxu0 0.0
        %6892 = vmatpush1.msra.mxu0 %v5882
        %6893 = vmatprep.subr.mxu0 0.0
        %6894 = vmatpush1.msra.mxu0 %v5881
        %6895 = vmatprep.subr.mxu0 0.0
        %6896 = vmatpush1.msra.mxu0 %v5880
        %6897 = vmatprep.subr.mxu0 0.0
        %6898 = vmatpush1.msra.mxu0 %v5879
        %6899 = vmatprep.subr.mxu0 0.0
        %6900 = vmatpush1.msra.mxu0 %v5878
        %6901 = vmatprep.subr.mxu0 0.0
        %6902 = vmatpush1.msra.mxu0 %v5877
        %6903 = vmatprep.subr.mxu0 0.0
        %6904 = vmatpush2.msra.mxu0 %v5908
        %6905 = vmatprep.subr.mxu0 0.0
        %6906 = vmatpush2.msra.mxu0 %v5907
        %6907 = vmatprep.subr.mxu0 0.0
        %6908 = vmatpush2.msra.mxu0 %v5906
        %6909 = vmatprep.subr.mxu0 0.0
        %6910 = vmatpush2.msra.mxu0 %v5905
        %6911 = vmatprep.subr.mxu0 0.0
        %6912 = vmatpush2.msra.mxu0 %v5904
        %6913 = vmatprep.subr.mxu0 0.0
        %6914 = vmatpush2.msra.mxu0 %v5903
        %6915 = vmatprep.subr.mxu0 0.0
        %6916 = vmatpush2.msra.mxu0 %v5902
        %6917 = vmatprep.subr.mxu0 0.0
        %6918 = vmatpush2.msra.mxu0 %v5901
        %6919 = vmatprep.subr.mxu0 0.0
        %6920 = vmatpush2.msra.mxu0 %v5900
        %6921 = vmatprep.subr.mxu0 0.0
        %6922 = vmatpush2.msra.mxu0 %v5899
        %6923 = vmatprep.subr.mxu0 0.0
        %6924 = vmatpush2.msra.mxu0 %v5898
        %6925 = vmatprep.subr.mxu0 0.0
        %6926 = vmatpush2.msra.mxu0 %v5897
        %6927 = vmatprep.subr.mxu0 0.0
        %6928 = vmatpush2.msra.mxu0 %v5896
        %6929 = vmatprep.subr.mxu0 0.0
        %6930 = vmatpush2.msra.mxu0 %v5895
        %6931 = vmatprep.subr.mxu0 0.0
        %6932 = vmatpush2.msra.mxu0 %v5894
        %6933 = vmatprep.subr.mxu0 0.0
        %6934 = vmatpush2.msra.mxu0 %v5893
        %6935 = vmatprep.mubr.f32.mxu0 %v6113
        %6936 = vmatmul.mubr.f32.gmra.mxu0 %v6109
        %v6937 = vpop.f32.mrf.mxu0
        %v6938 = vadd.f32 %v6868, %v6937
        %v6939 = vpop.f32.mrf.mxu0
        %6940 = vdwg.mxu0
        %6941 = vmatprep.subr.mxu0 0.0
        %6942 = vmatpush1.msra.mxu0 %v5924
        %6943 = vmatprep.subr.mxu0 0.0
        %6944 = vmatpush1.msra.mxu0 %v5923
        %6945 = vmatprep.subr.mxu0 0.0
        %6946 = vmatpush1.msra.mxu0 %v5922
        %6947 = vmatprep.subr.mxu0 0.0
        %6948 = vmatpush1.msra.mxu0 %v5921
        %6949 = vmatprep.subr.mxu0 0.0
        %6950 = vmatpush1.msra.mxu0 %v5920
        %6951 = vmatprep.subr.mxu0 0.0
        %6952 = vmatpush1.msra.mxu0 %v5919
        %6953 = vmatprep.subr.mxu0 0.0
        %6954 = vmatpush1.msra.mxu0 %v5918
        %6955 = vmatprep.subr.mxu0 0.0
        %6956 = vmatpush1.msra.mxu0 %v5917
        %6957 = vmatprep.subr.mxu0 0.0
        %6958 = vmatpush1.msra.mxu0 %v5916
        %6959 = vmatprep.subr.mxu0 0.0
        %6960 = vmatpush1.msra.mxu0 %v5915
        %6961 = vmatprep.subr.mxu0 0.0
        %6962 = vmatpush1.msra.mxu0 %v5914
        %6963 = vmatprep.subr.mxu0 0.0
        %6964 = vmatpush1.msra.mxu0 %v5913
        %6965 = vmatprep.subr.mxu0 0.0
        %6966 = vmatpush1.msra.mxu0 %v5912
        %6967 = vmatprep.subr.mxu0 0.0
        %6968 = vmatpush1.msra.mxu0 %v5911
        %6969 = vmatprep.subr.mxu0 0.0
        %6970 = vmatpush1.msra.mxu0 %v5910
        %6971 = vmatprep.subr.mxu0 0.0
        %6972 = vmatpush1.msra.mxu0 %v5909
        %6973 = vmatprep.subr.mxu0 0.0
        %6974 = vmatpush2.msra.mxu0 %v5940
        %6975 = vmatprep.subr.mxu0 0.0
        %6976 = vmatpush2.msra.mxu0 %v5939
        %6977 = vmatprep.subr.mxu0 0.0
        %6978 = vmatpush2.msra.mxu0 %v5938
        %6979 = vmatprep.subr.mxu0 0.0
        %6980 = vmatpush2.msra.mxu0 %v5937
        %6981 = vmatprep.subr.mxu0 0.0
        %6982 = vmatpush2.msra.mxu0 %v5936
        %6983 = vmatprep.subr.mxu0 0.0
        %6984 = vmatpush2.msra.mxu0 %v5935
        %6985 = vmatprep.subr.mxu0 0.0
        %6986 = vmatpush2.msra.mxu0 %v5934
        %6987 = vmatprep.subr.mxu0 0.0
        %6988 = vmatpush2.msra.mxu0 %v5933
        %6989 = vmatprep.subr.mxu0 0.0
        %6990 = vmatpush2.msra.mxu0 %v5932
        %6991 = vmatprep.subr.mxu0 0.0
        %6992 = vmatpush2.msra.mxu0 %v5931
        %6993 = vmatprep.subr.mxu0 0.0
        %6994 = vmatpush2.msra.mxu0 %v5930
        %6995 = vmatprep.subr.mxu0 0.0
        %6996 = vmatpush2.msra.mxu0 %v5929
        %6997 = vmatprep.subr.mxu0 0.0
        %6998 = vmatpush2.msra.mxu0 %v5928
        %6999 = vmatprep.subr.mxu0 0.0
        %7000 = vmatpush2.msra.mxu0 %v5927
        %7001 = vmatprep.subr.mxu0 0.0
        %7002 = vmatpush2.msra.mxu0 %v5926
        %7003 = vmatprep.subr.mxu0 0.0
        %7004 = vmatpush2.msra.mxu0 %v5925
        %7005 = vmatprep.mubr.f32.mxu0 %v6121
        %7006 = vmatmul.mubr.f32.gmra.mxu0 %v6117
        %v7007 = vpop.f32.mrf.mxu0
        %v7008 = vadd.f32 %v6938, %v7007
        %v7009 = vpop.f32.mrf.mxu0
        %7010 = vdwg.mxu0
        %7011 = vmatprep.subr.mxu0 0.0
        %7012 = vmatpush1.msra.mxu0 %v5956
        %7013 = vmatprep.subr.mxu0 0.0
        %7014 = vmatpush1.msra.mxu0 %v5955
        %7015 = vmatprep.subr.mxu0 0.0
        %7016 = vmatpush1.msra.mxu0 %v5954
        %7017 = vmatprep.subr.mxu0 0.0
        %7018 = vmatpush1.msra.mxu0 %v5953
        %7019 = vmatprep.subr.mxu0 0.0
        %7020 = vmatpush1.msra.mxu0 %v5952
        %7021 = vmatprep.subr.mxu0 0.0
        %7022 = vmatpush1.msra.mxu0 %v5951
        %7023 = vmatprep.subr.mxu0 0.0
        %7024 = vmatpush1.msra.mxu0 %v5950
        %7025 = vmatprep.subr.mxu0 0.0
        %7026 = vmatpush1.msra.mxu0 %v5949
        %7027 = vmatprep.subr.mxu0 0.0
        %7028 = vmatpush1.msra.mxu0 %v5948
        %7029 = vmatprep.subr.mxu0 0.0
        %7030 = vmatpush1.msra.mxu0 %v5947
        %7031 = vmatprep.subr.mxu0 0.0
        %7032 = vmatpush1.msra.mxu0 %v5946
        %7033 = vmatprep.subr.mxu0 0.0
        %7034 = vmatpush1.msra.mxu0 %v5945
        %7035 = vmatprep.subr.mxu0 0.0
        %7036 = vmatpush1.msra.mxu0 %v5944
        %7037 = vmatprep.subr.mxu0 0.0
        %7038 = vmatpush1.msra.mxu0 %v5943
        %7039 = vmatprep.subr.mxu0 0.0
        %7040 = vmatpush1.msra.mxu0 %v5942
        %7041 = vmatprep.subr.mxu0 0.0
        %7042 = vmatpush1.msra.mxu0 %v5941
        %7043 = vmatprep.subr.mxu0 0.0
        %7044 = vmatpush2.msra.mxu0 %v5972
        %7045 = vmatprep.subr.mxu0 0.0
        %7046 = vmatpush2.msra.mxu0 %v5971
        %7047 = vmatprep.subr.mxu0 0.0
        %7048 = vmatpush2.msra.mxu0 %v5970
        %7049 = vmatprep.subr.mxu0 0.0
        %7050 = vmatpush2.msra.mxu0 %v5969
        %7051 = vmatprep.subr.mxu0 0.0
        %7052 = vmatpush2.msra.mxu0 %v5968
        %7053 = vmatprep.subr.mxu0 0.0
        %7054 = vmatpush2.msra.mxu0 %v5967
        %7055 = vmatprep.subr.mxu0 0.0
        %7056 = vmatpush2.msra.mxu0 %v5966
        %7057 = vmatprep.subr.mxu0 0.0
        %7058 = vmatpush2.msra.mxu0 %v5965
        %7059 = vmatprep.subr.mxu0 0.0
        %7060 = vmatpush2.msra.mxu0 %v5964
        %7061 = vmatprep.subr.mxu0 0.0
        %7062 = vmatpush2.msra.mxu0 %v5963
        %7063 = vmatprep.subr.mxu0 0.0
        %7064 = vmatpush2.msra.mxu0 %v5962
        %7065 = vmatprep.subr.mxu0 0.0
        %7066 = vmatpush2.msra.mxu0 %v5961
        %7067 = vmatprep.subr.mxu0 0.0
        %7068 = vmatpush2.msra.mxu0 %v5960
        %7069 = vmatprep.subr.mxu0 0.0
        %7070 = vmatpush2.msra.mxu0 %v5959
        %7071 = vmatprep.subr.mxu0 0.0
        %7072 = vmatpush2.msra.mxu0 %v5958
        %7073 = vmatprep.subr.mxu0 0.0
        %7074 = vmatpush2.msra.mxu0 %v5957
        %7075 = vmatprep.mubr.f32.mxu0 %v6129
        %7076 = vmatmul.mubr.f32.gmra.mxu0 %v6125
        %v7077 = vpop.f32.mrf.mxu0
        %v7078 = vadd.f32 %v7008, %v7077
        %v7079 = vpop.f32.mrf.mxu0
        %7080 = vdwg.mxu0
        %7081 = vmatprep.subr.mxu0 0.0
        %7082 = vmatpush1.msra.mxu0 %v5988
        %7083 = vmatprep.subr.mxu0 0.0
        %7084 = vmatpush1.msra.mxu0 %v5987
        %7085 = vmatprep.subr.mxu0 0.0
        %7086 = vmatpush1.msra.mxu0 %v5986
        %7087 = vmatprep.subr.mxu0 0.0
        %7088 = vmatpush1.msra.mxu0 %v5985
        %7089 = vmatprep.subr.mxu0 0.0
        %7090 = vmatpush1.msra.mxu0 %v5984
        %7091 = vmatprep.subr.mxu0 0.0
        %7092 = vmatpush1.msra.mxu0 %v5983
        %7093 = vmatprep.subr.mxu0 0.0
        %7094 = vmatpush1.msra.mxu0 %v5982
        %7095 = vmatprep.subr.mxu0 0.0
        %7096 = vmatpush1.msra.mxu0 %v5981
        %7097 = vmatprep.subr.mxu0 0.0
        %7098 = vmatpush1.msra.mxu0 %v5980
        %7099 = vmatprep.subr.mxu0 0.0
        %7100 = vmatpush1.msra.mxu0 %v5979
        %7101 = vmatprep.subr.mxu0 0.0
        %7102 = vmatpush1.msra.mxu0 %v5978
        %7103 = vmatprep.subr.mxu0 0.0
        %7104 = vmatpush1.msra.mxu0 %v5977
        %7105 = vmatprep.subr.mxu0 0.0
        %7106 = vmatpush1.msra.mxu0 %v5976
        %7107 = vmatprep.subr.mxu0 0.0
        %7108 = vmatpush1.msra.mxu0 %v5975
        %7109 = vmatprep.subr.mxu0 0.0
        %7110 = vmatpush1.msra.mxu0 %v5974
        %7111 = vmatprep.subr.mxu0 0.0
        %7112 = vmatpush1.msra.mxu0 %v5973
        %7113 = vmatprep.subr.mxu0 0.0
        %7114 = vmatpush2.msra.mxu0 %v6004
        %7115 = vmatprep.subr.mxu0 0.0
        %7116 = vmatpush2.msra.mxu0 %v6003
        %7117 = vmatprep.subr.mxu0 0.0
        %7118 = vmatpush2.msra.mxu0 %v6002
        %7119 = vmatprep.subr.mxu0 0.0
        %7120 = vmatpush2.msra.mxu0 %v6001
        %7121 = vmatprep.subr.mxu0 0.0
        %7122 = vmatpush2.msra.mxu0 %v6000
        %7123 = vmatprep.subr.mxu0 0.0
        %7124 = vmatpush2.msra.mxu0 %v5999
        %7125 = vmatprep.subr.mxu0 0.0
        %7126 = vmatpush2.msra.mxu0 %v5998
        %7127 = vmatprep.subr.mxu0 0.0
        %7128 = vmatpush2.msra.mxu0 %v5997
        %7129 = vmatprep.subr.mxu0 0.0
        %7130 = vmatpush2.msra.mxu0 %v5996
        %7131 = vmatprep.subr.mxu0 0.0
        %7132 = vmatpush2.msra.mxu0 %v5995
        %7133 = vmatprep.subr.mxu0 0.0
        %7134 = vmatpush2.msra.mxu0 %v5994
        %7135 = vmatprep.subr.mxu0 0.0
        %7136 = vmatpush2.msra.mxu0 %v5993
        %7137 = vmatprep.subr.mxu0 0.0
        %7138 = vmatpush2.msra.mxu0 %v5992
        %7139 = vmatprep.subr.mxu0 0.0
        %7140 = vmatpush2.msra.mxu0 %v5991
        %7141 = vmatprep.subr.mxu0 0.0
        %7142 = vmatpush2.msra.mxu0 %v5990
        %7143 = vmatprep.subr.mxu0 0.0
        %7144 = vmatpush2.msra.mxu0 %v5989
        %7145 = vmatprep.mubr.f32.mxu0 %v6137
        %7146 = vmatmul.mubr.f32.gmra.mxu0 %v6133
        %v7147 = vpop.f32.mrf.mxu0
        %v7148 = vadd.f32 %v7078, %v7147
        %v7149 = vpop.f32.mrf.mxu0
        %7150 = vdwg.mxu0
        %7151 = vmatprep.subr.mxu0 0.0
        %7152 = vmatpush1.msra.mxu0 %v6020
        %7153 = vmatprep.subr.mxu0 0.0
        %7154 = vmatpush1.msra.mxu0 %v6019
        %7155 = vmatprep.subr.mxu0 0.0
        %7156 = vmatpush1.msra.mxu0 %v6018
        %7157 = vmatprep.subr.mxu0 0.0
        %7158 = vmatpush1.msra.mxu0 %v6017
        %7159 = vmatprep.subr.mxu0 0.0
        %7160 = vmatpush1.msra.mxu0 %v6016
        %7161 = vmatprep.subr.mxu0 0.0
        %7162 = vmatpush1.msra.mxu0 %v6015
        %7163 = vmatprep.subr.mxu0 0.0
        %7164 = vmatpush1.msra.mxu0 %v6014
        %7165 = vmatprep.subr.mxu0 0.0
        %7166 = vmatpush1.msra.mxu0 %v6013
        %7167 = vmatprep.subr.mxu0 0.0
        %7168 = vmatpush1.msra.mxu0 %v6012
        %7169 = vmatprep.subr.mxu0 0.0
        %7170 = vmatpush1.msra.mxu0 %v6011
        %7171 = vmatprep.subr.mxu0 0.0
        %7172 = vmatpush1.msra.mxu0 %v6010
        %7173 = vmatprep.subr.mxu0 0.0
        %7174 = vmatpush1.msra.mxu0 %v6009
        %7175 = vmatprep.subr.mxu0 0.0
        %7176 = vmatpush1.msra.mxu0 %v6008
        %7177 = vmatprep.subr.mxu0 0.0
        %7178 = vmatpush1.msra.mxu0 %v6007
        %7179 = vmatprep.subr.mxu0 0.0
        %7180 = vmatpush1.msra.mxu0 %v6006
        %7181 = vmatprep.subr.mxu0 0.0
        %7182 = vmatpush1.msra.mxu0 %v6005
        %7183 = vmatprep.subr.mxu0 0.0
        %7184 = vmatpush2.msra.mxu0 0.0
        %7185 = vmatprep.subr.mxu0 0.0
        %7186 = vmatpush2.msra.mxu0 0.0
        %7187 = vmatprep.subr.mxu0 0.0
        %7188 = vmatpush2.msra.mxu0 0.0
        %7189 = vmatprep.subr.mxu0 0.0
        %7190 = vmatpush2.msra.mxu0 0.0
        %7191 = vmatprep.subr.mxu0 0.0
        %7192 = vmatpush2.msra.mxu0 0.0
        %7193 = vmatprep.subr.mxu0 0.0
        %7194 = vmatpush2.msra.mxu0 0.0
        %7195 = vmatprep.subr.mxu0 0.0
        %7196 = vmatpush2.msra.mxu0 0.0
        %7197 = vmatprep.subr.mxu0 0.0
        %7198 = vmatpush2.msra.mxu0 0.0
        %7199 = vmatprep.subr.mxu0 0.0
        %7200 = vmatpush2.msra.mxu0 0.0
        %7201 = vmatprep.subr.mxu0 0.0
        %7202 = vmatpush2.msra.mxu0 0.0
        %7203 = vmatprep.subr.mxu0 0.0
        %7204 = vmatpush2.msra.mxu0 0.0
        %7205 = vmatprep.subr.mxu0 0.0
        %7206 = vmatpush2.msra.mxu0 0.0
        %7207 = vmatprep.subr.mxu0 0.0
        %7208 = vmatpush2.msra.mxu0 0.0
        %7209 = vmatprep.subr.mxu0 0.0
        %7210 = vmatpush2.msra.mxu0 0.0
        %7211 = vmatprep.subr.mxu0 0.0
        %7212 = vmatpush2.msra.mxu0 0.0
        %7213 = vmatprep.subr.mxu0 0.0
        %7214 = vmatpush2.msra.mxu0 0.0
        %7215 = vmatprep.mubr.f32.mxu0 0.0
        %7216 = vmatmul.mubr.f32.gmra.mxu0 %v6141
        %v7217 = vpop.f32.mrf.mxu0
        %v7218 = vadd.f32 %v7148, %v7217
        %v7219 = vpop.f32.mrf.mxu0
        %7220 = vdwg.mxu0
        %v7221 = vlaneseq
        %v7222 = vshrl.u32 %v7221, 7
        %v7223 = vsub.s32 0, %v7222
        %v7224 = vrot.slane %v7218, %v7223
        %7225 = vst [vmem:[%s250] sm:$0xff] %v7224
      $region48: #{regnet_forward.1} parent=39 // pred_fallthru
        _
      %p7226 = scmp.lt.s32.totalorder %s20, 1
      %s7227 = scalar_select %p7226, %s20, 1
      %s7228 = smul.addr %s7227, 8
      %s7229 = scalar_lea.vmem %s5, %s7228
      // Predicated region
      $region49: #{regnet_forward.1} parent=39 // pred_check
        %p7230 = pneg %p158
      $region50: #{regnet_forward.1} parent=39 // pred_check_branch
        %7232 = sbr.rel (%p7230) target = $region52
      $region51: #{regnet_forward.1} parent=39 // pred_region
        _
      $region52: #{regnet_forward.1} parent=39 // pred_fallthru
        _
    $region40: #{regnet_forward.1} parent=5 // pred_fallthru
      _
    %p7233 = scmp.le.s32.totalorder 2, %s11
    // Predicated region
    $region53: #{regnet_forward.1} parent=5 // pred_check
      %p7234 = pneg %p7233
    $region54: #{regnet_forward.1} parent=5 // pred_check_branch
      %7236 = sbr.rel (%p7234) target = $region56
    $region55: #{regnet_forward.1} parent=5 // pred_region
      %s7237 = ssub.s32 %s11, 2
      // Predicated region
      $region57: #{regnet_forward.1} parent=55 // pred_check
        %p7238 = pneg %p164
      $region58: #{regnet_forward.1} parent=55 // pred_check_branch
        %7240 = sbr.rel (%p7238) target = $region60
      $region59: #{regnet_forward.1} parent=55 // pred_region
        %p7241 = scmp.lt.s32.totalorder %s22, 1
        %s7242 = scalar_select %p7241, %s22, 1
        %s7243 = smul.addr %s7242, 8
        %s7244 = scalar_lea.vmem %s5, %s7243
      $region60: #{regnet_forward.1} parent=55 // pred_fallthru
        _
    $region56: #{regnet_forward.1} parent=5 // pred_fallthru
      _
  $region6: #{regnet_forward.1} parent=0 // loop_footer
    %s15 = sadd.s32 1, %s11
  $region7: #{regnet_forward.1} parent=0 // loop_footer_branch
    %10 = sbr.rel target = $region3
  $region8: #{regnet_forward.1} parent=0 // loop_exit
    _

</llo_original>
